<compile_context>
chip_gen: v7x
topology: tpu7x:2x2x1
jax: 0.10.0
libtpu: 0.0.40
codegen_flags: <defaults>
</compile_context>

<pallas_src>
import jax
import jax.numpy as jnp
from jax.experimental import pallas as pl
from jax.experimental.pallas import tpu as pltpu

NC = 3
NDF = 8
N_CLASS = 10
IMG = 64
LRELU_SLOPE = 0.2
BN_EPS = 1e-5
# Fits under every generation's physical VMEM (64 MiB on v7x, 128 MiB on v5e/v6e)
# while lifting v5e's 16 MiB scoped default.
VMEM_LIMIT = 64 * 1024 * 1024


def _lrelu(x):
    return jnp.where(x >= 0, x, LRELU_SLOPE * x)


# ---------------------------------------------------------------------------
# Pallas kernels
# ---------------------------------------------------------------------------
def _conv1_kernel(p_ref, w_ref, o_ref):
    # (Cout, K) @ (K, tm) -> (Cout, tm) on the MXU, fused LeakyReLU.
    y = jnp.dot(w_ref[...], p_ref[...], preferred_element_type=jnp.float32)
    o_ref[...] = _lrelu(y)


def conv1_lrelu(patches_t, w_ck):
    """First conv (no BN): lane-dense GEMM.

    Small M: one gridless call (no per-step overhead on single-TC chips).
    Large M: "parallel" M-split so the v7x megacore gets both TensorCores and
    HBM streaming is double-buffered.
    """
    K, M = patches_t.shape
    Cout = w_ck.shape[0]
    tm = M
    if M > 4096:
        for cand in (4096, 2048, 1024, 512, 256, 128):
            if M % cand == 0:
                tm = cand
                break
    if tm == M:
        return pl.pallas_call(
            _conv1_kernel,
            out_shape=jax.ShapeDtypeStruct((Cout, M), jnp.float32),
            compiler_params=pltpu.CompilerParams(vmem_limit_bytes=VMEM_LIMIT),
        )(patches_t, w_ck)
    return pl.pallas_call(
        _conv1_kernel,
        out_shape=jax.ShapeDtypeStruct((Cout, M), jnp.float32),
        grid=(M // tm,),
        in_specs=[
            pl.BlockSpec((K, tm), lambda i: (0, i)),
            pl.BlockSpec((Cout, K), lambda i: (0, 0)),
        ],
        out_specs=pl.BlockSpec((Cout, tm), lambda i: (0, i)),
        compiler_params=pltpu.CompilerParams(
            dimension_semantics=("parallel",), vmem_limit_bytes=VMEM_LIMIT),
    )(patches_t, w_ck)


def _conv_bn_lrelu_kernel(p_ref, w_ref, g_ref, b_ref, o_ref):
    # Fused: GEMM -> BatchNorm2d (batch stats over N*OH*OW) -> LeakyReLU.
    y = jnp.dot(w_ref[...], p_ref[...], preferred_element_type=jnp.float32)
    mean = jnp.mean(y, axis=1, keepdims=True)                  # per-channel
    var = jnp.mean(jnp.square(y - mean), axis=1, keepdims=True)
    y = (y - mean) * jax.lax.rsqrt(var + BN_EPS) * g_ref[...] + b_ref[...]
    o_ref[...] = _lrelu(y)


def conv_bn_lrelu(patches_t, w_ck, gamma, beta):
    """conv2..conv4: whole layer (GEMM + BN + LeakyReLU) in one gridless kernel."""
    K, M = patches_t.shape
    Cout = w_ck.shape[0]
    return pl.pallas_call(
        _conv_bn_lrelu_kernel,
        out_shape=jax.ShapeDtypeStruct((Cout, M), jnp.float32),
        compiler_params=pltpu.CompilerParams(vmem_limit_bytes=VMEM_LIMIT),
    )(patches_t, w_ck, gamma, beta)


def _conv5_head_kernel(p_ref, w5_ref, g_ref, b_ref, emb_ref,
                       w1a_ref, w1b_ref, b1_ref, w2_ref, b2_ref, o_ref):
    """conv5 + BN + LReLU + Flatten + (concat, Linear, LReLU, Linear, Sigmoid).

    Everything runs channel-major / transposed so no in-kernel transposes or
    reshapes are needed:
      * p_ref is (4, K, N): conv5 patches, split by the 2x2 output position s.
      * y_s = W5 @ p[s] is (128, N); BN batch stats accumulate over the 4 s's.
      * PyTorch flatten + first Linear == sum_s W1b[s] @ lrelu(bn(y_s)), with
        W1b pre-regrouped to (4, 128, 128) at init (rows f = c*4 + s).
      * the concat with the label embedding is fused away:
        z^T = W1a^T @ emb^T + (feature term) + b1.
    """
    n = emb_ref.shape[1]
    ys = [jnp.dot(w5_ref[...], p_ref[s], preferred_element_type=jnp.float32)
          for s in range(4)]                                   # 4 x (128, N)
    cnt = 4.0 * n                                              # N * OH * OW
    mean = sum(jnp.sum(y, axis=1, keepdims=True) for y in ys) / cnt
    var = sum(jnp.sum(jnp.square(y - mean), axis=1, keepdims=True)
              for y in ys) / cnt                               # biased (train mode)
    scale = jax.lax.rsqrt(var + BN_EPS) * g_ref[...]
    shift = b_ref[...]

    # z^T = W1a^T @ emb^T + sum_s W1b[s] @ act_s  -> (128, N)
    z = jnp.dot(w1a_ref[...], emb_ref[...], preferred_element_type=jnp.float32)
    for s in range(4):
        act = _lrelu((ys[s] - mean) * scale + shift)           # conv5 activation
        z = z + jnp.dot(w1b_ref[s], act, preferred_element_type=jnp.float32)
    z = _lrelu(z + b1_ref[...])
    y = jnp.dot(w2_ref[...], z, preferred_element_type=jnp.float32) + b2_ref[...]
    o_ref[...] = jax.nn.sigmoid(y)                             # (1, N)


def conv5_head(p5s, w5, g5, b5, emb_t, w1a_t, w1b_rt, b1, w2_t, b2):
    N = p5s.shape[2]
    return pl.pallas_call(
        _conv5_head_kernel,
        out_shape=jax.ShapeDtypeStruct((1, N), jnp.float32),
        compiler_params=pltpu.CompilerParams(vmem_limit_bytes=VMEM_LIMIT),
    )(p5s, w5, g5, b5, emb_t, w1a_t, w1b_rt, b1, w2_t, b2)


# ---------------------------------------------------------------------------
# Plain-JAX glue (layout plumbing only; no transposes inside the conv chain)
# ---------------------------------------------------------------------------
def im2col_cnhw(x_cnhw, k=4, stride=2, pad=1):
    """(C, N, H, W) -> patches^T (K, M); K order (kh,kw,cin), M order (n,oh,ow)."""
    C, N, H, W = x_cnhw.shape
    xp = jnp.pad(x_cnhw, ((0, 0), (0, 0), (pad, pad), (pad, pad)))
    OH = (H + 2 * pad - k) // stride + 1
    OW = (W + 2 * pad - k) // stride + 1
    cols = [xp[:, :, kh:kh + stride * OH:stride, kw:kw + stride * OW:stride]
            for kh in range(k) for kw in range(k)]
    p = jnp.stack(cols, axis=0)                 # (k*k, C, N, OH, OW)
    return p.reshape(k * k * C, N * OH * OW), (N, OH, OW)


def im2col_swn(x_cnhw, k=4, stride=2, pad=1):
    """(C, N, H, W) -> patches (OH*OW, K, N) for the final (2x2-spatial) conv."""
    C, N, H, W = x_cnhw.shape
    xp = jnp.pad(x_cnhw, ((0, 0), (0, 0), (pad, pad), (pad, pad)))
    OH = (H + 2 * pad - k) // stride + 1
    OW = (W + 2 * pad - k) // stride + 1
    cols = [xp[:, :, kh:kh + stride * OH:stride, kw:kw + stride * OW:stride]
            for kh in range(k) for kw in range(k)]
    p = jnp.stack(cols, axis=0)                 # (k*k, C, N, OH, OW)
    p = p.transpose(3, 4, 0, 1, 2)              # (OH, OW, k*k, C, N)
    return p.reshape(OH * OW, k * k * C, N)


def init_params(key):
    ks = jax.random.split(key, 12)

    def nrm(k, shape, scale=0.02):
        return scale * jax.random.normal(k, shape, jnp.float32)

    cin = [NC, NDF, NDF * 2, NDF * 4, NDF * 8]
    cout = [NDF, NDF * 2, NDF * 4, NDF * 8, NDF * 16]
    params = {}
    for i in range(5):
        # (Cout, kh*kw*Cin) == PyTorch (Cout,Cin,4,4).permute(0,2,3,1).reshape(Cout,-1)
        params[f"w{i + 1}"] = nrm(ks[i], (cout[i], 16 * cin[i]))
    for i in range(2, 6):
        params[f"g{i}"] = 1.0 + nrm(ks[3 + i], (cout[i - 1], 1))
        params[f"b{i}"] = jnp.zeros((cout[i - 1], 1), jnp.float32)
    emb_dim = NDF * 16 * 4                      # = 128 * 2 * 2 = 512
    params["emb"] = nrm(ks[9], (N_CLASS, emb_dim), 1.0)

    # Head: PyTorch Linear(1024, 128) weight^T, split for the fused concat
    # (embedding first, features second, matching torch.cat((emb, disc), 1))
    # and regrouped so the NCHW flatten is folded into the parameters.
    lw1 = nrm(ks[10], (2 * emb_dim, NDF * 16))          # (1024, 128) = W1^T
    params["lw1a_t"] = lw1[:emb_dim].T                  # (128, 512), hits emb^T
    # rows of lw1[512:] are indexed by f = c*4 + s (PyTorch NCHW flatten order)
    params["lw1b_rt"] = (lw1[emb_dim:]
                         .reshape(NDF * 16, 4, NDF * 16)   # (c, s, j)
                         .transpose(1, 2, 0))              # (s, j, c) = (4,128,128)
    params["lb1"] = jnp.zeros((NDF * 16, 1), jnp.float32)
    params["lw2_t"] = nrm(ks[11], (NDF * 16, 1)).T      # (1, 128)
    params["lb2"] = jnp.zeros((1, 1), jnp.float32)
    return params


def discriminator_forward(params, x_nchw, labels):
    # Channel-major (C, N, H, W) activations through the whole conv stack.
    h = x_nchw.astype(jnp.float32).transpose(1, 0, 2, 3)       # (3, N, 64, 64)

    # conv1 + LeakyReLU (no BN): lane-dense (8, N*1024), single tile at small M
    p, (N, OH, OW) = im2col_cnhw(h)
    h = conv1_lrelu(p, params["w1"]).reshape(-1, N, OH, OW)

    # conv2..conv4: one fused GEMM + BN(batch stats) + LeakyReLU kernel each
    for i in range(2, 5):
        p, (N, OH, OW) = im2col_cnhw(h)
        h = conv_bn_lrelu(p, params[f"w{i}"], params[f"g{i}"],
                          params[f"b{i}"]).reshape(-1, N, OH, OW)

    # conv5 + BN + LeakyReLU + Flatten + classifier head: one pallas_call.
    p5s = im2col_swn(h)                                        # (4, 1024, N)
    assert p5s.shape[0] == 4, "architecture requires 64x64 inputs"
    emb_t = params["emb"][labels].T                            # (512, N) gather (XLA)
    out_t = conv5_head(p5s, params["w5"], params["g5"], params["b5"], emb_t,
                       params["lw1a_t"], params["lw1b_rt"], params["lb1"],
                       params["lw2_t"], params["lb2"])         # (1, N)
    # torch .squeeze() is a no-op for a 2-D (N>1, F) tensor; final (N, 1, 1, 1).
    return out_t.T[:, :, None, None]


if __name__ == "__main__":
    key = jax.random.PRNGKey(0)
    kp, kx, kl = jax.random.split(key, 3)
    params = init_params(kp)
    x = jax.random.normal(kx, (2, NC, IMG, IMG), jnp.float32)
    labels = jax.random.randint(kl, (2,), 0, N_CLASS)

    out = jax.jit(discriminator_forward)(params, x, labels)
    out = jax.block_until_ready(out)
    assert out.shape == (2, 1, 1, 1), out.shape
    assert bool(jnp.all(jnp.isfinite(out)))
    print("KERNEL_OK")
</pallas_src>

<mosaic_0001>
module attributes {stable_mosaic.version = 11 : i64} {
  func.func @_conv1_kernel(%arg0: memref<48x2048xf32, #tpu.memory_space<vmem>>, %arg1: memref<8x48xf32, #tpu.memory_space<vmem>>, %arg2: memref<8x2048xf32, #tpu.memory_space<vmem>>) attributes {dimension_semantics = [], scalar_prefetch = 0 : i64, scratch_operands = 0 : i64, tpu.core_type = #tpu.core_type<tc>} {
    %c0 = arith.constant 0 : index
    %c0_0 = arith.constant 0 : index
    %0 = vector.load %arg1[%c0, %c0_0] : memref<8x48xf32, #tpu.memory_space<vmem>>, vector<8x48xf32>
    %c0_1 = arith.constant 0 : index
    %c0_2 = arith.constant 0 : index
    %1 = vector.load %arg0[%c0_1, %c0_2] : memref<48x2048xf32, #tpu.memory_space<vmem>>, vector<48x2048xf32>
    %cst = arith.constant dense<0.000000e+00> : vector<8x2048xf32>
    %2 = tpu.matmul %0, %1, %cst {dimension_numbers = #tpu.dot_dimension_numbers<[1], [0], [0], [1], [0, 0, 1, 1], [], []>} : vector<8x48xf32>, vector<48x2048xf32>, vector<8x2048xf32> -> vector<8x2048xf32>
    %cst_3 = arith.constant 0.000000e+00 : f32
    %3 = vector.broadcast %cst_3 : f32 to vector<8x2048xf32>
    %4 = arith.cmpf oge, %2, %3 : vector<8x2048xf32>
    %cst_4 = arith.constant 2.000000e-01 : f32
    %5 = vector.broadcast %cst_4 : f32 to vector<8x2048xf32>
    %6 = arith.mulf %5, %2 : vector<8x2048xf32>
    %7 = arith.select %4, %2, %6 : vector<8x2048xi1>, vector<8x2048xf32>
    %c0_5 = arith.constant 0 : index
    %c0_6 = arith.constant 0 : index
    %8 = vector.load %arg2[%c0_5, %c0_6] : memref<8x2048xf32, #tpu.memory_space<vmem>>, vector<8x2048xf32>
    tpu.vector_store %arg2[%c0_5, %c0_6], %7 {strides = array<i32>} : memref<8x2048xf32, #tpu.memory_space<vmem>>, vector<8x2048xf32>,
    return
  }
}

module attributes {stable_mosaic.version = 11 : i64} {
  func.func @_conv_bn_lrelu_kernel(%arg0: memref<128x512xf32, #tpu.memory_space<vmem>>, %arg1: memref<16x128xf32, #tpu.memory_space<vmem>>, %arg2: memref<16x1xf32, #tpu.memory_space<vmem>>, %arg3: memref<16x1xf32, #tpu.memory_space<vmem>>, %arg4: memref<16x512xf32, #tpu.memory_space<vmem>>) attributes {dimension_semantics = [], scalar_prefetch = 0 : i64, scratch_operands = 0 : i64, tpu.core_type = #tpu.core_type<tc>} {
    %c0 = arith.constant 0 : index
    %c0_0 = arith.constant 0 : index
    %0 = vector.load %arg1[%c0, %c0_0] : memref<16x128xf32, #tpu.memory_space<vmem>>, vector<16x128xf32>
    %c0_1 = arith.constant 0 : index
    %c0_2 = arith.constant 0 : index
    %1 = vector.load %arg0[%c0_1, %c0_2] : memref<128x512xf32, #tpu.memory_space<vmem>>, vector<128x512xf32>
    %cst = arith.constant dense<0.000000e+00> : vector<16x512xf32>
    %2 = tpu.matmul %0, %1, %cst {dimension_numbers = #tpu.dot_dimension_numbers<[1], [0], [0], [1], [0, 0, 1, 1], [], []>} : vector<16x128xf32>, vector<128x512xf32>, vector<16x512xf32> -> vector<16x512xf32>
    %cst_3 = arith.constant dense<0.000000e+00> : vector<16xf32>
    %3 = vector.multi_reduction <add>, %2, %cst_3 [1] : vector<16x512xf32> to vector<16xf32>
    %4 = vector.shape_cast %3 : vector<16xf32> to vector<16x1xf32>
    %cst_4 = arith.constant 5.120000e+02 : f32
    %5 = vector.broadcast %cst_4 : f32 to vector<16x1xf32>
    %6 = arith.divf %4, %5 : vector<16x1xf32>
    %7 = vector.broadcast %6 : vector<16x1xf32> to vector<16x512xf32>
    %8 = arith.subf %2, %7 : vector<16x512xf32>
    %9 = arith.mulf %8, %8 : vector<16x512xf32>
    %cst_5 = arith.constant dense<0.000000e+00> : vector<16xf32>
    %10 = vector.multi_reduction <add>, %9, %cst_5 [1] : vector<16x512xf32> to vector<16xf32>
    %11 = vector.shape_cast %10 : vector<16xf32> to vector<16x1xf32>
    %cst_6 = arith.constant 5.120000e+02 : f32
    %12 = vector.broadcast %cst_6 : f32 to vector<16x1xf32>
    %13 = arith.divf %11, %12 : vector<16x1xf32>
    %14 = vector.broadcast %6 : vector<16x1xf32> to vector<16x512xf32>
    %15 = arith.subf %2, %14 : vector<16x512xf32>
    %cst_7 = arith.constant 9.99999974E-6 : f32
    %16 = vector.broadcast %cst_7 : f32 to vector<16x1xf32>
    %17 = arith.addf %13, %16 : vector<16x1xf32>
    %18 = math.rsqrt %17 : vector<16x1xf32>
    %19 = vector.broadcast %18 : vector<16x1xf32> to vector<16x512xf32>
    %20 = arith.mulf %15, %19 : vector<16x512xf32>
    %c0_8 = arith.constant 0 : index
    %c0_9 = arith.constant 0 : index
    %21 = vector.load %arg2[%c0_8, %c0_9] : memref<16x1xf32, #tpu.memory_space<vmem>>, vector<16x1xf32>
    %22 = vector.broadcast %21 : vector<16x1xf32> to vector<16x512xf32>
    %23 = arith.mulf %20, %22 : vector<16x512xf32>
    %c0_10 = arith.constant 0 : index
    %c0_11 = arith.constant 0 : index
    %24 = vector.load %arg3[%c0_10, %c0_11] : memref<16x1xf32, #tpu.memory_space<vmem>>, vector<16x1xf32>
    %25 = vector.broadcast %24 : vector<16x1xf32> to vector<16x512xf32>
    %26 = arith.addf %23, %25 : vector<16x512xf32>
    %cst_12 = arith.constant 0.000000e+00 : f32
    %27 = vector.broadcast %cst_12 : f32 to vector<16x512xf32>
    %28 = arith.cmpf oge, %26, %27 : vector<16x512xf32>
    %cst_13 = arith.constant 2.000000e-01 : f32
    %29 = vector.broadcast %cst_13 : f32 to vector<16x512xf32>
    %30 = arith.mulf %29, %26 : vector<16x512xf32>
    %31 = arith.select %28, %26, %30 : vector<16x512xi1>, vector<16x512xf32>
    %c0_14 = arith.constant 0 : index
    %c0_15 = arith.constant 0 : index
    %32 = vector.load %arg4[%c0_14, %c0_15] : memref<16x512xf32, #tpu.memory_space<vmem>>, vector<16x512xf32>
    tpu.vector_store %arg4[%c0_14, %c0_15], %31 {strides = array<i32>} : memref<16x512xf32, #tpu.memory_space<vmem>>, vector<16x512xf32>,
    return
  }
}

module attributes {stable_mosaic.version = 11 : i64} {
  func.func @_conv_bn_lrelu_kernel(%arg0: memref<256x128xf32, #tpu.memory_space<vmem>>, %arg1: memref<32x256xf32, #tpu.memory_space<vmem>>, %arg2: memref<32x1xf32, #tpu.memory_space<vmem>>, %arg3: memref<32x1xf32, #tpu.memory_space<vmem>>, %arg4: memref<32x128xf32, #tpu.memory_space<vmem>>) attributes {dimension_semantics = [], scalar_prefetch = 0 : i64, scratch_operands = 0 : i64, tpu.core_type = #tpu.core_type<tc>} {
    %c0 = arith.constant 0 : index
    %c0_0 = arith.constant 0 : index
    %0 = vector.load %arg1[%c0, %c0_0] : memref<32x256xf32, #tpu.memory_space<vmem>>, vector<32x256xf32>
    %c0_1 = arith.constant 0 : index
    %c0_2 = arith.constant 0 : index
    %1 = vector.load %arg0[%c0_1, %c0_2] : memref<256x128xf32, #tpu.memory_space<vmem>>, vector<256x128xf32>
    %cst = arith.constant dense<0.000000e+00> : vector<32x128xf32>
    %2 = tpu.matmul %0, %1, %cst {dimension_numbers = #tpu.dot_dimension_numbers<[1], [0], [0], [1], [0, 0, 1, 1], [], []>} : vector<32x256xf32>, vector<256x128xf32>, vector<32x128xf32> -> vector<32x128xf32>
    %cst_3 = arith.constant dense<0.000000e+00> : vector<32xf32>
    %3 = vector.multi_reduction <add>, %2, %cst_3 [1] : vector<32x128xf32> to vector<32xf32>
    %4 = vector.shape_cast %3 : vector<32xf32> to vector<32x1xf32>
    %cst_4 = arith.constant 1.280000e+02 : f32
    %5 = vector.broadcast %cst_4 : f32 to vector<32x1xf32>
    %6 = arith.divf %4, %5 : vector<32x1xf32>
    %7 = vector.broadcast %6 : vector<32x1xf32> to vector<32x128xf32>
    %8 = arith.subf %2, %7 : vector<32x128xf32>
    %9 = arith.mulf %8, %8 : vector<32x128xf32>
    %cst_5 = arith.constant dense<0.000000e+00> : vector<32xf32>
    %10 = vector.multi_reduction <add>, %9, %cst_5 [1] : vector<32x128xf32> to vector<32xf32>
    %11 = vector.shape_cast %10 : vector<32xf32> to vector<32x1xf32>
    %cst_6 = arith.constant 1.280000e+02 : f32
    %12 = vector.broadcast %cst_6 : f32 to vector<32x1xf32>
    %13 = arith.divf %11, %12 : vector<32x1xf32>
    %14 = vector.broadcast %6 : vector<32x1xf32> to vector<32x128xf32>
    %15 = arith.subf %2, %14 : vector<32x128xf32>
    %cst_7 = arith.constant 9.99999974E-6 : f32
    %16 = vector.broadcast %cst_7 : f32 to vector<32x1xf32>
    %17 = arith.addf %13, %16 : vector<32x1xf32>
    %18 = math.rsqrt %17 : vector<32x1xf32>
    %19 = vector.broadcast %18 : vector<32x1xf32> to vector<32x128xf32>
    %20 = arith.mulf %15, %19 : vector<32x128xf32>
    %c0_8 = arith.constant 0 : index
    %c0_9 = arith.constant 0 : index
    %21 = vector.load %arg2[%c0_8, %c0_9] : memref<32x1xf32, #tpu.memory_space<vmem>>, vector<32x1xf32>
    %22 = vector.broadcast %21 : vector<32x1xf32> to vector<32x128xf32>
    %23 = arith.mulf %20, %22 : vector<32x128xf32>
    %c0_10 = arith.constant 0 : index
    %c0_11 = arith.constant 0 : index
    %24 = vector.load %arg3[%c0_10, %c0_11] : memref<32x1xf32, #tpu.memory_space<vmem>>, vector<32x1xf32>
    %25 = vector.broadcast %24 : vector<32x1xf32> to vector<32x128xf32>
    %26 = arith.addf %23, %25 : vector<32x128xf32>
    %cst_12 = arith.constant 0.000000e+00 : f32
    %27 = vector.broadcast %cst_12 : f32 to vector<32x128xf32>
    %28 = arith.cmpf oge, %26, %27 : vector<32x128xf32>
    %cst_13 = arith.constant 2.000000e-01 : f32
    %29 = vector.broadcast %cst_13 : f32 to vector<32x128xf32>
    %30 = arith.mulf %29, %26 : vector<32x128xf32>
    %31 = arith.select %28, %26, %30 : vector<32x128xi1>, vector<32x128xf32>
    %c0_14 = arith.constant 0 : index
    %c0_15 = arith.constant 0 : index
    %32 = vector.load %arg4[%c0_14, %c0_15] : memref<32x128xf32, #tpu.memory_space<vmem>>, vector<32x128xf32>
    tpu.vector_store %arg4[%c0_14, %c0_15], %31 {strides = array<i32>} : memref<32x128xf32, #tpu.memory_space<vmem>>, vector<32x128xf32>,
    return
  }
}

module attributes {stable_mosaic.version = 11 : i64} {
  func.func @_conv_bn_lrelu_kernel(%arg0: memref<512x32xf32, #tpu.memory_space<vmem>>, %arg1: memref<64x512xf32, #tpu.memory_space<vmem>>, %arg2: memref<64x1xf32, #tpu.memory_space<vmem>>, %arg3: memref<64x1xf32, #tpu.memory_space<vmem>>, %arg4: memref<64x32xf32, #tpu.memory_space<vmem>>) attributes {dimension_semantics = [], scalar_prefetch = 0 : i64, scratch_operands = 0 : i64, tpu.core_type = #tpu.core_type<tc>} {
    %c0 = arith.constant 0 : index
    %c0_0 = arith.constant 0 : index
    %0 = vector.load %arg1[%c0, %c0_0] : memref<64x512xf32, #tpu.memory_space<vmem>>, vector<64x512xf32>
    %c0_1 = arith.constant 0 : index
    %c0_2 = arith.constant 0 : index
    %1 = vector.load %arg0[%c0_1, %c0_2] : memref<512x32xf32, #tpu.memory_space<vmem>>, vector<512x32xf32>
    %cst = arith.constant dense<0.000000e+00> : vector<64x32xf32>
    %2 = tpu.matmul %0, %1, %cst {dimension_numbers = #tpu.dot_dimension_numbers<[1], [0], [0], [1], [0, 0, 1, 1], [], []>} : vector<64x512xf32>, vector<512x32xf32>, vector<64x32xf32> -> vector<64x32xf32>
    %cst_3 = arith.constant dense<0.000000e+00> : vector<64xf32>
    %3 = vector.multi_reduction <add>, %2, %cst_3 [1] : vector<64x32xf32> to vector<64xf32>
    %4 = vector.shape_cast %3 : vector<64xf32> to vector<64x1xf32>
    %cst_4 = arith.constant 3.200000e+01 : f32
    %5 = vector.broadcast %cst_4 : f32 to vector<64x1xf32>
    %6 = arith.divf %4, %5 : vector<64x1xf32>
    %7 = vector.broadcast %6 : vector<64x1xf32> to vector<64x32xf32>
    %8 = arith.subf %2, %7 : vector<64x32xf32>
    %9 = arith.mulf %8, %8 : vector<64x32xf32>
    %cst_5 = arith.constant dense<0.000000e+00> : vector<64xf32>
    %10 = vector.multi_reduction <add>, %9, %cst_5 [1] : vector<64x32xf32> to vector<64xf32>
    %11 = vector.shape_cast %10 : vector<64xf32> to vector<64x1xf32>
    %cst_6 = arith.constant 3.200000e+01 : f32
    %12 = vector.broadcast %cst_6 : f32 to vector<64x1xf32>
    %13 = arith.divf %11, %12 : vector<64x1xf32>
    %14 = vector.broadcast %6 : vector<64x1xf32> to vector<64x32xf32>
    %15 = arith.subf %2, %14 : vector<64x32xf32>
    %cst_7 = arith.constant 9.99999974E-6 : f32
    %16 = vector.broadcast %cst_7 : f32 to vector<64x1xf32>
    %17 = arith.addf %13, %16 : vector<64x1xf32>
    %18 = math.rsqrt %17 : vector<64x1xf32>
    %19 = vector.broadcast %18 : vector<64x1xf32> to vector<64x32xf32>
    %20 = arith.mulf %15, %19 : vector<64x32xf32>
    %c0_8 = arith.constant 0 : index
    %c0_9 = arith.constant 0 : index
    %21 = vector.load %arg2[%c0_8, %c0_9] : memref<64x1xf32, #tpu.memory_space<vmem>>, vector<64x1xf32>
    %22 = vector.broadcast %21 : vector<64x1xf32> to vector<64x32xf32>
    %23 = arith.mulf %20, %22 : vector<64x32xf32>
    %c0_10 = arith.constant 0 : index
    %c0_11 = arith.constant 0 : index
    %24 = vector.load %arg3[%c0_10, %c0_11] : memref<64x1xf32, #tpu.memory_space<vmem>>, vector<64x1xf32>
    %25 = vector.broadcast %24 : vector<64x1xf32> to vector<64x32xf32>
    %26 = arith.addf %23, %25 : vector<64x32xf32>
    %cst_12 = arith.constant 0.000000e+00 : f32
    %27 = vector.broadcast %cst_12 : f32 to vector<64x32xf32>
    %28 = arith.cmpf oge, %26, %27 : vector<64x32xf32>
    %cst_13 = arith.constant 2.000000e-01 : f32
    %29 = vector.broadcast %cst_13 : f32 to vector<64x32xf32>
    %30 = arith.mulf %29, %26 : vector<64x32xf32>
    %31 = arith.select %28, %26, %30 : vector<64x32xi1>, vector<64x32xf32>
    %c0_14 = arith.constant 0 : index
    %c0_15 = arith.constant 0 : index
    %32 = vector.load %arg4[%c0_14, %c0_15] : memref<64x32xf32, #tpu.memory_space<vmem>>, vector<64x32xf32>
    tpu.vector_store %arg4[%c0_14, %c0_15], %31 {strides = array<i32>} : memref<64x32xf32, #tpu.memory_space<vmem>>, vector<64x32xf32>,
    return
  }
}

module attributes {stable_mosaic.version = 11 : i64} {
  func.func @_conv5_head_kernel(%arg0: memref<4x1024x2xf32, #tpu.memory_space<vmem>>, %arg1: memref<128x1024xf32, #tpu.memory_space<vmem>>, %arg2: memref<128x1xf32, #tpu.memory_space<vmem>>, %arg3: memref<128x1xf32, #tpu.memory_space<vmem>>, %arg4: memref<512x2xf32, #tpu.memory_space<vmem>>, %arg5: memref<128x512xf32, #tpu.memory_space<vmem>>, %arg6: memref<4x128x128xf32, #tpu.memory_space<vmem>>, %arg7: memref<128x1xf32, #tpu.memory_space<vmem>>, %arg8: memref<1x128xf32, #tpu.memory_space<vmem>>, %arg9: memref<1x1xf32, #tpu.memory_space<vmem>>, %arg10: memref<1x2xf32, #tpu.memory_space<vmem>>) attributes {dimension_semantics = [], scalar_prefetch = 0 : i64, scratch_operands = 0 : i64, tpu.core_type = #tpu.core_type<tc>} {
    %c0 = arith.constant 0 : index
    %c0_0 = arith.constant 0 : index
    %0 = vector.load %arg1[%c0, %c0_0] : memref<128x1024xf32, #tpu.memory_space<vmem>>, vector<128x1024xf32>
    %c0_1 = arith.constant 0 : index
    %c0_2 = arith.constant 0 : index
    %c0_3 = arith.constant 0 : index
    %1 = vector.load %arg0[%c0_1, %c0_2, %c0_3] : memref<4x1024x2xf32, #tpu.memory_space<vmem>>, vector<1x1024x2xf32>
    %2 = vector.shape_cast %1 : vector<1x1024x2xf32> to vector<1024x2xf32>
    %cst = arith.constant dense<0.000000e+00> : vector<128x2xf32>
    %3 = tpu.matmul %0, %2, %cst {dimension_numbers = #tpu.dot_dimension_numbers<[1], [0], [0], [1], [0, 0, 1, 1], [], []>} : vector<128x1024xf32>, vector<1024x2xf32>, vector<128x2xf32> -> vector<128x2xf32>
    %c0_4 = arith.constant 0 : index
    %c0_5 = arith.constant 0 : index
    %4 = vector.load %arg1[%c0_4, %c0_5] : memref<128x1024xf32, #tpu.memory_space<vmem>>, vector<128x1024xf32>
    %c1 = arith.constant 1 : index
    %c0_6 = arith.constant 0 : index
    %c0_7 = arith.constant 0 : index
    %5 = vector.load %arg0[%c1, %c0_6, %c0_7] : memref<4x1024x2xf32, #tpu.memory_space<vmem>>, vector<1x1024x2xf32>
    %6 = vector.shape_cast %5 : vector<1x1024x2xf32> to vector<1024x2xf32>
    %cst_8 = arith.constant dense<0.000000e+00> : vector<128x2xf32>
    %7 = tpu.matmul %4, %6, %cst_8 {dimension_numbers = #tpu.dot_dimension_numbers<[1], [0], [0], [1], [0, 0, 1, 1], [], []>} : vector<128x1024xf32>, vector<1024x2xf32>, vector<128x2xf32> -> vector<128x2xf32>
    %c0_9 = arith.constant 0 : index
    %c0_10 = arith.constant 0 : index
    %8 = vector.load %arg1[%c0_9, %c0_10] : memref<128x1024xf32, #tpu.memory_space<vmem>>, vector<128x1024xf32>
    %c2 = arith.constant 2 : index
    %c0_11 = arith.constant 0 : index
    %c0_12 = arith.constant 0 : index
    %9 = vector.load %arg0[%c2, %c0_11, %c0_12] : memref<4x1024x2xf32, #tpu.memory_space<vmem>>, vector<1x1024x2xf32>
    %10 = vector.shape_cast %9 : vector<1x1024x2xf32> to vector<1024x2xf32>
    %cst_13 = arith.constant dense<0.000000e+00> : vector<128x2xf32>
    %11 = tpu.matmul %8, %10, %cst_13 {dimension_numbers = #tpu.dot_dimension_numbers<[1], [0], [0], [1], [0, 0, 1, 1], [], []>} : vector<128x1024xf32>, vector<1024x2xf32>, vector<128x2xf32> -> vector<128x2xf32>
    %c0_14 = arith.constant 0 : index
    %c0_15 = arith.constant 0 : index
    %12 = vector.load %arg1[%c0_14, %c0_15] : memref<128x1024xf32, #tpu.memory_space<vmem>>, vector<128x1024xf32>
    %c3 = arith.constant 3 : index
    %c0_16 = arith.constant 0 : index
    %c0_17 = arith.constant 0 : index
    %13 = vector.load %arg0[%c3, %c0_16, %c0_17] : memref<4x1024x2xf32, #tpu.memory_space<vmem>>, vector<1x1024x2xf32>
    %14 = vector.shape_cast %13 : vector<1x1024x2xf32> to vector<1024x2xf32>
    %cst_18 = arith.constant dense<0.000000e+00> : vector<128x2xf32>
    %15 = tpu.matmul %12, %14, %cst_18 {dimension_numbers = #tpu.dot_dimension_numbers<[1], [0], [0], [1], [0, 0, 1, 1], [], []>} : vector<128x1024xf32>, vector<1024x2xf32>, vector<128x2xf32> -> vector<128x2xf32>
    %cst_19 = arith.constant dense<0.000000e+00> : vector<128xf32>
    %16 = vector.multi_reduction <add>, %3, %cst_19 [1] : vector<128x2xf32> to vector<128xf32>
    %17 = vector.shape_cast %16 : vector<128xf32> to vector<128x1xf32>
    %cst_20 = arith.constant 0.000000e+00 : f32
    %18 = vector.broadcast %cst_20 : f32 to vector<128x1xf32>
    %19 = arith.addf %18, %17 : vector<128x1xf32>
    %cst_21 = arith.constant dense<0.000000e+00> : vector<128xf32>
    %20 = vector.multi_reduction <add>, %7, %cst_21 [1] : vector<128x2xf32> to vector<128xf32>
    %21 = vector.shape_cast %20 : vector<128xf32> to vector<128x1xf32>
    %22 = arith.addf %19, %21 : vector<128x1xf32>
    %cst_22 = arith.constant dense<0.000000e+00> : vector<128xf32>
    %23 = vector.multi_reduction <add>, %11, %cst_22 [1] : vector<128x2xf32> to vector<128xf32>
    %24 = vector.shape_cast %23 : vector<128xf32> to vector<128x1xf32>
    %25 = arith.addf %22, %24 : vector<128x1xf32>
    %cst_23 = arith.constant dense<0.000000e+00> : vector<128xf32>
    %26 = vector.multi_reduction <add>, %15, %cst_23 [1] : vector<128x2xf32> to vector<128xf32>
    %27 = vector.shape_cast %26 : vector<128xf32> to vector<128x1xf32>
    %28 = arith.addf %25, %27 : vector<128x1xf32>
    %cst_24 = arith.constant 8.000000e+00 : f32
    %29 = vector.broadcast %cst_24 : f32 to vector<128x1xf32>
    %30 = arith.divf %28, %29 : vector<128x1xf32>
    %31 = vector.broadcast %30 : vector<128x1xf32> to vector<128x2xf32>
    %32 = arith.subf %3, %31 : vector<128x2xf32>
    %33 = arith.mulf %32, %32 : vector<128x2xf32>
    %cst_25 = arith.constant dense<0.000000e+00> : vector<128xf32>
    %34 = vector.multi_reduction <add>, %33, %cst_25 [1] : vector<128x2xf32> to vector<128xf32>
    %35 = vector.shape_cast %34 : vector<128xf32> to vector<128x1xf32>
    %cst_26 = arith.constant 0.000000e+00 : f32
    %36 = vector.broadcast %cst_26 : f32 to vector<128x1xf32>
    %37 = arith.addf %36, %35 : vector<128x1xf32>
    %38 = vector.broadcast %30 : vector<128x1xf32> to vector<128x2xf32>
    %39 = arith.subf %7, %38 : vector<128x2xf32>
    %40 = arith.mulf %39, %39 : vector<128x2xf32>
    %cst_27 = arith.constant dense<0.000000e+00> : vector<128xf32>
    %41 = vector.multi_reduction <add>, %40, %cst_27 [1] : vector<128x2xf32> to vector<128xf32>
    %42 = vector.shape_cast %41 : vector<128xf32> to vector<128x1xf32>
    %43 = arith.addf %37, %42 : vector<128x1xf32>
    %44 = vector.broadcast %30 : vector<128x1xf32> to vector<128x2xf32>
    %45 = arith.subf %11, %44 : vector<128x2xf32>
    %46 = arith.mulf %45, %45 : vector<128x2xf32>
    %cst_28 = arith.constant dense<0.000000e+00> : vector<128xf32>
    %47 = vector.multi_reduction <add>, %46, %cst_28 [1] : vector<128x2xf32> to vector<128xf32>
    %48 = vector.shape_cast %47 : vector<128xf32> to vector<128x1xf32>
    %49 = arith.addf %43, %48 : vector<128x1xf32>
    %50 = vector.broadcast %30 : vector<128x1xf32> to vector<128x2xf32>
    %51 = arith.subf %15, %50 : vector<128x2xf32>
    %52 = arith.mulf %51, %51 : vector<128x2xf32>
    %cst_29 = arith.constant dense<0.000000e+00> : vector<128xf32>
    %53 = vector.multi_reduction <add>, %52, %cst_29 [1] : vector<128x2xf32> to vector<128xf32>
    %54 = vector.shape_cast %53 : vector<128xf32> to vector<128x1xf32>
    %55 = arith.addf %49, %54 : vector<128x1xf32>
    %cst_30 = arith.constant 8.000000e+00 : f32
    %56 = vector.broadcast %cst_30 : f32 to vector<128x1xf32>
    %57 = arith.divf %55, %56 : vector<128x1xf32>
    %cst_31 = arith.constant 9.99999974E-6 : f32
    %58 = vector.broadcast %cst_31 : f32 to vector<128x1xf32>
    %59 = arith.addf %57, %58 : vector<128x1xf32>
    %60 = math.rsqrt %59 : vector<128x1xf32>
    %c0_32 = arith.constant 0 : index
    %c0_33 = arith.constant 0 : index
    %61 = vector.load %arg2[%c0_32, %c0_33] : memref<128x1xf32, #tpu.memory_space<vmem>>, vector<128x1xf32>
    %62 = arith.mulf %60, %61 : vector<128x1xf32>
    %c0_34 = arith.constant 0 : index
    %c0_35 = arith.constant 0 : index
    %63 = vector.load %arg3[%c0_34, %c0_35] : memref<128x1xf32, #tpu.memory_space<vmem>>, vector<128x1xf32>
    %c0_36 = arith.constant 0 : index
    %c0_37 = arith.constant 0 : index
    %64 = vector.load %arg5[%c0_36, %c0_37] : memref<128x512xf32, #tpu.memory_space<vmem>>, vector<128x512xf32>
    %c0_38 = arith.constant 0 : index
    %c0_39 = arith.constant 0 : index
    %65 = vector.load %arg4[%c0_38, %c0_39] : memref<512x2xf32, #tpu.memory_space<vmem>>, vector<512x2xf32>
    %cst_40 = arith.constant dense<0.000000e+00> : vector<128x2xf32>
    %66 = tpu.matmul %64, %65, %cst_40 {dimension_numbers = #tpu.dot_dimension_numbers<[1], [0], [0], [1], [0, 0, 1, 1], [], []>} : vector<128x512xf32>, vector<512x2xf32>, vector<128x2xf32> -> vector<128x2xf32>
    %67 = vector.broadcast %30 : vector<128x1xf32> to vector<128x2xf32>
    %68 = arith.subf %3, %67 : vector<128x2xf32>
    %69 = vector.broadcast %62 : vector<128x1xf32> to vector<128x2xf32>
    %70 = arith.mulf %68, %69 : vector<128x2xf32>
    %71 = vector.broadcast %63 : vector<128x1xf32> to vector<128x2xf32>
    %72 = arith.addf %70, %71 : vector<128x2xf32>
    %cst_41 = arith.constant 0.000000e+00 : f32
    %73 = vector.broadcast %cst_41 : f32 to vector<128x2xf32>
    %74 = arith.cmpf oge, %72, %73 : vector<128x2xf32>
    %cst_42 = arith.constant 2.000000e-01 : f32
    %75 = vector.broadcast %cst_42 : f32 to vector<128x2xf32>
    %76 = arith.mulf %75, %72 : vector<128x2xf32>
    %77 = arith.select %74, %72, %76 : vector<128x2xi1>, vector<128x2xf32>
    %c0_43 = arith.constant 0 : index
    %c0_44 = arith.constant 0 : index
    %c0_45 = arith.constant 0 : index
    %78 = vector.load %arg6[%c0_43, %c0_44, %c0_45] : memref<4x128x128xf32, #tpu.memory_space<vmem>>, vector<1x128x128xf32>
    %79 = vector.shape_cast %78 : vector<1x128x128xf32> to vector<128x128xf32>
    %cst_46 = arith.constant dense<0.000000e+00> : vector<128x2xf32>
    %80 = tpu.matmul %79, %77, %cst_46 {dimension_numbers = #tpu.dot_dimension_numbers<[1], [0], [0], [1], [0, 0, 1, 1], [], []>} : vector<128x128xf32>, vector<128x2xf32>, vector<128x2xf32> -> vector<128x2xf32>
    %81 = arith.addf %66, %80 : vector<128x2xf32>
    %82 = vector.broadcast %30 : vector<128x1xf32> to vector<128x2xf32>
    %83 = arith.subf %7, %82 : vector<128x2xf32>
    %84 = vector.broadcast %62 : vector<128x1xf32> to vector<128x2xf32>
    %85 = arith.mulf %83, %84 : vector<128x2xf32>
    %86 = vector.broadcast %63 : vector<128x1xf32> to vector<128x2xf32>
    %87 = arith.addf %85, %86 : vector<128x2xf32>
    %cst_47 = arith.constant 0.000000e+00 : f32
    %88 = vector.broadcast %cst_47 : f32 to vector<128x2xf32>
    %89 = arith.cmpf oge, %87, %88 : vector<128x2xf32>
    %cst_48 = arith.constant 2.000000e-01 : f32
    %90 = vector.broadcast %cst_48 : f32 to vector<128x2xf32>
    %91 = arith.mulf %90, %87 : vector<128x2xf32>
    %92 = arith.select %89, %87, %91 : vector<128x2xi1>, vector<128x2xf32>
    %c1_49 = arith.constant 1 : index
    %c0_50 = arith.constant 0 : index
    %c0_51 = arith.constant 0 : index
    %93 = vector.load %arg6[%c1_49, %c0_50, %c0_51] : memref<4x128x128xf32, #tpu.memory_space<vmem>>, vector<1x128x128xf32>
    %94 = vector.shape_cast %93 : vector<1x128x128xf32> to vector<128x128xf32>
    %cst_52 = arith.constant dense<0.000000e+00> : vector<128x2xf32>
    %95 = tpu.matmul %94, %92, %cst_52 {dimension_numbers = #tpu.dot_dimension_numbers<[1], [0], [0], [1], [0, 0, 1, 1], [], []>} : vector<128x128xf32>, vector<128x2xf32>, vector<128x2xf32> -> vector<128x2xf32>
    %96 = arith.addf %81, %95 : vector<128x2xf32>
    %97 = vector.broadcast %30 : vector<128x1xf32> to vector<128x2xf32>
    %98 = arith.subf %11, %97 : vector<128x2xf32>
    %99 = vector.broadcast %62 : vector<128x1xf32> to vector<128x2xf32>
    %100 = arith.mulf %98, %99 : vector<128x2xf32>
    %101 = vector.broadcast %63 : vector<128x1xf32> to vector<128x2xf32>
    %102 = arith.addf %100, %101 : vector<128x2xf32>
    %cst_53 = arith.constant 0.000000e+00 : f32
    %103 = vector.broadcast %cst_53 : f32 to vector<128x2xf32>
    %104 = arith.cmpf oge, %102, %103 : vector<128x2xf32>
    %cst_54 = arith.constant 2.000000e-01 : f32
    %105 = vector.broadcast %cst_54 : f32 to vector<128x2xf32>
    %106 = arith.mulf %105, %102 : vector<128x2xf32>
    %107 = arith.select %104, %102, %106 : vector<128x2xi1>, vector<128x2xf32>
    %c2_55 = arith.constant 2 : index
    %c0_56 = arith.constant 0 : index
    %c0_57 = arith.constant 0 : index
    %108 = vector.load %arg6[%c2_55, %c0_56, %c0_57] : memref<4x128x128xf32, #tpu.memory_space<vmem>>, vector<1x128x128xf32>
    %109 = vector.shape_cast %108 : vector<1x128x128xf32> to vector<128x128xf32>
    %cst_58 = arith.constant dense<0.000000e+00> : vector<128x2xf32>
    %110 = tpu.matmul %109, %107, %cst_58 {dimension_numbers = #tpu.dot_dimension_numbers<[1], [0], [0], [1], [0, 0, 1, 1], [], []>} : vector<128x128xf32>, vector<128x2xf32>, vector<128x2xf32> -> vector<128x2xf32>
    %111 = arith.addf %96, %110 : vector<128x2xf32>
    %112 = vector.broadcast %30 : vector<128x1xf32> to vector<128x2xf32>
    %113 = arith.subf %15, %112 : vector<128x2xf32>
    %114 = vector.broadcast %62 : vector<128x1xf32> to vector<128x2xf32>
    %115 = arith.mulf %113, %114 : vector<128x2xf32>
    %116 = vector.broadcast %63 : vector<128x1xf32> to vector<128x2xf32>
    %117 = arith.addf %115, %116 : vector<128x2xf32>
    %cst_59 = arith.constant 0.000000e+00 : f32
    %118 = vector.broadcast %cst_59 : f32 to vector<128x2xf32>
    %119 = arith.cmpf oge, %117, %118 : vector<128x2xf32>
    %cst_60 = arith.constant 2.000000e-01 : f32
    %120 = vector.broadcast %cst_60 : f32 to vector<128x2xf32>
    %121 = arith.mulf %120, %117 : vector<128x2xf32>
    %122 = arith.select %119, %117, %121 : vector<128x2xi1>, vector<128x2xf32>
    %c3_61 = arith.constant 3 : index
    %c0_62 = arith.constant 0 : index
    %c0_63 = arith.constant 0 : index
    %123 = vector.load %arg6[%c3_61, %c0_62, %c0_63] : memref<4x128x128xf32, #tpu.memory_space<vmem>>, vector<1x128x128xf32>
    %124 = vector.shape_cast %123 : vector<1x128x128xf32> to vector<128x128xf32>
    %cst_64 = arith.constant dense<0.000000e+00> : vector<128x2xf32>
    %125 = tpu.matmul %124, %122, %cst_64 {dimension_numbers = #tpu.dot_dimension_numbers<[1], [0], [0], [1], [0, 0, 1, 1], [], []>} : vector<128x128xf32>, vector<128x2xf32>, vector<128x2xf32> -> vector<128x2xf32>
    %126 = arith.addf %111, %125 : vector<128x2xf32>
    %c0_65 = arith.constant 0 : index
    %c0_66 = arith.constant 0 : index
    %127 = vector.load %arg7[%c0_65, %c0_66] : memref<128x1xf32, #tpu.memory_space<vmem>>, vector<128x1xf32>
    %128 = vector.broadcast %127 : vector<128x1xf32> to vector<128x2xf32>
    %129 = arith.addf %126, %128 : vector<128x2xf32>
    %cst_67 = arith.constant 0.000000e+00 : f32
    %130 = vector.broadcast %cst_67 : f32 to vector<128x2xf32>
    %131 = arith.cmpf oge, %129, %130 : vector<128x2xf32>
    %cst_68 = arith.constant 2.000000e-01 : f32
    %132 = vector.broadcast %cst_68 : f32 to vector<128x2xf32>
    %133 = arith.mulf %132, %129 : vector<128x2xf32>
    %134 = arith.select %131, %129, %133 : vector<128x2xi1>, vector<128x2xf32>
    %c0_69 = arith.constant 0 : index
    %c0_70 = arith.constant 0 : index
    %135 = vector.load %arg8[%c0_69, %c0_70] : memref<1x128xf32, #tpu.memory_space<vmem>>, vector<1x128xf32>
    %cst_71 = arith.constant dense<0.000000e+00> : vector<1x2xf32>
    %136 = tpu.matmul %135, %134, %cst_71 {dimension_numbers = #tpu.dot_dimension_numbers<[1], [0], [0], [1], [0, 0, 1, 1], [], []>} : vector<1x128xf32>, vector<128x2xf32>, vector<1x2xf32> -> vector<1x2xf32>
    %c0_72 = arith.constant 0 : index
    %c0_73 = arith.constant 0 : index
    %137 = vector.load %arg9[%c0_72, %c0_73] : memref<1x1xf32, #tpu.memory_space<vmem>>, vector<1x1xf32>
    %138 = vector.broadcast %137 : vector<1x1xf32> to vector<1x2xf32>
    %139 = arith.addf %136, %138 : vector<1x2xf32>
    %140 = arith.negf %139 : vector<1x2xf32>
    %141 = math.exp %140 : vector<1x2xf32>
    %cst_74 = arith.constant 1.000000e+00 : f32
    %142 = vector.broadcast %cst_74 : f32 to vector<1x2xf32>
    %143 = arith.addf %142, %141 : vector<1x2xf32>
    %144 = arith.divf %142, %143 : vector<1x2xf32>
    %c0_75 = arith.constant 0 : index
    %c0_76 = arith.constant 0 : index
    %145 = vector.load %arg10[%c0_75, %c0_76] : memref<1x2xf32, #tpu.memory_space<vmem>>, vector<1x2xf32>
    tpu.vector_store %arg10[%c0_75, %c0_76], %144 {strides = array<i32>} : memref<1x2xf32, #tpu.memory_space<vmem>>, vector<1x2xf32>,
    return
  }
}

</mosaic_0001>

<llo_original>
// kernel: discriminator_forward.5
$region0: #{discriminator_forward.5}
  #allocation0 [shape = 'u32[]', space=smem, size = 0x4, offset = 0x4, fixed_abs, tag = 'smem constant byte address 0x4 - core index']
  #allocation1 [shape = 'u32[144,128]{1,0:T(1,128)}', space=vmem, size = 0x12000, scoped, tag = 'internal scratch']
  %s0 = inlined_call_operand.hbm [shape: f32[48,2048], index: 0, kind: input, shape index: {}]
  %s1 = inlined_call_operand.hbm [shape: f32[8,48], index: 1, kind: input, shape index: {}]
  %s2 = inlined_call_operand.hbm [shape: f32[8,2048], index: 2, kind: output, shape index: {}]
  %s3 = sld [smem:[#allocation0]]
  $region26: #{discriminator_forward.5} parent=0
    _
  %s5 = ssub.s32 1, %s3
  %s6 = scalar_select 0, %s5, %s3
  $region1: #{discriminator_forward.5} parent=0
    #allocation2 [shape = 'u8[393216]{0}', space=vmem, size = 0x60000, scoped, tag = 'input window, operand 0, single buffered']
    #allocation3 [shape = 's32[1]{0}', space=sflag, size = 0x4, scoped, tag = 'scoped memory for discriminator_forward.5']
    #allocation4 [shape = 's32[1]{0}', space=sflag, size = 0x4, scoped, tag = 'scoped memory for discriminator_forward.5']
    #allocation5 [shape = 'u8[4096]{0}', space=vmem, size = 0x1000, scoped, tag = 'input window, operand 1, single buffered']
    #allocation6 [shape = 's32[1]{0}', space=sflag, size = 0x4, scoped, tag = 'scoped memory for discriminator_forward.5']
    #allocation7 [shape = 'u8[65536]{0}', space=vmem, size = 0x10000, scoped, tag = 'output window, operand 0, single buffered']
    %7 = vsyncpa [#allocation3], 0
    %8 = vsyncpa [#allocation6], 0
    %9 = vsyncpa [#allocation4], 0
    // Predicated region
    $region2: #{discriminator_forward.5} parent=1 // pred_check
      _
    $region3: #{discriminator_forward.5} parent=1 // pred_check_branch
      %11 = sbr.rel (0) target = $region5
    $region4: #{discriminator_forward.5} parent=1 // pred_region
      %s13 = ssub.s32 12288, 12288
      %14 = vsyncadd [#allocation3], %s13
      %s15 = sshll.u32 [#allocation2], 4
      %s16 = int_to_ptr.vmem [resolvable:$true] %s15
      %21 = dma.hbm_to_vmem [thread:$0]  %s0, 12288, %s16, [#allocation3], 2048, 2048, 128
    $region5: #{discriminator_forward.5} parent=1 // pred_fallthru
      _
    // Predicated region
    $region6: #{discriminator_forward.5} parent=1 // pred_check
      _
    $region7: #{discriminator_forward.5} parent=1 // pred_check_branch
      %23 = sbr.rel (0) target = $region9
    $region8: #{discriminator_forward.5} parent=1 // pred_region
      %s25 = ssub.s32 128, 128
      %26 = vsyncadd [#allocation6], %s25
      %s28 = sshll.u32 [#allocation5], 4
      %s29 = int_to_ptr.vmem [resolvable:$true] %s28
      %31 = dma.hbm_to_vmem [thread:$0]  %s1, 128, %s29, [#allocation6]
    $region9: #{discriminator_forward.5} parent=1 // pred_fallthru
      _
    // Predicated region
    $region10: #{discriminator_forward.5} parent=1 // pred_check
      _
    $region11: #{discriminator_forward.5} parent=1 // pred_check_branch
      %33 = sbr.rel (0) target = $region13
    $region12: #{discriminator_forward.5} parent=1 // pred_region
      %34 = dma.done [#allocation3], 12288
    $region13: #{discriminator_forward.5} parent=1 // pred_fallthru
      _
    // Predicated region
    $region14: #{discriminator_forward.5} parent=1 // pred_check
      _
    $region15: #{discriminator_forward.5} parent=1 // pred_check_branch
      %36 = sbr.rel (0) target = $region17
    $region16: #{discriminator_forward.5} parent=1 // pred_region
      %37 = dma.done [#allocation6], 128
    $region17: #{discriminator_forward.5} parent=1 // pred_fallthru
      _
    %v38 = vld [vmem:[#allocation5] sm:$0xff]
    %v39 = vld [vmem:[#allocation2] sm:$0xff]
    %v40 = vld [vmem:[#allocation2 + $0x8] sm:$0xff]
    %v41 = vld [vmem:[#allocation2 + $0x10] sm:$0xff]
    %v42 = vld [vmem:[#allocation2 + $0x18] sm:$0xff]
    %v43 = vld [vmem:[#allocation2 + $0x20] sm:$0xff]
    %v44 = vld [vmem:[#allocation2 + $0x28] sm:$0xff]
    %v45 = vld [vmem:[#allocation2 + $0x30] sm:$0xff]
    %v46 = vld [vmem:[#allocation2 + $0x38] sm:$0xff]
    %v47 = vld [vmem:[#allocation2 + $0x40] sm:$0xff]
    %v48 = vld [vmem:[#allocation2 + $0x48] sm:$0xff]
    %v49 = vld [vmem:[#allocation2 + $0x50] sm:$0xff]
    %v50 = vld [vmem:[#allocation2 + $0x58] sm:$0xff]
    %v51 = vld [vmem:[#allocation2 + $0x60] sm:$0xff]
    %v52 = vld [vmem:[#allocation2 + $0x68] sm:$0xff]
    %v53 = vld [vmem:[#allocation2 + $0x70] sm:$0xff]
    %v54 = vld [vmem:[#allocation2 + $0x78] sm:$0xff]
    %v55 = vld [vmem:[#allocation2 + $0x80] sm:$0xff]
    %v56 = vld [vmem:[#allocation2 + $0x88] sm:$0xff]
    %v57 = vld [vmem:[#allocation2 + $0x90] sm:$0xff]
    %v58 = vld [vmem:[#allocation2 + $0x98] sm:$0xff]
    %v59 = vld [vmem:[#allocation2 + $0xa0] sm:$0xff]
    %v60 = vld [vmem:[#allocation2 + $0xa8] sm:$0xff]
    %v61 = vld [vmem:[#allocation2 + $0xb0] sm:$0xff]
    %v62 = vld [vmem:[#allocation2 + $0xb8] sm:$0xff]
    %v63 = vld [vmem:[#allocation2 + $0xc0] sm:$0xff]
    %v64 = vld [vmem:[#allocation2 + $0xc8] sm:$0xff]
    %v65 = vld [vmem:[#allocation2 + $0xd0] sm:$0xff]
    %v66 = vld [vmem:[#allocation2 + $0xd8] sm:$0xff]
    %v67 = vld [vmem:[#allocation2 + $0xe0] sm:$0xff]
    %v68 = vld [vmem:[#allocation2 + $0xe8] sm:$0xff]
    %v69 = vld [vmem:[#allocation2 + $0xf0] sm:$0xff]
    %v70 = vld [vmem:[#allocation2 + $0xf8] sm:$0xff]
    %v71 = vld [vmem:[#allocation2 + $0x100] sm:$0xff]
    %v72 = vld [vmem:[#allocation2 + $0x108] sm:$0xff]
    %v73 = vld [vmem:[#allocation2 + $0x110] sm:$0xff]
    %v74 = vld [vmem:[#allocation2 + $0x118] sm:$0xff]
    %v75 = vld [vmem:[#allocation2 + $0x120] sm:$0xff]
    %v76 = vld [vmem:[#allocation2 + $0x128] sm:$0xff]
    %v77 = vld [vmem:[#allocation2 + $0x130] sm:$0xff]
    %v78 = vld [vmem:[#allocation2 + $0x138] sm:$0xff]
    %v79 = vld [vmem:[#allocation2 + $0x140] sm:$0xff]
    %v80 = vld [vmem:[#allocation2 + $0x148] sm:$0xff]
    %v81 = vld [vmem:[#allocation2 + $0x150] sm:$0xff]
    %v82 = vld [vmem:[#allocation2 + $0x158] sm:$0xff]
    %v83 = vld [vmem:[#allocation2 + $0x160] sm:$0xff]
    %v84 = vld [vmem:[#allocation2 + $0x168] sm:$0xff]
    %v85 = vld [vmem:[#allocation2 + $0x170] sm:$0xff]
    %v86 = vld [vmem:[#allocation2 + $0x178] sm:$0xff]
    %v87 = vld [vmem:[#allocation2 + $0x180] sm:$0xff]
    %v88 = vld [vmem:[#allocation2 + $0x188] sm:$0xff]
    %v89 = vld [vmem:[#allocation2 + $0x190] sm:$0xff]
    %v90 = vld [vmem:[#allocation2 + $0x198] sm:$0xff]
    %v91 = vld [vmem:[#allocation2 + $0x1a0] sm:$0xff]
    %v92 = vld [vmem:[#allocation2 + $0x1a8] sm:$0xff]
    %v93 = vld [vmem:[#allocation2 + $0x1b0] sm:$0xff]
    %v94 = vld [vmem:[#allocation2 + $0x1b8] sm:$0xff]
    %v95 = vld [vmem:[#allocation2 + $0x1c0] sm:$0xff]
    %v96 = vld [vmem:[#allocation2 + $0x1c8] sm:$0xff]
    %v97 = vld [vmem:[#allocation2 + $0x1d0] sm:$0xff]
    %v98 = vld [vmem:[#allocation2 + $0x1d8] sm:$0xff]
    %v99 = vld [vmem:[#allocation2 + $0x1e0] sm:$0xff]
    %v100 = vld [vmem:[#allocation2 + $0x1e8] sm:$0xff]
    %v101 = vld [vmem:[#allocation2 + $0x1f0] sm:$0xff]
    %v102 = vld [vmem:[#allocation2 + $0x1f8] sm:$0xff]
    %v103 = vld [vmem:[#allocation2 + $0x200] sm:$0xff]
    %v104 = vld [vmem:[#allocation2 + $0x208] sm:$0xff]
    %v105 = vld [vmem:[#allocation2 + $0x210] sm:$0xff]
    %v106 = vld [vmem:[#allocation2 + $0x218] sm:$0xff]
    %v107 = vld [vmem:[#allocation2 + $0x220] sm:$0xff]
    %v108 = vld [vmem:[#allocation2 + $0x228] sm:$0xff]
    %v109 = vld [vmem:[#allocation2 + $0x230] sm:$0xff]
    %v110 = vld [vmem:[#allocation2 + $0x238] sm:$0xff]
    %v111 = vld [vmem:[#allocation2 + $0x240] sm:$0xff]
    %v112 = vld [vmem:[#allocation2 + $0x248] sm:$0xff]
    %v113 = vld [vmem:[#allocation2 + $0x250] sm:$0xff]
    %v114 = vld [vmem:[#allocation2 + $0x258] sm:$0xff]
    %v115 = vld [vmem:[#allocation2 + $0x260] sm:$0xff]
    %v116 = vld [vmem:[#allocation2 + $0x268] sm:$0xff]
    %v117 = vld [vmem:[#allocation2 + $0x270] sm:$0xff]
    %v118 = vld [vmem:[#allocation2 + $0x278] sm:$0xff]
    %v119 = vld [vmem:[#allocation2 + $0x280] sm:$0xff]
    %v120 = vld [vmem:[#allocation2 + $0x288] sm:$0xff]
    %v121 = vld [vmem:[#allocation2 + $0x290] sm:$0xff]
    %v122 = vld [vmem:[#allocation2 + $0x298] sm:$0xff]
    %v123 = vld [vmem:[#allocation2 + $0x2a0] sm:$0xff]
    %v124 = vld [vmem:[#allocation2 + $0x2a8] sm:$0xff]
    %v125 = vld [vmem:[#allocation2 + $0x2b0] sm:$0xff]
    %v126 = vld [vmem:[#allocation2 + $0x2b8] sm:$0xff]
    %v127 = vld [vmem:[#allocation2 + $0x2c0] sm:$0xff]
    %v128 = vld [vmem:[#allocation2 + $0x2c8] sm:$0xff]
    %v129 = vld [vmem:[#allocation2 + $0x2d0] sm:$0xff]
    %v130 = vld [vmem:[#allocation2 + $0x2d8] sm:$0xff]
    %v131 = vld [vmem:[#allocation2 + $0x2e0] sm:$0xff]
    %v132 = vld [vmem:[#allocation2 + $0x2e8] sm:$0xff]
    %v133 = vld [vmem:[#allocation2 + $0x2f0] sm:$0xff]
    %v134 = vld [vmem:[#allocation2 + $0x2f8] sm:$0xff]
    %vm135 = vcmask 392192
    %v137 = vsel %vm135, %v38, 0
    %139 = vmatprep.subr.mxu0 %v40
    %140 = vmatpush1.msra.mxu0 %v39
    %141 = vmatprep.subr.mxu0 %v56
    %142 = vmatpush1.msra.mxu0 %v55
    %143 = vmatprep.subr.mxu0 %v72
    %144 = vmatpush1.msra.mxu0 %v71
    %145 = vmatprep.subr.mxu0 %v88
    %146 = vmatpush1.msra.mxu0 %v87
    %147 = vmatprep.subr.mxu0 %v104
    %148 = vmatpush1.msra.mxu0 %v103
    %149 = vmatprep.subr.mxu0 %v120
    %150 = vmatpush1.msra.mxu0 %v119
    %151 = vmatprep.subr.mxu0 0.0
    %152 = vmatpush1.msra.mxu0 0.0
    %153 = vmatprep.subr.mxu0 0.0
    %154 = vmatpush1.msra.mxu0 0.0
    %155 = vmatprep.subr.mxu0 0.0
    %156 = vmatpush1.msra.mxu0 0.0
    %157 = vmatprep.subr.mxu0 0.0
    %158 = vmatpush1.msra.mxu0 0.0
    %159 = vmatprep.subr.mxu0 0.0
    %160 = vmatpush1.msra.mxu0 0.0
    %161 = vmatprep.subr.mxu0 0.0
    %162 = vmatpush1.msra.mxu0 0.0
    %163 = vmatprep.subr.mxu0 0.0
    %164 = vmatpush1.msra.mxu0 0.0
    %165 = vmatprep.subr.mxu0 0.0
    %166 = vmatpush1.msra.mxu0 0.0
    %167 = vmatprep.subr.mxu0 0.0
    %168 = vmatpush1.msra.mxu0 0.0
    %169 = vmatprep.subr.mxu0 0.0
    %170 = vmatpush1.msra.mxu0 0.0
    %171 = vmatprep.subr.mxu0 0.0
    %172 = vmatpush1.msra.mxu0 0.0
    %173 = vmatprep.subr.mxu0 0.0
    %174 = vmatpush1.msra.mxu0 0.0
    %175 = vmatprep.subr.mxu0 0.0
    %176 = vmatpush1.msra.mxu0 0.0
    %177 = vmatprep.subr.mxu0 0.0
    %178 = vmatpush1.msra.mxu0 0.0
    %179 = vmatprep.subr.mxu0 0.0
    %180 = vmatpush1.msra.mxu0 0.0
    %181 = vmatprep.subr.mxu0 0.0
    %182 = vmatpush1.msra.mxu0 0.0
    %183 = vmatprep.subr.mxu0 0.0
    %184 = vmatpush1.msra.mxu0 0.0
    %185 = vmatprep.subr.mxu0 0.0
    %186 = vmatpush1.msra.mxu0 0.0
    %187 = vmatprep.subr.mxu0 0.0
    %188 = vmatpush1.msra.mxu0 0.0
    %189 = vmatprep.subr.mxu0 0.0
    %190 = vmatpush1.msra.mxu0 0.0
    %191 = vmatprep.subr.mxu0 0.0
    %192 = vmatpush1.msra.mxu0 0.0
    %193 = vmatprep.subr.mxu0 0.0
    %194 = vmatpush1.msra.mxu0 0.0
    %195 = vmatprep.subr.mxu0 0.0
    %196 = vmatpush1.msra.mxu0 0.0
    %197 = vmatprep.subr.mxu0 0.0
    %198 = vmatpush1.msra.mxu0 0.0
    %199 = vmatprep.subr.mxu0 0.0
    %200 = vmatpush1.msra.mxu0 0.0
    %201 = vmatprep.subr.mxu0 0.0
    %202 = vmatpush1.msra.mxu0 0.0
    %203 = vmatprep.mubr.f32.mxu0 0.0
    %204 = vmatmul.mubr.f32.gmra.mrb[0].mxu0 %v137
    %v205 = vpop.f32.mrb[0].mxu0
    %v206 = vadd.f32 0.0, %v205
    %v207 = vpop.f32.mrb[0].mxu0
    %v208 = vadd.f32 0.0, %v207
    %209 = vdwg.mxu0
    %210 = vmatprep.subr.mxu0 %v42
    %211 = vmatpush1.msra.mxu0 %v41
    %212 = vmatprep.subr.mxu0 %v58
    %213 = vmatpush1.msra.mxu0 %v57
    %214 = vmatprep.subr.mxu0 %v74
    %215 = vmatpush1.msra.mxu0 %v73
    %216 = vmatprep.subr.mxu0 %v90
    %217 = vmatpush1.msra.mxu0 %v89
    %218 = vmatprep.subr.mxu0 %v106
    %219 = vmatpush1.msra.mxu0 %v105
    %220 = vmatprep.subr.mxu0 %v122
    %221 = vmatpush1.msra.mxu0 %v121
    %222 = vmatprep.subr.mxu0 0.0
    %223 = vmatpush1.msra.mxu0 0.0
    %224 = vmatprep.subr.mxu0 0.0
    %225 = vmatpush1.msra.mxu0 0.0
    %226 = vmatprep.subr.mxu0 0.0
    %227 = vmatpush1.msra.mxu0 0.0
    %228 = vmatprep.subr.mxu0 0.0
    %229 = vmatpush1.msra.mxu0 0.0
    %230 = vmatprep.subr.mxu0 0.0
    %231 = vmatpush1.msra.mxu0 0.0
    %232 = vmatprep.subr.mxu0 0.0
    %233 = vmatpush1.msra.mxu0 0.0
    %234 = vmatprep.subr.mxu0 0.0
    %235 = vmatpush1.msra.mxu0 0.0
    %236 = vmatprep.subr.mxu0 0.0
    %237 = vmatpush1.msra.mxu0 0.0
    %238 = vmatprep.subr.mxu0 0.0
    %239 = vmatpush1.msra.mxu0 0.0
    %240 = vmatprep.subr.mxu0 0.0
    %241 = vmatpush1.msra.mxu0 0.0
    %242 = vmatprep.subr.mxu0 0.0
    %243 = vmatpush1.msra.mxu0 0.0
    %244 = vmatprep.subr.mxu0 0.0
    %245 = vmatpush1.msra.mxu0 0.0
    %246 = vmatprep.subr.mxu0 0.0
    %247 = vmatpush1.msra.mxu0 0.0
    %248 = vmatprep.subr.mxu0 0.0
    %249 = vmatpush1.msra.mxu0 0.0
    %250 = vmatprep.subr.mxu0 0.0
    %251 = vmatpush1.msra.mxu0 0.0
    %252 = vmatprep.subr.mxu0 0.0
    %253 = vmatpush1.msra.mxu0 0.0
    %254 = vmatprep.subr.mxu0 0.0
    %255 = vmatpush1.msra.mxu0 0.0
    %256 = vmatprep.subr.mxu0 0.0
    %257 = vmatpush1.msra.mxu0 0.0
    %258 = vmatprep.subr.mxu0 0.0
    %259 = vmatpush1.msra.mxu0 0.0
    %260 = vmatprep.subr.mxu0 0.0
    %261 = vmatpush1.msra.mxu0 0.0
    %262 = vmatprep.subr.mxu0 0.0
    %263 = vmatpush1.msra.mxu0 0.0
    %264 = vmatprep.subr.mxu0 0.0
    %265 = vmatpush1.msra.mxu0 0.0
    %266 = vmatprep.subr.mxu0 0.0
    %267 = vmatpush1.msra.mxu0 0.0
    %268 = vmatprep.subr.mxu0 0.0
    %269 = vmatpush1.msra.mxu0 0.0
    %270 = vmatprep.subr.mxu0 0.0
    %271 = vmatpush1.msra.mxu0 0.0
    %272 = vmatprep.subr.mxu0 0.0
    %273 = vmatpush1.msra.mxu0 0.0
    %274 = vmatprep.mubr.f32.mxu0 0.0
    %275 = vmatmul.mubr.f32.gmra.mrb[0].mxu0 %v137
    %v276 = vpop.f32.mrb[0].mxu0
    %v277 = vadd.f32 0.0, %v276
    %v278 = vpop.f32.mrb[0].mxu0
    %v279 = vadd.f32 0.0, %v278
    %280 = vdwg.mxu0
    %281 = vmatprep.subr.mxu0 %v44
    %282 = vmatpush1.msra.mxu0 %v43
    %283 = vmatprep.subr.mxu0 %v60
    %284 = vmatpush1.msra.mxu0 %v59
    %285 = vmatprep.subr.mxu0 %v76
    %286 = vmatpush1.msra.mxu0 %v75
    %287 = vmatprep.subr.mxu0 %v92
    %288 = vmatpush1.msra.mxu0 %v91
    %289 = vmatprep.subr.mxu0 %v108
    %290 = vmatpush1.msra.mxu0 %v107
    %291 = vmatprep.subr.mxu0 %v124
    %292 = vmatpush1.msra.mxu0 %v123
    %293 = vmatprep.subr.mxu0 0.0
    %294 = vmatpush1.msra.mxu0 0.0
    %295 = vmatprep.subr.mxu0 0.0
    %296 = vmatpush1.msra.mxu0 0.0
    %297 = vmatprep.subr.mxu0 0.0
    %298 = vmatpush1.msra.mxu0 0.0
    %299 = vmatprep.subr.mxu0 0.0
    %300 = vmatpush1.msra.mxu0 0.0
    %301 = vmatprep.subr.mxu0 0.0
    %302 = vmatpush1.msra.mxu0 0.0
    %303 = vmatprep.subr.mxu0 0.0
    %304 = vmatpush1.msra.mxu0 0.0
    %305 = vmatprep.subr.mxu0 0.0
    %306 = vmatpush1.msra.mxu0 0.0
    %307 = vmatprep.subr.mxu0 0.0
    %308 = vmatpush1.msra.mxu0 0.0
    %309 = vmatprep.subr.mxu0 0.0
    %310 = vmatpush1.msra.mxu0 0.0
    %311 = vmatprep.subr.mxu0 0.0
    %312 = vmatpush1.msra.mxu0 0.0
    %313 = vmatprep.subr.mxu0 0.0
    %314 = vmatpush1.msra.mxu0 0.0
    %315 = vmatprep.subr.mxu0 0.0
    %316 = vmatpush1.msra.mxu0 0.0
    %317 = vmatprep.subr.mxu0 0.0
    %318 = vmatpush1.msra.mxu0 0.0
    %319 = vmatprep.subr.mxu0 0.0
    %320 = vmatpush1.msra.mxu0 0.0
    %321 = vmatprep.subr.mxu0 0.0
    %322 = vmatpush1.msra.mxu0 0.0
    %323 = vmatprep.subr.mxu0 0.0
    %324 = vmatpush1.msra.mxu0 0.0
    %325 = vmatprep.subr.mxu0 0.0
    %326 = vmatpush1.msra.mxu0 0.0
    %327 = vmatprep.subr.mxu0 0.0
    %328 = vmatpush1.msra.mxu0 0.0
    %329 = vmatprep.subr.mxu0 0.0
    %330 = vmatpush1.msra.mxu0 0.0
    %331 = vmatprep.subr.mxu0 0.0
    %332 = vmatpush1.msra.mxu0 0.0
    %333 = vmatprep.subr.mxu0 0.0
    %334 = vmatpush1.msra.mxu0 0.0
    %335 = vmatprep.subr.mxu0 0.0
    %336 = vmatpush1.msra.mxu0 0.0
    %337 = vmatprep.subr.mxu0 0.0
    %338 = vmatpush1.msra.mxu0 0.0
    %339 = vmatprep.subr.mxu0 0.0
    %340 = vmatpush1.msra.mxu0 0.0
    %341 = vmatprep.subr.mxu0 0.0
    %342 = vmatpush1.msra.mxu0 0.0
    %343 = vmatprep.subr.mxu0 0.0
    %344 = vmatpush1.msra.mxu0 0.0
    %345 = vmatprep.mubr.f32.mxu0 0.0
    %346 = vmatmul.mubr.f32.gmra.mrb[0].mxu0 %v137
    %v347 = vpop.f32.mrb[0].mxu0
    %v348 = vadd.f32 0.0, %v347
    %v349 = vpop.f32.mrb[0].mxu0
    %v350 = vadd.f32 0.0, %v349
    %351 = vdwg.mxu0
    %352 = vmatprep.subr.mxu0 %v46
    %353 = vmatpush1.msra.mxu0 %v45
    %354 = vmatprep.subr.mxu0 %v62
    %355 = vmatpush1.msra.mxu0 %v61
    %356 = vmatprep.subr.mxu0 %v78
    %357 = vmatpush1.msra.mxu0 %v77
    %358 = vmatprep.subr.mxu0 %v94
    %359 = vmatpush1.msra.mxu0 %v93
    %360 = vmatprep.subr.mxu0 %v110
    %361 = vmatpush1.msra.mxu0 %v109
    %362 = vmatprep.subr.mxu0 %v126
    %363 = vmatpush1.msra.mxu0 %v125
    %364 = vmatprep.subr.mxu0 0.0
    %365 = vmatpush1.msra.mxu0 0.0
    %366 = vmatprep.subr.mxu0 0.0
    %367 = vmatpush1.msra.mxu0 0.0
    %368 = vmatprep.subr.mxu0 0.0
    %369 = vmatpush1.msra.mxu0 0.0
    %370 = vmatprep.subr.mxu0 0.0
    %371 = vmatpush1.msra.mxu0 0.0
    %372 = vmatprep.subr.mxu0 0.0
    %373 = vmatpush1.msra.mxu0 0.0
    %374 = vmatprep.subr.mxu0 0.0
    %375 = vmatpush1.msra.mxu0 0.0
    %376 = vmatprep.subr.mxu0 0.0
    %377 = vmatpush1.msra.mxu0 0.0
    %378 = vmatprep.subr.mxu0 0.0
    %379 = vmatpush1.msra.mxu0 0.0
    %380 = vmatprep.subr.mxu0 0.0
    %381 = vmatpush1.msra.mxu0 0.0
    %382 = vmatprep.subr.mxu0 0.0
    %383 = vmatpush1.msra.mxu0 0.0
    %384 = vmatprep.subr.mxu0 0.0
    %385 = vmatpush1.msra.mxu0 0.0
    %386 = vmatprep.subr.mxu0 0.0
    %387 = vmatpush1.msra.mxu0 0.0
    %388 = vmatprep.subr.mxu0 0.0
    %389 = vmatpush1.msra.mxu0 0.0
    %390 = vmatprep.subr.mxu0 0.0
    %391 = vmatpush1.msra.mxu0 0.0
    %392 = vmatprep.subr.mxu0 0.0
    %393 = vmatpush1.msra.mxu0 0.0
    %394 = vmatprep.subr.mxu0 0.0
    %395 = vmatpush1.msra.mxu0 0.0
    %396 = vmatprep.subr.mxu0 0.0
    %397 = vmatpush1.msra.mxu0 0.0
    %398 = vmatprep.subr.mxu0 0.0
    %399 = vmatpush1.msra.mxu0 0.0
    %400 = vmatprep.subr.mxu0 0.0
    %401 = vmatpush1.msra.mxu0 0.0
    %402 = vmatprep.subr.mxu0 0.0
    %403 = vmatpush1.msra.mxu0 0.0
    %404 = vmatprep.subr.mxu0 0.0
    %405 = vmatpush1.msra.mxu0 0.0
    %406 = vmatprep.subr.mxu0 0.0
    %407 = vmatpush1.msra.mxu0 0.0
    %408 = vmatprep.subr.mxu0 0.0
    %409 = vmatpush1.msra.mxu0 0.0
    %410 = vmatprep.subr.mxu0 0.0
    %411 = vmatpush1.msra.mxu0 0.0
    %412 = vmatprep.subr.mxu0 0.0
    %413 = vmatpush1.msra.mxu0 0.0
    %414 = vmatprep.subr.mxu0 0.0
    %415 = vmatpush1.msra.mxu0 0.0
    %416 = vmatprep.mubr.f32.mxu0 0.0
    %417 = vmatmul.mubr.f32.gmra.mrb[0].mxu0 %v137
    %v418 = vpop.f32.mrb[0].mxu0
    %v419 = vadd.f32 0.0, %v418
    %v420 = vpop.f32.mrb[0].mxu0
    %v421 = vadd.f32 0.0, %v420
    %422 = vdwg.mxu0
    %423 = vmatprep.subr.mxu0 %v48
    %424 = vmatpush1.msra.mxu0 %v47
    %425 = vmatprep.subr.mxu0 %v64
    %426 = vmatpush1.msra.mxu0 %v63
    %427 = vmatprep.subr.mxu0 %v80
    %428 = vmatpush1.msra.mxu0 %v79
    %429 = vmatprep.subr.mxu0 %v96
    %430 = vmatpush1.msra.mxu0 %v95
    %431 = vmatprep.subr.mxu0 %v112
    %432 = vmatpush1.msra.mxu0 %v111
    %433 = vmatprep.subr.mxu0 %v128
    %434 = vmatpush1.msra.mxu0 %v127
    %435 = vmatprep.subr.mxu0 0.0
    %436 = vmatpush1.msra.mxu0 0.0
    %437 = vmatprep.subr.mxu0 0.0
    %438 = vmatpush1.msra.mxu0 0.0
    %439 = vmatprep.subr.mxu0 0.0
    %440 = vmatpush1.msra.mxu0 0.0
    %441 = vmatprep.subr.mxu0 0.0
    %442 = vmatpush1.msra.mxu0 0.0
    %443 = vmatprep.subr.mxu0 0.0
    %444 = vmatpush1.msra.mxu0 0.0
    %445 = vmatprep.subr.mxu0 0.0
    %446 = vmatpush1.msra.mxu0 0.0
    %447 = vmatprep.subr.mxu0 0.0
    %448 = vmatpush1.msra.mxu0 0.0
    %449 = vmatprep.subr.mxu0 0.0
    %450 = vmatpush1.msra.mxu0 0.0
    %451 = vmatprep.subr.mxu0 0.0
    %452 = vmatpush1.msra.mxu0 0.0
    %453 = vmatprep.subr.mxu0 0.0
    %454 = vmatpush1.msra.mxu0 0.0
    %455 = vmatprep.subr.mxu0 0.0
    %456 = vmatpush1.msra.mxu0 0.0
    %457 = vmatprep.subr.mxu0 0.0
    %458 = vmatpush1.msra.mxu0 0.0
    %459 = vmatprep.subr.mxu0 0.0
    %460 = vmatpush1.msra.mxu0 0.0
    %461 = vmatprep.subr.mxu0 0.0
    %462 = vmatpush1.msra.mxu0 0.0
    %463 = vmatprep.subr.mxu0 0.0
    %464 = vmatpush1.msra.mxu0 0.0
    %465 = vmatprep.subr.mxu0 0.0
    %466 = vmatpush1.msra.mxu0 0.0
    %467 = vmatprep.subr.mxu0 0.0
    %468 = vmatpush1.msra.mxu0 0.0
    %469 = vmatprep.subr.mxu0 0.0
    %470 = vmatpush1.msra.mxu0 0.0
    %471 = vmatprep.subr.mxu0 0.0
    %472 = vmatpush1.msra.mxu0 0.0
    %473 = vmatprep.subr.mxu0 0.0
    %474 = vmatpush1.msra.mxu0 0.0
    %475 = vmatprep.subr.mxu0 0.0
    %476 = vmatpush1.msra.mxu0 0.0
    %477 = vmatprep.subr.mxu0 0.0
    %478 = vmatpush1.msra.mxu0 0.0
    %479 = vmatprep.subr.mxu0 0.0
    %480 = vmatpush1.msra.mxu0 0.0
    %481 = vmatprep.subr.mxu0 0.0
    %482 = vmatpush1.msra.mxu0 0.0
    %483 = vmatprep.subr.mxu0 0.0
    %484 = vmatpush1.msra.mxu0 0.0
    %485 = vmatprep.subr.mxu0 0.0
    %486 = vmatpush1.msra.mxu0 0.0
    %487 = vmatprep.mubr.f32.mxu0 0.0
    %488 = vmatmul.mubr.f32.gmra.mrb[0].mxu0 %v137
    %v489 = vpop.f32.mrb[0].mxu0
    %v490 = vadd.f32 0.0, %v489
    %v491 = vpop.f32.mrb[0].mxu0
    %v492 = vadd.f32 0.0, %v491
    %493 = vdwg.mxu0
    %494 = vmatprep.subr.mxu0 %v50
    %495 = vmatpush1.msra.mxu0 %v49
    %496 = vmatprep.subr.mxu0 %v66
    %497 = vmatpush1.msra.mxu0 %v65
    %498 = vmatprep.subr.mxu0 %v82
    %499 = vmatpush1.msra.mxu0 %v81
    %500 = vmatprep.subr.mxu0 %v98
    %501 = vmatpush1.msra.mxu0 %v97
    %502 = vmatprep.subr.mxu0 %v114
    %503 = vmatpush1.msra.mxu0 %v113
    %504 = vmatprep.subr.mxu0 %v130
    %505 = vmatpush1.msra.mxu0 %v129
    %506 = vmatprep.subr.mxu0 0.0
    %507 = vmatpush1.msra.mxu0 0.0
    %508 = vmatprep.subr.mxu0 0.0
    %509 = vmatpush1.msra.mxu0 0.0
    %510 = vmatprep.subr.mxu0 0.0
    %511 = vmatpush1.msra.mxu0 0.0
    %512 = vmatprep.subr.mxu0 0.0
    %513 = vmatpush1.msra.mxu0 0.0
    %514 = vmatprep.subr.mxu0 0.0
    %515 = vmatpush1.msra.mxu0 0.0
    %516 = vmatprep.subr.mxu0 0.0
    %517 = vmatpush1.msra.mxu0 0.0
    %518 = vmatprep.subr.mxu0 0.0
    %519 = vmatpush1.msra.mxu0 0.0
    %520 = vmatprep.subr.mxu0 0.0
    %521 = vmatpush1.msra.mxu0 0.0
    %522 = vmatprep.subr.mxu0 0.0
    %523 = vmatpush1.msra.mxu0 0.0
    %524 = vmatprep.subr.mxu0 0.0
    %525 = vmatpush1.msra.mxu0 0.0
    %526 = vmatprep.subr.mxu0 0.0
    %527 = vmatpush1.msra.mxu0 0.0
    %528 = vmatprep.subr.mxu0 0.0
    %529 = vmatpush1.msra.mxu0 0.0
    %530 = vmatprep.subr.mxu0 0.0
    %531 = vmatpush1.msra.mxu0 0.0
    %532 = vmatprep.subr.mxu0 0.0
    %533 = vmatpush1.msra.mxu0 0.0
    %534 = vmatprep.subr.mxu0 0.0
    %535 = vmatpush1.msra.mxu0 0.0
    %536 = vmatprep.subr.mxu0 0.0
    %537 = vmatpush1.msra.mxu0 0.0
    %538 = vmatprep.subr.mxu0 0.0
    %539 = vmatpush1.msra.mxu0 0.0
    %540 = vmatprep.subr.mxu0 0.0
    %541 = vmatpush1.msra.mxu0 0.0
    %542 = vmatprep.subr.mxu0 0.0
    %543 = vmatpush1.msra.mxu0 0.0
    %544 = vmatprep.subr.mxu0 0.0
    %545 = vmatpush1.msra.mxu0 0.0
    %546 = vmatprep.subr.mxu0 0.0
    %547 = vmatpush1.msra.mxu0 0.0
    %548 = vmatprep.subr.mxu0 0.0
    %549 = vmatpush1.msra.mxu0 0.0
    %550 = vmatprep.subr.mxu0 0.0
    %551 = vmatpush1.msra.mxu0 0.0
    %552 = vmatprep.subr.mxu0 0.0
    %553 = vmatpush1.msra.mxu0 0.0
    %554 = vmatprep.subr.mxu0 0.0
    %555 = vmatpush1.msra.mxu0 0.0
    %556 = vmatprep.subr.mxu0 0.0
    %557 = vmatpush1.msra.mxu0 0.0
    %558 = vmatprep.mubr.f32.mxu0 0.0
    %559 = vmatmul.mubr.f32.gmra.mrb[0].mxu0 %v137
    %v560 = vpop.f32.mrb[0].mxu0
    %v561 = vadd.f32 0.0, %v560
    %v562 = vpop.f32.mrb[0].mxu0
    %v563 = vadd.f32 0.0, %v562
    %564 = vdwg.mxu0
    %565 = vmatprep.subr.mxu0 %v52
    %566 = vmatpush1.msra.mxu0 %v51
    %567 = vmatprep.subr.mxu0 %v68
    %568 = vmatpush1.msra.mxu0 %v67
    %569 = vmatprep.subr.mxu0 %v84
    %570 = vmatpush1.msra.mxu0 %v83
    %571 = vmatprep.subr.mxu0 %v100
    %572 = vmatpush1.msra.mxu0 %v99
    %573 = vmatprep.subr.mxu0 %v116
    %574 = vmatpush1.msra.mxu0 %v115
    %575 = vmatprep.subr.mxu0 %v132
    %576 = vmatpush1.msra.mxu0 %v131
    %577 = vmatprep.subr.mxu0 0.0
    %578 = vmatpush1.msra.mxu0 0.0
    %579 = vmatprep.subr.mxu0 0.0
    %580 = vmatpush1.msra.mxu0 0.0
    %581 = vmatprep.subr.mxu0 0.0
    %582 = vmatpush1.msra.mxu0 0.0
    %583 = vmatprep.subr.mxu0 0.0
    %584 = vmatpush1.msra.mxu0 0.0
    %585 = vmatprep.subr.mxu0 0.0
    %586 = vmatpush1.msra.mxu0 0.0
    %587 = vmatprep.subr.mxu0 0.0
    %588 = vmatpush1.msra.mxu0 0.0
    %589 = vmatprep.subr.mxu0 0.0
    %590 = vmatpush1.msra.mxu0 0.0
    %591 = vmatprep.subr.mxu0 0.0
    %592 = vmatpush1.msra.mxu0 0.0
    %593 = vmatprep.subr.mxu0 0.0
    %594 = vmatpush1.msra.mxu0 0.0
    %595 = vmatprep.subr.mxu0 0.0
    %596 = vmatpush1.msra.mxu0 0.0
    %597 = vmatprep.subr.mxu0 0.0
    %598 = vmatpush1.msra.mxu0 0.0
    %599 = vmatprep.subr.mxu0 0.0
    %600 = vmatpush1.msra.mxu0 0.0
    %601 = vmatprep.subr.mxu0 0.0
    %602 = vmatpush1.msra.mxu0 0.0
    %603 = vmatprep.subr.mxu0 0.0
    %604 = vmatpush1.msra.mxu0 0.0
    %605 = vmatprep.subr.mxu0 0.0
    %606 = vmatpush1.msra.mxu0 0.0
    %607 = vmatprep.subr.mxu0 0.0
    %608 = vmatpush1.msra.mxu0 0.0
    %609 = vmatprep.subr.mxu0 0.0
    %610 = vmatpush1.msra.mxu0 0.0
    %611 = vmatprep.subr.mxu0 0.0
    %612 = vmatpush1.msra.mxu0 0.0
    %613 = vmatprep.subr.mxu0 0.0
    %614 = vmatpush1.msra.mxu0 0.0
    %615 = vmatprep.subr.mxu0 0.0
    %616 = vmatpush1.msra.mxu0 0.0
    %617 = vmatprep.subr.mxu0 0.0
    %618 = vmatpush1.msra.mxu0 0.0
    %619 = vmatprep.subr.mxu0 0.0
    %620 = vmatpush1.msra.mxu0 0.0
    %621 = vmatprep.subr.mxu0 0.0
    %622 = vmatpush1.msra.mxu0 0.0
    %623 = vmatprep.subr.mxu0 0.0
    %624 = vmatpush1.msra.mxu0 0.0
    %625 = vmatprep.subr.mxu0 0.0
    %626 = vmatpush1.msra.mxu0 0.0
    %627 = vmatprep.subr.mxu0 0.0
    %628 = vmatpush1.msra.mxu0 0.0
    %629 = vmatprep.mubr.f32.mxu0 0.0
    %630 = vmatmul.mubr.f32.gmra.mrb[0].mxu0 %v137
    %v631 = vpop.f32.mrb[0].mxu0
    %v632 = vadd.f32 0.0, %v631
    %v633 = vpop.f32.mrb[0].mxu0
    %v634 = vadd.f32 0.0, %v633
    %635 = vdwg.mxu0
    %636 = vmatprep.subr.mxu0 %v54
    %637 = vmatpush1.msra.mxu0 %v53
    %638 = vmatprep.subr.mxu0 %v70
    %639 = vmatpush1.msra.mxu0 %v69
    %640 = vmatprep.subr.mxu0 %v86
    %641 = vmatpush1.msra.mxu0 %v85
    %642 = vmatprep.subr.mxu0 %v102
    %643 = vmatpush1.msra.mxu0 %v101
    %644 = vmatprep.subr.mxu0 %v118
    %645 = vmatpush1.msra.mxu0 %v117
    %646 = vmatprep.subr.mxu0 %v134
    %647 = vmatpush1.msra.mxu0 %v133
    %648 = vmatprep.subr.mxu0 0.0
    %649 = vmatpush1.msra.mxu0 0.0
    %650 = vmatprep.subr.mxu0 0.0
    %651 = vmatpush1.msra.mxu0 0.0
    %652 = vmatprep.subr.mxu0 0.0
    %653 = vmatpush1.msra.mxu0 0.0
    %654 = vmatprep.subr.mxu0 0.0
    %655 = vmatpush1.msra.mxu0 0.0
    %656 = vmatprep.subr.mxu0 0.0
    %657 = vmatpush1.msra.mxu0 0.0
    %658 = vmatprep.subr.mxu0 0.0
    %659 = vmatpush1.msra.mxu0 0.0
    %660 = vmatprep.subr.mxu0 0.0
    %661 = vmatpush1.msra.mxu0 0.0
    %662 = vmatprep.subr.mxu0 0.0
    %663 = vmatpush1.msra.mxu0 0.0
    %664 = vmatprep.subr.mxu0 0.0
    %665 = vmatpush1.msra.mxu0 0.0
    %666 = vmatprep.subr.mxu0 0.0
    %667 = vmatpush1.msra.mxu0 0.0
    %668 = vmatprep.subr.mxu0 0.0
    %669 = vmatpush1.msra.mxu0 0.0
    %670 = vmatprep.subr.mxu0 0.0
    %671 = vmatpush1.msra.mxu0 0.0
    %672 = vmatprep.subr.mxu0 0.0
    %673 = vmatpush1.msra.mxu0 0.0
    %674 = vmatprep.subr.mxu0 0.0
    %675 = vmatpush1.msra.mxu0 0.0
    %676 = vmatprep.subr.mxu0 0.0
    %677 = vmatpush1.msra.mxu0 0.0
    %678 = vmatprep.subr.mxu0 0.0
    %679 = vmatpush1.msra.mxu0 0.0
    %680 = vmatprep.subr.mxu0 0.0
    %681 = vmatpush1.msra.mxu0 0.0
    %682 = vmatprep.subr.mxu0 0.0
    %683 = vmatpush1.msra.mxu0 0.0
    %684 = vmatprep.subr.mxu0 0.0
    %685 = vmatpush1.msra.mxu0 0.0
    %686 = vmatprep.subr.mxu0 0.0
    %687 = vmatpush1.msra.mxu0 0.0
    %688 = vmatprep.subr.mxu0 0.0
    %689 = vmatpush1.msra.mxu0 0.0
    %690 = vmatprep.subr.mxu0 0.0
    %691 = vmatpush1.msra.mxu0 0.0
    %692 = vmatprep.subr.mxu0 0.0
    %693 = vmatpush1.msra.mxu0 0.0
    %694 = vmatprep.subr.mxu0 0.0
    %695 = vmatpush1.msra.mxu0 0.0
    %696 = vmatprep.subr.mxu0 0.0
    %697 = vmatpush1.msra.mxu0 0.0
    %698 = vmatprep.subr.mxu0 0.0
    %699 = vmatpush1.msra.mxu0 0.0
    %700 = vmatprep.mubr.f32.mxu0 0.0
    %701 = vmatmul.mubr.f32.gmra.mrb[0].mxu0 %v137
    %v702 = vpop.f32.mrb[0].mxu0
    %v703 = vadd.f32 0.0, %v702
    %v704 = vpop.f32.mrb[0].mxu0
    %v705 = vadd.f32 0.0, %v704
    %706 = vdwg.mxu0
    %vm707 = vcmp.ge.f32.partialorder %v206, 0.0
    %vm708 = vcmp.ge.f32.partialorder %v208, 0.0
    %vm709 = vcmp.ge.f32.partialorder %v277, 0.0
    %vm710 = vcmp.ge.f32.partialorder %v279, 0.0
    %vm711 = vcmp.ge.f32.partialorder %v348, 0.0
    %vm712 = vcmp.ge.f32.partialorder %v350, 0.0
    %vm713 = vcmp.ge.f32.partialorder %v419, 0.0
    %vm714 = vcmp.ge.f32.partialorder %v421, 0.0
    %vm715 = vcmp.ge.f32.partialorder %v490, 0.0
    %vm716 = vcmp.ge.f32.partialorder %v492, 0.0
    %vm717 = vcmp.ge.f32.partialorder %v561, 0.0
    %vm718 = vcmp.ge.f32.partialorder %v563, 0.0
    %vm719 = vcmp.ge.f32.partialorder %v632, 0.0
    %vm720 = vcmp.ge.f32.partialorder %v634, 0.0
    %vm721 = vcmp.ge.f32.partialorder %v703, 0.0
    %vm722 = vcmp.ge.f32.partialorder %v705, 0.0
    %v723 = vmul.f32 %v206, 0.2
    %v724 = vmul.f32 %v208, 0.2
    %v725 = vmul.f32 %v277, 0.2
    %v726 = vmul.f32 %v279, 0.2
    %v727 = vmul.f32 %v348, 0.2
    %v728 = vmul.f32 %v350, 0.2
    %v729 = vmul.f32 %v419, 0.2
    %v730 = vmul.f32 %v421, 0.2
    %v731 = vmul.f32 %v490, 0.2
    %v732 = vmul.f32 %v492, 0.2
    %v733 = vmul.f32 %v561, 0.2
    %v734 = vmul.f32 %v563, 0.2
    %v735 = vmul.f32 %v632, 0.2
    %v736 = vmul.f32 %v634, 0.2
    %v737 = vmul.f32 %v703, 0.2
    %v738 = vmul.f32 %v705, 0.2
    %v739 = vsel %vm707, %v206, %v723
    %v740 = vsel %vm708, %v208, %v724
    %v741 = vsel %vm709, %v277, %v725
    %v742 = vsel %vm710, %v279, %v726
    %v743 = vsel %vm711, %v348, %v727
    %v744 = vsel %vm712, %v350, %v728
    %v745 = vsel %vm713, %v419, %v729
    %v746 = vsel %vm714, %v421, %v730
    %v747 = vsel %vm715, %v490, %v731
    %v748 = vsel %vm716, %v492, %v732
    %v749 = vsel %vm717, %v561, %v733
    %v750 = vsel %vm718, %v563, %v734
    %v751 = vsel %vm719, %v632, %v735
    %v752 = vsel %vm720, %v634, %v736
    %v753 = vsel %vm721, %v703, %v737
    %v754 = vsel %vm722, %v705, %v738
    %755 = vst [vmem:[#allocation7] sm:$0xff] %v739
    %756 = vst [vmem:[#allocation7 + $0x8] sm:$0xff] %v740
    %757 = vst [vmem:[#allocation7 + $0x10] sm:$0xff] %v741
    %758 = vst [vmem:[#allocation7 + $0x18] sm:$0xff] %v742
    %759 = vst [vmem:[#allocation7 + $0x20] sm:$0xff] %v743
    %760 = vst [vmem:[#allocation7 + $0x28] sm:$0xff] %v744
    %761 = vst [vmem:[#allocation7 + $0x30] sm:$0xff] %v745
    %762 = vst [vmem:[#allocation7 + $0x38] sm:$0xff] %v746
    %763 = vst [vmem:[#allocation7 + $0x40] sm:$0xff] %v747
    %764 = vst [vmem:[#allocation7 + $0x48] sm:$0xff] %v748
    %765 = vst [vmem:[#allocation7 + $0x50] sm:$0xff] %v749
    %766 = vst [vmem:[#allocation7 + $0x58] sm:$0xff] %v750
    %767 = vst [vmem:[#allocation7 + $0x60] sm:$0xff] %v751
    %768 = vst [vmem:[#allocation7 + $0x68] sm:$0xff] %v752
    %769 = vst [vmem:[#allocation7 + $0x70] sm:$0xff] %v753
    %770 = vst [vmem:[#allocation7 + $0x78] sm:$0xff] %v754
    // Predicated region
    $region18: #{discriminator_forward.5} parent=1 // pred_check
      _
    $region19: #{discriminator_forward.5} parent=1 // pred_check_branch
      %772 = sbr.rel (0) target = $region21
    $region20: #{discriminator_forward.5} parent=1 // pred_region
      %s774 = ssub.s32 2048, 2048
      %775 = vsyncadd [#allocation4], %s774
      %s777 = sshll.u32 [#allocation7], 4
      %s778 = int_to_ptr.vmem [resolvable:$true] %s777
      %780 = dma.vmem_to_hbm [thread:$0]  %s778, 2048, %s2, [#allocation4]
    $region21: #{discriminator_forward.5} parent=1 // pred_fallthru
      _
    // Predicated region
    $region22: #{discriminator_forward.5} parent=1 // pred_check
      _
    $region23: #{discriminator_forward.5} parent=1 // pred_check_branch
      %782 = sbr.rel (0) target = $region25
    $region24: #{discriminator_forward.5} parent=1 // pred_region
      %783 = dma.done [#allocation4], 2048
    $region25: #{discriminator_forward.5} parent=1 // pred_fallthru
      _
    %784 = vsyncpa [#allocation3], 1
    %785 = vsyncpa [#allocation6], 1
    %786 = vsyncpa [#allocation4], 1

// kernel: discriminator_forward.6
$region0: #{discriminator_forward.6}
  #allocation0 [shape = 'u32[]', space=smem, size = 0x4, offset = 0x4, fixed_abs, tag = 'smem constant byte address 0x4 - core index']
  #allocation1 [shape = 'u32[144,128]{1,0:T(1,128)}', space=vmem, size = 0x12000, scoped, tag = 'internal scratch']
  %s0 = inlined_call_operand.hbm [shape: f32[128,512], index: 0, kind: input, shape index: {}]
  %s1 = inlined_call_operand.hbm [shape: f32[16,128], index: 1, kind: input, shape index: {}]
  %s2 = inlined_call_operand.hbm [shape: f32[16,1], index: 2, kind: input, shape index: {}]
  %s3 = inlined_call_operand.hbm [shape: f32[16,1], index: 3, kind: input, shape index: {}]
  %s4 = inlined_call_operand.hbm [shape: f32[16,512], index: 4, kind: output, shape index: {}]
  %s5 = sld [smem:[#allocation0]]
  $region42: #{discriminator_forward.6} parent=0
    _
  %s7 = ssub.s32 1, %s5
  %s8 = scalar_select 0, %s7, %s5
  $region1: #{discriminator_forward.6} parent=0
    #allocation2 [shape = 'u8[262144]{0}', space=vmem, size = 0x40000, scoped, tag = 'input window, operand 0, single buffered']
    #allocation3 [shape = 's32[1]{0}', space=sflag, size = 0x4, scoped, tag = 'scoped memory for discriminator_forward.6']
    #allocation4 [shape = 's32[1]{0}', space=sflag, size = 0x4, scoped, tag = 'scoped memory for discriminator_forward.6']
    #allocation5 [shape = 'u8[8192]{0}', space=vmem, size = 0x2000, scoped, tag = 'input window, operand 1, single buffered']
    #allocation6 [shape = 's32[1]{0}', space=sflag, size = 0x4, scoped, tag = 'scoped memory for discriminator_forward.6']
    #allocation7 [shape = 'u8[8192]{0}', space=vmem, size = 0x2000, scoped, tag = 'input window, operand 2, single buffered']
    #allocation8 [shape = 'u8[8192]{0}', space=vmem, size = 0x2000, scoped, tag = 'input window, operand 3, single buffered']
    #allocation9 [shape = 's32[1]{0}', space=sflag, size = 0x4, scoped, tag = 'scoped memory for discriminator_forward.6']
    #allocation10 [shape = 'u8[32768]{0}', space=vmem, size = 0x8000, scoped, tag = 'output window, operand 0, single buffered']
    %9 = vsyncpa [#allocation3], 0
    %10 = vsyncpa [#allocation6], 0
    %11 = vsyncpa [#allocation9], 0
    %12 = vsyncpa [#allocation4], 0
    // Predicated region
    $region2: #{discriminator_forward.6} parent=1 // pred_check
      _
    $region3: #{discriminator_forward.6} parent=1 // pred_check_branch
      %14 = sbr.rel (0) target = $region5
    $region4: #{discriminator_forward.6} parent=1 // pred_region
      %s16 = ssub.s32 8192, 8192
      %17 = vsyncadd [#allocation3], %s16
      %s18 = sshll.u32 [#allocation2], 4
      %s19 = int_to_ptr.vmem [resolvable:$true] %s18
      %24 = dma.hbm_to_vmem [thread:$0]  %s0, 8192, %s19, [#allocation3], 512, 512, 32
    $region5: #{discriminator_forward.6} parent=1 // pred_fallthru
      _
    // Predicated region
    $region6: #{discriminator_forward.6} parent=1 // pred_check
      _
    $region7: #{discriminator_forward.6} parent=1 // pred_check_branch
      %26 = sbr.rel (0) target = $region9
    $region8: #{discriminator_forward.6} parent=1 // pred_region
      %s28 = ssub.s32 256, 256
      %29 = vsyncadd [#allocation6], %s28
      %s30 = sshll.u32 [#allocation5], 4
      %s31 = int_to_ptr.vmem [resolvable:$true] %s30
      %36 = dma.hbm_to_vmem [thread:$0]  %s1, 256, %s31, [#allocation6], 128, 128, 8
    $region9: #{discriminator_forward.6} parent=1 // pred_fallthru
      _
    // Predicated region
    $region10: #{discriminator_forward.6} parent=1 // pred_check
      _
    $region11: #{discriminator_forward.6} parent=1 // pred_check_branch
      %38 = sbr.rel (0) target = $region13
    $region12: #{discriminator_forward.6} parent=1 // pred_region
      %s40 = ssub.s32 256, 256
      %41 = vsyncadd [#allocation6], %s40
      %s42 = sshll.u32 [#allocation7], 4
      %s43 = int_to_ptr.vmem [resolvable:$true] %s42
      %48 = dma.hbm_to_vmem [thread:$0]  %s2, 256, %s43, [#allocation6], 128, 128, 8
    $region13: #{discriminator_forward.6} parent=1 // pred_fallthru
      _
    // Predicated region
    $region14: #{discriminator_forward.6} parent=1 // pred_check
      _
    $region15: #{discriminator_forward.6} parent=1 // pred_check_branch
      %50 = sbr.rel (0) target = $region17
    $region16: #{discriminator_forward.6} parent=1 // pred_region
      %s52 = ssub.s32 256, 256
      %53 = vsyncadd [#allocation9], %s52
      %s54 = sshll.u32 [#allocation8], 4
      %s55 = int_to_ptr.vmem [resolvable:$true] %s54
      %60 = dma.hbm_to_vmem [thread:$0]  %s3, 256, %s55, [#allocation9], 128, 128, 8
    $region17: #{discriminator_forward.6} parent=1 // pred_fallthru
      _
    // Predicated region
    $region18: #{discriminator_forward.6} parent=1 // pred_check
      _
    $region19: #{discriminator_forward.6} parent=1 // pred_check_branch
      %62 = sbr.rel (0) target = $region21
    $region20: #{discriminator_forward.6} parent=1 // pred_region
      %63 = dma.done [#allocation3], 8192
    $region21: #{discriminator_forward.6} parent=1 // pred_fallthru
      _
    // Predicated region
    $region22: #{discriminator_forward.6} parent=1 // pred_check
      _
    $region23: #{discriminator_forward.6} parent=1 // pred_check_branch
      %65 = sbr.rel (0) target = $region25
    $region24: #{discriminator_forward.6} parent=1 // pred_region
      %66 = dma.done [#allocation6], 256
    $region25: #{discriminator_forward.6} parent=1 // pred_fallthru
      _
    // Predicated region
    $region26: #{discriminator_forward.6} parent=1 // pred_check
      _
    $region27: #{discriminator_forward.6} parent=1 // pred_check_branch
      %68 = sbr.rel (0) target = $region29
    $region28: #{discriminator_forward.6} parent=1 // pred_region
      %69 = dma.done [#allocation6], 256
    $region29: #{discriminator_forward.6} parent=1 // pred_fallthru
      _
    // Predicated region
    $region30: #{discriminator_forward.6} parent=1 // pred_check
      _
    $region31: #{discriminator_forward.6} parent=1 // pred_check_branch
      %71 = sbr.rel (0) target = $region33
    $region32: #{discriminator_forward.6} parent=1 // pred_region
      %72 = dma.done [#allocation9], 256
    $region33: #{discriminator_forward.6} parent=1 // pred_fallthru
      _
    %v73 = vld [vmem:[#allocation5] sm:$0xff]
    %v74 = vld [vmem:[#allocation5 + $0x8] sm:$0xff]
    %v75 = vld [vmem:[#allocation2] sm:$0xff]
    %v76 = vld [vmem:[#allocation2 + $0x8] sm:$0xff]
    %v77 = vld [vmem:[#allocation2 + $0x10] sm:$0xff]
    %v78 = vld [vmem:[#allocation2 + $0x18] sm:$0xff]
    %v79 = vld [vmem:[#allocation2 + $0x20] sm:$0xff]
    %v80 = vld [vmem:[#allocation2 + $0x28] sm:$0xff]
    %v81 = vld [vmem:[#allocation2 + $0x30] sm:$0xff]
    %v82 = vld [vmem:[#allocation2 + $0x38] sm:$0xff]
    %v83 = vld [vmem:[#allocation2 + $0x40] sm:$0xff]
    %v84 = vld [vmem:[#allocation2 + $0x48] sm:$0xff]
    %v85 = vld [vmem:[#allocation2 + $0x50] sm:$0xff]
    %v86 = vld [vmem:[#allocation2 + $0x58] sm:$0xff]
    %v87 = vld [vmem:[#allocation2 + $0x60] sm:$0xff]
    %v88 = vld [vmem:[#allocation2 + $0x68] sm:$0xff]
    %v89 = vld [vmem:[#allocation2 + $0x70] sm:$0xff]
    %v90 = vld [vmem:[#allocation2 + $0x78] sm:$0xff]
    %v91 = vld [vmem:[#allocation2 + $0x80] sm:$0xff]
    %v92 = vld [vmem:[#allocation2 + $0x88] sm:$0xff]
    %v93 = vld [vmem:[#allocation2 + $0x90] sm:$0xff]
    %v94 = vld [vmem:[#allocation2 + $0x98] sm:$0xff]
    %v95 = vld [vmem:[#allocation2 + $0xa0] sm:$0xff]
    %v96 = vld [vmem:[#allocation2 + $0xa8] sm:$0xff]
    %v97 = vld [vmem:[#allocation2 + $0xb0] sm:$0xff]
    %v98 = vld [vmem:[#allocation2 + $0xb8] sm:$0xff]
    %v99 = vld [vmem:[#allocation2 + $0xc0] sm:$0xff]
    %v100 = vld [vmem:[#allocation2 + $0xc8] sm:$0xff]
    %v101 = vld [vmem:[#allocation2 + $0xd0] sm:$0xff]
    %v102 = vld [vmem:[#allocation2 + $0xd8] sm:$0xff]
    %v103 = vld [vmem:[#allocation2 + $0xe0] sm:$0xff]
    %v104 = vld [vmem:[#allocation2 + $0xe8] sm:$0xff]
    %v105 = vld [vmem:[#allocation2 + $0xf0] sm:$0xff]
    %v106 = vld [vmem:[#allocation2 + $0xf8] sm:$0xff]
    %v107 = vld [vmem:[#allocation2 + $0x100] sm:$0xff]
    %v108 = vld [vmem:[#allocation2 + $0x108] sm:$0xff]
    %v109 = vld [vmem:[#allocation2 + $0x110] sm:$0xff]
    %v110 = vld [vmem:[#allocation2 + $0x118] sm:$0xff]
    %v111 = vld [vmem:[#allocation2 + $0x120] sm:$0xff]
    %v112 = vld [vmem:[#allocation2 + $0x128] sm:$0xff]
    %v113 = vld [vmem:[#allocation2 + $0x130] sm:$0xff]
    %v114 = vld [vmem:[#allocation2 + $0x138] sm:$0xff]
    %v115 = vld [vmem:[#allocation2 + $0x140] sm:$0xff]
    %v116 = vld [vmem:[#allocation2 + $0x148] sm:$0xff]
    %v117 = vld [vmem:[#allocation2 + $0x150] sm:$0xff]
    %v118 = vld [vmem:[#allocation2 + $0x158] sm:$0xff]
    %v119 = vld [vmem:[#allocation2 + $0x160] sm:$0xff]
    %v120 = vld [vmem:[#allocation2 + $0x168] sm:$0xff]
    %v121 = vld [vmem:[#allocation2 + $0x170] sm:$0xff]
    %v122 = vld [vmem:[#allocation2 + $0x178] sm:$0xff]
    %v123 = vld [vmem:[#allocation2 + $0x180] sm:$0xff]
    %v124 = vld [vmem:[#allocation2 + $0x188] sm:$0xff]
    %v125 = vld [vmem:[#allocation2 + $0x190] sm:$0xff]
    %v126 = vld [vmem:[#allocation2 + $0x198] sm:$0xff]
    %v127 = vld [vmem:[#allocation2 + $0x1a0] sm:$0xff]
    %v128 = vld [vmem:[#allocation2 + $0x1a8] sm:$0xff]
    %v129 = vld [vmem:[#allocation2 + $0x1b0] sm:$0xff]
    %v130 = vld [vmem:[#allocation2 + $0x1b8] sm:$0xff]
    %v131 = vld [vmem:[#allocation2 + $0x1c0] sm:$0xff]
    %v132 = vld [vmem:[#allocation2 + $0x1c8] sm:$0xff]
    %v133 = vld [vmem:[#allocation2 + $0x1d0] sm:$0xff]
    %v134 = vld [vmem:[#allocation2 + $0x1d8] sm:$0xff]
    %v135 = vld [vmem:[#allocation2 + $0x1e0] sm:$0xff]
    %v136 = vld [vmem:[#allocation2 + $0x1e8] sm:$0xff]
    %v137 = vld [vmem:[#allocation2 + $0x1f0] sm:$0xff]
    %v138 = vld [vmem:[#allocation2 + $0x1f8] sm:$0xff]
    %139 = vmatprep.subr.mxu0 %v76
    %140 = vmatpush1.msra.mxu0 %v75
    %141 = vmatprep.subr.mxu0 %v80
    %142 = vmatpush1.msra.mxu0 %v79
    %143 = vmatprep.subr.mxu0 %v84
    %144 = vmatpush1.msra.mxu0 %v83
    %145 = vmatprep.subr.mxu0 %v88
    %146 = vmatpush1.msra.mxu0 %v87
    %147 = vmatprep.subr.mxu0 %v92
    %148 = vmatpush1.msra.mxu0 %v91
    %149 = vmatprep.subr.mxu0 %v96
    %150 = vmatpush1.msra.mxu0 %v95
    %151 = vmatprep.subr.mxu0 %v100
    %152 = vmatpush1.msra.mxu0 %v99
    %153 = vmatprep.subr.mxu0 %v104
    %154 = vmatpush1.msra.mxu0 %v103
    %155 = vmatprep.subr.mxu0 %v108
    %156 = vmatpush1.msra.mxu0 %v107
    %157 = vmatprep.subr.mxu0 %v112
    %158 = vmatpush1.msra.mxu0 %v111
    %159 = vmatprep.subr.mxu0 %v116
    %160 = vmatpush1.msra.mxu0 %v115
    %161 = vmatprep.subr.mxu0 %v120
    %162 = vmatpush1.msra.mxu0 %v119
    %163 = vmatprep.subr.mxu0 %v124
    %164 = vmatpush1.msra.mxu0 %v123
    %165 = vmatprep.subr.mxu0 %v128
    %166 = vmatpush1.msra.mxu0 %v127
    %167 = vmatprep.subr.mxu0 %v132
    %168 = vmatpush1.msra.mxu0 %v131
    %169 = vmatprep.subr.mxu0 %v136
    %170 = vmatpush1.msra.mxu0 %v135
    %171 = vmatprep.subr.mxu0 0.0
    %172 = vmatpush1.msra.mxu0 0.0
    %173 = vmatprep.subr.mxu0 0.0
    %174 = vmatpush1.msra.mxu0 0.0
    %175 = vmatprep.subr.mxu0 0.0
    %176 = vmatpush1.msra.mxu0 0.0
    %177 = vmatprep.subr.mxu0 0.0
    %178 = vmatpush1.msra.mxu0 0.0
    %179 = vmatprep.subr.mxu0 0.0
    %180 = vmatpush1.msra.mxu0 0.0
    %181 = vmatprep.subr.mxu0 0.0
    %182 = vmatpush1.msra.mxu0 0.0
    %183 = vmatprep.subr.mxu0 0.0
    %184 = vmatpush1.msra.mxu0 0.0
    %185 = vmatprep.subr.mxu0 0.0
    %186 = vmatpush1.msra.mxu0 0.0
    %187 = vmatprep.subr.mxu0 0.0
    %188 = vmatpush1.msra.mxu0 0.0
    %189 = vmatprep.subr.mxu0 0.0
    %190 = vmatpush1.msra.mxu0 0.0
    %191 = vmatprep.subr.mxu0 0.0
    %192 = vmatpush1.msra.mxu0 0.0
    %193 = vmatprep.subr.mxu0 0.0
    %194 = vmatpush1.msra.mxu0 0.0
    %195 = vmatprep.subr.mxu0 0.0
    %196 = vmatpush1.msra.mxu0 0.0
    %197 = vmatprep.subr.mxu0 0.0
    %198 = vmatpush1.msra.mxu0 0.0
    %199 = vmatprep.subr.mxu0 0.0
    %200 = vmatpush1.msra.mxu0 0.0
    %201 = vmatprep.subr.mxu0 0.0
    %202 = vmatpush1.msra.mxu0 0.0
    %203 = vmatprep.mubr.f32.mxu0 0.0
    %204 = vmatmul.mubr.f32.gmra.mrb[0].mxu0 %v73
    %v205 = vpop.f32.mrb[0].mxu0
    %v206 = vadd.f32 0.0, %v205
    %v207 = vpop.f32.mrb[0].mxu0
    %v208 = vadd.f32 0.0, %v207
    %209 = vmatprep.mubr.f32.mxu0 0.0
    %210 = vmatmul.mubr.f32.gmra.mrb[0].mxu0 %v74
    %v211 = vpop.f32.mrb[0].mxu0
    %v212 = vadd.f32 0.0, %v211
    %v213 = vpop.f32.mrb[0].mxu0
    %v214 = vadd.f32 0.0, %v213
    %215 = vdwg.mxu0
    %216 = vmatprep.subr.mxu0 %v78
    %217 = vmatpush1.msra.mxu0 %v77
    %218 = vmatprep.subr.mxu0 %v82
    %219 = vmatpush1.msra.mxu0 %v81
    %220 = vmatprep.subr.mxu0 %v86
    %221 = vmatpush1.msra.mxu0 %v85
    %222 = vmatprep.subr.mxu0 %v90
    %223 = vmatpush1.msra.mxu0 %v89
    %224 = vmatprep.subr.mxu0 %v94
    %225 = vmatpush1.msra.mxu0 %v93
    %226 = vmatprep.subr.mxu0 %v98
    %227 = vmatpush1.msra.mxu0 %v97
    %228 = vmatprep.subr.mxu0 %v102
    %229 = vmatpush1.msra.mxu0 %v101
    %230 = vmatprep.subr.mxu0 %v106
    %231 = vmatpush1.msra.mxu0 %v105
    %232 = vmatprep.subr.mxu0 %v110
    %233 = vmatpush1.msra.mxu0 %v109
    %234 = vmatprep.subr.mxu0 %v114
    %235 = vmatpush1.msra.mxu0 %v113
    %236 = vmatprep.subr.mxu0 %v118
    %237 = vmatpush1.msra.mxu0 %v117
    %238 = vmatprep.subr.mxu0 %v122
    %239 = vmatpush1.msra.mxu0 %v121
    %240 = vmatprep.subr.mxu0 %v126
    %241 = vmatpush1.msra.mxu0 %v125
    %242 = vmatprep.subr.mxu0 %v130
    %243 = vmatpush1.msra.mxu0 %v129
    %244 = vmatprep.subr.mxu0 %v134
    %245 = vmatpush1.msra.mxu0 %v133
    %246 = vmatprep.subr.mxu0 %v138
    %247 = vmatpush1.msra.mxu0 %v137
    %248 = vmatprep.subr.mxu0 0.0
    %249 = vmatpush1.msra.mxu0 0.0
    %250 = vmatprep.subr.mxu0 0.0
    %251 = vmatpush1.msra.mxu0 0.0
    %252 = vmatprep.subr.mxu0 0.0
    %253 = vmatpush1.msra.mxu0 0.0
    %254 = vmatprep.subr.mxu0 0.0
    %255 = vmatpush1.msra.mxu0 0.0
    %256 = vmatprep.subr.mxu0 0.0
    %257 = vmatpush1.msra.mxu0 0.0
    %258 = vmatprep.subr.mxu0 0.0
    %259 = vmatpush1.msra.mxu0 0.0
    %260 = vmatprep.subr.mxu0 0.0
    %261 = vmatpush1.msra.mxu0 0.0
    %262 = vmatprep.subr.mxu0 0.0
    %263 = vmatpush1.msra.mxu0 0.0
    %264 = vmatprep.subr.mxu0 0.0
    %265 = vmatpush1.msra.mxu0 0.0
    %266 = vmatprep.subr.mxu0 0.0
    %267 = vmatpush1.msra.mxu0 0.0
    %268 = vmatprep.subr.mxu0 0.0
    %269 = vmatpush1.msra.mxu0 0.0
    %270 = vmatprep.subr.mxu0 0.0
    %271 = vmatpush1.msra.mxu0 0.0
    %272 = vmatprep.subr.mxu0 0.0
    %273 = vmatpush1.msra.mxu0 0.0
    %274 = vmatprep.subr.mxu0 0.0
    %275 = vmatpush1.msra.mxu0 0.0
    %276 = vmatprep.subr.mxu0 0.0
    %277 = vmatpush1.msra.mxu0 0.0
    %278 = vmatprep.subr.mxu0 0.0
    %279 = vmatpush1.msra.mxu0 0.0
    %280 = vmatprep.mubr.f32.mxu0 0.0
    %281 = vmatmul.mubr.f32.gmra.mrb[0].mxu0 %v73
    %v282 = vpop.f32.mrb[0].mxu0
    %v283 = vadd.f32 0.0, %v282
    %v284 = vpop.f32.mrb[0].mxu0
    %v285 = vadd.f32 0.0, %v284
    %286 = vmatprep.mubr.f32.mxu0 0.0
    %287 = vmatmul.mubr.f32.gmra.mrb[0].mxu0 %v74
    %v288 = vpop.f32.mrb[0].mxu0
    %v289 = vadd.f32 0.0, %v288
    %v290 = vpop.f32.mrb[0].mxu0
    %v291 = vadd.f32 0.0, %v290
    %292 = vdwg.mxu0
    %v293 = vadd.f32 %v206, %v208
    %v294 = vadd.f32 %v293, %v283
    %v295 = vadd.f32 %v294, %v285
    %296 = vadd.xlane.f32.xlu0 %v295
    %v297 = vpop.xlane.xlu0 %296
    %v298 = vadd.f32 %v212, %v214
    %v299 = vadd.f32 %v298, %v289
    %v300 = vadd.f32 %v299, %v291
    %301 = vadd.xlane.f32.xlu0 %v300
    %v302 = vpop.xlane.xlu0 %301
    %v303 = vrcp.pop 512.0
    %v304 = vmul.f32 %v297, %v303
    %v305 = vmul.f32 %v302, %v303
    %v306 = vsub.f32 %v206, %v304
    %v307 = vsub.f32 %v208, %v304
    %v308 = vsub.f32 %v283, %v304
    %v309 = vsub.f32 %v285, %v304
    %v310 = vsub.f32 %v212, %v305
    %v311 = vsub.f32 %v214, %v305
    %v312 = vsub.f32 %v289, %v305
    %v313 = vsub.f32 %v291, %v305
    %v314 = vmul.f32 %v306, %v306
    %v315 = vmul.f32 %v307, %v307
    %v316 = vmul.f32 %v308, %v308
    %v317 = vmul.f32 %v309, %v309
    %v318 = vmul.f32 %v310, %v310
    %v319 = vmul.f32 %v311, %v311
    %v320 = vmul.f32 %v312, %v312
    %v321 = vmul.f32 %v313, %v313
    %v322 = vadd.f32 %v314, %v315
    %v323 = vadd.f32 %v322, %v316
    %v324 = vadd.f32 %v323, %v317
    %325 = vadd.xlane.f32.xlu0 %v324
    %v326 = vpop.xlane.xlu0 %325
    %v327 = vadd.f32 %v318, %v319
    %v328 = vadd.f32 %v327, %v320
    %v329 = vadd.f32 %v328, %v321
    %330 = vadd.xlane.f32.xlu0 %v329
    %v331 = vpop.xlane.xlu0 %330
    %v332 = vmul.f32 %v326, %v303
    %v333 = vmul.f32 %v331, %v303
    %v334 = vadd.f32 %v332, 1e-05
    %v335 = vadd.f32 %v333, 1e-05
    %v336 = vrsqrt.pop %v334
    %v337 = vrsqrt.pop %v335
    %v338 = vmul.f32 %v306, %v336
    %v339 = vmul.f32 %v307, %v336
    %v340 = vmul.f32 %v308, %v336
    %v341 = vmul.f32 %v309, %v336
    %v342 = vmul.f32 %v310, %v337
    %v343 = vmul.f32 %v311, %v337
    %v344 = vmul.f32 %v312, %v337
    %v345 = vmul.f32 %v313, %v337
    %v346 = vld [vmem:[#allocation7] sm:$0xff]
    %v347 = vld [vmem:[#allocation7 + $0x8] sm:$0xff]
    %349 = vset.pattern.permute.xlu0 0
    %350 = vperm.xlu0 %349, %v346
    %v351 = vpop.permute.xlu0 %350
    %354 = vset.pattern.permute.xlu0 0
    %355 = vperm.xlu0 %354, %v347
    %v356 = vpop.permute.xlu0 %355
    %v358 = vmul.f32 %v338, %v351
    %v359 = vmul.f32 %v339, %v351
    %v360 = vmul.f32 %v340, %v351
    %v361 = vmul.f32 %v341, %v351
    %v362 = vmul.f32 %v342, %v356
    %v363 = vmul.f32 %v343, %v356
    %v364 = vmul.f32 %v344, %v356
    %v365 = vmul.f32 %v345, %v356
    %v366 = vld [vmem:[#allocation8] sm:$0xff]
    %v367 = vld [vmem:[#allocation8 + $0x8] sm:$0xff]
    %369 = vset.pattern.permute.xlu0 0
    %370 = vperm.xlu0 %369, %v366
    %v371 = vpop.permute.xlu0 %370
    %374 = vset.pattern.permute.xlu0 0
    %375 = vperm.xlu0 %374, %v367
    %v376 = vpop.permute.xlu0 %375
    %v378 = vadd.f32 %v358, %v371
    %v379 = vadd.f32 %v359, %v371
    %v380 = vadd.f32 %v360, %v371
    %v381 = vadd.f32 %v361, %v371
    %v382 = vadd.f32 %v362, %v376
    %v383 = vadd.f32 %v363, %v376
    %v384 = vadd.f32 %v364, %v376
    %v385 = vadd.f32 %v365, %v376
    %vm386 = vcmp.ge.f32.partialorder %v378, 0.0
    %vm387 = vcmp.ge.f32.partialorder %v379, 0.0
    %vm388 = vcmp.ge.f32.partialorder %v380, 0.0
    %vm389 = vcmp.ge.f32.partialorder %v381, 0.0
    %vm390 = vcmp.ge.f32.partialorder %v382, 0.0
    %vm391 = vcmp.ge.f32.partialorder %v383, 0.0
    %vm392 = vcmp.ge.f32.partialorder %v384, 0.0
    %vm393 = vcmp.ge.f32.partialorder %v385, 0.0
    %v394 = vmul.f32 %v378, 0.2
    %v395 = vmul.f32 %v379, 0.2
    %v396 = vmul.f32 %v380, 0.2
    %v397 = vmul.f32 %v381, 0.2
    %v398 = vmul.f32 %v382, 0.2
    %v399 = vmul.f32 %v383, 0.2
    %v400 = vmul.f32 %v384, 0.2
    %v401 = vmul.f32 %v385, 0.2
    %v402 = vsel %vm386, %v378, %v394
    %v403 = vsel %vm387, %v379, %v395
    %v404 = vsel %vm388, %v380, %v396
    %v405 = vsel %vm389, %v381, %v397
    %v406 = vsel %vm390, %v382, %v398
    %v407 = vsel %vm391, %v383, %v399
    %v408 = vsel %vm392, %v384, %v400
    %v409 = vsel %vm393, %v385, %v401
    %410 = vst [vmem:[#allocation10] sm:$0xff] %v402
    %411 = vst [vmem:[#allocation10 + $0x8] sm:$0xff] %v403
    %412 = vst [vmem:[#allocation10 + $0x10] sm:$0xff] %v404
    %413 = vst [vmem:[#allocation10 + $0x18] sm:$0xff] %v405
    %414 = vst [vmem:[#allocation10 + $0x20] sm:$0xff] %v406
    %415 = vst [vmem:[#allocation10 + $0x28] sm:$0xff] %v407
    %416 = vst [vmem:[#allocation10 + $0x30] sm:$0xff] %v408
    %417 = vst [vmem:[#allocation10 + $0x38] sm:$0xff] %v409
    // Predicated region
    $region34: #{discriminator_forward.6} parent=1 // pred_check
      _
    $region35: #{discriminator_forward.6} parent=1 // pred_check_branch
      %419 = sbr.rel (0) target = $region37
    $region36: #{discriminator_forward.6} parent=1 // pred_region
      %s421 = ssub.s32 1024, 1024
      %422 = vsyncadd [#allocation4], %s421
      %s423 = sshll.u32 [#allocation10], 4
      %s424 = int_to_ptr.vmem [resolvable:$true] %s423
      %429 = dma.vmem_to_hbm [thread:$0]  %s424, 1024, %s4, [#allocation4], 512, 512, 32
    $region37: #{discriminator_forward.6} parent=1 // pred_fallthru
      _
    // Predicated region
    $region38: #{discriminator_forward.6} parent=1 // pred_check
      _
    $region39: #{discriminator_forward.6} parent=1 // pred_check_branch
      %431 = sbr.rel (0) target = $region41
    $region40: #{discriminator_forward.6} parent=1 // pred_region
      %432 = dma.done [#allocation4], 1024
    $region41: #{discriminator_forward.6} parent=1 // pred_fallthru
      _
    %433 = vsyncpa [#allocation3], 1
    %434 = vsyncpa [#allocation6], 1
    %435 = vsyncpa [#allocation9], 1
    %436 = vsyncpa [#allocation4], 1

// kernel: discriminator_forward.7
$region0: #{discriminator_forward.7}
  #allocation0 [shape = 'u32[]', space=smem, size = 0x4, offset = 0x4, fixed_abs, tag = 'smem constant byte address 0x4 - core index']
  #allocation1 [shape = 'u32[144,128]{1,0:T(1,128)}', space=vmem, size = 0x12000, scoped, tag = 'internal scratch']
  %s0 = inlined_call_operand.hbm [shape: f32[256,128], index: 0, kind: input, shape index: {}]
  %s1 = inlined_call_operand.hbm [shape: f32[32,256], index: 1, kind: input, shape index: {}]
  %s2 = inlined_call_operand.hbm [shape: f32[32,1], index: 2, kind: input, shape index: {}]
  %s3 = inlined_call_operand.hbm [shape: f32[32,1], index: 3, kind: input, shape index: {}]
  %s4 = inlined_call_operand.hbm [shape: f32[32,128], index: 4, kind: output, shape index: {}]
  %s5 = sld [smem:[#allocation0]]
  $region42: #{discriminator_forward.7} parent=0
    _
  %s7 = ssub.s32 1, %s5
  %s8 = scalar_select 0, %s7, %s5
  $region1: #{discriminator_forward.7} parent=0
    #allocation2 [shape = 'u8[131072]{0}', space=vmem, size = 0x20000, scoped, tag = 'input window, operand 0, single buffered']
    #allocation3 [shape = 's32[1]{0}', space=sflag, size = 0x4, scoped, tag = 'scoped memory for discriminator_forward.7']
    #allocation4 [shape = 's32[1]{0}', space=sflag, size = 0x4, scoped, tag = 'scoped memory for discriminator_forward.7']
    #allocation5 [shape = 'u8[32768]{0}', space=vmem, size = 0x8000, scoped, tag = 'input window, operand 1, single buffered']
    #allocation6 [shape = 's32[1]{0}', space=sflag, size = 0x4, scoped, tag = 'scoped memory for discriminator_forward.7']
    #allocation7 [shape = 'u8[16384]{0}', space=vmem, size = 0x4000, scoped, tag = 'input window, operand 2, single buffered']
    #allocation8 [shape = 'u8[16384]{0}', space=vmem, size = 0x4000, scoped, tag = 'input window, operand 3, single buffered']
    #allocation9 [shape = 's32[1]{0}', space=sflag, size = 0x4, scoped, tag = 'scoped memory for discriminator_forward.7']
    #allocation10 [shape = 'u8[16384]{0}', space=vmem, size = 0x4000, scoped, tag = 'output window, operand 0, single buffered']
    %9 = vsyncpa [#allocation3], 0
    %10 = vsyncpa [#allocation6], 0
    %11 = vsyncpa [#allocation9], 0
    %12 = vsyncpa [#allocation4], 0
    // Predicated region
    $region2: #{discriminator_forward.7} parent=1 // pred_check
      _
    $region3: #{discriminator_forward.7} parent=1 // pred_check_branch
      %14 = sbr.rel (0) target = $region5
    $region4: #{discriminator_forward.7} parent=1 // pred_region
      %s16 = ssub.s32 4096, 4096
      %17 = vsyncadd [#allocation3], %s16
      %s18 = sshll.u32 [#allocation2], 4
      %s19 = int_to_ptr.vmem [resolvable:$true] %s18
      %24 = dma.hbm_to_vmem [thread:$0]  %s0, 4096, %s19, [#allocation3], 128, 128, 8
    $region5: #{discriminator_forward.7} parent=1 // pred_fallthru
      _
    // Predicated region
    $region6: #{discriminator_forward.7} parent=1 // pred_check
      _
    $region7: #{discriminator_forward.7} parent=1 // pred_check_branch
      %26 = sbr.rel (0) target = $region9
    $region8: #{discriminator_forward.7} parent=1 // pred_region
      %s28 = ssub.s32 1024, 1024
      %29 = vsyncadd [#allocation6], %s28
      %s30 = sshll.u32 [#allocation5], 4
      %s31 = int_to_ptr.vmem [resolvable:$true] %s30
      %36 = dma.hbm_to_vmem [thread:$0]  %s1, 1024, %s31, [#allocation6], 256, 256, 16
    $region9: #{discriminator_forward.7} parent=1 // pred_fallthru
      _
    // Predicated region
    $region10: #{discriminator_forward.7} parent=1 // pred_check
      _
    $region11: #{discriminator_forward.7} parent=1 // pred_check_branch
      %38 = sbr.rel (0) target = $region13
    $region12: #{discriminator_forward.7} parent=1 // pred_region
      %s40 = ssub.s32 512, 512
      %41 = vsyncadd [#allocation6], %s40
      %s42 = sshll.u32 [#allocation7], 4
      %s43 = int_to_ptr.vmem [resolvable:$true] %s42
      %48 = dma.hbm_to_vmem [thread:$0]  %s2, 512, %s43, [#allocation6], 128, 128, 8
    $region13: #{discriminator_forward.7} parent=1 // pred_fallthru
      _
    // Predicated region
    $region14: #{discriminator_forward.7} parent=1 // pred_check
      _
    $region15: #{discriminator_forward.7} parent=1 // pred_check_branch
      %50 = sbr.rel (0) target = $region17
    $region16: #{discriminator_forward.7} parent=1 // pred_region
      %s52 = ssub.s32 512, 512
      %53 = vsyncadd [#allocation9], %s52
      %s54 = sshll.u32 [#allocation8], 4
      %s55 = int_to_ptr.vmem [resolvable:$true] %s54
      %60 = dma.hbm_to_vmem [thread:$0]  %s3, 512, %s55, [#allocation9], 128, 128, 8
    $region17: #{discriminator_forward.7} parent=1 // pred_fallthru
      _
    // Predicated region
    $region18: #{discriminator_forward.7} parent=1 // pred_check
      _
    $region19: #{discriminator_forward.7} parent=1 // pred_check_branch
      %62 = sbr.rel (0) target = $region21
    $region20: #{discriminator_forward.7} parent=1 // pred_region
      %63 = dma.done [#allocation3], 4096
    $region21: #{discriminator_forward.7} parent=1 // pred_fallthru
      _
    // Predicated region
    $region22: #{discriminator_forward.7} parent=1 // pred_check
      _
    $region23: #{discriminator_forward.7} parent=1 // pred_check_branch
      %65 = sbr.rel (0) target = $region25
    $region24: #{discriminator_forward.7} parent=1 // pred_region
      %66 = dma.done [#allocation6], 1024
    $region25: #{discriminator_forward.7} parent=1 // pred_fallthru
      _
    // Predicated region
    $region26: #{discriminator_forward.7} parent=1 // pred_check
      _
    $region27: #{discriminator_forward.7} parent=1 // pred_check_branch
      %68 = sbr.rel (0) target = $region29
    $region28: #{discriminator_forward.7} parent=1 // pred_region
      %69 = dma.done [#allocation6], 512
    $region29: #{discriminator_forward.7} parent=1 // pred_fallthru
      _
    // Predicated region
    $region30: #{discriminator_forward.7} parent=1 // pred_check
      _
    $region31: #{discriminator_forward.7} parent=1 // pred_check_branch
      %71 = sbr.rel (0) target = $region33
    $region32: #{discriminator_forward.7} parent=1 // pred_region
      %72 = dma.done [#allocation9], 512
    $region33: #{discriminator_forward.7} parent=1 // pred_fallthru
      _
    %v73 = vld [vmem:[#allocation5] sm:$0xff]
    %v74 = vld [vmem:[#allocation5 + $0x8] sm:$0xff]
    %v75 = vld [vmem:[#allocation5 + $0x10] sm:$0xff]
    %v76 = vld [vmem:[#allocation5 + $0x18] sm:$0xff]
    %v77 = vld [vmem:[#allocation5 + $0x20] sm:$0xff]
    %v78 = vld [vmem:[#allocation5 + $0x28] sm:$0xff]
    %v79 = vld [vmem:[#allocation5 + $0x30] sm:$0xff]
    %v80 = vld [vmem:[#allocation5 + $0x38] sm:$0xff]
    %v81 = vld [vmem:[#allocation2] sm:$0xff]
    %v82 = vld [vmem:[#allocation2 + $0x8] sm:$0xff]
    %v83 = vld [vmem:[#allocation2 + $0x10] sm:$0xff]
    %v84 = vld [vmem:[#allocation2 + $0x18] sm:$0xff]
    %v85 = vld [vmem:[#allocation2 + $0x20] sm:$0xff]
    %v86 = vld [vmem:[#allocation2 + $0x28] sm:$0xff]
    %v87 = vld [vmem:[#allocation2 + $0x30] sm:$0xff]
    %v88 = vld [vmem:[#allocation2 + $0x38] sm:$0xff]
    %v89 = vld [vmem:[#allocation2 + $0x40] sm:$0xff]
    %v90 = vld [vmem:[#allocation2 + $0x48] sm:$0xff]
    %v91 = vld [vmem:[#allocation2 + $0x50] sm:$0xff]
    %v92 = vld [vmem:[#allocation2 + $0x58] sm:$0xff]
    %v93 = vld [vmem:[#allocation2 + $0x60] sm:$0xff]
    %v94 = vld [vmem:[#allocation2 + $0x68] sm:$0xff]
    %v95 = vld [vmem:[#allocation2 + $0x70] sm:$0xff]
    %v96 = vld [vmem:[#allocation2 + $0x78] sm:$0xff]
    %v97 = vld [vmem:[#allocation2 + $0x80] sm:$0xff]
    %v98 = vld [vmem:[#allocation2 + $0x88] sm:$0xff]
    %v99 = vld [vmem:[#allocation2 + $0x90] sm:$0xff]
    %v100 = vld [vmem:[#allocation2 + $0x98] sm:$0xff]
    %v101 = vld [vmem:[#allocation2 + $0xa0] sm:$0xff]
    %v102 = vld [vmem:[#allocation2 + $0xa8] sm:$0xff]
    %v103 = vld [vmem:[#allocation2 + $0xb0] sm:$0xff]
    %v104 = vld [vmem:[#allocation2 + $0xb8] sm:$0xff]
    %v105 = vld [vmem:[#allocation2 + $0xc0] sm:$0xff]
    %v106 = vld [vmem:[#allocation2 + $0xc8] sm:$0xff]
    %v107 = vld [vmem:[#allocation2 + $0xd0] sm:$0xff]
    %v108 = vld [vmem:[#allocation2 + $0xd8] sm:$0xff]
    %v109 = vld [vmem:[#allocation2 + $0xe0] sm:$0xff]
    %v110 = vld [vmem:[#allocation2 + $0xe8] sm:$0xff]
    %v111 = vld [vmem:[#allocation2 + $0xf0] sm:$0xff]
    %v112 = vld [vmem:[#allocation2 + $0xf8] sm:$0xff]
    %113 = vmatprep.subr.mxu0 0.0
    %114 = vmatpush1.msra.mxu0 %v81
    %115 = vmatprep.subr.mxu0 0.0
    %116 = vmatpush1.msra.mxu0 %v82
    %117 = vmatprep.subr.mxu0 0.0
    %118 = vmatpush1.msra.mxu0 %v83
    %119 = vmatprep.subr.mxu0 0.0
    %120 = vmatpush1.msra.mxu0 %v84
    %121 = vmatprep.subr.mxu0 0.0
    %122 = vmatpush1.msra.mxu0 %v85
    %123 = vmatprep.subr.mxu0 0.0
    %124 = vmatpush1.msra.mxu0 %v86
    %125 = vmatprep.subr.mxu0 0.0
    %126 = vmatpush1.msra.mxu0 %v87
    %127 = vmatprep.subr.mxu0 0.0
    %128 = vmatpush1.msra.mxu0 %v88
    %129 = vmatprep.subr.mxu0 0.0
    %130 = vmatpush1.msra.mxu0 %v89
    %131 = vmatprep.subr.mxu0 0.0
    %132 = vmatpush1.msra.mxu0 %v90
    %133 = vmatprep.subr.mxu0 0.0
    %134 = vmatpush1.msra.mxu0 %v91
    %135 = vmatprep.subr.mxu0 0.0
    %136 = vmatpush1.msra.mxu0 %v92
    %137 = vmatprep.subr.mxu0 0.0
    %138 = vmatpush1.msra.mxu0 %v93
    %139 = vmatprep.subr.mxu0 0.0
    %140 = vmatpush1.msra.mxu0 %v94
    %141 = vmatprep.subr.mxu0 0.0
    %142 = vmatpush1.msra.mxu0 %v95
    %143 = vmatprep.subr.mxu0 0.0
    %144 = vmatpush1.msra.mxu0 %v96
    %145 = vmatprep.subr.mxu0 0.0
    %146 = vmatpush1.msra.mxu0 %v97
    %147 = vmatprep.subr.mxu0 0.0
    %148 = vmatpush1.msra.mxu0 %v98
    %149 = vmatprep.subr.mxu0 0.0
    %150 = vmatpush1.msra.mxu0 %v99
    %151 = vmatprep.subr.mxu0 0.0
    %152 = vmatpush1.msra.mxu0 %v100
    %153 = vmatprep.subr.mxu0 0.0
    %154 = vmatpush1.msra.mxu0 %v101
    %155 = vmatprep.subr.mxu0 0.0
    %156 = vmatpush1.msra.mxu0 %v102
    %157 = vmatprep.subr.mxu0 0.0
    %158 = vmatpush1.msra.mxu0 %v103
    %159 = vmatprep.subr.mxu0 0.0
    %160 = vmatpush1.msra.mxu0 %v104
    %161 = vmatprep.subr.mxu0 0.0
    %162 = vmatpush1.msra.mxu0 %v105
    %163 = vmatprep.subr.mxu0 0.0
    %164 = vmatpush1.msra.mxu0 %v106
    %165 = vmatprep.subr.mxu0 0.0
    %166 = vmatpush1.msra.mxu0 %v107
    %167 = vmatprep.subr.mxu0 0.0
    %168 = vmatpush1.msra.mxu0 %v108
    %169 = vmatprep.subr.mxu0 0.0
    %170 = vmatpush1.msra.mxu0 %v109
    %171 = vmatprep.subr.mxu0 0.0
    %172 = vmatpush1.msra.mxu0 %v110
    %173 = vmatprep.subr.mxu0 0.0
    %174 = vmatpush1.msra.mxu0 %v111
    %175 = vmatprep.subr.mxu0 0.0
    %176 = vmatpush1.msra.mxu0 %v112
    %177 = vmatprep.mubr.f32.mxu0 %v74
    %178 = vmatmul.mubr.f32.gmra.mrb[0].mxu0 %v73
    %v179 = vpop.f32.mrb[0].mxu0
    %v180 = vadd.f32 0.0, %v179
    %v181 = vpop.f32.mrb[0].mxu0
    %182 = vmatprep.mubr.f32.mxu0 %v76
    %183 = vmatmul.mubr.f32.gmra.mrb[0].mxu0 %v75
    %v184 = vpop.f32.mrb[0].mxu0
    %v185 = vadd.f32 0.0, %v184
    %v186 = vpop.f32.mrb[0].mxu0
    %187 = vmatprep.mubr.f32.mxu0 %v78
    %188 = vmatmul.mubr.f32.gmra.mrb[0].mxu0 %v77
    %v189 = vpop.f32.mrb[0].mxu0
    %v190 = vadd.f32 0.0, %v189
    %v191 = vpop.f32.mrb[0].mxu0
    %192 = vmatprep.mubr.f32.mxu0 %v80
    %193 = vmatmul.mubr.f32.gmra.mrb[0].mxu0 %v79
    %v194 = vpop.f32.mrb[0].mxu0
    %v195 = vadd.f32 0.0, %v194
    %v196 = vpop.f32.mrb[0].mxu0
    %197 = vdwg.mxu0
    %198 = vadd.xlane.f32.xlu0 %v180
    %v199 = vpop.xlane.xlu0 %198
    %200 = vadd.xlane.f32.xlu0 %v185
    %v201 = vpop.xlane.xlu0 %200
    %202 = vadd.xlane.f32.xlu0 %v190
    %v203 = vpop.xlane.xlu0 %202
    %204 = vadd.xlane.f32.xlu0 %v195
    %v205 = vpop.xlane.xlu0 %204
    %v206 = vrcp.pop 128.0
    %v207 = vmul.f32 %v199, %v206
    %v208 = vmul.f32 %v201, %v206
    %v209 = vmul.f32 %v203, %v206
    %v210 = vmul.f32 %v205, %v206
    %v211 = vsub.f32 %v180, %v207
    %v212 = vsub.f32 %v185, %v208
    %v213 = vsub.f32 %v190, %v209
    %v214 = vsub.f32 %v195, %v210
    %v215 = vmul.f32 %v211, %v211
    %v216 = vmul.f32 %v212, %v212
    %v217 = vmul.f32 %v213, %v213
    %v218 = vmul.f32 %v214, %v214
    %219 = vadd.xlane.f32.xlu0 %v215
    %v220 = vpop.xlane.xlu0 %219
    %221 = vadd.xlane.f32.xlu0 %v216
    %v222 = vpop.xlane.xlu0 %221
    %223 = vadd.xlane.f32.xlu0 %v217
    %v224 = vpop.xlane.xlu0 %223
    %225 = vadd.xlane.f32.xlu0 %v218
    %v226 = vpop.xlane.xlu0 %225
    %v227 = vmul.f32 %v220, %v206
    %v228 = vmul.f32 %v222, %v206
    %v229 = vmul.f32 %v224, %v206
    %v230 = vmul.f32 %v226, %v206
    %v231 = vadd.f32 %v227, 1e-05
    %v232 = vadd.f32 %v228, 1e-05
    %v233 = vadd.f32 %v229, 1e-05
    %v234 = vadd.f32 %v230, 1e-05
    %v235 = vrsqrt.pop %v231
    %v236 = vrsqrt.pop %v232
    %v237 = vrsqrt.pop %v233
    %v238 = vrsqrt.pop %v234
    %v239 = vmul.f32 %v211, %v235
    %v240 = vmul.f32 %v212, %v236
    %v241 = vmul.f32 %v213, %v237
    %v242 = vmul.f32 %v214, %v238
    %v243 = vld [vmem:[#allocation7] sm:$0xff]
    %v244 = vld [vmem:[#allocation7 + $0x8] sm:$0xff]
    %v245 = vld [vmem:[#allocation7 + $0x10] sm:$0xff]
    %v246 = vld [vmem:[#allocation7 + $0x18] sm:$0xff]
    %248 = vset.pattern.permute.xlu0 0
    %249 = vperm.xlu0 %248, %v243
    %v250 = vpop.permute.xlu0 %249
    %253 = vset.pattern.permute.xlu0 0
    %254 = vperm.xlu0 %253, %v244
    %v255 = vpop.permute.xlu0 %254
    %258 = vset.pattern.permute.xlu0 0
    %259 = vperm.xlu0 %258, %v245
    %v260 = vpop.permute.xlu0 %259
    %263 = vset.pattern.permute.xlu0 0
    %264 = vperm.xlu0 %263, %v246
    %v265 = vpop.permute.xlu0 %264
    %v267 = vmul.f32 %v239, %v250
    %v268 = vmul.f32 %v240, %v255
    %v269 = vmul.f32 %v241, %v260
    %v270 = vmul.f32 %v242, %v265
    %v271 = vld [vmem:[#allocation8] sm:$0xff]
    %v272 = vld [vmem:[#allocation8 + $0x8] sm:$0xff]
    %v273 = vld [vmem:[#allocation8 + $0x10] sm:$0xff]
    %v274 = vld [vmem:[#allocation8 + $0x18] sm:$0xff]
    %276 = vset.pattern.permute.xlu0 0
    %277 = vperm.xlu0 %276, %v271
    %v278 = vpop.permute.xlu0 %277
    %281 = vset.pattern.permute.xlu0 0
    %282 = vperm.xlu0 %281, %v272
    %v283 = vpop.permute.xlu0 %282
    %286 = vset.pattern.permute.xlu0 0
    %287 = vperm.xlu0 %286, %v273
    %v288 = vpop.permute.xlu0 %287
    %291 = vset.pattern.permute.xlu0 0
    %292 = vperm.xlu0 %291, %v274
    %v293 = vpop.permute.xlu0 %292
    %v295 = vadd.f32 %v267, %v278
    %v296 = vadd.f32 %v268, %v283
    %v297 = vadd.f32 %v269, %v288
    %v298 = vadd.f32 %v270, %v293
    %vm299 = vcmp.ge.f32.partialorder %v295, 0.0
    %vm300 = vcmp.ge.f32.partialorder %v296, 0.0
    %vm301 = vcmp.ge.f32.partialorder %v297, 0.0
    %vm302 = vcmp.ge.f32.partialorder %v298, 0.0
    %v303 = vmul.f32 %v295, 0.2
    %v304 = vmul.f32 %v296, 0.2
    %v305 = vmul.f32 %v297, 0.2
    %v306 = vmul.f32 %v298, 0.2
    %v307 = vsel %vm299, %v295, %v303
    %v308 = vsel %vm300, %v296, %v304
    %v309 = vsel %vm301, %v297, %v305
    %v310 = vsel %vm302, %v298, %v306
    %311 = vst [vmem:[#allocation10] sm:$0xff] %v307
    %312 = vst [vmem:[#allocation10 + $0x8] sm:$0xff] %v308
    %313 = vst [vmem:[#allocation10 + $0x10] sm:$0xff] %v309
    %314 = vst [vmem:[#allocation10 + $0x18] sm:$0xff] %v310
    // Predicated region
    $region34: #{discriminator_forward.7} parent=1 // pred_check
      _
    $region35: #{discriminator_forward.7} parent=1 // pred_check_branch
      %316 = sbr.rel (0) target = $region37
    $region36: #{discriminator_forward.7} parent=1 // pred_region
      %s318 = ssub.s32 512, 512
      %319 = vsyncadd [#allocation4], %s318
      %s320 = sshll.u32 [#allocation10], 4
      %s321 = int_to_ptr.vmem [resolvable:$true] %s320
      %326 = dma.vmem_to_hbm [thread:$0]  %s321, 512, %s4, [#allocation4], 128, 128, 8
    $region37: #{discriminator_forward.7} parent=1 // pred_fallthru
      _
    // Predicated region
    $region38: #{discriminator_forward.7} parent=1 // pred_check
      _
    $region39: #{discriminator_forward.7} parent=1 // pred_check_branch
      %328 = sbr.rel (0) target = $region41
    $region40: #{discriminator_forward.7} parent=1 // pred_region
      %329 = dma.done [#allocation4], 512
    $region41: #{discriminator_forward.7} parent=1 // pred_fallthru
      _
    %330 = vsyncpa [#allocation3], 1
    %331 = vsyncpa [#allocation6], 1
    %332 = vsyncpa [#allocation9], 1
    %333 = vsyncpa [#allocation4], 1

// kernel: discriminator_forward.8
$region0: #{discriminator_forward.8}
  #allocation0 [shape = 'u32[]', space=smem, size = 0x4, offset = 0x4, fixed_abs, tag = 'smem constant byte address 0x4 - core index']
  #allocation1 [shape = 'u32[144,128]{1,0:T(1,128)}', space=vmem, size = 0x12000, scoped, tag = 'internal scratch']
  %s0 = inlined_call_operand.hbm [shape: f32[512,32], index: 0, kind: input, shape index: {}]
  %s1 = inlined_call_operand.hbm [shape: f32[64,512], index: 1, kind: input, shape index: {}]
  %s2 = inlined_call_operand.hbm [shape: f32[64,1], index: 2, kind: input, shape index: {}]
  %s3 = inlined_call_operand.hbm [shape: f32[64,1], index: 3, kind: input, shape index: {}]
  %s4 = inlined_call_operand.hbm [shape: f32[64,32], index: 4, kind: output, shape index: {}]
  %s5 = sld [smem:[#allocation0]]
  $region42: #{discriminator_forward.8} parent=0
    _
  %s7 = ssub.s32 1, %s5
  %s8 = scalar_select 0, %s7, %s5
  $region1: #{discriminator_forward.8} parent=0
    #allocation2 [shape = 'u8[262144]{0}', space=vmem, size = 0x40000, scoped, tag = 'input window, operand 0, single buffered']
    #allocation3 [shape = 's32[1]{0}', space=sflag, size = 0x4, scoped, tag = 'scoped memory for discriminator_forward.8']
    #allocation4 [shape = 's32[1]{0}', space=sflag, size = 0x4, scoped, tag = 'scoped memory for discriminator_forward.8']
    #allocation5 [shape = 'u8[131072]{0}', space=vmem, size = 0x20000, scoped, tag = 'input window, operand 1, single buffered']
    #allocation6 [shape = 's32[1]{0}', space=sflag, size = 0x4, scoped, tag = 'scoped memory for discriminator_forward.8']
    #allocation7 [shape = 'u8[32768]{0}', space=vmem, size = 0x8000, scoped, tag = 'input window, operand 2, single buffered']
    #allocation8 [shape = 'u8[32768]{0}', space=vmem, size = 0x8000, scoped, tag = 'input window, operand 3, single buffered']
    #allocation9 [shape = 's32[1]{0}', space=sflag, size = 0x4, scoped, tag = 'scoped memory for discriminator_forward.8']
    #allocation10 [shape = 'u8[32768]{0}', space=vmem, size = 0x8000, scoped, tag = 'output window, operand 0, single buffered']
    %9 = vsyncpa [#allocation3], 0
    %10 = vsyncpa [#allocation6], 0
    %11 = vsyncpa [#allocation9], 0
    %12 = vsyncpa [#allocation4], 0
    // Predicated region
    $region2: #{discriminator_forward.8} parent=1 // pred_check
      _
    $region3: #{discriminator_forward.8} parent=1 // pred_check_branch
      %14 = sbr.rel (0) target = $region5
    $region4: #{discriminator_forward.8} parent=1 // pred_region
      %s16 = ssub.s32 8192, 8192
      %17 = vsyncadd [#allocation3], %s16
      %s18 = sshll.u32 [#allocation2], 4
      %s19 = int_to_ptr.vmem [resolvable:$true] %s18
      %24 = dma.hbm_to_vmem [thread:$0]  %s0, 8192, %s19, [#allocation3], 128, 128, 8
    $region5: #{discriminator_forward.8} parent=1 // pred_fallthru
      _
    // Predicated region
    $region6: #{discriminator_forward.8} parent=1 // pred_check
      _
    $region7: #{discriminator_forward.8} parent=1 // pred_check_branch
      %26 = sbr.rel (0) target = $region9
    $region8: #{discriminator_forward.8} parent=1 // pred_region
      %s28 = ssub.s32 4096, 4096
      %29 = vsyncadd [#allocation6], %s28
      %s30 = sshll.u32 [#allocation5], 4
      %s31 = int_to_ptr.vmem [resolvable:$true] %s30
      %36 = dma.hbm_to_vmem [thread:$0]  %s1, 4096, %s31, [#allocation6], 512, 512, 32
    $region9: #{discriminator_forward.8} parent=1 // pred_fallthru
      _
    // Predicated region
    $region10: #{discriminator_forward.8} parent=1 // pred_check
      _
    $region11: #{discriminator_forward.8} parent=1 // pred_check_branch
      %38 = sbr.rel (0) target = $region13
    $region12: #{discriminator_forward.8} parent=1 // pred_region
      %s40 = ssub.s32 1024, 1024
      %41 = vsyncadd [#allocation6], %s40
      %s42 = sshll.u32 [#allocation7], 4
      %s43 = int_to_ptr.vmem [resolvable:$true] %s42
      %48 = dma.hbm_to_vmem [thread:$0]  %s2, 1024, %s43, [#allocation6], 128, 128, 8
    $region13: #{discriminator_forward.8} parent=1 // pred_fallthru
      _
    // Predicated region
    $region14: #{discriminator_forward.8} parent=1 // pred_check
      _
    $region15: #{discriminator_forward.8} parent=1 // pred_check_branch
      %50 = sbr.rel (0) target = $region17
    $region16: #{discriminator_forward.8} parent=1 // pred_region
      %s52 = ssub.s32 1024, 1024
      %53 = vsyncadd [#allocation9], %s52
      %s54 = sshll.u32 [#allocation8], 4
      %s55 = int_to_ptr.vmem [resolvable:$true] %s54
      %60 = dma.hbm_to_vmem [thread:$0]  %s3, 1024, %s55, [#allocation9], 128, 128, 8
    $region17: #{discriminator_forward.8} parent=1 // pred_fallthru
      _
    // Predicated region
    $region18: #{discriminator_forward.8} parent=1 // pred_check
      _
    $region19: #{discriminator_forward.8} parent=1 // pred_check_branch
      %62 = sbr.rel (0) target = $region21
    $region20: #{discriminator_forward.8} parent=1 // pred_region
      %63 = dma.done [#allocation3], 8192
    $region21: #{discriminator_forward.8} parent=1 // pred_fallthru
      _
    // Predicated region
    $region22: #{discriminator_forward.8} parent=1 // pred_check
      _
    $region23: #{discriminator_forward.8} parent=1 // pred_check_branch
      %65 = sbr.rel (0) target = $region25
    $region24: #{discriminator_forward.8} parent=1 // pred_region
      %66 = dma.done [#allocation6], 4096
    $region25: #{discriminator_forward.8} parent=1 // pred_fallthru
      _
    // Predicated region
    $region26: #{discriminator_forward.8} parent=1 // pred_check
      _
    $region27: #{discriminator_forward.8} parent=1 // pred_check_branch
      %68 = sbr.rel (0) target = $region29
    $region28: #{discriminator_forward.8} parent=1 // pred_region
      %69 = dma.done [#allocation6], 1024
    $region29: #{discriminator_forward.8} parent=1 // pred_fallthru
      _
    // Predicated region
    $region30: #{discriminator_forward.8} parent=1 // pred_check
      _
    $region31: #{discriminator_forward.8} parent=1 // pred_check_branch
      %71 = sbr.rel (0) target = $region33
    $region32: #{discriminator_forward.8} parent=1 // pred_region
      %72 = dma.done [#allocation9], 1024
    $region33: #{discriminator_forward.8} parent=1 // pred_fallthru
      _
    %v73 = vld [vmem:[#allocation5] sm:$0xff]
    %v74 = vld [vmem:[#allocation5 + $0x8] sm:$0xff]
    %v75 = vld [vmem:[#allocation5 + $0x10] sm:$0xff]
    %v76 = vld [vmem:[#allocation5 + $0x18] sm:$0xff]
    %v77 = vld [vmem:[#allocation5 + $0x20] sm:$0xff]
    %v78 = vld [vmem:[#allocation5 + $0x28] sm:$0xff]
    %v79 = vld [vmem:[#allocation5 + $0x30] sm:$0xff]
    %v80 = vld [vmem:[#allocation5 + $0x38] sm:$0xff]
    %v81 = vld [vmem:[#allocation5 + $0x40] sm:$0xff]
    %v82 = vld [vmem:[#allocation5 + $0x48] sm:$0xff]
    %v83 = vld [vmem:[#allocation5 + $0x50] sm:$0xff]
    %v84 = vld [vmem:[#allocation5 + $0x58] sm:$0xff]
    %v85 = vld [vmem:[#allocation5 + $0x60] sm:$0xff]
    %v86 = vld [vmem:[#allocation5 + $0x68] sm:$0xff]
    %v87 = vld [vmem:[#allocation5 + $0x70] sm:$0xff]
    %v88 = vld [vmem:[#allocation5 + $0x78] sm:$0xff]
    %v89 = vld [vmem:[#allocation5 + $0x80] sm:$0xff]
    %v90 = vld [vmem:[#allocation5 + $0x88] sm:$0xff]
    %v91 = vld [vmem:[#allocation5 + $0x90] sm:$0xff]
    %v92 = vld [vmem:[#allocation5 + $0x98] sm:$0xff]
    %v93 = vld [vmem:[#allocation5 + $0xa0] sm:$0xff]
    %v94 = vld [vmem:[#allocation5 + $0xa8] sm:$0xff]
    %v95 = vld [vmem:[#allocation5 + $0xb0] sm:$0xff]
    %v96 = vld [vmem:[#allocation5 + $0xb8] sm:$0xff]
    %v97 = vld [vmem:[#allocation5 + $0xc0] sm:$0xff]
    %v98 = vld [vmem:[#allocation5 + $0xc8] sm:$0xff]
    %v99 = vld [vmem:[#allocation5 + $0xd0] sm:$0xff]
    %v100 = vld [vmem:[#allocation5 + $0xd8] sm:$0xff]
    %v101 = vld [vmem:[#allocation5 + $0xe0] sm:$0xff]
    %v102 = vld [vmem:[#allocation5 + $0xe8] sm:$0xff]
    %v103 = vld [vmem:[#allocation5 + $0xf0] sm:$0xff]
    %v104 = vld [vmem:[#allocation5 + $0xf8] sm:$0xff]
    %v105 = vld [vmem:[#allocation2] sm:$0xff]
    %v106 = vld [vmem:[#allocation2 + $0x8] sm:$0xff]
    %v107 = vld [vmem:[#allocation2 + $0x10] sm:$0xff]
    %v108 = vld [vmem:[#allocation2 + $0x18] sm:$0xff]
    %v109 = vld [vmem:[#allocation2 + $0x20] sm:$0xff]
    %v110 = vld [vmem:[#allocation2 + $0x28] sm:$0xff]
    %v111 = vld [vmem:[#allocation2 + $0x30] sm:$0xff]
    %v112 = vld [vmem:[#allocation2 + $0x38] sm:$0xff]
    %v113 = vld [vmem:[#allocation2 + $0x40] sm:$0xff]
    %v114 = vld [vmem:[#allocation2 + $0x48] sm:$0xff]
    %v115 = vld [vmem:[#allocation2 + $0x50] sm:$0xff]
    %v116 = vld [vmem:[#allocation2 + $0x58] sm:$0xff]
    %v117 = vld [vmem:[#allocation2 + $0x60] sm:$0xff]
    %v118 = vld [vmem:[#allocation2 + $0x68] sm:$0xff]
    %v119 = vld [vmem:[#allocation2 + $0x70] sm:$0xff]
    %v120 = vld [vmem:[#allocation2 + $0x78] sm:$0xff]
    %v121 = vld [vmem:[#allocation2 + $0x80] sm:$0xff]
    %v122 = vld [vmem:[#allocation2 + $0x88] sm:$0xff]
    %v123 = vld [vmem:[#allocation2 + $0x90] sm:$0xff]
    %v124 = vld [vmem:[#allocation2 + $0x98] sm:$0xff]
    %v125 = vld [vmem:[#allocation2 + $0xa0] sm:$0xff]
    %v126 = vld [vmem:[#allocation2 + $0xa8] sm:$0xff]
    %v127 = vld [vmem:[#allocation2 + $0xb0] sm:$0xff]
    %v128 = vld [vmem:[#allocation2 + $0xb8] sm:$0xff]
    %v129 = vld [vmem:[#allocation2 + $0xc0] sm:$0xff]
    %v130 = vld [vmem:[#allocation2 + $0xc8] sm:$0xff]
    %v131 = vld [vmem:[#allocation2 + $0xd0] sm:$0xff]
    %v132 = vld [vmem:[#allocation2 + $0xd8] sm:$0xff]
    %v133 = vld [vmem:[#allocation2 + $0xe0] sm:$0xff]
    %v134 = vld [vmem:[#allocation2 + $0xe8] sm:$0xff]
    %v135 = vld [vmem:[#allocation2 + $0xf0] sm:$0xff]
    %v136 = vld [vmem:[#allocation2 + $0xf8] sm:$0xff]
    %v137 = vld [vmem:[#allocation2 + $0x100] sm:$0xff]
    %v138 = vld [vmem:[#allocation2 + $0x108] sm:$0xff]
    %v139 = vld [vmem:[#allocation2 + $0x110] sm:$0xff]
    %v140 = vld [vmem:[#allocation2 + $0x118] sm:$0xff]
    %v141 = vld [vmem:[#allocation2 + $0x120] sm:$0xff]
    %v142 = vld [vmem:[#allocation2 + $0x128] sm:$0xff]
    %v143 = vld [vmem:[#allocation2 + $0x130] sm:$0xff]
    %v144 = vld [vmem:[#allocation2 + $0x138] sm:$0xff]
    %v145 = vld [vmem:[#allocation2 + $0x140] sm:$0xff]
    %v146 = vld [vmem:[#allocation2 + $0x148] sm:$0xff]
    %v147 = vld [vmem:[#allocation2 + $0x150] sm:$0xff]
    %v148 = vld [vmem:[#allocation2 + $0x158] sm:$0xff]
    %v149 = vld [vmem:[#allocation2 + $0x160] sm:$0xff]
    %v150 = vld [vmem:[#allocation2 + $0x168] sm:$0xff]
    %v151 = vld [vmem:[#allocation2 + $0x170] sm:$0xff]
    %v152 = vld [vmem:[#allocation2 + $0x178] sm:$0xff]
    %v153 = vld [vmem:[#allocation2 + $0x180] sm:$0xff]
    %v154 = vld [vmem:[#allocation2 + $0x188] sm:$0xff]
    %v155 = vld [vmem:[#allocation2 + $0x190] sm:$0xff]
    %v156 = vld [vmem:[#allocation2 + $0x198] sm:$0xff]
    %v157 = vld [vmem:[#allocation2 + $0x1a0] sm:$0xff]
    %v158 = vld [vmem:[#allocation2 + $0x1a8] sm:$0xff]
    %v159 = vld [vmem:[#allocation2 + $0x1b0] sm:$0xff]
    %v160 = vld [vmem:[#allocation2 + $0x1b8] sm:$0xff]
    %v161 = vld [vmem:[#allocation2 + $0x1c0] sm:$0xff]
    %v162 = vld [vmem:[#allocation2 + $0x1c8] sm:$0xff]
    %v163 = vld [vmem:[#allocation2 + $0x1d0] sm:$0xff]
    %v164 = vld [vmem:[#allocation2 + $0x1d8] sm:$0xff]
    %v165 = vld [vmem:[#allocation2 + $0x1e0] sm:$0xff]
    %v166 = vld [vmem:[#allocation2 + $0x1e8] sm:$0xff]
    %v167 = vld [vmem:[#allocation2 + $0x1f0] sm:$0xff]
    %v168 = vld [vmem:[#allocation2 + $0x1f8] sm:$0xff]
    %169 = vmatprep.subr.mxu0 0.0
    %170 = vmatpush1.msra.mxu0 %v105
    %171 = vmatprep.subr.mxu0 0.0
    %172 = vmatpush1.msra.mxu0 %v106
    %173 = vmatprep.subr.mxu0 0.0
    %174 = vmatpush1.msra.mxu0 %v107
    %175 = vmatprep.subr.mxu0 0.0
    %176 = vmatpush1.msra.mxu0 %v108
    %177 = vmatprep.subr.mxu0 0.0
    %178 = vmatpush1.msra.mxu0 %v109
    %179 = vmatprep.subr.mxu0 0.0
    %180 = vmatpush1.msra.mxu0 %v110
    %181 = vmatprep.subr.mxu0 0.0
    %182 = vmatpush1.msra.mxu0 %v111
    %183 = vmatprep.subr.mxu0 0.0
    %184 = vmatpush1.msra.mxu0 %v112
    %185 = vmatprep.subr.mxu0 0.0
    %186 = vmatpush1.msra.mxu0 %v113
    %187 = vmatprep.subr.mxu0 0.0
    %188 = vmatpush1.msra.mxu0 %v114
    %189 = vmatprep.subr.mxu0 0.0
    %190 = vmatpush1.msra.mxu0 %v115
    %191 = vmatprep.subr.mxu0 0.0
    %192 = vmatpush1.msra.mxu0 %v116
    %193 = vmatprep.subr.mxu0 0.0
    %194 = vmatpush1.msra.mxu0 %v117
    %195 = vmatprep.subr.mxu0 0.0
    %196 = vmatpush1.msra.mxu0 %v118
    %197 = vmatprep.subr.mxu0 0.0
    %198 = vmatpush1.msra.mxu0 %v119
    %199 = vmatprep.subr.mxu0 0.0
    %200 = vmatpush1.msra.mxu0 %v120
    %201 = vmatprep.subr.mxu0 0.0
    %202 = vmatpush1.msra.mxu0 %v121
    %203 = vmatprep.subr.mxu0 0.0
    %204 = vmatpush1.msra.mxu0 %v122
    %205 = vmatprep.subr.mxu0 0.0
    %206 = vmatpush1.msra.mxu0 %v123
    %207 = vmatprep.subr.mxu0 0.0
    %208 = vmatpush1.msra.mxu0 %v124
    %209 = vmatprep.subr.mxu0 0.0
    %210 = vmatpush1.msra.mxu0 %v125
    %211 = vmatprep.subr.mxu0 0.0
    %212 = vmatpush1.msra.mxu0 %v126
    %213 = vmatprep.subr.mxu0 0.0
    %214 = vmatpush1.msra.mxu0 %v127
    %215 = vmatprep.subr.mxu0 0.0
    %216 = vmatpush1.msra.mxu0 %v128
    %217 = vmatprep.subr.mxu0 0.0
    %218 = vmatpush1.msra.mxu0 %v129
    %219 = vmatprep.subr.mxu0 0.0
    %220 = vmatpush1.msra.mxu0 %v130
    %221 = vmatprep.subr.mxu0 0.0
    %222 = vmatpush1.msra.mxu0 %v131
    %223 = vmatprep.subr.mxu0 0.0
    %224 = vmatpush1.msra.mxu0 %v132
    %225 = vmatprep.subr.mxu0 0.0
    %226 = vmatpush1.msra.mxu0 %v133
    %227 = vmatprep.subr.mxu0 0.0
    %228 = vmatpush1.msra.mxu0 %v134
    %229 = vmatprep.subr.mxu0 0.0
    %230 = vmatpush1.msra.mxu0 %v135
    %231 = vmatprep.subr.mxu0 0.0
    %232 = vmatpush1.msra.mxu0 %v136
    %233 = vmatprep.mubr.f32.mxu0 %v74
    %234 = vmatmul.mubr.f32.gmra.mrb[0].mxu0 %v73
    %v235 = vpop.f32.mrb[0].mxu0
    %v236 = vadd.f32 0.0, %v235
    %v237 = vpop.f32.mrb[0].mxu0
    %238 = vmatprep.mubr.f32.mxu0 %v78
    %239 = vmatmul.mubr.f32.gmra.mrb[0].mxu0 %v77
    %v240 = vpop.f32.mrb[0].mxu0
    %v241 = vadd.f32 0.0, %v240
    %v242 = vpop.f32.mrb[0].mxu0
    %243 = vmatprep.mubr.f32.mxu0 %v82
    %244 = vmatmul.mubr.f32.gmra.mrb[0].mxu0 %v81
    %v245 = vpop.f32.mrb[0].mxu0
    %v246 = vadd.f32 0.0, %v245
    %v247 = vpop.f32.mrb[0].mxu0
    %248 = vmatprep.mubr.f32.mxu0 %v86
    %249 = vmatmul.mubr.f32.gmra.mrb[0].mxu0 %v85
    %v250 = vpop.f32.mrb[0].mxu0
    %v251 = vadd.f32 0.0, %v250
    %v252 = vpop.f32.mrb[0].mxu0
    %253 = vmatprep.mubr.f32.mxu0 %v90
    %254 = vmatmul.mubr.f32.gmra.mrb[0].mxu0 %v89
    %v255 = vpop.f32.mrb[0].mxu0
    %v256 = vadd.f32 0.0, %v255
    %v257 = vpop.f32.mrb[0].mxu0
    %258 = vmatprep.mubr.f32.mxu0 %v94
    %259 = vmatmul.mubr.f32.gmra.mrb[0].mxu0 %v93
    %v260 = vpop.f32.mrb[0].mxu0
    %v261 = vadd.f32 0.0, %v260
    %v262 = vpop.f32.mrb[0].mxu0
    %263 = vmatprep.mubr.f32.mxu0 %v98
    %264 = vmatmul.mubr.f32.gmra.mrb[0].mxu0 %v97
    %v265 = vpop.f32.mrb[0].mxu0
    %v266 = vadd.f32 0.0, %v265
    %v267 = vpop.f32.mrb[0].mxu0
    %268 = vmatprep.mubr.f32.mxu0 %v102
    %269 = vmatmul.mubr.f32.gmra.mrb[0].mxu0 %v101
    %v270 = vpop.f32.mrb[0].mxu0
    %v271 = vadd.f32 0.0, %v270
    %v272 = vpop.f32.mrb[0].mxu0
    %273 = vdwg.mxu0
    %274 = vmatprep.subr.mxu0 0.0
    %275 = vmatpush1.msra.mxu0 %v137
    %276 = vmatprep.subr.mxu0 0.0
    %277 = vmatpush1.msra.mxu0 %v138
    %278 = vmatprep.subr.mxu0 0.0
    %279 = vmatpush1.msra.mxu0 %v139
    %280 = vmatprep.subr.mxu0 0.0
    %281 = vmatpush1.msra.mxu0 %v140
    %282 = vmatprep.subr.mxu0 0.0
    %283 = vmatpush1.msra.mxu0 %v141
    %284 = vmatprep.subr.mxu0 0.0
    %285 = vmatpush1.msra.mxu0 %v142
    %286 = vmatprep.subr.mxu0 0.0
    %287 = vmatpush1.msra.mxu0 %v143
    %288 = vmatprep.subr.mxu0 0.0
    %289 = vmatpush1.msra.mxu0 %v144
    %290 = vmatprep.subr.mxu0 0.0
    %291 = vmatpush1.msra.mxu0 %v145
    %292 = vmatprep.subr.mxu0 0.0
    %293 = vmatpush1.msra.mxu0 %v146
    %294 = vmatprep.subr.mxu0 0.0
    %295 = vmatpush1.msra.mxu0 %v147
    %296 = vmatprep.subr.mxu0 0.0
    %297 = vmatpush1.msra.mxu0 %v148
    %298 = vmatprep.subr.mxu0 0.0
    %299 = vmatpush1.msra.mxu0 %v149
    %300 = vmatprep.subr.mxu0 0.0
    %301 = vmatpush1.msra.mxu0 %v150
    %302 = vmatprep.subr.mxu0 0.0
    %303 = vmatpush1.msra.mxu0 %v151
    %304 = vmatprep.subr.mxu0 0.0
    %305 = vmatpush1.msra.mxu0 %v152
    %306 = vmatprep.subr.mxu0 0.0
    %307 = vmatpush1.msra.mxu0 %v153
    %308 = vmatprep.subr.mxu0 0.0
    %309 = vmatpush1.msra.mxu0 %v154
    %310 = vmatprep.subr.mxu0 0.0
    %311 = vmatpush1.msra.mxu0 %v155
    %312 = vmatprep.subr.mxu0 0.0
    %313 = vmatpush1.msra.mxu0 %v156
    %314 = vmatprep.subr.mxu0 0.0
    %315 = vmatpush1.msra.mxu0 %v157
    %316 = vmatprep.subr.mxu0 0.0
    %317 = vmatpush1.msra.mxu0 %v158
    %318 = vmatprep.subr.mxu0 0.0
    %319 = vmatpush1.msra.mxu0 %v159
    %320 = vmatprep.subr.mxu0 0.0
    %321 = vmatpush1.msra.mxu0 %v160
    %322 = vmatprep.subr.mxu0 0.0
    %323 = vmatpush1.msra.mxu0 %v161
    %324 = vmatprep.subr.mxu0 0.0
    %325 = vmatpush1.msra.mxu0 %v162
    %326 = vmatprep.subr.mxu0 0.0
    %327 = vmatpush1.msra.mxu0 %v163
    %328 = vmatprep.subr.mxu0 0.0
    %329 = vmatpush1.msra.mxu0 %v164
    %330 = vmatprep.subr.mxu0 0.0
    %331 = vmatpush1.msra.mxu0 %v165
    %332 = vmatprep.subr.mxu0 0.0
    %333 = vmatpush1.msra.mxu0 %v166
    %334 = vmatprep.subr.mxu0 0.0
    %335 = vmatpush1.msra.mxu0 %v167
    %336 = vmatprep.subr.mxu0 0.0
    %337 = vmatpush1.msra.mxu0 %v168
    %338 = vmatprep.mubr.f32.mxu0 %v76
    %339 = vmatmul.mubr.f32.gmra.mrb[0].mxu0 %v75
    %v340 = vpop.f32.mrb[0].mxu0
    %v341 = vadd.f32 %v236, %v340
    %v342 = vpop.f32.mrb[0].mxu0
    %343 = vmatprep.mubr.f32.mxu0 %v80
    %344 = vmatmul.mubr.f32.gmra.mrb[0].mxu0 %v79
    %v345 = vpop.f32.mrb[0].mxu0
    %v346 = vadd.f32 %v241, %v345
    %v347 = vpop.f32.mrb[0].mxu0
    %348 = vmatprep.mubr.f32.mxu0 %v84
    %349 = vmatmul.mubr.f32.gmra.mrb[0].mxu0 %v83
    %v350 = vpop.f32.mrb[0].mxu0
    %v351 = vadd.f32 %v246, %v350
    %v352 = vpop.f32.mrb[0].mxu0
    %353 = vmatprep.mubr.f32.mxu0 %v88
    %354 = vmatmul.mubr.f32.gmra.mrb[0].mxu0 %v87
    %v355 = vpop.f32.mrb[0].mxu0
    %v356 = vadd.f32 %v251, %v355
    %v357 = vpop.f32.mrb[0].mxu0
    %358 = vmatprep.mubr.f32.mxu0 %v92
    %359 = vmatmul.mubr.f32.gmra.mrb[0].mxu0 %v91
    %v360 = vpop.f32.mrb[0].mxu0
    %v361 = vadd.f32 %v256, %v360
    %v362 = vpop.f32.mrb[0].mxu0
    %363 = vmatprep.mubr.f32.mxu0 %v96
    %364 = vmatmul.mubr.f32.gmra.mrb[0].mxu0 %v95
    %v365 = vpop.f32.mrb[0].mxu0
    %v366 = vadd.f32 %v261, %v365
    %v367 = vpop.f32.mrb[0].mxu0
    %368 = vmatprep.mubr.f32.mxu0 %v100
    %369 = vmatmul.mubr.f32.gmra.mrb[0].mxu0 %v99
    %v370 = vpop.f32.mrb[0].mxu0
    %v371 = vadd.f32 %v266, %v370
    %v372 = vpop.f32.mrb[0].mxu0
    %373 = vmatprep.mubr.f32.mxu0 %v104
    %374 = vmatmul.mubr.f32.gmra.mrb[0].mxu0 %v103
    %v375 = vpop.f32.mrb[0].mxu0
    %v376 = vadd.f32 %v271, %v375
    %v377 = vpop.f32.mrb[0].mxu0
    %378 = vdwg.mxu0
    %vm379 = vcmask 261120
    %v380 = vsel %vm379, %v341, 0.0
    %381 = vadd.xlane.f32.xlu0 %v380
    %v382 = vpop.xlane.xlu0 %381
    %v383 = vsel %vm379, %v346, 0.0
    %384 = vadd.xlane.f32.xlu0 %v383
    %v385 = vpop.xlane.xlu0 %384
    %v386 = vsel %vm379, %v351, 0.0
    %387 = vadd.xlane.f32.xlu0 %v386
    %v388 = vpop.xlane.xlu0 %387
    %v389 = vsel %vm379, %v356, 0.0
    %390 = vadd.xlane.f32.xlu0 %v389
    %v391 = vpop.xlane.xlu0 %390
    %v392 = vsel %vm379, %v361, 0.0
    %393 = vadd.xlane.f32.xlu0 %v392
    %v394 = vpop.xlane.xlu0 %393
    %v395 = vsel %vm379, %v366, 0.0
    %396 = vadd.xlane.f32.xlu0 %v395
    %v397 = vpop.xlane.xlu0 %396
    %v398 = vsel %vm379, %v371, 0.0
    %399 = vadd.xlane.f32.xlu0 %v398
    %v400 = vpop.xlane.xlu0 %399
    %v401 = vsel %vm379, %v376, 0.0
    %402 = vadd.xlane.f32.xlu0 %v401
    %v403 = vpop.xlane.xlu0 %402
    %v404 = vrcp.pop 32.0
    %v405 = vmul.f32 %v382, %v404
    %v406 = vmul.f32 %v385, %v404
    %v407 = vmul.f32 %v388, %v404
    %v408 = vmul.f32 %v391, %v404
    %v409 = vmul.f32 %v394, %v404
    %v410 = vmul.f32 %v397, %v404
    %v411 = vmul.f32 %v400, %v404
    %v412 = vmul.f32 %v403, %v404
    %v413 = vsub.f32 %v341, %v405
    %v414 = vsub.f32 %v346, %v406
    %v415 = vsub.f32 %v351, %v407
    %v416 = vsub.f32 %v356, %v408
    %v417 = vsub.f32 %v361, %v409
    %v418 = vsub.f32 %v366, %v410
    %v419 = vsub.f32 %v371, %v411
    %v420 = vsub.f32 %v376, %v412
    %v421 = vmul.f32 %v413, %v413
    %v422 = vmul.f32 %v414, %v414
    %v423 = vmul.f32 %v415, %v415
    %v424 = vmul.f32 %v416, %v416
    %v425 = vmul.f32 %v417, %v417
    %v426 = vmul.f32 %v418, %v418
    %v427 = vmul.f32 %v419, %v419
    %v428 = vmul.f32 %v420, %v420
    %v429 = vsel %vm379, %v421, 0.0
    %430 = vadd.xlane.f32.xlu0 %v429
    %v431 = vpop.xlane.xlu0 %430
    %v432 = vsel %vm379, %v422, 0.0
    %433 = vadd.xlane.f32.xlu0 %v432
    %v434 = vpop.xlane.xlu0 %433
    %v435 = vsel %vm379, %v423, 0.0
    %436 = vadd.xlane.f32.xlu0 %v435
    %v437 = vpop.xlane.xlu0 %436
    %v438 = vsel %vm379, %v424, 0.0
    %439 = vadd.xlane.f32.xlu0 %v438
    %v440 = vpop.xlane.xlu0 %439
    %v441 = vsel %vm379, %v425, 0.0
    %442 = vadd.xlane.f32.xlu0 %v441
    %v443 = vpop.xlane.xlu0 %442
    %v444 = vsel %vm379, %v426, 0.0
    %445 = vadd.xlane.f32.xlu0 %v444
    %v446 = vpop.xlane.xlu0 %445
    %v447 = vsel %vm379, %v427, 0.0
    %448 = vadd.xlane.f32.xlu0 %v447
    %v449 = vpop.xlane.xlu0 %448
    %v450 = vsel %vm379, %v428, 0.0
    %451 = vadd.xlane.f32.xlu0 %v450
    %v452 = vpop.xlane.xlu0 %451
    %v453 = vmul.f32 %v431, %v404
    %v454 = vmul.f32 %v434, %v404
    %v455 = vmul.f32 %v437, %v404
    %v456 = vmul.f32 %v440, %v404
    %v457 = vmul.f32 %v443, %v404
    %v458 = vmul.f32 %v446, %v404
    %v459 = vmul.f32 %v449, %v404
    %v460 = vmul.f32 %v452, %v404
    %v461 = vadd.f32 %v453, 1e-05
    %v462 = vadd.f32 %v454, 1e-05
    %v463 = vadd.f32 %v455, 1e-05
    %v464 = vadd.f32 %v456, 1e-05
    %v465 = vadd.f32 %v457, 1e-05
    %v466 = vadd.f32 %v458, 1e-05
    %v467 = vadd.f32 %v459, 1e-05
    %v468 = vadd.f32 %v460, 1e-05
    %v469 = vrsqrt.pop %v461
    %v470 = vrsqrt.pop %v462
    %v471 = vrsqrt.pop %v463
    %v472 = vrsqrt.pop %v464
    %v473 = vrsqrt.pop %v465
    %v474 = vrsqrt.pop %v466
    %v475 = vrsqrt.pop %v467
    %v476 = vrsqrt.pop %v468
    %v477 = vmul.f32 %v413, %v469
    %v478 = vmul.f32 %v414, %v470
    %v479 = vmul.f32 %v415, %v471
    %v480 = vmul.f32 %v416, %v472
    %v481 = vmul.f32 %v417, %v473
    %v482 = vmul.f32 %v418, %v474
    %v483 = vmul.f32 %v419, %v475
    %v484 = vmul.f32 %v420, %v476
    %v485 = vld [vmem:[#allocation7] sm:$0xff]
    %v486 = vld [vmem:[#allocation7 + $0x8] sm:$0xff]
    %v487 = vld [vmem:[#allocation7 + $0x10] sm:$0xff]
    %v488 = vld [vmem:[#allocation7 + $0x18] sm:$0xff]
    %v489 = vld [vmem:[#allocation7 + $0x20] sm:$0xff]
    %v490 = vld [vmem:[#allocation7 + $0x28] sm:$0xff]
    %v491 = vld [vmem:[#allocation7 + $0x30] sm:$0xff]
    %v492 = vld [vmem:[#allocation7 + $0x38] sm:$0xff]
    %494 = vset.pattern.permute.xlu0 0
    %495 = vperm.xlu0 %494, %v485
    %v496 = vpop.permute.xlu0 %495
    %499 = vset.pattern.permute.xlu0 0
    %500 = vperm.xlu0 %499, %v486
    %v501 = vpop.permute.xlu0 %500
    %504 = vset.pattern.permute.xlu0 0
    %505 = vperm.xlu0 %504, %v487
    %v506 = vpop.permute.xlu0 %505
    %509 = vset.pattern.permute.xlu0 0
    %510 = vperm.xlu0 %509, %v488
    %v511 = vpop.permute.xlu0 %510
    %514 = vset.pattern.permute.xlu0 0
    %515 = vperm.xlu0 %514, %v489
    %v516 = vpop.permute.xlu0 %515
    %519 = vset.pattern.permute.xlu0 0
    %520 = vperm.xlu0 %519, %v490
    %v521 = vpop.permute.xlu0 %520
    %524 = vset.pattern.permute.xlu0 0
    %525 = vperm.xlu0 %524, %v491
    %v526 = vpop.permute.xlu0 %525
    %529 = vset.pattern.permute.xlu0 0
    %530 = vperm.xlu0 %529, %v492
    %v531 = vpop.permute.xlu0 %530
    %v533 = vmul.f32 %v477, %v496
    %v534 = vmul.f32 %v478, %v501
    %v535 = vmul.f32 %v479, %v506
    %v536 = vmul.f32 %v480, %v511
    %v537 = vmul.f32 %v481, %v516
    %v538 = vmul.f32 %v482, %v521
    %v539 = vmul.f32 %v483, %v526
    %v540 = vmul.f32 %v484, %v531
    %v541 = vld [vmem:[#allocation8] sm:$0xff]
    %v542 = vld [vmem:[#allocation8 + $0x8] sm:$0xff]
    %v543 = vld [vmem:[#allocation8 + $0x10] sm:$0xff]
    %v544 = vld [vmem:[#allocation8 + $0x18] sm:$0xff]
    %v545 = vld [vmem:[#allocation8 + $0x20] sm:$0xff]
    %v546 = vld [vmem:[#allocation8 + $0x28] sm:$0xff]
    %v547 = vld [vmem:[#allocation8 + $0x30] sm:$0xff]
    %v548 = vld [vmem:[#allocation8 + $0x38] sm:$0xff]
    %550 = vset.pattern.permute.xlu0 0
    %551 = vperm.xlu0 %550, %v541
    %v552 = vpop.permute.xlu0 %551
    %555 = vset.pattern.permute.xlu0 0
    %556 = vperm.xlu0 %555, %v542
    %v557 = vpop.permute.xlu0 %556
    %560 = vset.pattern.permute.xlu0 0
    %561 = vperm.xlu0 %560, %v543
    %v562 = vpop.permute.xlu0 %561
    %565 = vset.pattern.permute.xlu0 0
    %566 = vperm.xlu0 %565, %v544
    %v567 = vpop.permute.xlu0 %566
    %570 = vset.pattern.permute.xlu0 0
    %571 = vperm.xlu0 %570, %v545
    %v572 = vpop.permute.xlu0 %571
    %575 = vset.pattern.permute.xlu0 0
    %576 = vperm.xlu0 %575, %v546
    %v577 = vpop.permute.xlu0 %576
    %580 = vset.pattern.permute.xlu0 0
    %581 = vperm.xlu0 %580, %v547
    %v582 = vpop.permute.xlu0 %581
    %585 = vset.pattern.permute.xlu0 0
    %586 = vperm.xlu0 %585, %v548
    %v587 = vpop.permute.xlu0 %586
    %v589 = vadd.f32 %v533, %v552
    %v590 = vadd.f32 %v534, %v557
    %v591 = vadd.f32 %v535, %v562
    %v592 = vadd.f32 %v536, %v567
    %v593 = vadd.f32 %v537, %v572
    %v594 = vadd.f32 %v538, %v577
    %v595 = vadd.f32 %v539, %v582
    %v596 = vadd.f32 %v540, %v587
    %vm597 = vcmp.ge.f32.partialorder %v589, 0.0
    %vm598 = vcmp.ge.f32.partialorder %v590, 0.0
    %vm599 = vcmp.ge.f32.partialorder %v591, 0.0
    %vm600 = vcmp.ge.f32.partialorder %v592, 0.0
    %vm601 = vcmp.ge.f32.partialorder %v593, 0.0
    %vm602 = vcmp.ge.f32.partialorder %v594, 0.0
    %vm603 = vcmp.ge.f32.partialorder %v595, 0.0
    %vm604 = vcmp.ge.f32.partialorder %v596, 0.0
    %v605 = vmul.f32 %v589, 0.2
    %v606 = vmul.f32 %v590, 0.2
    %v607 = vmul.f32 %v591, 0.2
    %v608 = vmul.f32 %v592, 0.2
    %v609 = vmul.f32 %v593, 0.2
    %v610 = vmul.f32 %v594, 0.2
    %v611 = vmul.f32 %v595, 0.2
    %v612 = vmul.f32 %v596, 0.2
    %v613 = vsel %vm597, %v589, %v605
    %v614 = vsel %vm598, %v590, %v606
    %v615 = vsel %vm599, %v591, %v607
    %v616 = vsel %vm600, %v592, %v608
    %v617 = vsel %vm601, %v593, %v609
    %v618 = vsel %vm602, %v594, %v610
    %v619 = vsel %vm603, %v595, %v611
    %v620 = vsel %vm604, %v596, %v612
    %621 = vst.msk [vmem:[#allocation10] sm:$0xff] %vm379, %v613
    %622 = vst.msk [vmem:[#allocation10 + $0x8] sm:$0xff] %vm379, %v614
    %623 = vst.msk [vmem:[#allocation10 + $0x10] sm:$0xff] %vm379, %v615
    %624 = vst.msk [vmem:[#allocation10 + $0x18] sm:$0xff] %vm379, %v616
    %625 = vst.msk [vmem:[#allocation10 + $0x20] sm:$0xff] %vm379, %v617
    %626 = vst.msk [vmem:[#allocation10 + $0x28] sm:$0xff] %vm379, %v618
    %627 = vst.msk [vmem:[#allocation10 + $0x30] sm:$0xff] %vm379, %v619
    %628 = vst.msk [vmem:[#allocation10 + $0x38] sm:$0xff] %vm379, %v620
    // Predicated region
    $region34: #{discriminator_forward.8} parent=1 // pred_check
      _
    $region35: #{discriminator_forward.8} parent=1 // pred_check_branch
      %630 = sbr.rel (0) target = $region37
    $region36: #{discriminator_forward.8} parent=1 // pred_region
      %s632 = ssub.s32 1024, 1024
      %633 = vsyncadd [#allocation4], %s632
      %s634 = sshll.u32 [#allocation10], 4
      %s635 = int_to_ptr.vmem [resolvable:$true] %s634
      %640 = dma.vmem_to_hbm [thread:$0]  %s635, 1024, %s4, [#allocation4], 128, 128, 8
    $region37: #{discriminator_forward.8} parent=1 // pred_fallthru
      _
    // Predicated region
    $region38: #{discriminator_forward.8} parent=1 // pred_check
      _
    $region39: #{discriminator_forward.8} parent=1 // pred_check_branch
      %642 = sbr.rel (0) target = $region41
    $region40: #{discriminator_forward.8} parent=1 // pred_region
      %643 = dma.done [#allocation4], 1024
    $region41: #{discriminator_forward.8} parent=1 // pred_fallthru
      _
    %644 = vsyncpa [#allocation3], 1
    %645 = vsyncpa [#allocation6], 1
    %646 = vsyncpa [#allocation9], 1
    %647 = vsyncpa [#allocation4], 1

// kernel: discriminator_forward.9
$region0: #{discriminator_forward.9}
  #allocation0 [shape = 'u32[]', space=smem, size = 0x4, offset = 0x4, fixed_abs, tag = 'smem constant byte address 0x4 - core index']
  #allocation1 [shape = 'u32[144,128]{1,0:T(1,128)}', space=vmem, size = 0x12000, scoped, tag = 'internal scratch']
  #allocation2 [shape = 'f32[1,1]{1,0:T(1,128)S(1)}', space=vmem, size = 0x200, scoped, tag = 'scoped memory for discriminator_forward.9']
  %s0 = inlined_call_operand.hbm [shape: f32[4,1024,2], index: 0, kind: input, shape index: {}]
  %s1 = inlined_call_operand.hbm [shape: f32[128,1024], index: 1, kind: input, shape index: {}]
  %s2 = inlined_call_operand.hbm [shape: f32[128,1], index: 2, kind: input, shape index: {}]
  %s3 = inlined_call_operand.hbm [shape: f32[128,1], index: 3, kind: input, shape index: {}]
  %s4 = inlined_call_operand.hbm [shape: f32[512,2], index: 4, kind: input, shape index: {}]
  %s5 = inlined_call_operand.hbm [shape: f32[128,512], index: 5, kind: input, shape index: {}]
  %s6 = inlined_call_operand.hbm [shape: f32[4,128,128], index: 6, kind: input, shape index: {}]
  %s7 = inlined_call_operand.hbm [shape: f32[128,1], index: 7, kind: input, shape index: {}]
  %s8 = inlined_call_operand.hbm [shape: f32[1,128], index: 8, kind: input, shape index: {}]
  %s9 = inlined_call_operand.<no memory space> [shape: f32[1,1], index: 9, kind: input, shape index: {}]
  %s10 = inlined_call_operand.hbm [shape: f32[1,2], index: 10, kind: output, shape index: {}]
  %s11 = sld [smem:[#allocation0]]
  $region86: #{discriminator_forward.9} parent=0
    _
  %s13 = ssub.s32 1, %s11
  %s14 = scalar_select 0, %s13, %s11
  %v15 = vstv %s9
  %16 = vst [vmem:[#allocation2] sm:$0x1] %v15
  $region1: #{discriminator_forward.9} parent=0
    #allocation3 [shape = 'u8[2097152]{0}', space=vmem, size = 0x200000, scoped, tag = 'input window, operand 0, single buffered']
    #allocation4 [shape = 's32[1]{0}', space=sflag, size = 0x4, scoped, tag = 'scoped memory for discriminator_forward.9']
    #allocation5 [shape = 's32[1]{0}', space=sflag, size = 0x4, scoped, tag = 'scoped memory for discriminator_forward.9']
    #allocation6 [shape = 'u8[524288]{0}', space=vmem, size = 0x80000, scoped, tag = 'input window, operand 1, single buffered']
    #allocation7 [shape = 's32[1]{0}', space=sflag, size = 0x4, scoped, tag = 'scoped memory for discriminator_forward.9']
    #allocation8 [shape = 'u8[65536]{0}', space=vmem, size = 0x10000, scoped, tag = 'input window, operand 2, single buffered']
    #allocation9 [shape = 'u8[65536]{0}', space=vmem, size = 0x10000, scoped, tag = 'input window, operand 3, single buffered']
    #allocation10 [shape = 's32[1]{0}', space=sflag, size = 0x4, scoped, tag = 'scoped memory for discriminator_forward.9']
    #allocation11 [shape = 'u8[262144]{0}', space=vmem, size = 0x40000, scoped, tag = 'input window, operand 4, single buffered']
    #allocation12 [shape = 'u8[262144]{0}', space=vmem, size = 0x40000, scoped, tag = 'input window, operand 5, single buffered']
    #allocation13 [shape = 's32[1]{0}', space=sflag, size = 0x4, scoped, tag = 'scoped memory for discriminator_forward.9']
    #allocation14 [shape = 'u8[262144]{0}', space=vmem, size = 0x40000, scoped, tag = 'input window, operand 6, single buffered']
    #allocation15 [shape = 'u8[65536]{0}', space=vmem, size = 0x10000, scoped, tag = 'input window, operand 7, single buffered']
    #allocation16 [shape = 's32[1]{0}', space=sflag, size = 0x4, scoped, tag = 'scoped memory for discriminator_forward.9']
    #allocation17 [shape = 'u8[512]{0}', space=vmem, size = 0x400, scoped, tag = 'input window, operand 8, single buffered']
    #allocation18 [shape = 'u8[512]{0}', space=vmem, size = 0x400, scoped, tag = 'output window, operand 0, single buffered']
    %17 = vsyncpa [#allocation4], 0
    %18 = vsyncpa [#allocation7], 0
    %19 = vsyncpa [#allocation10], 0
    %20 = vsyncpa [#allocation13], 0
    %21 = vsyncpa [#allocation16], 0
    %22 = vsyncpa [#allocation5], 0
    // Predicated region
    $region2: #{discriminator_forward.9} parent=1 // pred_check
      _
    $region3: #{discriminator_forward.9} parent=1 // pred_check_branch
      %24 = sbr.rel (0) target = $region5
    $region4: #{discriminator_forward.9} parent=1 // pred_region
      %s26 = ssub.s32 65536, 65536
      %27 = vsyncadd [#allocation4], %s26
      %s28 = sshll.u32 [#allocation3], 4
      %s29 = int_to_ptr.vmem [resolvable:$true] %s28
      %34 = dma.hbm_to_vmem [thread:$0]  %s0, 65536, %s29, [#allocation4], 128, 128, 8
    $region5: #{discriminator_forward.9} parent=1 // pred_fallthru
      _
    // Predicated region
    $region6: #{discriminator_forward.9} parent=1 // pred_check
      _
    $region7: #{discriminator_forward.9} parent=1 // pred_check_branch
      %36 = sbr.rel (0) target = $region9
    $region8: #{discriminator_forward.9} parent=1 // pred_region
      %s38 = ssub.s32 16384, 16384
      %39 = vsyncadd [#allocation7], %s38
      %s40 = sshll.u32 [#allocation6], 4
      %s41 = int_to_ptr.vmem [resolvable:$true] %s40
      %46 = dma.hbm_to_vmem [thread:$0]  %s1, 16384, %s41, [#allocation7], 1024, 1024, 64
    $region9: #{discriminator_forward.9} parent=1 // pred_fallthru
      _
    // Predicated region
    $region10: #{discriminator_forward.9} parent=1 // pred_check
      _
    $region11: #{discriminator_forward.9} parent=1 // pred_check_branch
      %48 = sbr.rel (0) target = $region13
    $region12: #{discriminator_forward.9} parent=1 // pred_region
      %s50 = ssub.s32 2048, 2048
      %51 = vsyncadd [#allocation7], %s50
      %s52 = sshll.u32 [#allocation8], 4
      %s53 = int_to_ptr.vmem [resolvable:$true] %s52
      %58 = dma.hbm_to_vmem [thread:$0]  %s2, 2048, %s53, [#allocation7], 128, 128, 8
    $region13: #{discriminator_forward.9} parent=1 // pred_fallthru
      _
    // Predicated region
    $region14: #{discriminator_forward.9} parent=1 // pred_check
      _
    $region15: #{discriminator_forward.9} parent=1 // pred_check_branch
      %60 = sbr.rel (0) target = $region17
    $region16: #{discriminator_forward.9} parent=1 // pred_region
      %s62 = ssub.s32 2048, 2048
      %63 = vsyncadd [#allocation10], %s62
      %s64 = sshll.u32 [#allocation9], 4
      %s65 = int_to_ptr.vmem [resolvable:$true] %s64
      %70 = dma.hbm_to_vmem [thread:$0]  %s3, 2048, %s65, [#allocation10], 128, 128, 8
    $region17: #{discriminator_forward.9} parent=1 // pred_fallthru
      _
    // Predicated region
    $region18: #{discriminator_forward.9} parent=1 // pred_check
      _
    $region19: #{discriminator_forward.9} parent=1 // pred_check_branch
      %72 = sbr.rel (0) target = $region21
    $region20: #{discriminator_forward.9} parent=1 // pred_region
      %s74 = ssub.s32 8192, 8192
      %75 = vsyncadd [#allocation10], %s74
      %s76 = sshll.u32 [#allocation11], 4
      %s77 = int_to_ptr.vmem [resolvable:$true] %s76
      %82 = dma.hbm_to_vmem [thread:$0]  %s4, 8192, %s77, [#allocation10], 128, 128, 8
    $region21: #{discriminator_forward.9} parent=1 // pred_fallthru
      _
    // Predicated region
    $region22: #{discriminator_forward.9} parent=1 // pred_check
      _
    $region23: #{discriminator_forward.9} parent=1 // pred_check_branch
      %84 = sbr.rel (0) target = $region25
    $region24: #{discriminator_forward.9} parent=1 // pred_region
      %s86 = ssub.s32 8192, 8192
      %87 = vsyncadd [#allocation13], %s86
      %s88 = sshll.u32 [#allocation12], 4
      %s89 = int_to_ptr.vmem [resolvable:$true] %s88
      %94 = dma.hbm_to_vmem [thread:$0]  %s5, 8192, %s89, [#allocation13], 512, 512, 32
    $region25: #{discriminator_forward.9} parent=1 // pred_fallthru
      _
    // Predicated region
    $region26: #{discriminator_forward.9} parent=1 // pred_check
      _
    $region27: #{discriminator_forward.9} parent=1 // pred_check_branch
      %96 = sbr.rel (0) target = $region29
    $region28: #{discriminator_forward.9} parent=1 // pred_region
      %s98 = ssub.s32 8192, 8192
      %99 = vsyncadd [#allocation13], %s98
      %s100 = sshll.u32 [#allocation14], 4
      %s101 = int_to_ptr.vmem [resolvable:$true] %s100
      %106 = dma.hbm_to_vmem [thread:$0]  %s6, 8192, %s101, [#allocation13], 128, 128, 8
    $region29: #{discriminator_forward.9} parent=1 // pred_fallthru
      _
    // Predicated region
    $region30: #{discriminator_forward.9} parent=1 // pred_check
      _
    $region31: #{discriminator_forward.9} parent=1 // pred_check_branch
      %108 = sbr.rel (0) target = $region33
    $region32: #{discriminator_forward.9} parent=1 // pred_region
      %s110 = ssub.s32 2048, 2048
      %111 = vsyncadd [#allocation16], %s110
      %s112 = sshll.u32 [#allocation15], 4
      %s113 = int_to_ptr.vmem [resolvable:$true] %s112
      %118 = dma.hbm_to_vmem [thread:$0]  %s7, 2048, %s113, [#allocation16], 128, 128, 8
    $region33: #{discriminator_forward.9} parent=1 // pred_fallthru
      _
    // Predicated region
    $region34: #{discriminator_forward.9} parent=1 // pred_check
      _
    $region35: #{discriminator_forward.9} parent=1 // pred_check_branch
      %120 = sbr.rel (0) target = $region37
    $region36: #{discriminator_forward.9} parent=1 // pred_region
      %s122 = ssub.s32 16, 16
      %123 = vsyncadd [#allocation16], %s122
      %s125 = sshll.u32 [#allocation17], 4
      %s126 = int_to_ptr.vmem [resolvable:$true] %s125
      %128 = dma.hbm_to_vmem [thread:$0]  %s8, 16, %s126, [#allocation16]
    $region37: #{discriminator_forward.9} parent=1 // pred_fallthru
      _
    // Predicated region
    $region38: #{discriminator_forward.9} parent=1 // pred_check
      _
    $region39: #{discriminator_forward.9} parent=1 // pred_check_branch
      %130 = sbr.rel (0) target = $region41
    $region40: #{discriminator_forward.9} parent=1 // pred_region
      _
    $region41: #{discriminator_forward.9} parent=1 // pred_fallthru
      _
    // Predicated region
    $region42: #{discriminator_forward.9} parent=1 // pred_check
      _
    $region43: #{discriminator_forward.9} parent=1 // pred_check_branch
      %132 = sbr.rel (0) target = $region45
    $region44: #{discriminator_forward.9} parent=1 // pred_region
      %133 = dma.done [#allocation4], 65536
    $region45: #{discriminator_forward.9} parent=1 // pred_fallthru
      _
    // Predicated region
    $region46: #{discriminator_forward.9} parent=1 // pred_check
      _
    $region47: #{discriminator_forward.9} parent=1 // pred_check_branch
      %135 = sbr.rel (0) target = $region49
    $region48: #{discriminator_forward.9} parent=1 // pred_region
      %136 = dma.done [#allocation7], 16384
    $region49: #{discriminator_forward.9} parent=1 // pred_fallthru
      _
    // Predicated region
    $region50: #{discriminator_forward.9} parent=1 // pred_check
      _
    $region51: #{discriminator_forward.9} parent=1 // pred_check_branch
      %138 = sbr.rel (0) target = $region53
    $region52: #{discriminator_forward.9} parent=1 // pred_region
      %139 = dma.done [#allocation7], 2048
    $region53: #{discriminator_forward.9} parent=1 // pred_fallthru
      _
    // Predicated region
    $region54: #{discriminator_forward.9} parent=1 // pred_check
      _
    $region55: #{discriminator_forward.9} parent=1 // pred_check_branch
      %141 = sbr.rel (0) target = $region57
    $region56: #{discriminator_forward.9} parent=1 // pred_region
      %142 = dma.done [#allocation10], 2048
    $region57: #{discriminator_forward.9} parent=1 // pred_fallthru
      _
    // Predicated region
    $region58: #{discriminator_forward.9} parent=1 // pred_check
      _
    $region59: #{discriminator_forward.9} parent=1 // pred_check_branch
      %144 = sbr.rel (0) target = $region61
    $region60: #{discriminator_forward.9} parent=1 // pred_region
      %145 = dma.done [#allocation10], 8192
    $region61: #{discriminator_forward.9} parent=1 // pred_fallthru
      _
    // Predicated region
    $region62: #{discriminator_forward.9} parent=1 // pred_check
      _
    $region63: #{discriminator_forward.9} parent=1 // pred_check_branch
      %147 = sbr.rel (0) target = $region65
    $region64: #{discriminator_forward.9} parent=1 // pred_region
      %148 = dma.done [#allocation13], 8192
    $region65: #{discriminator_forward.9} parent=1 // pred_fallthru
      _
    // Predicated region
    $region66: #{discriminator_forward.9} parent=1 // pred_check
      _
    $region67: #{discriminator_forward.9} parent=1 // pred_check_branch
      %150 = sbr.rel (0) target = $region69
    $region68: #{discriminator_forward.9} parent=1 // pred_region
      %151 = dma.done [#allocation13], 8192
    $region69: #{discriminator_forward.9} parent=1 // pred_fallthru
      _
    // Predicated region
    $region70: #{discriminator_forward.9} parent=1 // pred_check
      _
    $region71: #{discriminator_forward.9} parent=1 // pred_check_branch
      %153 = sbr.rel (0) target = $region73
    $region72: #{discriminator_forward.9} parent=1 // pred_region
      %154 = dma.done [#allocation16], 2048
    $region73: #{discriminator_forward.9} parent=1 // pred_fallthru
      _
    // Predicated region
    $region74: #{discriminator_forward.9} parent=1 // pred_check
      _
    $region75: #{discriminator_forward.9} parent=1 // pred_check_branch
      %156 = sbr.rel (0) target = $region77
    $region76: #{discriminator_forward.9} parent=1 // pred_region
      %157 = dma.done [#allocation16], 16
    $region77: #{discriminator_forward.9} parent=1 // pred_fallthru
      _
    %v158 = vld [vmem:[#allocation6] sm:$0xff]
    %v159 = vld [vmem:[#allocation6 + $0x8] sm:$0xff]
    %v160 = vld [vmem:[#allocation6 + $0x10] sm:$0xff]
    %v161 = vld [vmem:[#allocation6 + $0x18] sm:$0xff]
    %v162 = vld [vmem:[#allocation6 + $0x20] sm:$0xff]
    %v163 = vld [vmem:[#allocation6 + $0x28] sm:$0xff]
    %v164 = vld [vmem:[#allocation6 + $0x30] sm:$0xff]
    %v165 = vld [vmem:[#allocation6 + $0x38] sm:$0xff]
    %v166 = vld [vmem:[#allocation6 + $0x40] sm:$0xff]
    %v167 = vld [vmem:[#allocation6 + $0x48] sm:$0xff]
    %v168 = vld [vmem:[#allocation6 + $0x50] sm:$0xff]
    %v169 = vld [vmem:[#allocation6 + $0x58] sm:$0xff]
    %v170 = vld [vmem:[#allocation6 + $0x60] sm:$0xff]
    %v171 = vld [vmem:[#allocation6 + $0x68] sm:$0xff]
    %v172 = vld [vmem:[#allocation6 + $0x70] sm:$0xff]
    %v173 = vld [vmem:[#allocation6 + $0x78] sm:$0xff]
    %v174 = vld [vmem:[#allocation6 + $0x80] sm:$0xff]
    %v175 = vld [vmem:[#allocation6 + $0x88] sm:$0xff]
    %v176 = vld [vmem:[#allocation6 + $0x90] sm:$0xff]
    %v177 = vld [vmem:[#allocation6 + $0x98] sm:$0xff]
    %v178 = vld [vmem:[#allocation6 + $0xa0] sm:$0xff]
    %v179 = vld [vmem:[#allocation6 + $0xa8] sm:$0xff]
    %v180 = vld [vmem:[#allocation6 + $0xb0] sm:$0xff]
    %v181 = vld [vmem:[#allocation6 + $0xb8] sm:$0xff]
    %v182 = vld [vmem:[#allocation6 + $0xc0] sm:$0xff]
    %v183 = vld [vmem:[#allocation6 + $0xc8] sm:$0xff]
    %v184 = vld [vmem:[#allocation6 + $0xd0] sm:$0xff]
    %v185 = vld [vmem:[#allocation6 + $0xd8] sm:$0xff]
    %v186 = vld [vmem:[#allocation6 + $0xe0] sm:$0xff]
    %v187 = vld [vmem:[#allocation6 + $0xe8] sm:$0xff]
    %v188 = vld [vmem:[#allocation6 + $0xf0] sm:$0xff]
    %v189 = vld [vmem:[#allocation6 + $0xf8] sm:$0xff]
    %v190 = vld [vmem:[#allocation6 + $0x100] sm:$0xff]
    %v191 = vld [vmem:[#allocation6 + $0x108] sm:$0xff]
    %v192 = vld [vmem:[#allocation6 + $0x110] sm:$0xff]
    %v193 = vld [vmem:[#allocation6 + $0x118] sm:$0xff]
    %v194 = vld [vmem:[#allocation6 + $0x120] sm:$0xff]
    %v195 = vld [vmem:[#allocation6 + $0x128] sm:$0xff]
    %v196 = vld [vmem:[#allocation6 + $0x130] sm:$0xff]
    %v197 = vld [vmem:[#allocation6 + $0x138] sm:$0xff]
    %v198 = vld [vmem:[#allocation6 + $0x140] sm:$0xff]
    %v199 = vld [vmem:[#allocation6 + $0x148] sm:$0xff]
    %v200 = vld [vmem:[#allocation6 + $0x150] sm:$0xff]
    %v201 = vld [vmem:[#allocation6 + $0x158] sm:$0xff]
    %v202 = vld [vmem:[#allocation6 + $0x160] sm:$0xff]
    %v203 = vld [vmem:[#allocation6 + $0x168] sm:$0xff]
    %v204 = vld [vmem:[#allocation6 + $0x170] sm:$0xff]
    %v205 = vld [vmem:[#allocation6 + $0x178] sm:$0xff]
    %v206 = vld [vmem:[#allocation6 + $0x180] sm:$0xff]
    %v207 = vld [vmem:[#allocation6 + $0x188] sm:$0xff]
    %v208 = vld [vmem:[#allocation6 + $0x190] sm:$0xff]
    %v209 = vld [vmem:[#allocation6 + $0x198] sm:$0xff]
    %v210 = vld [vmem:[#allocation6 + $0x1a0] sm:$0xff]
    %v211 = vld [vmem:[#allocation6 + $0x1a8] sm:$0xff]
    %v212 = vld [vmem:[#allocation6 + $0x1b0] sm:$0xff]
    %v213 = vld [vmem:[#allocation6 + $0x1b8] sm:$0xff]
    %v214 = vld [vmem:[#allocation6 + $0x1c0] sm:$0xff]
    %v215 = vld [vmem:[#allocation6 + $0x1c8] sm:$0xff]
    %v216 = vld [vmem:[#allocation6 + $0x1d0] sm:$0xff]
    %v217 = vld [vmem:[#allocation6 + $0x1d8] sm:$0xff]
    %v218 = vld [vmem:[#allocation6 + $0x1e0] sm:$0xff]
    %v219 = vld [vmem:[#allocation6 + $0x1e8] sm:$0xff]
    %v220 = vld [vmem:[#allocation6 + $0x1f0] sm:$0xff]
    %v221 = vld [vmem:[#allocation6 + $0x1f8] sm:$0xff]
    %v222 = vld [vmem:[#allocation6 + $0x200] sm:$0xff]
    %v223 = vld [vmem:[#allocation6 + $0x208] sm:$0xff]
    %v224 = vld [vmem:[#allocation6 + $0x210] sm:$0xff]
    %v225 = vld [vmem:[#allocation6 + $0x218] sm:$0xff]
    %v226 = vld [vmem:[#allocation6 + $0x220] sm:$0xff]
    %v227 = vld [vmem:[#allocation6 + $0x228] sm:$0xff]
    %v228 = vld [vmem:[#allocation6 + $0x230] sm:$0xff]
    %v229 = vld [vmem:[#allocation6 + $0x238] sm:$0xff]
    %v230 = vld [vmem:[#allocation6 + $0x240] sm:$0xff]
    %v231 = vld [vmem:[#allocation6 + $0x248] sm:$0xff]
    %v232 = vld [vmem:[#allocation6 + $0x250] sm:$0xff]
    %v233 = vld [vmem:[#allocation6 + $0x258] sm:$0xff]
    %v234 = vld [vmem:[#allocation6 + $0x260] sm:$0xff]
    %v235 = vld [vmem:[#allocation6 + $0x268] sm:$0xff]
    %v236 = vld [vmem:[#allocation6 + $0x270] sm:$0xff]
    %v237 = vld [vmem:[#allocation6 + $0x278] sm:$0xff]
    %v238 = vld [vmem:[#allocation6 + $0x280] sm:$0xff]
    %v239 = vld [vmem:[#allocation6 + $0x288] sm:$0xff]
    %v240 = vld [vmem:[#allocation6 + $0x290] sm:$0xff]
    %v241 = vld [vmem:[#allocation6 + $0x298] sm:$0xff]
    %v242 = vld [vmem:[#allocation6 + $0x2a0] sm:$0xff]
    %v243 = vld [vmem:[#allocation6 + $0x2a8] sm:$0xff]
    %v244 = vld [vmem:[#allocation6 + $0x2b0] sm:$0xff]
    %v245 = vld [vmem:[#allocation6 + $0x2b8] sm:$0xff]
    %v246 = vld [vmem:[#allocation6 + $0x2c0] sm:$0xff]
    %v247 = vld [vmem:[#allocation6 + $0x2c8] sm:$0xff]
    %v248 = vld [vmem:[#allocation6 + $0x2d0] sm:$0xff]
    %v249 = vld [vmem:[#allocation6 + $0x2d8] sm:$0xff]
    %v250 = vld [vmem:[#allocation6 + $0x2e0] sm:$0xff]
    %v251 = vld [vmem:[#allocation6 + $0x2e8] sm:$0xff]
    %v252 = vld [vmem:[#allocation6 + $0x2f0] sm:$0xff]
    %v253 = vld [vmem:[#allocation6 + $0x2f8] sm:$0xff]
    %v254 = vld [vmem:[#allocation6 + $0x300] sm:$0xff]
    %v255 = vld [vmem:[#allocation6 + $0x308] sm:$0xff]
    %v256 = vld [vmem:[#allocation6 + $0x310] sm:$0xff]
    %v257 = vld [vmem:[#allocation6 + $0x318] sm:$0xff]
    %v258 = vld [vmem:[#allocation6 + $0x320] sm:$0xff]
    %v259 = vld [vmem:[#allocation6 + $0x328] sm:$0xff]
    %v260 = vld [vmem:[#allocation6 + $0x330] sm:$0xff]
    %v261 = vld [vmem:[#allocation6 + $0x338] sm:$0xff]
    %v262 = vld [vmem:[#allocation6 + $0x340] sm:$0xff]
    %v263 = vld [vmem:[#allocation6 + $0x348] sm:$0xff]
    %v264 = vld [vmem:[#allocation6 + $0x350] sm:$0xff]
    %v265 = vld [vmem:[#allocation6 + $0x358] sm:$0xff]
    %v266 = vld [vmem:[#allocation6 + $0x360] sm:$0xff]
    %v267 = vld [vmem:[#allocation6 + $0x368] sm:$0xff]
    %v268 = vld [vmem:[#allocation6 + $0x370] sm:$0xff]
    %v269 = vld [vmem:[#allocation6 + $0x378] sm:$0xff]
    %v270 = vld [vmem:[#allocation6 + $0x380] sm:$0xff]
    %v271 = vld [vmem:[#allocation6 + $0x388] sm:$0xff]
    %v272 = vld [vmem:[#allocation6 + $0x390] sm:$0xff]
    %v273 = vld [vmem:[#allocation6 + $0x398] sm:$0xff]
    %v274 = vld [vmem:[#allocation6 + $0x3a0] sm:$0xff]
    %v275 = vld [vmem:[#allocation6 + $0x3a8] sm:$0xff]
    %v276 = vld [vmem:[#allocation6 + $0x3b0] sm:$0xff]
    %v277 = vld [vmem:[#allocation6 + $0x3b8] sm:$0xff]
    %v278 = vld [vmem:[#allocation6 + $0x3c0] sm:$0xff]
    %v279 = vld [vmem:[#allocation6 + $0x3c8] sm:$0xff]
    %v280 = vld [vmem:[#allocation6 + $0x3d0] sm:$0xff]
    %v281 = vld [vmem:[#allocation6 + $0x3d8] sm:$0xff]
    %v282 = vld [vmem:[#allocation6 + $0x3e0] sm:$0xff]
    %v283 = vld [vmem:[#allocation6 + $0x3e8] sm:$0xff]
    %v284 = vld [vmem:[#allocation6 + $0x3f0] sm:$0xff]
    %v285 = vld [vmem:[#allocation6 + $0x3f8] sm:$0xff]
    %v286 = vld [vmem:[#allocation3] sm:$0xff]
    %v287 = vld [vmem:[#allocation3 + $0x8] sm:$0xff]
    %v288 = vld [vmem:[#allocation3 + $0x10] sm:$0xff]
    %v289 = vld [vmem:[#allocation3 + $0x18] sm:$0xff]
    %v290 = vld [vmem:[#allocation3 + $0x20] sm:$0xff]
    %v291 = vld [vmem:[#allocation3 + $0x28] sm:$0xff]
    %v292 = vld [vmem:[#allocation3 + $0x30] sm:$0xff]
    %v293 = vld [vmem:[#allocation3 + $0x38] sm:$0xff]
    %v294 = vld [vmem:[#allocation3 + $0x40] sm:$0xff]
    %v295 = vld [vmem:[#allocation3 + $0x48] sm:$0xff]
    %v296 = vld [vmem:[#allocation3 + $0x50] sm:$0xff]
    %v297 = vld [vmem:[#allocation3 + $0x58] sm:$0xff]
    %v298 = vld [vmem:[#allocation3 + $0x60] sm:$0xff]
    %v299 = vld [vmem:[#allocation3 + $0x68] sm:$0xff]
    %v300 = vld [vmem:[#allocation3 + $0x70] sm:$0xff]
    %v301 = vld [vmem:[#allocation3 + $0x78] sm:$0xff]
    %v302 = vld [vmem:[#allocation3 + $0x80] sm:$0xff]
    %v303 = vld [vmem:[#allocation3 + $0x88] sm:$0xff]
    %v304 = vld [vmem:[#allocation3 + $0x90] sm:$0xff]
    %v305 = vld [vmem:[#allocation3 + $0x98] sm:$0xff]
    %v306 = vld [vmem:[#allocation3 + $0xa0] sm:$0xff]
    %v307 = vld [vmem:[#allocation3 + $0xa8] sm:$0xff]
    %v308 = vld [vmem:[#allocation3 + $0xb0] sm:$0xff]
    %v309 = vld [vmem:[#allocation3 + $0xb8] sm:$0xff]
    %v310 = vld [vmem:[#allocation3 + $0xc0] sm:$0xff]
    %v311 = vld [vmem:[#allocation3 + $0xc8] sm:$0xff]
    %v312 = vld [vmem:[#allocation3 + $0xd0] sm:$0xff]
    %v313 = vld [vmem:[#allocation3 + $0xd8] sm:$0xff]
    %v314 = vld [vmem:[#allocation3 + $0xe0] sm:$0xff]
    %v315 = vld [vmem:[#allocation3 + $0xe8] sm:$0xff]
    %v316 = vld [vmem:[#allocation3 + $0xf0] sm:$0xff]
    %v317 = vld [vmem:[#allocation3 + $0xf8] sm:$0xff]
    %v318 = vld [vmem:[#allocation3 + $0x100] sm:$0xff]
    %v319 = vld [vmem:[#allocation3 + $0x108] sm:$0xff]
    %v320 = vld [vmem:[#allocation3 + $0x110] sm:$0xff]
    %v321 = vld [vmem:[#allocation3 + $0x118] sm:$0xff]
    %v322 = vld [vmem:[#allocation3 + $0x120] sm:$0xff]
    %v323 = vld [vmem:[#allocation3 + $0x128] sm:$0xff]
    %v324 = vld [vmem:[#allocation3 + $0x130] sm:$0xff]
    %v325 = vld [vmem:[#allocation3 + $0x138] sm:$0xff]
    %v326 = vld [vmem:[#allocation3 + $0x140] sm:$0xff]
    %v327 = vld [vmem:[#allocation3 + $0x148] sm:$0xff]
    %v328 = vld [vmem:[#allocation3 + $0x150] sm:$0xff]
    %v329 = vld [vmem:[#allocation3 + $0x158] sm:$0xff]
    %v330 = vld [vmem:[#allocation3 + $0x160] sm:$0xff]
    %v331 = vld [vmem:[#allocation3 + $0x168] sm:$0xff]
    %v332 = vld [vmem:[#allocation3 + $0x170] sm:$0xff]
    %v333 = vld [vmem:[#allocation3 + $0x178] sm:$0xff]
    %v334 = vld [vmem:[#allocation3 + $0x180] sm:$0xff]
    %v335 = vld [vmem:[#allocation3 + $0x188] sm:$0xff]
    %v336 = vld [vmem:[#allocation3 + $0x190] sm:$0xff]
    %v337 = vld [vmem:[#allocation3 + $0x198] sm:$0xff]
    %v338 = vld [vmem:[#allocation3 + $0x1a0] sm:$0xff]
    %v339 = vld [vmem:[#allocation3 + $0x1a8] sm:$0xff]
    %v340 = vld [vmem:[#allocation3 + $0x1b0] sm:$0xff]
    %v341 = vld [vmem:[#allocation3 + $0x1b8] sm:$0xff]
    %v342 = vld [vmem:[#allocation3 + $0x1c0] sm:$0xff]
    %v343 = vld [vmem:[#allocation3 + $0x1c8] sm:$0xff]
    %v344 = vld [vmem:[#allocation3 + $0x1d0] sm:$0xff]
    %v345 = vld [vmem:[#allocation3 + $0x1d8] sm:$0xff]
    %v346 = vld [vmem:[#allocation3 + $0x1e0] sm:$0xff]
    %v347 = vld [vmem:[#allocation3 + $0x1e8] sm:$0xff]
    %v348 = vld [vmem:[#allocation3 + $0x1f0] sm:$0xff]
    %v349 = vld [vmem:[#allocation3 + $0x1f8] sm:$0xff]
    %v350 = vld [vmem:[#allocation3 + $0x200] sm:$0xff]
    %v351 = vld [vmem:[#allocation3 + $0x208] sm:$0xff]
    %v352 = vld [vmem:[#allocation3 + $0x210] sm:$0xff]
    %v353 = vld [vmem:[#allocation3 + $0x218] sm:$0xff]
    %v354 = vld [vmem:[#allocation3 + $0x220] sm:$0xff]
    %v355 = vld [vmem:[#allocation3 + $0x228] sm:$0xff]
    %v356 = vld [vmem:[#allocation3 + $0x230] sm:$0xff]
    %v357 = vld [vmem:[#allocation3 + $0x238] sm:$0xff]
    %v358 = vld [vmem:[#allocation3 + $0x240] sm:$0xff]
    %v359 = vld [vmem:[#allocation3 + $0x248] sm:$0xff]
    %v360 = vld [vmem:[#allocation3 + $0x250] sm:$0xff]
    %v361 = vld [vmem:[#allocation3 + $0x258] sm:$0xff]
    %v362 = vld [vmem:[#allocation3 + $0x260] sm:$0xff]
    %v363 = vld [vmem:[#allocation3 + $0x268] sm:$0xff]
    %v364 = vld [vmem:[#allocation3 + $0x270] sm:$0xff]
    %v365 = vld [vmem:[#allocation3 + $0x278] sm:$0xff]
    %v366 = vld [vmem:[#allocation3 + $0x280] sm:$0xff]
    %v367 = vld [vmem:[#allocation3 + $0x288] sm:$0xff]
    %v368 = vld [vmem:[#allocation3 + $0x290] sm:$0xff]
    %v369 = vld [vmem:[#allocation3 + $0x298] sm:$0xff]
    %v370 = vld [vmem:[#allocation3 + $0x2a0] sm:$0xff]
    %v371 = vld [vmem:[#allocation3 + $0x2a8] sm:$0xff]
    %v372 = vld [vmem:[#allocation3 + $0x2b0] sm:$0xff]
    %v373 = vld [vmem:[#allocation3 + $0x2b8] sm:$0xff]
    %v374 = vld [vmem:[#allocation3 + $0x2c0] sm:$0xff]
    %v375 = vld [vmem:[#allocation3 + $0x2c8] sm:$0xff]
    %v376 = vld [vmem:[#allocation3 + $0x2d0] sm:$0xff]
    %v377 = vld [vmem:[#allocation3 + $0x2d8] sm:$0xff]
    %v378 = vld [vmem:[#allocation3 + $0x2e0] sm:$0xff]
    %v379 = vld [vmem:[#allocation3 + $0x2e8] sm:$0xff]
    %v380 = vld [vmem:[#allocation3 + $0x2f0] sm:$0xff]
    %v381 = vld [vmem:[#allocation3 + $0x2f8] sm:$0xff]
    %v382 = vld [vmem:[#allocation3 + $0x300] sm:$0xff]
    %v383 = vld [vmem:[#allocation3 + $0x308] sm:$0xff]
    %v384 = vld [vmem:[#allocation3 + $0x310] sm:$0xff]
    %v385 = vld [vmem:[#allocation3 + $0x318] sm:$0xff]
    %v386 = vld [vmem:[#allocation3 + $0x320] sm:$0xff]
    %v387 = vld [vmem:[#allocation3 + $0x328] sm:$0xff]
    %v388 = vld [vmem:[#allocation3 + $0x330] sm:$0xff]
    %v389 = vld [vmem:[#allocation3 + $0x338] sm:$0xff]
    %v390 = vld [vmem:[#allocation3 + $0x340] sm:$0xff]
    %v391 = vld [vmem:[#allocation3 + $0x348] sm:$0xff]
    %v392 = vld [vmem:[#allocation3 + $0x350] sm:$0xff]
    %v393 = vld [vmem:[#allocation3 + $0x358] sm:$0xff]
    %v394 = vld [vmem:[#allocation3 + $0x360] sm:$0xff]
    %v395 = vld [vmem:[#allocation3 + $0x368] sm:$0xff]
    %v396 = vld [vmem:[#allocation3 + $0x370] sm:$0xff]
    %v397 = vld [vmem:[#allocation3 + $0x378] sm:$0xff]
    %v398 = vld [vmem:[#allocation3 + $0x380] sm:$0xff]
    %v399 = vld [vmem:[#allocation3 + $0x388] sm:$0xff]
    %v400 = vld [vmem:[#allocation3 + $0x390] sm:$0xff]
    %v401 = vld [vmem:[#allocation3 + $0x398] sm:$0xff]
    %v402 = vld [vmem:[#allocation3 + $0x3a0] sm:$0xff]
    %v403 = vld [vmem:[#allocation3 + $0x3a8] sm:$0xff]
    %v404 = vld [vmem:[#allocation3 + $0x3b0] sm:$0xff]
    %v405 = vld [vmem:[#allocation3 + $0x3b8] sm:$0xff]
    %v406 = vld [vmem:[#allocation3 + $0x3c0] sm:$0xff]
    %v407 = vld [vmem:[#allocation3 + $0x3c8] sm:$0xff]
    %v408 = vld [vmem:[#allocation3 + $0x3d0] sm:$0xff]
    %v409 = vld [vmem:[#allocation3 + $0x3d8] sm:$0xff]
    %v410 = vld [vmem:[#allocation3 + $0x3e0] sm:$0xff]
    %v411 = vld [vmem:[#allocation3 + $0x3e8] sm:$0xff]
    %v412 = vld [vmem:[#allocation3 + $0x3f0] sm:$0xff]
    %v413 = vld [vmem:[#allocation3 + $0x3f8] sm:$0xff]
    %414 = vmatprep.subr.mxu0 0.0
    %415 = vmatpush1.msra.mxu0 %v286
    %416 = vmatprep.subr.mxu0 0.0
    %417 = vmatpush1.msra.mxu0 %v287
    %418 = vmatprep.subr.mxu0 0.0
    %419 = vmatpush1.msra.mxu0 %v288
    %420 = vmatprep.subr.mxu0 0.0
    %421 = vmatpush1.msra.mxu0 %v289
    %422 = vmatprep.subr.mxu0 0.0
    %423 = vmatpush1.msra.mxu0 %v290
    %424 = vmatprep.subr.mxu0 0.0
    %425 = vmatpush1.msra.mxu0 %v291
    %426 = vmatprep.subr.mxu0 0.0
    %427 = vmatpush1.msra.mxu0 %v292
    %428 = vmatprep.subr.mxu0 0.0
    %429 = vmatpush1.msra.mxu0 %v293
    %430 = vmatprep.subr.mxu0 0.0
    %431 = vmatpush1.msra.mxu0 %v294
    %432 = vmatprep.subr.mxu0 0.0
    %433 = vmatpush1.msra.mxu0 %v295
    %434 = vmatprep.subr.mxu0 0.0
    %435 = vmatpush1.msra.mxu0 %v296
    %436 = vmatprep.subr.mxu0 0.0
    %437 = vmatpush1.msra.mxu0 %v297
    %438 = vmatprep.subr.mxu0 0.0
    %439 = vmatpush1.msra.mxu0 %v298
    %440 = vmatprep.subr.mxu0 0.0
    %441 = vmatpush1.msra.mxu0 %v299
    %442 = vmatprep.subr.mxu0 0.0
    %443 = vmatpush1.msra.mxu0 %v300
    %444 = vmatprep.subr.mxu0 0.0
    %445 = vmatpush1.msra.mxu0 %v301
    %446 = vmatprep.subr.mxu0 0.0
    %447 = vmatpush1.msra.mxu0 %v302
    %448 = vmatprep.subr.mxu0 0.0
    %449 = vmatpush1.msra.mxu0 %v303
    %450 = vmatprep.subr.mxu0 0.0
    %451 = vmatpush1.msra.mxu0 %v304
    %452 = vmatprep.subr.mxu0 0.0
    %453 = vmatpush1.msra.mxu0 %v305
    %454 = vmatprep.subr.mxu0 0.0
    %455 = vmatpush1.msra.mxu0 %v306
    %456 = vmatprep.subr.mxu0 0.0
    %457 = vmatpush1.msra.mxu0 %v307
    %458 = vmatprep.subr.mxu0 0.0
    %459 = vmatpush1.msra.mxu0 %v308
    %460 = vmatprep.subr.mxu0 0.0
    %461 = vmatpush1.msra.mxu0 %v309
    %462 = vmatprep.subr.mxu0 0.0
    %463 = vmatpush1.msra.mxu0 %v310
    %464 = vmatprep.subr.mxu0 0.0
    %465 = vmatpush1.msra.mxu0 %v311
    %466 = vmatprep.subr.mxu0 0.0
    %467 = vmatpush1.msra.mxu0 %v312
    %468 = vmatprep.subr.mxu0 0.0
    %469 = vmatpush1.msra.mxu0 %v313
    %470 = vmatprep.subr.mxu0 0.0
    %471 = vmatpush1.msra.mxu0 %v314
    %472 = vmatprep.subr.mxu0 0.0
    %473 = vmatpush1.msra.mxu0 %v315
    %474 = vmatprep.subr.mxu0 0.0
    %475 = vmatpush1.msra.mxu0 %v316
    %476 = vmatprep.subr.mxu0 0.0
    %477 = vmatpush1.msra.mxu0 %v317
    %478 = vmatprep.mubr.f32.mxu0 %v159
    %479 = vmatmul.mubr.f32.gmra.mrb[0].mxu0 %v158
    %v480 = vpop.f32.mrb[0].mxu0
    %v481 = vadd.f32 0.0, %v480
    %v482 = vpop.f32.mrb[0].mxu0
    %483 = vmatprep.mubr.f32.mxu0 %v167
    %484 = vmatmul.mubr.f32.gmra.mrb[0].mxu0 %v166
    %v485 = vpop.f32.mrb[0].mxu0
    %v486 = vadd.f32 0.0, %v485
    %v487 = vpop.f32.mrb[0].mxu0
    %488 = vmatprep.mubr.f32.mxu0 %v175
    %489 = vmatmul.mubr.f32.gmra.mrb[0].mxu0 %v174
    %v490 = vpop.f32.mrb[0].mxu0
    %v491 = vadd.f32 0.0, %v490
    %v492 = vpop.f32.mrb[0].mxu0
    %493 = vmatprep.mubr.f32.mxu0 %v183
    %494 = vmatmul.mubr.f32.gmra.mrb[0].mxu0 %v182
    %v495 = vpop.f32.mrb[0].mxu0
    %v496 = vadd.f32 0.0, %v495
    %v497 = vpop.f32.mrb[0].mxu0
    %498 = vmatprep.mubr.f32.mxu0 %v191
    %499 = vmatmul.mubr.f32.gmra.mrb[0].mxu0 %v190
    %v500 = vpop.f32.mrb[0].mxu0
    %v501 = vadd.f32 0.0, %v500
    %v502 = vpop.f32.mrb[0].mxu0
    %503 = vmatprep.mubr.f32.mxu0 %v199
    %504 = vmatmul.mubr.f32.gmra.mrb[0].mxu0 %v198
    %v505 = vpop.f32.mrb[0].mxu0
    %v506 = vadd.f32 0.0, %v505
    %v507 = vpop.f32.mrb[0].mxu0
    %508 = vmatprep.mubr.f32.mxu0 %v207
    %509 = vmatmul.mubr.f32.gmra.mrb[0].mxu0 %v206
    %v510 = vpop.f32.mrb[0].mxu0
    %v511 = vadd.f32 0.0, %v510
    %v512 = vpop.f32.mrb[0].mxu0
    %513 = vmatprep.mubr.f32.mxu0 %v215
    %514 = vmatmul.mubr.f32.gmra.mrb[0].mxu0 %v214
    %v515 = vpop.f32.mrb[0].mxu0
    %v516 = vadd.f32 0.0, %v515
    %v517 = vpop.f32.mrb[0].mxu0
    %518 = vmatprep.mubr.f32.mxu0 %v223
    %519 = vmatmul.mubr.f32.gmra.mrb[0].mxu0 %v222
    %v520 = vpop.f32.mrb[0].mxu0
    %v521 = vadd.f32 0.0, %v520
    %v522 = vpop.f32.mrb[0].mxu0
    %523 = vmatprep.mubr.f32.mxu0 %v231
    %524 = vmatmul.mubr.f32.gmra.mrb[0].mxu0 %v230
    %v525 = vpop.f32.mrb[0].mxu0
    %v526 = vadd.f32 0.0, %v525
    %v527 = vpop.f32.mrb[0].mxu0
    %528 = vmatprep.mubr.f32.mxu0 %v239
    %529 = vmatmul.mubr.f32.gmra.mrb[0].mxu0 %v238
    %v530 = vpop.f32.mrb[0].mxu0
    %v531 = vadd.f32 0.0, %v530
    %v532 = vpop.f32.mrb[0].mxu0
    %533 = vmatprep.mubr.f32.mxu0 %v247
    %534 = vmatmul.mubr.f32.gmra.mrb[0].mxu0 %v246
    %v535 = vpop.f32.mrb[0].mxu0
    %v536 = vadd.f32 0.0, %v535
    %v537 = vpop.f32.mrb[0].mxu0
    %538 = vmatprep.mubr.f32.mxu0 %v255
    %539 = vmatmul.mubr.f32.gmra.mrb[0].mxu0 %v254
    %v540 = vpop.f32.mrb[0].mxu0
    %v541 = vadd.f32 0.0, %v540
    %v542 = vpop.f32.mrb[0].mxu0
    %543 = vmatprep.mubr.f32.mxu0 %v263
    %544 = vmatmul.mubr.f32.gmra.mrb[0].mxu0 %v262
    %v545 = vpop.f32.mrb[0].mxu0
    %v546 = vadd.f32 0.0, %v545
    %v547 = vpop.f32.mrb[0].mxu0
    %548 = vmatprep.mubr.f32.mxu0 %v271
    %549 = vmatmul.mubr.f32.gmra.mrb[0].mxu0 %v270
    %v550 = vpop.f32.mrb[0].mxu0
    %v551 = vadd.f32 0.0, %v550
    %v552 = vpop.f32.mrb[0].mxu0
    %553 = vmatprep.mubr.f32.mxu0 %v279
    %554 = vmatmul.mubr.f32.gmra.mrb[0].mxu0 %v278
    %v555 = vpop.f32.mrb[0].mxu0
    %v556 = vadd.f32 0.0, %v555
    %v557 = vpop.f32.mrb[0].mxu0
    %558 = vdwg.mxu0
    %559 = vmatprep.subr.mxu0 0.0
    %560 = vmatpush1.msra.mxu0 %v318
    %561 = vmatprep.subr.mxu0 0.0
    %562 = vmatpush1.msra.mxu0 %v319
    %563 = vmatprep.subr.mxu0 0.0
    %564 = vmatpush1.msra.mxu0 %v320
    %565 = vmatprep.subr.mxu0 0.0
    %566 = vmatpush1.msra.mxu0 %v321
    %567 = vmatprep.subr.mxu0 0.0
    %568 = vmatpush1.msra.mxu0 %v322
    %569 = vmatprep.subr.mxu0 0.0
    %570 = vmatpush1.msra.mxu0 %v323
    %571 = vmatprep.subr.mxu0 0.0
    %572 = vmatpush1.msra.mxu0 %v324
    %573 = vmatprep.subr.mxu0 0.0
    %574 = vmatpush1.msra.mxu0 %v325
    %575 = vmatprep.subr.mxu0 0.0
    %576 = vmatpush1.msra.mxu0 %v326
    %577 = vmatprep.subr.mxu0 0.0
    %578 = vmatpush1.msra.mxu0 %v327
    %579 = vmatprep.subr.mxu0 0.0
    %580 = vmatpush1.msra.mxu0 %v328
    %581 = vmatprep.subr.mxu0 0.0
    %582 = vmatpush1.msra.mxu0 %v329
    %583 = vmatprep.subr.mxu0 0.0
    %584 = vmatpush1.msra.mxu0 %v330
    %585 = vmatprep.subr.mxu0 0.0
    %586 = vmatpush1.msra.mxu0 %v331
    %587 = vmatprep.subr.mxu0 0.0
    %588 = vmatpush1.msra.mxu0 %v332
    %589 = vmatprep.subr.mxu0 0.0
    %590 = vmatpush1.msra.mxu0 %v333
    %591 = vmatprep.subr.mxu0 0.0
    %592 = vmatpush1.msra.mxu0 %v334
    %593 = vmatprep.subr.mxu0 0.0
    %594 = vmatpush1.msra.mxu0 %v335
    %595 = vmatprep.subr.mxu0 0.0
    %596 = vmatpush1.msra.mxu0 %v336
    %597 = vmatprep.subr.mxu0 0.0
    %598 = vmatpush1.msra.mxu0 %v337
    %599 = vmatprep.subr.mxu0 0.0
    %600 = vmatpush1.msra.mxu0 %v338
    %601 = vmatprep.subr.mxu0 0.0
    %602 = vmatpush1.msra.mxu0 %v339
    %603 = vmatprep.subr.mxu0 0.0
    %604 = vmatpush1.msra.mxu0 %v340
    %605 = vmatprep.subr.mxu0 0.0
    %606 = vmatpush1.msra.mxu0 %v341
    %607 = vmatprep.subr.mxu0 0.0
    %608 = vmatpush1.msra.mxu0 %v342
    %609 = vmatprep.subr.mxu0 0.0
    %610 = vmatpush1.msra.mxu0 %v343
    %611 = vmatprep.subr.mxu0 0.0
    %612 = vmatpush1.msra.mxu0 %v344
    %613 = vmatprep.subr.mxu0 0.0
    %614 = vmatpush1.msra.mxu0 %v345
    %615 = vmatprep.subr.mxu0 0.0
    %616 = vmatpush1.msra.mxu0 %v346
    %617 = vmatprep.subr.mxu0 0.0
    %618 = vmatpush1.msra.mxu0 %v347
    %619 = vmatprep.subr.mxu0 0.0
    %620 = vmatpush1.msra.mxu0 %v348
    %621 = vmatprep.subr.mxu0 0.0
    %622 = vmatpush1.msra.mxu0 %v349
    %623 = vmatprep.mubr.f32.mxu0 %v161
    %624 = vmatmul.mubr.f32.gmra.mrb[0].mxu0 %v160
    %v625 = vpop.f32.mrb[0].mxu0
    %v626 = vadd.f32 %v481, %v625
    %v627 = vpop.f32.mrb[0].mxu0
    %628 = vmatprep.mubr.f32.mxu0 %v169
    %629 = vmatmul.mubr.f32.gmra.mrb[0].mxu0 %v168
    %v630 = vpop.f32.mrb[0].mxu0
    %v631 = vadd.f32 %v486, %v630
    %v632 = vpop.f32.mrb[0].mxu0
    %633 = vmatprep.mubr.f32.mxu0 %v177
    %634 = vmatmul.mubr.f32.gmra.mrb[0].mxu0 %v176
    %v635 = vpop.f32.mrb[0].mxu0
    %v636 = vadd.f32 %v491, %v635
    %v637 = vpop.f32.mrb[0].mxu0
    %638 = vmatprep.mubr.f32.mxu0 %v185
    %639 = vmatmul.mubr.f32.gmra.mrb[0].mxu0 %v184
    %v640 = vpop.f32.mrb[0].mxu0
    %v641 = vadd.f32 %v496, %v640
    %v642 = vpop.f32.mrb[0].mxu0
    %643 = vmatprep.mubr.f32.mxu0 %v193
    %644 = vmatmul.mubr.f32.gmra.mrb[0].mxu0 %v192
    %v645 = vpop.f32.mrb[0].mxu0
    %v646 = vadd.f32 %v501, %v645
    %v647 = vpop.f32.mrb[0].mxu0
    %648 = vmatprep.mubr.f32.mxu0 %v201
    %649 = vmatmul.mubr.f32.gmra.mrb[0].mxu0 %v200
    %v650 = vpop.f32.mrb[0].mxu0
    %v651 = vadd.f32 %v506, %v650
    %v652 = vpop.f32.mrb[0].mxu0
    %653 = vmatprep.mubr.f32.mxu0 %v209
    %654 = vmatmul.mubr.f32.gmra.mrb[0].mxu0 %v208
    %v655 = vpop.f32.mrb[0].mxu0
    %v656 = vadd.f32 %v511, %v655
    %v657 = vpop.f32.mrb[0].mxu0
    %658 = vmatprep.mubr.f32.mxu0 %v217
    %659 = vmatmul.mubr.f32.gmra.mrb[0].mxu0 %v216
    %v660 = vpop.f32.mrb[0].mxu0
    %v661 = vadd.f32 %v516, %v660
    %v662 = vpop.f32.mrb[0].mxu0
    %663 = vmatprep.mubr.f32.mxu0 %v225
    %664 = vmatmul.mubr.f32.gmra.mrb[0].mxu0 %v224
    %v665 = vpop.f32.mrb[0].mxu0
    %v666 = vadd.f32 %v521, %v665
    %v667 = vpop.f32.mrb[0].mxu0
    %668 = vmatprep.mubr.f32.mxu0 %v233
    %669 = vmatmul.mubr.f32.gmra.mrb[0].mxu0 %v232
    %v670 = vpop.f32.mrb[0].mxu0
    %v671 = vadd.f32 %v526, %v670
    %v672 = vpop.f32.mrb[0].mxu0
    %673 = vmatprep.mubr.f32.mxu0 %v241
    %674 = vmatmul.mubr.f32.gmra.mrb[0].mxu0 %v240
    %v675 = vpop.f32.mrb[0].mxu0
    %v676 = vadd.f32 %v531, %v675
    %v677 = vpop.f32.mrb[0].mxu0
    %678 = vmatprep.mubr.f32.mxu0 %v249
    %679 = vmatmul.mubr.f32.gmra.mrb[0].mxu0 %v248
    %v680 = vpop.f32.mrb[0].mxu0
    %v681 = vadd.f32 %v536, %v680
    %v682 = vpop.f32.mrb[0].mxu0
    %683 = vmatprep.mubr.f32.mxu0 %v257
    %684 = vmatmul.mubr.f32.gmra.mrb[0].mxu0 %v256
    %v685 = vpop.f32.mrb[0].mxu0
    %v686 = vadd.f32 %v541, %v685
    %v687 = vpop.f32.mrb[0].mxu0
    %688 = vmatprep.mubr.f32.mxu0 %v265
    %689 = vmatmul.mubr.f32.gmra.mrb[0].mxu0 %v264
    %v690 = vpop.f32.mrb[0].mxu0
    %v691 = vadd.f32 %v546, %v690
    %v692 = vpop.f32.mrb[0].mxu0
    %693 = vmatprep.mubr.f32.mxu0 %v273
    %694 = vmatmul.mubr.f32.gmra.mrb[0].mxu0 %v272
    %v695 = vpop.f32.mrb[0].mxu0
    %v696 = vadd.f32 %v551, %v695
    %v697 = vpop.f32.mrb[0].mxu0
    %698 = vmatprep.mubr.f32.mxu0 %v281
    %699 = vmatmul.mubr.f32.gmra.mrb[0].mxu0 %v280
    %v700 = vpop.f32.mrb[0].mxu0
    %v701 = vadd.f32 %v556, %v700
    %v702 = vpop.f32.mrb[0].mxu0
    %703 = vdwg.mxu0
    %704 = vmatprep.subr.mxu0 0.0
    %705 = vmatpush1.msra.mxu0 %v350
    %706 = vmatprep.subr.mxu0 0.0
    %707 = vmatpush1.msra.mxu0 %v351
    %708 = vmatprep.subr.mxu0 0.0
    %709 = vmatpush1.msra.mxu0 %v352
    %710 = vmatprep.subr.mxu0 0.0
    %711 = vmatpush1.msra.mxu0 %v353
    %712 = vmatprep.subr.mxu0 0.0
    %713 = vmatpush1.msra.mxu0 %v354
    %714 = vmatprep.subr.mxu0 0.0
    %715 = vmatpush1.msra.mxu0 %v355
    %716 = vmatprep.subr.mxu0 0.0
    %717 = vmatpush1.msra.mxu0 %v356
    %718 = vmatprep.subr.mxu0 0.0
    %719 = vmatpush1.msra.mxu0 %v357
    %720 = vmatprep.subr.mxu0 0.0
    %721 = vmatpush1.msra.mxu0 %v358
    %722 = vmatprep.subr.mxu0 0.0
    %723 = vmatpush1.msra.mxu0 %v359
    %724 = vmatprep.subr.mxu0 0.0
    %725 = vmatpush1.msra.mxu0 %v360
    %726 = vmatprep.subr.mxu0 0.0
    %727 = vmatpush1.msra.mxu0 %v361
    %728 = vmatprep.subr.mxu0 0.0
    %729 = vmatpush1.msra.mxu0 %v362
    %730 = vmatprep.subr.mxu0 0.0
    %731 = vmatpush1.msra.mxu0 %v363
    %732 = vmatprep.subr.mxu0 0.0
    %733 = vmatpush1.msra.mxu0 %v364
    %734 = vmatprep.subr.mxu0 0.0
    %735 = vmatpush1.msra.mxu0 %v365
    %736 = vmatprep.subr.mxu0 0.0
    %737 = vmatpush1.msra.mxu0 %v366
    %738 = vmatprep.subr.mxu0 0.0
    %739 = vmatpush1.msra.mxu0 %v367
    %740 = vmatprep.subr.mxu0 0.0
    %741 = vmatpush1.msra.mxu0 %v368
    %742 = vmatprep.subr.mxu0 0.0
    %743 = vmatpush1.msra.mxu0 %v369
    %744 = vmatprep.subr.mxu0 0.0
    %745 = vmatpush1.msra.mxu0 %v370
    %746 = vmatprep.subr.mxu0 0.0
    %747 = vmatpush1.msra.mxu0 %v371
    %748 = vmatprep.subr.mxu0 0.0
    %749 = vmatpush1.msra.mxu0 %v372
    %750 = vmatprep.subr.mxu0 0.0
    %751 = vmatpush1.msra.mxu0 %v373
    %752 = vmatprep.subr.mxu0 0.0
    %753 = vmatpush1.msra.mxu0 %v374
    %754 = vmatprep.subr.mxu0 0.0
    %755 = vmatpush1.msra.mxu0 %v375
    %756 = vmatprep.subr.mxu0 0.0
    %757 = vmatpush1.msra.mxu0 %v376
    %758 = vmatprep.subr.mxu0 0.0
    %759 = vmatpush1.msra.mxu0 %v377
    %760 = vmatprep.subr.mxu0 0.0
    %761 = vmatpush1.msra.mxu0 %v378
    %762 = vmatprep.subr.mxu0 0.0
    %763 = vmatpush1.msra.mxu0 %v379
    %764 = vmatprep.subr.mxu0 0.0
    %765 = vmatpush1.msra.mxu0 %v380
    %766 = vmatprep.subr.mxu0 0.0
    %767 = vmatpush1.msra.mxu0 %v381
    %768 = vmatprep.mubr.f32.mxu0 %v163
    %769 = vmatmul.mubr.f32.gmra.mrb[0].mxu0 %v162
    %v770 = vpop.f32.mrb[0].mxu0
    %v771 = vadd.f32 %v626, %v770
    %v772 = vpop.f32.mrb[0].mxu0
    %773 = vmatprep.mubr.f32.mxu0 %v171
    %774 = vmatmul.mubr.f32.gmra.mrb[0].mxu0 %v170
    %v775 = vpop.f32.mrb[0].mxu0
    %v776 = vadd.f32 %v631, %v775
    %v777 = vpop.f32.mrb[0].mxu0
    %778 = vmatprep.mubr.f32.mxu0 %v179
    %779 = vmatmul.mubr.f32.gmra.mrb[0].mxu0 %v178
    %v780 = vpop.f32.mrb[0].mxu0
    %v781 = vadd.f32 %v636, %v780
    %v782 = vpop.f32.mrb[0].mxu0
    %783 = vmatprep.mubr.f32.mxu0 %v187
    %784 = vmatmul.mubr.f32.gmra.mrb[0].mxu0 %v186
    %v785 = vpop.f32.mrb[0].mxu0
    %v786 = vadd.f32 %v641, %v785
    %v787 = vpop.f32.mrb[0].mxu0
    %788 = vmatprep.mubr.f32.mxu0 %v195
    %789 = vmatmul.mubr.f32.gmra.mrb[0].mxu0 %v194
    %v790 = vpop.f32.mrb[0].mxu0
    %v791 = vadd.f32 %v646, %v790
    %v792 = vpop.f32.mrb[0].mxu0
    %793 = vmatprep.mubr.f32.mxu0 %v203
    %794 = vmatmul.mubr.f32.gmra.mrb[0].mxu0 %v202
    %v795 = vpop.f32.mrb[0].mxu0
    %v796 = vadd.f32 %v651, %v795
    %v797 = vpop.f32.mrb[0].mxu0
    %798 = vmatprep.mubr.f32.mxu0 %v211
    %799 = vmatmul.mubr.f32.gmra.mrb[0].mxu0 %v210
    %v800 = vpop.f32.mrb[0].mxu0
    %v801 = vadd.f32 %v656, %v800
    %v802 = vpop.f32.mrb[0].mxu0
    %803 = vmatprep.mubr.f32.mxu0 %v219
    %804 = vmatmul.mubr.f32.gmra.mrb[0].mxu0 %v218
    %v805 = vpop.f32.mrb[0].mxu0
    %v806 = vadd.f32 %v661, %v805
    %v807 = vpop.f32.mrb[0].mxu0
    %808 = vmatprep.mubr.f32.mxu0 %v227
    %809 = vmatmul.mubr.f32.gmra.mrb[0].mxu0 %v226
    %v810 = vpop.f32.mrb[0].mxu0
    %v811 = vadd.f32 %v666, %v810
    %v812 = vpop.f32.mrb[0].mxu0
    %813 = vmatprep.mubr.f32.mxu0 %v235
    %814 = vmatmul.mubr.f32.gmra.mrb[0].mxu0 %v234
    %v815 = vpop.f32.mrb[0].mxu0
    %v816 = vadd.f32 %v671, %v815
    %v817 = vpop.f32.mrb[0].mxu0
    %818 = vmatprep.mubr.f32.mxu0 %v243
    %819 = vmatmul.mubr.f32.gmra.mrb[0].mxu0 %v242
    %v820 = vpop.f32.mrb[0].mxu0
    %v821 = vadd.f32 %v676, %v820
    %v822 = vpop.f32.mrb[0].mxu0
    %823 = vmatprep.mubr.f32.mxu0 %v251
    %824 = vmatmul.mubr.f32.gmra.mrb[0].mxu0 %v250
    %v825 = vpop.f32.mrb[0].mxu0
    %v826 = vadd.f32 %v681, %v825
    %v827 = vpop.f32.mrb[0].mxu0
    %828 = vmatprep.mubr.f32.mxu0 %v259
    %829 = vmatmul.mubr.f32.gmra.mrb[0].mxu0 %v258
    %v830 = vpop.f32.mrb[0].mxu0
    %v831 = vadd.f32 %v686, %v830
    %v832 = vpop.f32.mrb[0].mxu0
    %833 = vmatprep.mubr.f32.mxu0 %v267
    %834 = vmatmul.mubr.f32.gmra.mrb[0].mxu0 %v266
    %v835 = vpop.f32.mrb[0].mxu0
    %v836 = vadd.f32 %v691, %v835
    %v837 = vpop.f32.mrb[0].mxu0
    %838 = vmatprep.mubr.f32.mxu0 %v275
    %839 = vmatmul.mubr.f32.gmra.mrb[0].mxu0 %v274
    %v840 = vpop.f32.mrb[0].mxu0
    %v841 = vadd.f32 %v696, %v840
    %v842 = vpop.f32.mrb[0].mxu0
    %843 = vmatprep.mubr.f32.mxu0 %v283
    %844 = vmatmul.mubr.f32.gmra.mrb[0].mxu0 %v282
    %v845 = vpop.f32.mrb[0].mxu0
    %v846 = vadd.f32 %v701, %v845
    %v847 = vpop.f32.mrb[0].mxu0
    %848 = vdwg.mxu0
    %849 = vmatprep.subr.mxu0 0.0
    %850 = vmatpush1.msra.mxu0 %v382
    %851 = vmatprep.subr.mxu0 0.0
    %852 = vmatpush1.msra.mxu0 %v383
    %853 = vmatprep.subr.mxu0 0.0
    %854 = vmatpush1.msra.mxu0 %v384
    %855 = vmatprep.subr.mxu0 0.0
    %856 = vmatpush1.msra.mxu0 %v385
    %857 = vmatprep.subr.mxu0 0.0
    %858 = vmatpush1.msra.mxu0 %v386
    %859 = vmatprep.subr.mxu0 0.0
    %860 = vmatpush1.msra.mxu0 %v387
    %861 = vmatprep.subr.mxu0 0.0
    %862 = vmatpush1.msra.mxu0 %v388
    %863 = vmatprep.subr.mxu0 0.0
    %864 = vmatpush1.msra.mxu0 %v389
    %865 = vmatprep.subr.mxu0 0.0
    %866 = vmatpush1.msra.mxu0 %v390
    %867 = vmatprep.subr.mxu0 0.0
    %868 = vmatpush1.msra.mxu0 %v391
    %869 = vmatprep.subr.mxu0 0.0
    %870 = vmatpush1.msra.mxu0 %v392
    %871 = vmatprep.subr.mxu0 0.0
    %872 = vmatpush1.msra.mxu0 %v393
    %873 = vmatprep.subr.mxu0 0.0
    %874 = vmatpush1.msra.mxu0 %v394
    %875 = vmatprep.subr.mxu0 0.0
    %876 = vmatpush1.msra.mxu0 %v395
    %877 = vmatprep.subr.mxu0 0.0
    %878 = vmatpush1.msra.mxu0 %v396
    %879 = vmatprep.subr.mxu0 0.0
    %880 = vmatpush1.msra.mxu0 %v397
    %881 = vmatprep.subr.mxu0 0.0
    %882 = vmatpush1.msra.mxu0 %v398
    %883 = vmatprep.subr.mxu0 0.0
    %884 = vmatpush1.msra.mxu0 %v399
    %885 = vmatprep.subr.mxu0 0.0
    %886 = vmatpush1.msra.mxu0 %v400
    %887 = vmatprep.subr.mxu0 0.0
    %888 = vmatpush1.msra.mxu0 %v401
    %889 = vmatprep.subr.mxu0 0.0
    %890 = vmatpush1.msra.mxu0 %v402
    %891 = vmatprep.subr.mxu0 0.0
    %892 = vmatpush1.msra.mxu0 %v403
    %893 = vmatprep.subr.mxu0 0.0
    %894 = vmatpush1.msra.mxu0 %v404
    %895 = vmatprep.subr.mxu0 0.0
    %896 = vmatpush1.msra.mxu0 %v405
    %897 = vmatprep.subr.mxu0 0.0
    %898 = vmatpush1.msra.mxu0 %v406
    %899 = vmatprep.subr.mxu0 0.0
    %900 = vmatpush1.msra.mxu0 %v407
    %901 = vmatprep.subr.mxu0 0.0
    %902 = vmatpush1.msra.mxu0 %v408
    %903 = vmatprep.subr.mxu0 0.0
    %904 = vmatpush1.msra.mxu0 %v409
    %905 = vmatprep.subr.mxu0 0.0
    %906 = vmatpush1.msra.mxu0 %v410
    %907 = vmatprep.subr.mxu0 0.0
    %908 = vmatpush1.msra.mxu0 %v411
    %909 = vmatprep.subr.mxu0 0.0
    %910 = vmatpush1.msra.mxu0 %v412
    %911 = vmatprep.subr.mxu0 0.0
    %912 = vmatpush1.msra.mxu0 %v413
    %913 = vmatprep.mubr.f32.mxu0 %v165
    %914 = vmatmul.mubr.f32.gmra.mrb[0].mxu0 %v164
    %v915 = vpop.f32.mrb[0].mxu0
    %v916 = vadd.f32 %v771, %v915
    %v917 = vpop.f32.mrb[0].mxu0
    %918 = vmatprep.mubr.f32.mxu0 %v173
    %919 = vmatmul.mubr.f32.gmra.mrb[0].mxu0 %v172
    %v920 = vpop.f32.mrb[0].mxu0
    %v921 = vadd.f32 %v776, %v920
    %v922 = vpop.f32.mrb[0].mxu0
    %923 = vmatprep.mubr.f32.mxu0 %v181
    %924 = vmatmul.mubr.f32.gmra.mrb[0].mxu0 %v180
    %v925 = vpop.f32.mrb[0].mxu0
    %v926 = vadd.f32 %v781, %v925
    %v927 = vpop.f32.mrb[0].mxu0
    %928 = vmatprep.mubr.f32.mxu0 %v189
    %929 = vmatmul.mubr.f32.gmra.mrb[0].mxu0 %v188
    %v930 = vpop.f32.mrb[0].mxu0
    %v931 = vadd.f32 %v786, %v930
    %v932 = vpop.f32.mrb[0].mxu0
    %933 = vmatprep.mubr.f32.mxu0 %v197
    %934 = vmatmul.mubr.f32.gmra.mrb[0].mxu0 %v196
    %v935 = vpop.f32.mrb[0].mxu0
    %v936 = vadd.f32 %v791, %v935
    %v937 = vpop.f32.mrb[0].mxu0
    %938 = vmatprep.mubr.f32.mxu0 %v205
    %939 = vmatmul.mubr.f32.gmra.mrb[0].mxu0 %v204
    %v940 = vpop.f32.mrb[0].mxu0
    %v941 = vadd.f32 %v796, %v940
    %v942 = vpop.f32.mrb[0].mxu0
    %943 = vmatprep.mubr.f32.mxu0 %v213
    %944 = vmatmul.mubr.f32.gmra.mrb[0].mxu0 %v212
    %v945 = vpop.f32.mrb[0].mxu0
    %v946 = vadd.f32 %v801, %v945
    %v947 = vpop.f32.mrb[0].mxu0
    %948 = vmatprep.mubr.f32.mxu0 %v221
    %949 = vmatmul.mubr.f32.gmra.mrb[0].mxu0 %v220
    %v950 = vpop.f32.mrb[0].mxu0
    %v951 = vadd.f32 %v806, %v950
    %v952 = vpop.f32.mrb[0].mxu0
    %953 = vmatprep.mubr.f32.mxu0 %v229
    %954 = vmatmul.mubr.f32.gmra.mrb[0].mxu0 %v228
    %v955 = vpop.f32.mrb[0].mxu0
    %v956 = vadd.f32 %v811, %v955
    %v957 = vpop.f32.mrb[0].mxu0
    %958 = vmatprep.mubr.f32.mxu0 %v237
    %959 = vmatmul.mubr.f32.gmra.mrb[0].mxu0 %v236
    %v960 = vpop.f32.mrb[0].mxu0
    %v961 = vadd.f32 %v816, %v960
    %v962 = vpop.f32.mrb[0].mxu0
    %963 = vmatprep.mubr.f32.mxu0 %v245
    %964 = vmatmul.mubr.f32.gmra.mrb[0].mxu0 %v244
    %v965 = vpop.f32.mrb[0].mxu0
    %v966 = vadd.f32 %v821, %v965
    %v967 = vpop.f32.mrb[0].mxu0
    %968 = vmatprep.mubr.f32.mxu0 %v253
    %969 = vmatmul.mubr.f32.gmra.mrb[0].mxu0 %v252
    %v970 = vpop.f32.mrb[0].mxu0
    %v971 = vadd.f32 %v826, %v970
    %v972 = vpop.f32.mrb[0].mxu0
    %973 = vmatprep.mubr.f32.mxu0 %v261
    %974 = vmatmul.mubr.f32.gmra.mrb[0].mxu0 %v260
    %v975 = vpop.f32.mrb[0].mxu0
    %v976 = vadd.f32 %v831, %v975
    %v977 = vpop.f32.mrb[0].mxu0
    %978 = vmatprep.mubr.f32.mxu0 %v269
    %979 = vmatmul.mubr.f32.gmra.mrb[0].mxu0 %v268
    %v980 = vpop.f32.mrb[0].mxu0
    %v981 = vadd.f32 %v836, %v980
    %v982 = vpop.f32.mrb[0].mxu0
    %983 = vmatprep.mubr.f32.mxu0 %v277
    %984 = vmatmul.mubr.f32.gmra.mrb[0].mxu0 %v276
    %v985 = vpop.f32.mrb[0].mxu0
    %v986 = vadd.f32 %v841, %v985
    %v987 = vpop.f32.mrb[0].mxu0
    %988 = vmatprep.mubr.f32.mxu0 %v285
    %989 = vmatmul.mubr.f32.gmra.mrb[0].mxu0 %v284
    %v990 = vpop.f32.mrb[0].mxu0
    %v991 = vadd.f32 %v846, %v990
    %v992 = vpop.f32.mrb[0].mxu0
    %993 = vdwg.mxu0
    %s994 = scalar_lea.vmem [#allocation3], 1024
    %v995 = vld [vmem:[%s994] sm:$0xff]
    %v996 = vld [vmem:[%s994 + $0x8] sm:$0xff]
    %v997 = vld [vmem:[%s994 + $0x10] sm:$0xff]
    %v998 = vld [vmem:[%s994 + $0x18] sm:$0xff]
    %v999 = vld [vmem:[%s994 + $0x20] sm:$0xff]
    %v1000 = vld [vmem:[%s994 + $0x28] sm:$0xff]
    %v1001 = vld [vmem:[%s994 + $0x30] sm:$0xff]
    %v1002 = vld [vmem:[%s994 + $0x38] sm:$0xff]
    %v1003 = vld [vmem:[%s994 + $0x40] sm:$0xff]
    %v1004 = vld [vmem:[%s994 + $0x48] sm:$0xff]
    %v1005 = vld [vmem:[%s994 + $0x50] sm:$0xff]
    %v1006 = vld [vmem:[%s994 + $0x58] sm:$0xff]
    %v1007 = vld [vmem:[%s994 + $0x60] sm:$0xff]
    %v1008 = vld [vmem:[%s994 + $0x68] sm:$0xff]
    %v1009 = vld [vmem:[%s994 + $0x70] sm:$0xff]
    %v1010 = vld [vmem:[%s994 + $0x78] sm:$0xff]
    %v1011 = vld [vmem:[%s994 + $0x80] sm:$0xff]
    %v1012 = vld [vmem:[%s994 + $0x88] sm:$0xff]
    %v1013 = vld [vmem:[%s994 + $0x90] sm:$0xff]
    %v1014 = vld [vmem:[%s994 + $0x98] sm:$0xff]
    %v1015 = vld [vmem:[%s994 + $0xa0] sm:$0xff]
    %v1016 = vld [vmem:[%s994 + $0xa8] sm:$0xff]
    %v1017 = vld [vmem:[%s994 + $0xb0] sm:$0xff]
    %v1018 = vld [vmem:[%s994 + $0xb8] sm:$0xff]
    %v1019 = vld [vmem:[%s994 + $0xc0] sm:$0xff]
    %v1020 = vld [vmem:[%s994 + $0xc8] sm:$0xff]
    %v1021 = vld [vmem:[%s994 + $0xd0] sm:$0xff]
    %v1022 = vld [vmem:[%s994 + $0xd8] sm:$0xff]
    %v1023 = vld [vmem:[%s994 + $0xe0] sm:$0xff]
    %v1024 = vld [vmem:[%s994 + $0xe8] sm:$0xff]
    %v1025 = vld [vmem:[%s994 + $0xf0] sm:$0xff]
    %v1026 = vld [vmem:[%s994 + $0xf8] sm:$0xff]
    %v1027 = vld [vmem:[%s994 + $0x100] sm:$0xff]
    %v1028 = vld [vmem:[%s994 + $0x108] sm:$0xff]
    %v1029 = vld [vmem:[%s994 + $0x110] sm:$0xff]
    %v1030 = vld [vmem:[%s994 + $0x118] sm:$0xff]
    %v1031 = vld [vmem:[%s994 + $0x120] sm:$0xff]
    %v1032 = vld [vmem:[%s994 + $0x128] sm:$0xff]
    %v1033 = vld [vmem:[%s994 + $0x130] sm:$0xff]
    %v1034 = vld [vmem:[%s994 + $0x138] sm:$0xff]
    %v1035 = vld [vmem:[%s994 + $0x140] sm:$0xff]
    %v1036 = vld [vmem:[%s994 + $0x148] sm:$0xff]
    %v1037 = vld [vmem:[%s994 + $0x150] sm:$0xff]
    %v1038 = vld [vmem:[%s994 + $0x158] sm:$0xff]
    %v1039 = vld [vmem:[%s994 + $0x160] sm:$0xff]
    %v1040 = vld [vmem:[%s994 + $0x168] sm:$0xff]
    %v1041 = vld [vmem:[%s994 + $0x170] sm:$0xff]
    %v1042 = vld [vmem:[%s994 + $0x178] sm:$0xff]
    %v1043 = vld [vmem:[%s994 + $0x180] sm:$0xff]
    %v1044 = vld [vmem:[%s994 + $0x188] sm:$0xff]
    %v1045 = vld [vmem:[%s994 + $0x190] sm:$0xff]
    %v1046 = vld [vmem:[%s994 + $0x198] sm:$0xff]
    %v1047 = vld [vmem:[%s994 + $0x1a0] sm:$0xff]
    %v1048 = vld [vmem:[%s994 + $0x1a8] sm:$0xff]
    %v1049 = vld [vmem:[%s994 + $0x1b0] sm:$0xff]
    %v1050 = vld [vmem:[%s994 + $0x1b8] sm:$0xff]
    %v1051 = vld [vmem:[%s994 + $0x1c0] sm:$0xff]
    %v1052 = vld [vmem:[%s994 + $0x1c8] sm:$0xff]
    %v1053 = vld [vmem:[%s994 + $0x1d0] sm:$0xff]
    %v1054 = vld [vmem:[%s994 + $0x1d8] sm:$0xff]
    %v1055 = vld [vmem:[%s994 + $0x1e0] sm:$0xff]
    %v1056 = vld [vmem:[%s994 + $0x1e8] sm:$0xff]
    %v1057 = vld [vmem:[%s994 + $0x1f0] sm:$0xff]
    %v1058 = vld [vmem:[%s994 + $0x1f8] sm:$0xff]
    %v1059 = vld [vmem:[%s994 + $0x200] sm:$0xff]
    %v1060 = vld [vmem:[%s994 + $0x208] sm:$0xff]
    %v1061 = vld [vmem:[%s994 + $0x210] sm:$0xff]
    %v1062 = vld [vmem:[%s994 + $0x218] sm:$0xff]
    %v1063 = vld [vmem:[%s994 + $0x220] sm:$0xff]
    %v1064 = vld [vmem:[%s994 + $0x228] sm:$0xff]
    %v1065 = vld [vmem:[%s994 + $0x230] sm:$0xff]
    %v1066 = vld [vmem:[%s994 + $0x238] sm:$0xff]
    %v1067 = vld [vmem:[%s994 + $0x240] sm:$0xff]
    %v1068 = vld [vmem:[%s994 + $0x248] sm:$0xff]
    %v1069 = vld [vmem:[%s994 + $0x250] sm:$0xff]
    %v1070 = vld [vmem:[%s994 + $0x258] sm:$0xff]
    %v1071 = vld [vmem:[%s994 + $0x260] sm:$0xff]
    %v1072 = vld [vmem:[%s994 + $0x268] sm:$0xff]
    %v1073 = vld [vmem:[%s994 + $0x270] sm:$0xff]
    %v1074 = vld [vmem:[%s994 + $0x278] sm:$0xff]
    %v1075 = vld [vmem:[%s994 + $0x280] sm:$0xff]
    %v1076 = vld [vmem:[%s994 + $0x288] sm:$0xff]
    %v1077 = vld [vmem:[%s994 + $0x290] sm:$0xff]
    %v1078 = vld [vmem:[%s994 + $0x298] sm:$0xff]
    %v1079 = vld [vmem:[%s994 + $0x2a0] sm:$0xff]
    %v1080 = vld [vmem:[%s994 + $0x2a8] sm:$0xff]
    %v1081 = vld [vmem:[%s994 + $0x2b0] sm:$0xff]
    %v1082 = vld [vmem:[%s994 + $0x2b8] sm:$0xff]
    %v1083 = vld [vmem:[%s994 + $0x2c0] sm:$0xff]
    %v1084 = vld [vmem:[%s994 + $0x2c8] sm:$0xff]
    %v1085 = vld [vmem:[%s994 + $0x2d0] sm:$0xff]
    %v1086 = vld [vmem:[%s994 + $0x2d8] sm:$0xff]
    %v1087 = vld [vmem:[%s994 + $0x2e0] sm:$0xff]
    %v1088 = vld [vmem:[%s994 + $0x2e8] sm:$0xff]
    %v1089 = vld [vmem:[%s994 + $0x2f0] sm:$0xff]
    %v1090 = vld [vmem:[%s994 + $0x2f8] sm:$0xff]
    %v1091 = vld [vmem:[%s994 + $0x300] sm:$0xff]
    %v1092 = vld [vmem:[%s994 + $0x308] sm:$0xff]
    %v1093 = vld [vmem:[%s994 + $0x310] sm:$0xff]
    %v1094 = vld [vmem:[%s994 + $0x318] sm:$0xff]
    %v1095 = vld [vmem:[%s994 + $0x320] sm:$0xff]
    %v1096 = vld [vmem:[%s994 + $0x328] sm:$0xff]
    %v1097 = vld [vmem:[%s994 + $0x330] sm:$0xff]
    %v1098 = vld [vmem:[%s994 + $0x338] sm:$0xff]
    %v1099 = vld [vmem:[%s994 + $0x340] sm:$0xff]
    %v1100 = vld [vmem:[%s994 + $0x348] sm:$0xff]
    %v1101 = vld [vmem:[%s994 + $0x350] sm:$0xff]
    %v1102 = vld [vmem:[%s994 + $0x358] sm:$0xff]
    %v1103 = vld [vmem:[%s994 + $0x360] sm:$0xff]
    %v1104 = vld [vmem:[%s994 + $0x368] sm:$0xff]
    %v1105 = vld [vmem:[%s994 + $0x370] sm:$0xff]
    %v1106 = vld [vmem:[%s994 + $0x378] sm:$0xff]
    %v1107 = vld [vmem:[%s994 + $0x380] sm:$0xff]
    %v1108 = vld [vmem:[%s994 + $0x388] sm:$0xff]
    %v1109 = vld [vmem:[%s994 + $0x390] sm:$0xff]
    %v1110 = vld [vmem:[%s994 + $0x398] sm:$0xff]
    %v1111 = vld [vmem:[%s994 + $0x3a0] sm:$0xff]
    %v1112 = vld [vmem:[%s994 + $0x3a8] sm:$0xff]
    %v1113 = vld [vmem:[%s994 + $0x3b0] sm:$0xff]
    %v1114 = vld [vmem:[%s994 + $0x3b8] sm:$0xff]
    %v1115 = vld [vmem:[%s994 + $0x3c0] sm:$0xff]
    %v1116 = vld [vmem:[%s994 + $0x3c8] sm:$0xff]
    %v1117 = vld [vmem:[%s994 + $0x3d0] sm:$0xff]
    %v1118 = vld [vmem:[%s994 + $0x3d8] sm:$0xff]
    %v1119 = vld [vmem:[%s994 + $0x3e0] sm:$0xff]
    %v1120 = vld [vmem:[%s994 + $0x3e8] sm:$0xff]
    %v1121 = vld [vmem:[%s994 + $0x3f0] sm:$0xff]
    %v1122 = vld [vmem:[%s994 + $0x3f8] sm:$0xff]
    %1123 = vmatprep.subr.mxu0 0.0
    %1124 = vmatpush1.msra.mxu0 %v995
    %1125 = vmatprep.subr.mxu0 0.0
    %1126 = vmatpush1.msra.mxu0 %v996
    %1127 = vmatprep.subr.mxu0 0.0
    %1128 = vmatpush1.msra.mxu0 %v997
    %1129 = vmatprep.subr.mxu0 0.0
    %1130 = vmatpush1.msra.mxu0 %v998
    %1131 = vmatprep.subr.mxu0 0.0
    %1132 = vmatpush1.msra.mxu0 %v999
    %1133 = vmatprep.subr.mxu0 0.0
    %1134 = vmatpush1.msra.mxu0 %v1000
    %1135 = vmatprep.subr.mxu0 0.0
    %1136 = vmatpush1.msra.mxu0 %v1001
    %1137 = vmatprep.subr.mxu0 0.0
    %1138 = vmatpush1.msra.mxu0 %v1002
    %1139 = vmatprep.subr.mxu0 0.0
    %1140 = vmatpush1.msra.mxu0 %v1003
    %1141 = vmatprep.subr.mxu0 0.0
    %1142 = vmatpush1.msra.mxu0 %v1004
    %1143 = vmatprep.subr.mxu0 0.0
    %1144 = vmatpush1.msra.mxu0 %v1005
    %1145 = vmatprep.subr.mxu0 0.0
    %1146 = vmatpush1.msra.mxu0 %v1006
    %1147 = vmatprep.subr.mxu0 0.0
    %1148 = vmatpush1.msra.mxu0 %v1007
    %1149 = vmatprep.subr.mxu0 0.0
    %1150 = vmatpush1.msra.mxu0 %v1008
    %1151 = vmatprep.subr.mxu0 0.0
    %1152 = vmatpush1.msra.mxu0 %v1009
    %1153 = vmatprep.subr.mxu0 0.0
    %1154 = vmatpush1.msra.mxu0 %v1010
    %1155 = vmatprep.subr.mxu0 0.0
    %1156 = vmatpush1.msra.mxu0 %v1011
    %1157 = vmatprep.subr.mxu0 0.0
    %1158 = vmatpush1.msra.mxu0 %v1012
    %1159 = vmatprep.subr.mxu0 0.0
    %1160 = vmatpush1.msra.mxu0 %v1013
    %1161 = vmatprep.subr.mxu0 0.0
    %1162 = vmatpush1.msra.mxu0 %v1014
    %1163 = vmatprep.subr.mxu0 0.0
    %1164 = vmatpush1.msra.mxu0 %v1015
    %1165 = vmatprep.subr.mxu0 0.0
    %1166 = vmatpush1.msra.mxu0 %v1016
    %1167 = vmatprep.subr.mxu0 0.0
    %1168 = vmatpush1.msra.mxu0 %v1017
    %1169 = vmatprep.subr.mxu0 0.0
    %1170 = vmatpush1.msra.mxu0 %v1018
    %1171 = vmatprep.subr.mxu0 0.0
    %1172 = vmatpush1.msra.mxu0 %v1019
    %1173 = vmatprep.subr.mxu0 0.0
    %1174 = vmatpush1.msra.mxu0 %v1020
    %1175 = vmatprep.subr.mxu0 0.0
    %1176 = vmatpush1.msra.mxu0 %v1021
    %1177 = vmatprep.subr.mxu0 0.0
    %1178 = vmatpush1.msra.mxu0 %v1022
    %1179 = vmatprep.subr.mxu0 0.0
    %1180 = vmatpush1.msra.mxu0 %v1023
    %1181 = vmatprep.subr.mxu0 0.0
    %1182 = vmatpush1.msra.mxu0 %v1024
    %1183 = vmatprep.subr.mxu0 0.0
    %1184 = vmatpush1.msra.mxu0 %v1025
    %1185 = vmatprep.subr.mxu0 0.0
    %1186 = vmatpush1.msra.mxu0 %v1026
    %1187 = vmatprep.mubr.f32.mxu0 %v159
    %1188 = vmatmul.mubr.f32.gmra.mrb[0].mxu0 %v158
    %v1189 = vpop.f32.mrb[0].mxu0
    %v1190 = vadd.f32 0.0, %v1189
    %v1191 = vpop.f32.mrb[0].mxu0
    %1192 = vmatprep.mubr.f32.mxu0 %v167
    %1193 = vmatmul.mubr.f32.gmra.mrb[0].mxu0 %v166
    %v1194 = vpop.f32.mrb[0].mxu0
    %v1195 = vadd.f32 0.0, %v1194
    %v1196 = vpop.f32.mrb[0].mxu0
    %1197 = vmatprep.mubr.f32.mxu0 %v175
    %1198 = vmatmul.mubr.f32.gmra.mrb[0].mxu0 %v174
    %v1199 = vpop.f32.mrb[0].mxu0
    %v1200 = vadd.f32 0.0, %v1199
    %v1201 = vpop.f32.mrb[0].mxu0
    %1202 = vmatprep.mubr.f32.mxu0 %v183
    %1203 = vmatmul.mubr.f32.gmra.mrb[0].mxu0 %v182
    %v1204 = vpop.f32.mrb[0].mxu0
    %v1205 = vadd.f32 0.0, %v1204
    %v1206 = vpop.f32.mrb[0].mxu0
    %1207 = vmatprep.mubr.f32.mxu0 %v191
    %1208 = vmatmul.mubr.f32.gmra.mrb[0].mxu0 %v190
    %v1209 = vpop.f32.mrb[0].mxu0
    %v1210 = vadd.f32 0.0, %v1209
    %v1211 = vpop.f32.mrb[0].mxu0
    %1212 = vmatprep.mubr.f32.mxu0 %v199
    %1213 = vmatmul.mubr.f32.gmra.mrb[0].mxu0 %v198
    %v1214 = vpop.f32.mrb[0].mxu0
    %v1215 = vadd.f32 0.0, %v1214
    %v1216 = vpop.f32.mrb[0].mxu0
    %1217 = vmatprep.mubr.f32.mxu0 %v207
    %1218 = vmatmul.mubr.f32.gmra.mrb[0].mxu0 %v206
    %v1219 = vpop.f32.mrb[0].mxu0
    %v1220 = vadd.f32 0.0, %v1219
    %v1221 = vpop.f32.mrb[0].mxu0
    %1222 = vmatprep.mubr.f32.mxu0 %v215
    %1223 = vmatmul.mubr.f32.gmra.mrb[0].mxu0 %v214
    %v1224 = vpop.f32.mrb[0].mxu0
    %v1225 = vadd.f32 0.0, %v1224
    %v1226 = vpop.f32.mrb[0].mxu0
    %1227 = vmatprep.mubr.f32.mxu0 %v223
    %1228 = vmatmul.mubr.f32.gmra.mrb[0].mxu0 %v222
    %v1229 = vpop.f32.mrb[0].mxu0
    %v1230 = vadd.f32 0.0, %v1229
    %v1231 = vpop.f32.mrb[0].mxu0
    %1232 = vmatprep.mubr.f32.mxu0 %v231
    %1233 = vmatmul.mubr.f32.gmra.mrb[0].mxu0 %v230
    %v1234 = vpop.f32.mrb[0].mxu0
    %v1235 = vadd.f32 0.0, %v1234
    %v1236 = vpop.f32.mrb[0].mxu0
    %1237 = vmatprep.mubr.f32.mxu0 %v239
    %1238 = vmatmul.mubr.f32.gmra.mrb[0].mxu0 %v238
    %v1239 = vpop.f32.mrb[0].mxu0
    %v1240 = vadd.f32 0.0, %v1239
    %v1241 = vpop.f32.mrb[0].mxu0
    %1242 = vmatprep.mubr.f32.mxu0 %v247
    %1243 = vmatmul.mubr.f32.gmra.mrb[0].mxu0 %v246
    %v1244 = vpop.f32.mrb[0].mxu0
    %v1245 = vadd.f32 0.0, %v1244
    %v1246 = vpop.f32.mrb[0].mxu0
    %1247 = vmatprep.mubr.f32.mxu0 %v255
    %1248 = vmatmul.mubr.f32.gmra.mrb[0].mxu0 %v254
    %v1249 = vpop.f32.mrb[0].mxu0
    %v1250 = vadd.f32 0.0, %v1249
    %v1251 = vpop.f32.mrb[0].mxu0
    %1252 = vmatprep.mubr.f32.mxu0 %v263
    %1253 = vmatmul.mubr.f32.gmra.mrb[0].mxu0 %v262
    %v1254 = vpop.f32.mrb[0].mxu0
    %v1255 = vadd.f32 0.0, %v1254
    %v1256 = vpop.f32.mrb[0].mxu0
    %1257 = vmatprep.mubr.f32.mxu0 %v271
    %1258 = vmatmul.mubr.f32.gmra.mrb[0].mxu0 %v270
    %v1259 = vpop.f32.mrb[0].mxu0
    %v1260 = vadd.f32 0.0, %v1259
    %v1261 = vpop.f32.mrb[0].mxu0
    %1262 = vmatprep.mubr.f32.mxu0 %v279
    %1263 = vmatmul.mubr.f32.gmra.mrb[0].mxu0 %v278
    %v1264 = vpop.f32.mrb[0].mxu0
    %v1265 = vadd.f32 0.0, %v1264
    %v1266 = vpop.f32.mrb[0].mxu0
    %1267 = vdwg.mxu0
    %1268 = vmatprep.subr.mxu0 0.0
    %1269 = vmatpush1.msra.mxu0 %v1027
    %1270 = vmatprep.subr.mxu0 0.0
    %1271 = vmatpush1.msra.mxu0 %v1028
    %1272 = vmatprep.subr.mxu0 0.0
    %1273 = vmatpush1.msra.mxu0 %v1029
    %1274 = vmatprep.subr.mxu0 0.0
    %1275 = vmatpush1.msra.mxu0 %v1030
    %1276 = vmatprep.subr.mxu0 0.0
    %1277 = vmatpush1.msra.mxu0 %v1031
    %1278 = vmatprep.subr.mxu0 0.0
    %1279 = vmatpush1.msra.mxu0 %v1032
    %1280 = vmatprep.subr.mxu0 0.0
    %1281 = vmatpush1.msra.mxu0 %v1033
    %1282 = vmatprep.subr.mxu0 0.0
    %1283 = vmatpush1.msra.mxu0 %v1034
    %1284 = vmatprep.subr.mxu0 0.0
    %1285 = vmatpush1.msra.mxu0 %v1035
    %1286 = vmatprep.subr.mxu0 0.0
    %1287 = vmatpush1.msra.mxu0 %v1036
    %1288 = vmatprep.subr.mxu0 0.0
    %1289 = vmatpush1.msra.mxu0 %v1037
    %1290 = vmatprep.subr.mxu0 0.0
    %1291 = vmatpush1.msra.mxu0 %v1038
    %1292 = vmatprep.subr.mxu0 0.0
    %1293 = vmatpush1.msra.mxu0 %v1039
    %1294 = vmatprep.subr.mxu0 0.0
    %1295 = vmatpush1.msra.mxu0 %v1040
    %1296 = vmatprep.subr.mxu0 0.0
    %1297 = vmatpush1.msra.mxu0 %v1041
    %1298 = vmatprep.subr.mxu0 0.0
    %1299 = vmatpush1.msra.mxu0 %v1042
    %1300 = vmatprep.subr.mxu0 0.0
    %1301 = vmatpush1.msra.mxu0 %v1043
    %1302 = vmatprep.subr.mxu0 0.0
    %1303 = vmatpush1.msra.mxu0 %v1044
    %1304 = vmatprep.subr.mxu0 0.0
    %1305 = vmatpush1.msra.mxu0 %v1045
    %1306 = vmatprep.subr.mxu0 0.0
    %1307 = vmatpush1.msra.mxu0 %v1046
    %1308 = vmatprep.subr.mxu0 0.0
    %1309 = vmatpush1.msra.mxu0 %v1047
    %1310 = vmatprep.subr.mxu0 0.0
    %1311 = vmatpush1.msra.mxu0 %v1048
    %1312 = vmatprep.subr.mxu0 0.0
    %1313 = vmatpush1.msra.mxu0 %v1049
    %1314 = vmatprep.subr.mxu0 0.0
    %1315 = vmatpush1.msra.mxu0 %v1050
    %1316 = vmatprep.subr.mxu0 0.0
    %1317 = vmatpush1.msra.mxu0 %v1051
    %1318 = vmatprep.subr.mxu0 0.0
    %1319 = vmatpush1.msra.mxu0 %v1052
    %1320 = vmatprep.subr.mxu0 0.0
    %1321 = vmatpush1.msra.mxu0 %v1053
    %1322 = vmatprep.subr.mxu0 0.0
    %1323 = vmatpush1.msra.mxu0 %v1054
    %1324 = vmatprep.subr.mxu0 0.0
    %1325 = vmatpush1.msra.mxu0 %v1055
    %1326 = vmatprep.subr.mxu0 0.0
    %1327 = vmatpush1.msra.mxu0 %v1056
    %1328 = vmatprep.subr.mxu0 0.0
    %1329 = vmatpush1.msra.mxu0 %v1057
    %1330 = vmatprep.subr.mxu0 0.0
    %1331 = vmatpush1.msra.mxu0 %v1058
    %1332 = vmatprep.mubr.f32.mxu0 %v161
    %1333 = vmatmul.mubr.f32.gmra.mrb[0].mxu0 %v160
    %v1334 = vpop.f32.mrb[0].mxu0
    %v1335 = vadd.f32 %v1190, %v1334
    %v1336 = vpop.f32.mrb[0].mxu0
    %1337 = vmatprep.mubr.f32.mxu0 %v169
    %1338 = vmatmul.mubr.f32.gmra.mrb[0].mxu0 %v168
    %v1339 = vpop.f32.mrb[0].mxu0
    %v1340 = vadd.f32 %v1195, %v1339
    %v1341 = vpop.f32.mrb[0].mxu0
    %1342 = vmatprep.mubr.f32.mxu0 %v177
    %1343 = vmatmul.mubr.f32.gmra.mrb[0].mxu0 %v176
    %v1344 = vpop.f32.mrb[0].mxu0
    %v1345 = vadd.f32 %v1200, %v1344
    %v1346 = vpop.f32.mrb[0].mxu0
    %1347 = vmatprep.mubr.f32.mxu0 %v185
    %1348 = vmatmul.mubr.f32.gmra.mrb[0].mxu0 %v184
    %v1349 = vpop.f32.mrb[0].mxu0
    %v1350 = vadd.f32 %v1205, %v1349
    %v1351 = vpop.f32.mrb[0].mxu0
    %1352 = vmatprep.mubr.f32.mxu0 %v193
    %1353 = vmatmul.mubr.f32.gmra.mrb[0].mxu0 %v192
    %v1354 = vpop.f32.mrb[0].mxu0
    %v1355 = vadd.f32 %v1210, %v1354
    %v1356 = vpop.f32.mrb[0].mxu0
    %1357 = vmatprep.mubr.f32.mxu0 %v201
    %1358 = vmatmul.mubr.f32.gmra.mrb[0].mxu0 %v200
    %v1359 = vpop.f32.mrb[0].mxu0
    %v1360 = vadd.f32 %v1215, %v1359
    %v1361 = vpop.f32.mrb[0].mxu0
    %1362 = vmatprep.mubr.f32.mxu0 %v209
    %1363 = vmatmul.mubr.f32.gmra.mrb[0].mxu0 %v208
    %v1364 = vpop.f32.mrb[0].mxu0
    %v1365 = vadd.f32 %v1220, %v1364
    %v1366 = vpop.f32.mrb[0].mxu0
    %1367 = vmatprep.mubr.f32.mxu0 %v217
    %1368 = vmatmul.mubr.f32.gmra.mrb[0].mxu0 %v216
    %v1369 = vpop.f32.mrb[0].mxu0
    %v1370 = vadd.f32 %v1225, %v1369
    %v1371 = vpop.f32.mrb[0].mxu0
    %1372 = vmatprep.mubr.f32.mxu0 %v225
    %1373 = vmatmul.mubr.f32.gmra.mrb[0].mxu0 %v224
    %v1374 = vpop.f32.mrb[0].mxu0
    %v1375 = vadd.f32 %v1230, %v1374
    %v1376 = vpop.f32.mrb[0].mxu0
    %1377 = vmatprep.mubr.f32.mxu0 %v233
    %1378 = vmatmul.mubr.f32.gmra.mrb[0].mxu0 %v232
    %v1379 = vpop.f32.mrb[0].mxu0
    %v1380 = vadd.f32 %v1235, %v1379
    %v1381 = vpop.f32.mrb[0].mxu0
    %1382 = vmatprep.mubr.f32.mxu0 %v241
    %1383 = vmatmul.mubr.f32.gmra.mrb[0].mxu0 %v240
    %v1384 = vpop.f32.mrb[0].mxu0
    %v1385 = vadd.f32 %v1240, %v1384
    %v1386 = vpop.f32.mrb[0].mxu0
    %1387 = vmatprep.mubr.f32.mxu0 %v249
    %1388 = vmatmul.mubr.f32.gmra.mrb[0].mxu0 %v248
    %v1389 = vpop.f32.mrb[0].mxu0
    %v1390 = vadd.f32 %v1245, %v1389
    %v1391 = vpop.f32.mrb[0].mxu0
    %1392 = vmatprep.mubr.f32.mxu0 %v257
    %1393 = vmatmul.mubr.f32.gmra.mrb[0].mxu0 %v256
    %v1394 = vpop.f32.mrb[0].mxu0
    %v1395 = vadd.f32 %v1250, %v1394
    %v1396 = vpop.f32.mrb[0].mxu0
    %1397 = vmatprep.mubr.f32.mxu0 %v265
    %1398 = vmatmul.mubr.f32.gmra.mrb[0].mxu0 %v264
    %v1399 = vpop.f32.mrb[0].mxu0
    %v1400 = vadd.f32 %v1255, %v1399
    %v1401 = vpop.f32.mrb[0].mxu0
    %1402 = vmatprep.mubr.f32.mxu0 %v273
    %1403 = vmatmul.mubr.f32.gmra.mrb[0].mxu0 %v272
    %v1404 = vpop.f32.mrb[0].mxu0
    %v1405 = vadd.f32 %v1260, %v1404
    %v1406 = vpop.f32.mrb[0].mxu0
    %1407 = vmatprep.mubr.f32.mxu0 %v281
    %1408 = vmatmul.mubr.f32.gmra.mrb[0].mxu0 %v280
    %v1409 = vpop.f32.mrb[0].mxu0
    %v1410 = vadd.f32 %v1265, %v1409
    %v1411 = vpop.f32.mrb[0].mxu0
    %1412 = vdwg.mxu0
    %1413 = vmatprep.subr.mxu0 0.0
    %1414 = vmatpush1.msra.mxu0 %v1059
    %1415 = vmatprep.subr.mxu0 0.0
    %1416 = vmatpush1.msra.mxu0 %v1060
    %1417 = vmatprep.subr.mxu0 0.0
    %1418 = vmatpush1.msra.mxu0 %v1061
    %1419 = vmatprep.subr.mxu0 0.0
    %1420 = vmatpush1.msra.mxu0 %v1062
    %1421 = vmatprep.subr.mxu0 0.0
    %1422 = vmatpush1.msra.mxu0 %v1063
    %1423 = vmatprep.subr.mxu0 0.0
    %1424 = vmatpush1.msra.mxu0 %v1064
    %1425 = vmatprep.subr.mxu0 0.0
    %1426 = vmatpush1.msra.mxu0 %v1065
    %1427 = vmatprep.subr.mxu0 0.0
    %1428 = vmatpush1.msra.mxu0 %v1066
    %1429 = vmatprep.subr.mxu0 0.0
    %1430 = vmatpush1.msra.mxu0 %v1067
    %1431 = vmatprep.subr.mxu0 0.0
    %1432 = vmatpush1.msra.mxu0 %v1068
    %1433 = vmatprep.subr.mxu0 0.0
    %1434 = vmatpush1.msra.mxu0 %v1069
    %1435 = vmatprep.subr.mxu0 0.0
    %1436 = vmatpush1.msra.mxu0 %v1070
    %1437 = vmatprep.subr.mxu0 0.0
    %1438 = vmatpush1.msra.mxu0 %v1071
    %1439 = vmatprep.subr.mxu0 0.0
    %1440 = vmatpush1.msra.mxu0 %v1072
    %1441 = vmatprep.subr.mxu0 0.0
    %1442 = vmatpush1.msra.mxu0 %v1073
    %1443 = vmatprep.subr.mxu0 0.0
    %1444 = vmatpush1.msra.mxu0 %v1074
    %1445 = vmatprep.subr.mxu0 0.0
    %1446 = vmatpush1.msra.mxu0 %v1075
    %1447 = vmatprep.subr.mxu0 0.0
    %1448 = vmatpush1.msra.mxu0 %v1076
    %1449 = vmatprep.subr.mxu0 0.0
    %1450 = vmatpush1.msra.mxu0 %v1077
    %1451 = vmatprep.subr.mxu0 0.0
    %1452 = vmatpush1.msra.mxu0 %v1078
    %1453 = vmatprep.subr.mxu0 0.0
    %1454 = vmatpush1.msra.mxu0 %v1079
    %1455 = vmatprep.subr.mxu0 0.0
    %1456 = vmatpush1.msra.mxu0 %v1080
    %1457 = vmatprep.subr.mxu0 0.0
    %1458 = vmatpush1.msra.mxu0 %v1081
    %1459 = vmatprep.subr.mxu0 0.0
    %1460 = vmatpush1.msra.mxu0 %v1082
    %1461 = vmatprep.subr.mxu0 0.0
    %1462 = vmatpush1.msra.mxu0 %v1083
    %1463 = vmatprep.subr.mxu0 0.0
    %1464 = vmatpush1.msra.mxu0 %v1084
    %1465 = vmatprep.subr.mxu0 0.0
    %1466 = vmatpush1.msra.mxu0 %v1085
    %1467 = vmatprep.subr.mxu0 0.0
    %1468 = vmatpush1.msra.mxu0 %v1086
    %1469 = vmatprep.subr.mxu0 0.0
    %1470 = vmatpush1.msra.mxu0 %v1087
    %1471 = vmatprep.subr.mxu0 0.0
    %1472 = vmatpush1.msra.mxu0 %v1088
    %1473 = vmatprep.subr.mxu0 0.0
    %1474 = vmatpush1.msra.mxu0 %v1089
    %1475 = vmatprep.subr.mxu0 0.0
    %1476 = vmatpush1.msra.mxu0 %v1090
    %1477 = vmatprep.mubr.f32.mxu0 %v163
    %1478 = vmatmul.mubr.f32.gmra.mrb[0].mxu0 %v162
    %v1479 = vpop.f32.mrb[0].mxu0
    %v1480 = vadd.f32 %v1335, %v1479
    %v1481 = vpop.f32.mrb[0].mxu0
    %1482 = vmatprep.mubr.f32.mxu0 %v171
    %1483 = vmatmul.mubr.f32.gmra.mrb[0].mxu0 %v170
    %v1484 = vpop.f32.mrb[0].mxu0
    %v1485 = vadd.f32 %v1340, %v1484
    %v1486 = vpop.f32.mrb[0].mxu0
    %1487 = vmatprep.mubr.f32.mxu0 %v179
    %1488 = vmatmul.mubr.f32.gmra.mrb[0].mxu0 %v178
    %v1489 = vpop.f32.mrb[0].mxu0
    %v1490 = vadd.f32 %v1345, %v1489
    %v1491 = vpop.f32.mrb[0].mxu0
    %1492 = vmatprep.mubr.f32.mxu0 %v187
    %1493 = vmatmul.mubr.f32.gmra.mrb[0].mxu0 %v186
    %v1494 = vpop.f32.mrb[0].mxu0
    %v1495 = vadd.f32 %v1350, %v1494
    %v1496 = vpop.f32.mrb[0].mxu0
    %1497 = vmatprep.mubr.f32.mxu0 %v195
    %1498 = vmatmul.mubr.f32.gmra.mrb[0].mxu0 %v194
    %v1499 = vpop.f32.mrb[0].mxu0
    %v1500 = vadd.f32 %v1355, %v1499
    %v1501 = vpop.f32.mrb[0].mxu0
    %1502 = vmatprep.mubr.f32.mxu0 %v203
    %1503 = vmatmul.mubr.f32.gmra.mrb[0].mxu0 %v202
    %v1504 = vpop.f32.mrb[0].mxu0
    %v1505 = vadd.f32 %v1360, %v1504
    %v1506 = vpop.f32.mrb[0].mxu0
    %1507 = vmatprep.mubr.f32.mxu0 %v211
    %1508 = vmatmul.mubr.f32.gmra.mrb[0].mxu0 %v210
    %v1509 = vpop.f32.mrb[0].mxu0
    %v1510 = vadd.f32 %v1365, %v1509
    %v1511 = vpop.f32.mrb[0].mxu0
    %1512 = vmatprep.mubr.f32.mxu0 %v219
    %1513 = vmatmul.mubr.f32.gmra.mrb[0].mxu0 %v218
    %v1514 = vpop.f32.mrb[0].mxu0
    %v1515 = vadd.f32 %v1370, %v1514
    %v1516 = vpop.f32.mrb[0].mxu0
    %1517 = vmatprep.mubr.f32.mxu0 %v227
    %1518 = vmatmul.mubr.f32.gmra.mrb[0].mxu0 %v226
    %v1519 = vpop.f32.mrb[0].mxu0
    %v1520 = vadd.f32 %v1375, %v1519
    %v1521 = vpop.f32.mrb[0].mxu0
    %1522 = vmatprep.mubr.f32.mxu0 %v235
    %1523 = vmatmul.mubr.f32.gmra.mrb[0].mxu0 %v234
    %v1524 = vpop.f32.mrb[0].mxu0
    %v1525 = vadd.f32 %v1380, %v1524
    %v1526 = vpop.f32.mrb[0].mxu0
    %1527 = vmatprep.mubr.f32.mxu0 %v243
    %1528 = vmatmul.mubr.f32.gmra.mrb[0].mxu0 %v242
    %v1529 = vpop.f32.mrb[0].mxu0
    %v1530 = vadd.f32 %v1385, %v1529
    %v1531 = vpop.f32.mrb[0].mxu0
    %1532 = vmatprep.mubr.f32.mxu0 %v251
    %1533 = vmatmul.mubr.f32.gmra.mrb[0].mxu0 %v250
    %v1534 = vpop.f32.mrb[0].mxu0
    %v1535 = vadd.f32 %v1390, %v1534
    %v1536 = vpop.f32.mrb[0].mxu0
    %1537 = vmatprep.mubr.f32.mxu0 %v259
    %1538 = vmatmul.mubr.f32.gmra.mrb[0].mxu0 %v258
    %v1539 = vpop.f32.mrb[0].mxu0
    %v1540 = vadd.f32 %v1395, %v1539
    %v1541 = vpop.f32.mrb[0].mxu0
    %1542 = vmatprep.mubr.f32.mxu0 %v267
    %1543 = vmatmul.mubr.f32.gmra.mrb[0].mxu0 %v266
    %v1544 = vpop.f32.mrb[0].mxu0
    %v1545 = vadd.f32 %v1400, %v1544
    %v1546 = vpop.f32.mrb[0].mxu0
    %1547 = vmatprep.mubr.f32.mxu0 %v275
    %1548 = vmatmul.mubr.f32.gmra.mrb[0].mxu0 %v274
    %v1549 = vpop.f32.mrb[0].mxu0
    %v1550 = vadd.f32 %v1405, %v1549
    %v1551 = vpop.f32.mrb[0].mxu0
    %1552 = vmatprep.mubr.f32.mxu0 %v283
    %1553 = vmatmul.mubr.f32.gmra.mrb[0].mxu0 %v282
    %v1554 = vpop.f32.mrb[0].mxu0
    %v1555 = vadd.f32 %v1410, %v1554
    %v1556 = vpop.f32.mrb[0].mxu0
    %1557 = vdwg.mxu0
    %1558 = vmatprep.subr.mxu0 0.0
    %1559 = vmatpush1.msra.mxu0 %v1091
    %1560 = vmatprep.subr.mxu0 0.0
    %1561 = vmatpush1.msra.mxu0 %v1092
    %1562 = vmatprep.subr.mxu0 0.0
    %1563 = vmatpush1.msra.mxu0 %v1093
    %1564 = vmatprep.subr.mxu0 0.0
    %1565 = vmatpush1.msra.mxu0 %v1094
    %1566 = vmatprep.subr.mxu0 0.0
    %1567 = vmatpush1.msra.mxu0 %v1095
    %1568 = vmatprep.subr.mxu0 0.0
    %1569 = vmatpush1.msra.mxu0 %v1096
    %1570 = vmatprep.subr.mxu0 0.0
    %1571 = vmatpush1.msra.mxu0 %v1097
    %1572 = vmatprep.subr.mxu0 0.0
    %1573 = vmatpush1.msra.mxu0 %v1098
    %1574 = vmatprep.subr.mxu0 0.0
    %1575 = vmatpush1.msra.mxu0 %v1099
    %1576 = vmatprep.subr.mxu0 0.0
    %1577 = vmatpush1.msra.mxu0 %v1100
    %1578 = vmatprep.subr.mxu0 0.0
    %1579 = vmatpush1.msra.mxu0 %v1101
    %1580 = vmatprep.subr.mxu0 0.0
    %1581 = vmatpush1.msra.mxu0 %v1102
    %1582 = vmatprep.subr.mxu0 0.0
    %1583 = vmatpush1.msra.mxu0 %v1103
    %1584 = vmatprep.subr.mxu0 0.0
    %1585 = vmatpush1.msra.mxu0 %v1104
    %1586 = vmatprep.subr.mxu0 0.0
    %1587 = vmatpush1.msra.mxu0 %v1105
    %1588 = vmatprep.subr.mxu0 0.0
    %1589 = vmatpush1.msra.mxu0 %v1106
    %1590 = vmatprep.subr.mxu0 0.0
    %1591 = vmatpush1.msra.mxu0 %v1107
    %1592 = vmatprep.subr.mxu0 0.0
    %1593 = vmatpush1.msra.mxu0 %v1108
    %1594 = vmatprep.subr.mxu0 0.0
    %1595 = vmatpush1.msra.mxu0 %v1109
    %1596 = vmatprep.subr.mxu0 0.0
    %1597 = vmatpush1.msra.mxu0 %v1110
    %1598 = vmatprep.subr.mxu0 0.0
    %1599 = vmatpush1.msra.mxu0 %v1111
    %1600 = vmatprep.subr.mxu0 0.0
    %1601 = vmatpush1.msra.mxu0 %v1112
    %1602 = vmatprep.subr.mxu0 0.0
    %1603 = vmatpush1.msra.mxu0 %v1113
    %1604 = vmatprep.subr.mxu0 0.0
    %1605 = vmatpush1.msra.mxu0 %v1114
    %1606 = vmatprep.subr.mxu0 0.0
    %1607 = vmatpush1.msra.mxu0 %v1115
    %1608 = vmatprep.subr.mxu0 0.0
    %1609 = vmatpush1.msra.mxu0 %v1116
    %1610 = vmatprep.subr.mxu0 0.0
    %1611 = vmatpush1.msra.mxu0 %v1117
    %1612 = vmatprep.subr.mxu0 0.0
    %1613 = vmatpush1.msra.mxu0 %v1118
    %1614 = vmatprep.subr.mxu0 0.0
    %1615 = vmatpush1.msra.mxu0 %v1119
    %1616 = vmatprep.subr.mxu0 0.0
    %1617 = vmatpush1.msra.mxu0 %v1120
    %1618 = vmatprep.subr.mxu0 0.0
    %1619 = vmatpush1.msra.mxu0 %v1121
    %1620 = vmatprep.subr.mxu0 0.0
    %1621 = vmatpush1.msra.mxu0 %v1122
    %1622 = vmatprep.mubr.f32.mxu0 %v165
    %1623 = vmatmul.mubr.f32.gmra.mrb[0].mxu0 %v164
    %v1624 = vpop.f32.mrb[0].mxu0
    %v1625 = vadd.f32 %v1480, %v1624
    %v1626 = vpop.f32.mrb[0].mxu0
    %1627 = vmatprep.mubr.f32.mxu0 %v173
    %1628 = vmatmul.mubr.f32.gmra.mrb[0].mxu0 %v172
    %v1629 = vpop.f32.mrb[0].mxu0
    %v1630 = vadd.f32 %v1485, %v1629
    %v1631 = vpop.f32.mrb[0].mxu0
    %1632 = vmatprep.mubr.f32.mxu0 %v181
    %1633 = vmatmul.mubr.f32.gmra.mrb[0].mxu0 %v180
    %v1634 = vpop.f32.mrb[0].mxu0
    %v1635 = vadd.f32 %v1490, %v1634
    %v1636 = vpop.f32.mrb[0].mxu0
    %1637 = vmatprep.mubr.f32.mxu0 %v189
    %1638 = vmatmul.mubr.f32.gmra.mrb[0].mxu0 %v188
    %v1639 = vpop.f32.mrb[0].mxu0
    %v1640 = vadd.f32 %v1495, %v1639
    %v1641 = vpop.f32.mrb[0].mxu0
    %1642 = vmatprep.mubr.f32.mxu0 %v197
    %1643 = vmatmul.mubr.f32.gmra.mrb[0].mxu0 %v196
    %v1644 = vpop.f32.mrb[0].mxu0
    %v1645 = vadd.f32 %v1500, %v1644
    %v1646 = vpop.f32.mrb[0].mxu0
    %1647 = vmatprep.mubr.f32.mxu0 %v205
    %1648 = vmatmul.mubr.f32.gmra.mrb[0].mxu0 %v204
    %v1649 = vpop.f32.mrb[0].mxu0
    %v1650 = vadd.f32 %v1505, %v1649
    %v1651 = vpop.f32.mrb[0].mxu0
    %1652 = vmatprep.mubr.f32.mxu0 %v213
    %1653 = vmatmul.mubr.f32.gmra.mrb[0].mxu0 %v212
    %v1654 = vpop.f32.mrb[0].mxu0
    %v1655 = vadd.f32 %v1510, %v1654
    %v1656 = vpop.f32.mrb[0].mxu0
    %1657 = vmatprep.mubr.f32.mxu0 %v221
    %1658 = vmatmul.mubr.f32.gmra.mrb[0].mxu0 %v220
    %v1659 = vpop.f32.mrb[0].mxu0
    %v1660 = vadd.f32 %v1515, %v1659
    %v1661 = vpop.f32.mrb[0].mxu0
    %1662 = vmatprep.mubr.f32.mxu0 %v229
    %1663 = vmatmul.mubr.f32.gmra.mrb[0].mxu0 %v228
    %v1664 = vpop.f32.mrb[0].mxu0
    %v1665 = vadd.f32 %v1520, %v1664
    %v1666 = vpop.f32.mrb[0].mxu0
    %1667 = vmatprep.mubr.f32.mxu0 %v237
    %1668 = vmatmul.mubr.f32.gmra.mrb[0].mxu0 %v236
    %v1669 = vpop.f32.mrb[0].mxu0
    %v1670 = vadd.f32 %v1525, %v1669
    %v1671 = vpop.f32.mrb[0].mxu0
    %1672 = vmatprep.mubr.f32.mxu0 %v245
    %1673 = vmatmul.mubr.f32.gmra.mrb[0].mxu0 %v244
    %v1674 = vpop.f32.mrb[0].mxu0
    %v1675 = vadd.f32 %v1530, %v1674
    %v1676 = vpop.f32.mrb[0].mxu0
    %1677 = vmatprep.mubr.f32.mxu0 %v253
    %1678 = vmatmul.mubr.f32.gmra.mrb[0].mxu0 %v252
    %v1679 = vpop.f32.mrb[0].mxu0
    %v1680 = vadd.f32 %v1535, %v1679
    %v1681 = vpop.f32.mrb[0].mxu0
    %1682 = vmatprep.mubr.f32.mxu0 %v261
    %1683 = vmatmul.mubr.f32.gmra.mrb[0].mxu0 %v260
    %v1684 = vpop.f32.mrb[0].mxu0
    %v1685 = vadd.f32 %v1540, %v1684
    %v1686 = vpop.f32.mrb[0].mxu0
    %1687 = vmatprep.mubr.f32.mxu0 %v269
    %1688 = vmatmul.mubr.f32.gmra.mrb[0].mxu0 %v268
    %v1689 = vpop.f32.mrb[0].mxu0
    %v1690 = vadd.f32 %v1545, %v1689
    %v1691 = vpop.f32.mrb[0].mxu0
    %1692 = vmatprep.mubr.f32.mxu0 %v277
    %1693 = vmatmul.mubr.f32.gmra.mrb[0].mxu0 %v276
    %v1694 = vpop.f32.mrb[0].mxu0
    %v1695 = vadd.f32 %v1550, %v1694
    %v1696 = vpop.f32.mrb[0].mxu0
    %1697 = vmatprep.mubr.f32.mxu0 %v285
    %1698 = vmatmul.mubr.f32.gmra.mrb[0].mxu0 %v284
    %v1699 = vpop.f32.mrb[0].mxu0
    %v1700 = vadd.f32 %v1555, %v1699
    %v1701 = vpop.f32.mrb[0].mxu0
    %1702 = vdwg.mxu0
    %s1703 = scalar_lea.vmem [#allocation3], 2048
    %v1704 = vld [vmem:[%s1703] sm:$0xff]
    %v1705 = vld [vmem:[%s1703 + $0x8] sm:$0xff]
    %v1706 = vld [vmem:[%s1703 + $0x10] sm:$0xff]
    %v1707 = vld [vmem:[%s1703 + $0x18] sm:$0xff]
    %v1708 = vld [vmem:[%s1703 + $0x20] sm:$0xff]
    %v1709 = vld [vmem:[%s1703 + $0x28] sm:$0xff]
    %v1710 = vld [vmem:[%s1703 + $0x30] sm:$0xff]
    %v1711 = vld [vmem:[%s1703 + $0x38] sm:$0xff]
    %v1712 = vld [vmem:[%s1703 + $0x40] sm:$0xff]
    %v1713 = vld [vmem:[%s1703 + $0x48] sm:$0xff]
    %v1714 = vld [vmem:[%s1703 + $0x50] sm:$0xff]
    %v1715 = vld [vmem:[%s1703 + $0x58] sm:$0xff]
    %v1716 = vld [vmem:[%s1703 + $0x60] sm:$0xff]
    %v1717 = vld [vmem:[%s1703 + $0x68] sm:$0xff]
    %v1718 = vld [vmem:[%s1703 + $0x70] sm:$0xff]
    %v1719 = vld [vmem:[%s1703 + $0x78] sm:$0xff]
    %v1720 = vld [vmem:[%s1703 + $0x80] sm:$0xff]
    %v1721 = vld [vmem:[%s1703 + $0x88] sm:$0xff]
    %v1722 = vld [vmem:[%s1703 + $0x90] sm:$0xff]
    %v1723 = vld [vmem:[%s1703 + $0x98] sm:$0xff]
    %v1724 = vld [vmem:[%s1703 + $0xa0] sm:$0xff]
    %v1725 = vld [vmem:[%s1703 + $0xa8] sm:$0xff]
    %v1726 = vld [vmem:[%s1703 + $0xb0] sm:$0xff]
    %v1727 = vld [vmem:[%s1703 + $0xb8] sm:$0xff]
    %v1728 = vld [vmem:[%s1703 + $0xc0] sm:$0xff]
    %v1729 = vld [vmem:[%s1703 + $0xc8] sm:$0xff]
    %v1730 = vld [vmem:[%s1703 + $0xd0] sm:$0xff]
    %v1731 = vld [vmem:[%s1703 + $0xd8] sm:$0xff]
    %v1732 = vld [vmem:[%s1703 + $0xe0] sm:$0xff]
    %v1733 = vld [vmem:[%s1703 + $0xe8] sm:$0xff]
    %v1734 = vld [vmem:[%s1703 + $0xf0] sm:$0xff]
    %v1735 = vld [vmem:[%s1703 + $0xf8] sm:$0xff]
    %v1736 = vld [vmem:[%s1703 + $0x100] sm:$0xff]
    %v1737 = vld [vmem:[%s1703 + $0x108] sm:$0xff]
    %v1738 = vld [vmem:[%s1703 + $0x110] sm:$0xff]
    %v1739 = vld [vmem:[%s1703 + $0x118] sm:$0xff]
    %v1740 = vld [vmem:[%s1703 + $0x120] sm:$0xff]
    %v1741 = vld [vmem:[%s1703 + $0x128] sm:$0xff]
    %v1742 = vld [vmem:[%s1703 + $0x130] sm:$0xff]
    %v1743 = vld [vmem:[%s1703 + $0x138] sm:$0xff]
    %v1744 = vld [vmem:[%s1703 + $0x140] sm:$0xff]
    %v1745 = vld [vmem:[%s1703 + $0x148] sm:$0xff]
    %v1746 = vld [vmem:[%s1703 + $0x150] sm:$0xff]
    %v1747 = vld [vmem:[%s1703 + $0x158] sm:$0xff]
    %v1748 = vld [vmem:[%s1703 + $0x160] sm:$0xff]
    %v1749 = vld [vmem:[%s1703 + $0x168] sm:$0xff]
    %v1750 = vld [vmem:[%s1703 + $0x170] sm:$0xff]
    %v1751 = vld [vmem:[%s1703 + $0x178] sm:$0xff]
    %v1752 = vld [vmem:[%s1703 + $0x180] sm:$0xff]
    %v1753 = vld [vmem:[%s1703 + $0x188] sm:$0xff]
    %v1754 = vld [vmem:[%s1703 + $0x190] sm:$0xff]
    %v1755 = vld [vmem:[%s1703 + $0x198] sm:$0xff]
    %v1756 = vld [vmem:[%s1703 + $0x1a0] sm:$0xff]
    %v1757 = vld [vmem:[%s1703 + $0x1a8] sm:$0xff]
    %v1758 = vld [vmem:[%s1703 + $0x1b0] sm:$0xff]
    %v1759 = vld [vmem:[%s1703 + $0x1b8] sm:$0xff]
    %v1760 = vld [vmem:[%s1703 + $0x1c0] sm:$0xff]
    %v1761 = vld [vmem:[%s1703 + $0x1c8] sm:$0xff]
    %v1762 = vld [vmem:[%s1703 + $0x1d0] sm:$0xff]
    %v1763 = vld [vmem:[%s1703 + $0x1d8] sm:$0xff]
    %v1764 = vld [vmem:[%s1703 + $0x1e0] sm:$0xff]
    %v1765 = vld [vmem:[%s1703 + $0x1e8] sm:$0xff]
    %v1766 = vld [vmem:[%s1703 + $0x1f0] sm:$0xff]
    %v1767 = vld [vmem:[%s1703 + $0x1f8] sm:$0xff]
    %v1768 = vld [vmem:[%s1703 + $0x200] sm:$0xff]
    %v1769 = vld [vmem:[%s1703 + $0x208] sm:$0xff]
    %v1770 = vld [vmem:[%s1703 + $0x210] sm:$0xff]
    %v1771 = vld [vmem:[%s1703 + $0x218] sm:$0xff]
    %v1772 = vld [vmem:[%s1703 + $0x220] sm:$0xff]
    %v1773 = vld [vmem:[%s1703 + $0x228] sm:$0xff]
    %v1774 = vld [vmem:[%s1703 + $0x230] sm:$0xff]
    %v1775 = vld [vmem:[%s1703 + $0x238] sm:$0xff]
    %v1776 = vld [vmem:[%s1703 + $0x240] sm:$0xff]
    %v1777 = vld [vmem:[%s1703 + $0x248] sm:$0xff]
    %v1778 = vld [vmem:[%s1703 + $0x250] sm:$0xff]
    %v1779 = vld [vmem:[%s1703 + $0x258] sm:$0xff]
    %v1780 = vld [vmem:[%s1703 + $0x260] sm:$0xff]
    %v1781 = vld [vmem:[%s1703 + $0x268] sm:$0xff]
    %v1782 = vld [vmem:[%s1703 + $0x270] sm:$0xff]
    %v1783 = vld [vmem:[%s1703 + $0x278] sm:$0xff]
    %v1784 = vld [vmem:[%s1703 + $0x280] sm:$0xff]
    %v1785 = vld [vmem:[%s1703 + $0x288] sm:$0xff]
    %v1786 = vld [vmem:[%s1703 + $0x290] sm:$0xff]
    %v1787 = vld [vmem:[%s1703 + $0x298] sm:$0xff]
    %v1788 = vld [vmem:[%s1703 + $0x2a0] sm:$0xff]
    %v1789 = vld [vmem:[%s1703 + $0x2a8] sm:$0xff]
    %v1790 = vld [vmem:[%s1703 + $0x2b0] sm:$0xff]
    %v1791 = vld [vmem:[%s1703 + $0x2b8] sm:$0xff]
    %v1792 = vld [vmem:[%s1703 + $0x2c0] sm:$0xff]
    %v1793 = vld [vmem:[%s1703 + $0x2c8] sm:$0xff]
    %v1794 = vld [vmem:[%s1703 + $0x2d0] sm:$0xff]
    %v1795 = vld [vmem:[%s1703 + $0x2d8] sm:$0xff]
    %v1796 = vld [vmem:[%s1703 + $0x2e0] sm:$0xff]
    %v1797 = vld [vmem:[%s1703 + $0x2e8] sm:$0xff]
    %v1798 = vld [vmem:[%s1703 + $0x2f0] sm:$0xff]
    %v1799 = vld [vmem:[%s1703 + $0x2f8] sm:$0xff]
    %v1800 = vld [vmem:[%s1703 + $0x300] sm:$0xff]
    %v1801 = vld [vmem:[%s1703 + $0x308] sm:$0xff]
    %v1802 = vld [vmem:[%s1703 + $0x310] sm:$0xff]
    %v1803 = vld [vmem:[%s1703 + $0x318] sm:$0xff]
    %v1804 = vld [vmem:[%s1703 + $0x320] sm:$0xff]
    %v1805 = vld [vmem:[%s1703 + $0x328] sm:$0xff]
    %v1806 = vld [vmem:[%s1703 + $0x330] sm:$0xff]
    %v1807 = vld [vmem:[%s1703 + $0x338] sm:$0xff]
    %v1808 = vld [vmem:[%s1703 + $0x340] sm:$0xff]
    %v1809 = vld [vmem:[%s1703 + $0x348] sm:$0xff]
    %v1810 = vld [vmem:[%s1703 + $0x350] sm:$0xff]
    %v1811 = vld [vmem:[%s1703 + $0x358] sm:$0xff]
    %v1812 = vld [vmem:[%s1703 + $0x360] sm:$0xff]
    %v1813 = vld [vmem:[%s1703 + $0x368] sm:$0xff]
    %v1814 = vld [vmem:[%s1703 + $0x370] sm:$0xff]
    %v1815 = vld [vmem:[%s1703 + $0x378] sm:$0xff]
    %v1816 = vld [vmem:[%s1703 + $0x380] sm:$0xff]
    %v1817 = vld [vmem:[%s1703 + $0x388] sm:$0xff]
    %v1818 = vld [vmem:[%s1703 + $0x390] sm:$0xff]
    %v1819 = vld [vmem:[%s1703 + $0x398] sm:$0xff]
    %v1820 = vld [vmem:[%s1703 + $0x3a0] sm:$0xff]
    %v1821 = vld [vmem:[%s1703 + $0x3a8] sm:$0xff]
    %v1822 = vld [vmem:[%s1703 + $0x3b0] sm:$0xff]
    %v1823 = vld [vmem:[%s1703 + $0x3b8] sm:$0xff]
    %v1824 = vld [vmem:[%s1703 + $0x3c0] sm:$0xff]
    %v1825 = vld [vmem:[%s1703 + $0x3c8] sm:$0xff]
    %v1826 = vld [vmem:[%s1703 + $0x3d0] sm:$0xff]
    %v1827 = vld [vmem:[%s1703 + $0x3d8] sm:$0xff]
    %v1828 = vld [vmem:[%s1703 + $0x3e0] sm:$0xff]
    %v1829 = vld [vmem:[%s1703 + $0x3e8] sm:$0xff]
    %v1830 = vld [vmem:[%s1703 + $0x3f0] sm:$0xff]
    %v1831 = vld [vmem:[%s1703 + $0x3f8] sm:$0xff]
    %1832 = vmatprep.subr.mxu0 0.0
    %1833 = vmatpush1.msra.mxu0 %v1704
    %1834 = vmatprep.subr.mxu0 0.0
    %1835 = vmatpush1.msra.mxu0 %v1705
    %1836 = vmatprep.subr.mxu0 0.0
    %1837 = vmatpush1.msra.mxu0 %v1706
    %1838 = vmatprep.subr.mxu0 0.0
    %1839 = vmatpush1.msra.mxu0 %v1707
    %1840 = vmatprep.subr.mxu0 0.0
    %1841 = vmatpush1.msra.mxu0 %v1708
    %1842 = vmatprep.subr.mxu0 0.0
    %1843 = vmatpush1.msra.mxu0 %v1709
    %1844 = vmatprep.subr.mxu0 0.0
    %1845 = vmatpush1.msra.mxu0 %v1710
    %1846 = vmatprep.subr.mxu0 0.0
    %1847 = vmatpush1.msra.mxu0 %v1711
    %1848 = vmatprep.subr.mxu0 0.0
    %1849 = vmatpush1.msra.mxu0 %v1712
    %1850 = vmatprep.subr.mxu0 0.0
    %1851 = vmatpush1.msra.mxu0 %v1713
    %1852 = vmatprep.subr.mxu0 0.0
    %1853 = vmatpush1.msra.mxu0 %v1714
    %1854 = vmatprep.subr.mxu0 0.0
    %1855 = vmatpush1.msra.mxu0 %v1715
    %1856 = vmatprep.subr.mxu0 0.0
    %1857 = vmatpush1.msra.mxu0 %v1716
    %1858 = vmatprep.subr.mxu0 0.0
    %1859 = vmatpush1.msra.mxu0 %v1717
    %1860 = vmatprep.subr.mxu0 0.0
    %1861 = vmatpush1.msra.mxu0 %v1718
    %1862 = vmatprep.subr.mxu0 0.0
    %1863 = vmatpush1.msra.mxu0 %v1719
    %1864 = vmatprep.subr.mxu0 0.0
    %1865 = vmatpush1.msra.mxu0 %v1720
    %1866 = vmatprep.subr.mxu0 0.0
    %1867 = vmatpush1.msra.mxu0 %v1721
    %1868 = vmatprep.subr.mxu0 0.0
    %1869 = vmatpush1.msra.mxu0 %v1722
    %1870 = vmatprep.subr.mxu0 0.0
    %1871 = vmatpush1.msra.mxu0 %v1723
    %1872 = vmatprep.subr.mxu0 0.0
    %1873 = vmatpush1.msra.mxu0 %v1724
    %1874 = vmatprep.subr.mxu0 0.0
    %1875 = vmatpush1.msra.mxu0 %v1725
    %1876 = vmatprep.subr.mxu0 0.0
    %1877 = vmatpush1.msra.mxu0 %v1726
    %1878 = vmatprep.subr.mxu0 0.0
    %1879 = vmatpush1.msra.mxu0 %v1727
    %1880 = vmatprep.subr.mxu0 0.0
    %1881 = vmatpush1.msra.mxu0 %v1728
    %1882 = vmatprep.subr.mxu0 0.0
    %1883 = vmatpush1.msra.mxu0 %v1729
    %1884 = vmatprep.subr.mxu0 0.0
    %1885 = vmatpush1.msra.mxu0 %v1730
    %1886 = vmatprep.subr.mxu0 0.0
    %1887 = vmatpush1.msra.mxu0 %v1731
    %1888 = vmatprep.subr.mxu0 0.0
    %1889 = vmatpush1.msra.mxu0 %v1732
    %1890 = vmatprep.subr.mxu0 0.0
    %1891 = vmatpush1.msra.mxu0 %v1733
    %1892 = vmatprep.subr.mxu0 0.0
    %1893 = vmatpush1.msra.mxu0 %v1734
    %1894 = vmatprep.subr.mxu0 0.0
    %1895 = vmatpush1.msra.mxu0 %v1735
    %1896 = vmatprep.mubr.f32.mxu0 %v159
    %1897 = vmatmul.mubr.f32.gmra.mrb[0].mxu0 %v158
    %v1898 = vpop.f32.mrb[0].mxu0
    %v1899 = vadd.f32 0.0, %v1898
    %v1900 = vpop.f32.mrb[0].mxu0
    %1901 = vmatprep.mubr.f32.mxu0 %v167
    %1902 = vmatmul.mubr.f32.gmra.mrb[0].mxu0 %v166
    %v1903 = vpop.f32.mrb[0].mxu0
    %v1904 = vadd.f32 0.0, %v1903
    %v1905 = vpop.f32.mrb[0].mxu0
    %1906 = vmatprep.mubr.f32.mxu0 %v175
    %1907 = vmatmul.mubr.f32.gmra.mrb[0].mxu0 %v174
    %v1908 = vpop.f32.mrb[0].mxu0
    %v1909 = vadd.f32 0.0, %v1908
    %v1910 = vpop.f32.mrb[0].mxu0
    %1911 = vmatprep.mubr.f32.mxu0 %v183
    %1912 = vmatmul.mubr.f32.gmra.mrb[0].mxu0 %v182
    %v1913 = vpop.f32.mrb[0].mxu0
    %v1914 = vadd.f32 0.0, %v1913
    %v1915 = vpop.f32.mrb[0].mxu0
    %1916 = vmatprep.mubr.f32.mxu0 %v191
    %1917 = vmatmul.mubr.f32.gmra.mrb[0].mxu0 %v190
    %v1918 = vpop.f32.mrb[0].mxu0
    %v1919 = vadd.f32 0.0, %v1918
    %v1920 = vpop.f32.mrb[0].mxu0
    %1921 = vmatprep.mubr.f32.mxu0 %v199
    %1922 = vmatmul.mubr.f32.gmra.mrb[0].mxu0 %v198
    %v1923 = vpop.f32.mrb[0].mxu0
    %v1924 = vadd.f32 0.0, %v1923
    %v1925 = vpop.f32.mrb[0].mxu0
    %1926 = vmatprep.mubr.f32.mxu0 %v207
    %1927 = vmatmul.mubr.f32.gmra.mrb[0].mxu0 %v206
    %v1928 = vpop.f32.mrb[0].mxu0
    %v1929 = vadd.f32 0.0, %v1928
    %v1930 = vpop.f32.mrb[0].mxu0
    %1931 = vmatprep.mubr.f32.mxu0 %v215
    %1932 = vmatmul.mubr.f32.gmra.mrb[0].mxu0 %v214
    %v1933 = vpop.f32.mrb[0].mxu0
    %v1934 = vadd.f32 0.0, %v1933
    %v1935 = vpop.f32.mrb[0].mxu0
    %1936 = vmatprep.mubr.f32.mxu0 %v223
    %1937 = vmatmul.mubr.f32.gmra.mrb[0].mxu0 %v222
    %v1938 = vpop.f32.mrb[0].mxu0
    %v1939 = vadd.f32 0.0, %v1938
    %v1940 = vpop.f32.mrb[0].mxu0
    %1941 = vmatprep.mubr.f32.mxu0 %v231
    %1942 = vmatmul.mubr.f32.gmra.mrb[0].mxu0 %v230
    %v1943 = vpop.f32.mrb[0].mxu0
    %v1944 = vadd.f32 0.0, %v1943
    %v1945 = vpop.f32.mrb[0].mxu0
    %1946 = vmatprep.mubr.f32.mxu0 %v239
    %1947 = vmatmul.mubr.f32.gmra.mrb[0].mxu0 %v238
    %v1948 = vpop.f32.mrb[0].mxu0
    %v1949 = vadd.f32 0.0, %v1948
    %v1950 = vpop.f32.mrb[0].mxu0
    %1951 = vmatprep.mubr.f32.mxu0 %v247
    %1952 = vmatmul.mubr.f32.gmra.mrb[0].mxu0 %v246
    %v1953 = vpop.f32.mrb[0].mxu0
    %v1954 = vadd.f32 0.0, %v1953
    %v1955 = vpop.f32.mrb[0].mxu0
    %1956 = vmatprep.mubr.f32.mxu0 %v255
    %1957 = vmatmul.mubr.f32.gmra.mrb[0].mxu0 %v254
    %v1958 = vpop.f32.mrb[0].mxu0
    %v1959 = vadd.f32 0.0, %v1958
    %v1960 = vpop.f32.mrb[0].mxu0
    %1961 = vmatprep.mubr.f32.mxu0 %v263
    %1962 = vmatmul.mubr.f32.gmra.mrb[0].mxu0 %v262
    %v1963 = vpop.f32.mrb[0].mxu0
    %v1964 = vadd.f32 0.0, %v1963
    %v1965 = vpop.f32.mrb[0].mxu0
    %1966 = vmatprep.mubr.f32.mxu0 %v271
    %1967 = vmatmul.mubr.f32.gmra.mrb[0].mxu0 %v270
    %v1968 = vpop.f32.mrb[0].mxu0
    %v1969 = vadd.f32 0.0, %v1968
    %v1970 = vpop.f32.mrb[0].mxu0
    %1971 = vmatprep.mubr.f32.mxu0 %v279
    %1972 = vmatmul.mubr.f32.gmra.mrb[0].mxu0 %v278
    %v1973 = vpop.f32.mrb[0].mxu0
    %v1974 = vadd.f32 0.0, %v1973
    %v1975 = vpop.f32.mrb[0].mxu0
    %1976 = vdwg.mxu0
    %1977 = vmatprep.subr.mxu0 0.0
    %1978 = vmatpush1.msra.mxu0 %v1736
    %1979 = vmatprep.subr.mxu0 0.0
    %1980 = vmatpush1.msra.mxu0 %v1737
    %1981 = vmatprep.subr.mxu0 0.0
    %1982 = vmatpush1.msra.mxu0 %v1738
    %1983 = vmatprep.subr.mxu0 0.0
    %1984 = vmatpush1.msra.mxu0 %v1739
    %1985 = vmatprep.subr.mxu0 0.0
    %1986 = vmatpush1.msra.mxu0 %v1740
    %1987 = vmatprep.subr.mxu0 0.0
    %1988 = vmatpush1.msra.mxu0 %v1741
    %1989 = vmatprep.subr.mxu0 0.0
    %1990 = vmatpush1.msra.mxu0 %v1742
    %1991 = vmatprep.subr.mxu0 0.0
    %1992 = vmatpush1.msra.mxu0 %v1743
    %1993 = vmatprep.subr.mxu0 0.0
    %1994 = vmatpush1.msra.mxu0 %v1744
    %1995 = vmatprep.subr.mxu0 0.0
    %1996 = vmatpush1.msra.mxu0 %v1745
    %1997 = vmatprep.subr.mxu0 0.0
    %1998 = vmatpush1.msra.mxu0 %v1746
    %1999 = vmatprep.subr.mxu0 0.0
    %2000 = vmatpush1.msra.mxu0 %v1747
    %2001 = vmatprep.subr.mxu0 0.0
    %2002 = vmatpush1.msra.mxu0 %v1748
    %2003 = vmatprep.subr.mxu0 0.0
    %2004 = vmatpush1.msra.mxu0 %v1749
    %2005 = vmatprep.subr.mxu0 0.0
    %2006 = vmatpush1.msra.mxu0 %v1750
    %2007 = vmatprep.subr.mxu0 0.0
    %2008 = vmatpush1.msra.mxu0 %v1751
    %2009 = vmatprep.subr.mxu0 0.0
    %2010 = vmatpush1.msra.mxu0 %v1752
    %2011 = vmatprep.subr.mxu0 0.0
    %2012 = vmatpush1.msra.mxu0 %v1753
    %2013 = vmatprep.subr.mxu0 0.0
    %2014 = vmatpush1.msra.mxu0 %v1754
    %2015 = vmatprep.subr.mxu0 0.0
    %2016 = vmatpush1.msra.mxu0 %v1755
    %2017 = vmatprep.subr.mxu0 0.0
    %2018 = vmatpush1.msra.mxu0 %v1756
    %2019 = vmatprep.subr.mxu0 0.0
    %2020 = vmatpush1.msra.mxu0 %v1757
    %2021 = vmatprep.subr.mxu0 0.0
    %2022 = vmatpush1.msra.mxu0 %v1758
    %2023 = vmatprep.subr.mxu0 0.0
    %2024 = vmatpush1.msra.mxu0 %v1759
    %2025 = vmatprep.subr.mxu0 0.0
    %2026 = vmatpush1.msra.mxu0 %v1760
    %2027 = vmatprep.subr.mxu0 0.0
    %2028 = vmatpush1.msra.mxu0 %v1761
    %2029 = vmatprep.subr.mxu0 0.0
    %2030 = vmatpush1.msra.mxu0 %v1762
    %2031 = vmatprep.subr.mxu0 0.0
    %2032 = vmatpush1.msra.mxu0 %v1763
    %2033 = vmatprep.subr.mxu0 0.0
    %2034 = vmatpush1.msra.mxu0 %v1764
    %2035 = vmatprep.subr.mxu0 0.0
    %2036 = vmatpush1.msra.mxu0 %v1765
    %2037 = vmatprep.subr.mxu0 0.0
    %2038 = vmatpush1.msra.mxu0 %v1766
    %2039 = vmatprep.subr.mxu0 0.0
    %2040 = vmatpush1.msra.mxu0 %v1767
    %2041 = vmatprep.mubr.f32.mxu0 %v161
    %2042 = vmatmul.mubr.f32.gmra.mrb[0].mxu0 %v160
    %v2043 = vpop.f32.mrb[0].mxu0
    %v2044 = vadd.f32 %v1899, %v2043
    %v2045 = vpop.f32.mrb[0].mxu0
    %2046 = vmatprep.mubr.f32.mxu0 %v169
    %2047 = vmatmul.mubr.f32.gmra.mrb[0].mxu0 %v168
    %v2048 = vpop.f32.mrb[0].mxu0
    %v2049 = vadd.f32 %v1904, %v2048
    %v2050 = vpop.f32.mrb[0].mxu0
    %2051 = vmatprep.mubr.f32.mxu0 %v177
    %2052 = vmatmul.mubr.f32.gmra.mrb[0].mxu0 %v176
    %v2053 = vpop.f32.mrb[0].mxu0
    %v2054 = vadd.f32 %v1909, %v2053
    %v2055 = vpop.f32.mrb[0].mxu0
    %2056 = vmatprep.mubr.f32.mxu0 %v185
    %2057 = vmatmul.mubr.f32.gmra.mrb[0].mxu0 %v184
    %v2058 = vpop.f32.mrb[0].mxu0
    %v2059 = vadd.f32 %v1914, %v2058
    %v2060 = vpop.f32.mrb[0].mxu0
    %2061 = vmatprep.mubr.f32.mxu0 %v193
    %2062 = vmatmul.mubr.f32.gmra.mrb[0].mxu0 %v192
    %v2063 = vpop.f32.mrb[0].mxu0
    %v2064 = vadd.f32 %v1919, %v2063
    %v2065 = vpop.f32.mrb[0].mxu0
    %2066 = vmatprep.mubr.f32.mxu0 %v201
    %2067 = vmatmul.mubr.f32.gmra.mrb[0].mxu0 %v200
    %v2068 = vpop.f32.mrb[0].mxu0
    %v2069 = vadd.f32 %v1924, %v2068
    %v2070 = vpop.f32.mrb[0].mxu0
    %2071 = vmatprep.mubr.f32.mxu0 %v209
    %2072 = vmatmul.mubr.f32.gmra.mrb[0].mxu0 %v208
    %v2073 = vpop.f32.mrb[0].mxu0
    %v2074 = vadd.f32 %v1929, %v2073
    %v2075 = vpop.f32.mrb[0].mxu0
    %2076 = vmatprep.mubr.f32.mxu0 %v217
    %2077 = vmatmul.mubr.f32.gmra.mrb[0].mxu0 %v216
    %v2078 = vpop.f32.mrb[0].mxu0
    %v2079 = vadd.f32 %v1934, %v2078
    %v2080 = vpop.f32.mrb[0].mxu0
    %2081 = vmatprep.mubr.f32.mxu0 %v225
    %2082 = vmatmul.mubr.f32.gmra.mrb[0].mxu0 %v224
    %v2083 = vpop.f32.mrb[0].mxu0
    %v2084 = vadd.f32 %v1939, %v2083
    %v2085 = vpop.f32.mrb[0].mxu0
    %2086 = vmatprep.mubr.f32.mxu0 %v233
    %2087 = vmatmul.mubr.f32.gmra.mrb[0].mxu0 %v232
    %v2088 = vpop.f32.mrb[0].mxu0
    %v2089 = vadd.f32 %v1944, %v2088
    %v2090 = vpop.f32.mrb[0].mxu0
    %2091 = vmatprep.mubr.f32.mxu0 %v241
    %2092 = vmatmul.mubr.f32.gmra.mrb[0].mxu0 %v240
    %v2093 = vpop.f32.mrb[0].mxu0
    %v2094 = vadd.f32 %v1949, %v2093
    %v2095 = vpop.f32.mrb[0].mxu0
    %2096 = vmatprep.mubr.f32.mxu0 %v249
    %2097 = vmatmul.mubr.f32.gmra.mrb[0].mxu0 %v248
    %v2098 = vpop.f32.mrb[0].mxu0
    %v2099 = vadd.f32 %v1954, %v2098
    %v2100 = vpop.f32.mrb[0].mxu0
    %2101 = vmatprep.mubr.f32.mxu0 %v257
    %2102 = vmatmul.mubr.f32.gmra.mrb[0].mxu0 %v256
    %v2103 = vpop.f32.mrb[0].mxu0
    %v2104 = vadd.f32 %v1959, %v2103
    %v2105 = vpop.f32.mrb[0].mxu0
    %2106 = vmatprep.mubr.f32.mxu0 %v265
    %2107 = vmatmul.mubr.f32.gmra.mrb[0].mxu0 %v264
    %v2108 = vpop.f32.mrb[0].mxu0
    %v2109 = vadd.f32 %v1964, %v2108
    %v2110 = vpop.f32.mrb[0].mxu0
    %2111 = vmatprep.mubr.f32.mxu0 %v273
    %2112 = vmatmul.mubr.f32.gmra.mrb[0].mxu0 %v272
    %v2113 = vpop.f32.mrb[0].mxu0
    %v2114 = vadd.f32 %v1969, %v2113
    %v2115 = vpop.f32.mrb[0].mxu0
    %2116 = vmatprep.mubr.f32.mxu0 %v281
    %2117 = vmatmul.mubr.f32.gmra.mrb[0].mxu0 %v280
    %v2118 = vpop.f32.mrb[0].mxu0
    %v2119 = vadd.f32 %v1974, %v2118
    %v2120 = vpop.f32.mrb[0].mxu0
    %2121 = vdwg.mxu0
    %2122 = vmatprep.subr.mxu0 0.0
    %2123 = vmatpush1.msra.mxu0 %v1768
    %2124 = vmatprep.subr.mxu0 0.0
    %2125 = vmatpush1.msra.mxu0 %v1769
    %2126 = vmatprep.subr.mxu0 0.0
    %2127 = vmatpush1.msra.mxu0 %v1770
    %2128 = vmatprep.subr.mxu0 0.0
    %2129 = vmatpush1.msra.mxu0 %v1771
    %2130 = vmatprep.subr.mxu0 0.0
    %2131 = vmatpush1.msra.mxu0 %v1772
    %2132 = vmatprep.subr.mxu0 0.0
    %2133 = vmatpush1.msra.mxu0 %v1773
    %2134 = vmatprep.subr.mxu0 0.0
    %2135 = vmatpush1.msra.mxu0 %v1774
    %2136 = vmatprep.subr.mxu0 0.0
    %2137 = vmatpush1.msra.mxu0 %v1775
    %2138 = vmatprep.subr.mxu0 0.0
    %2139 = vmatpush1.msra.mxu0 %v1776
    %2140 = vmatprep.subr.mxu0 0.0
    %2141 = vmatpush1.msra.mxu0 %v1777
    %2142 = vmatprep.subr.mxu0 0.0
    %2143 = vmatpush1.msra.mxu0 %v1778
    %2144 = vmatprep.subr.mxu0 0.0
    %2145 = vmatpush1.msra.mxu0 %v1779
    %2146 = vmatprep.subr.mxu0 0.0
    %2147 = vmatpush1.msra.mxu0 %v1780
    %2148 = vmatprep.subr.mxu0 0.0
    %2149 = vmatpush1.msra.mxu0 %v1781
    %2150 = vmatprep.subr.mxu0 0.0
    %2151 = vmatpush1.msra.mxu0 %v1782
    %2152 = vmatprep.subr.mxu0 0.0
    %2153 = vmatpush1.msra.mxu0 %v1783
    %2154 = vmatprep.subr.mxu0 0.0
    %2155 = vmatpush1.msra.mxu0 %v1784
    %2156 = vmatprep.subr.mxu0 0.0
    %2157 = vmatpush1.msra.mxu0 %v1785
    %2158 = vmatprep.subr.mxu0 0.0
    %2159 = vmatpush1.msra.mxu0 %v1786
    %2160 = vmatprep.subr.mxu0 0.0
    %2161 = vmatpush1.msra.mxu0 %v1787
    %2162 = vmatprep.subr.mxu0 0.0
    %2163 = vmatpush1.msra.mxu0 %v1788
    %2164 = vmatprep.subr.mxu0 0.0
    %2165 = vmatpush1.msra.mxu0 %v1789
    %2166 = vmatprep.subr.mxu0 0.0
    %2167 = vmatpush1.msra.mxu0 %v1790
    %2168 = vmatprep.subr.mxu0 0.0
    %2169 = vmatpush1.msra.mxu0 %v1791
    %2170 = vmatprep.subr.mxu0 0.0
    %2171 = vmatpush1.msra.mxu0 %v1792
    %2172 = vmatprep.subr.mxu0 0.0
    %2173 = vmatpush1.msra.mxu0 %v1793
    %2174 = vmatprep.subr.mxu0 0.0
    %2175 = vmatpush1.msra.mxu0 %v1794
    %2176 = vmatprep.subr.mxu0 0.0
    %2177 = vmatpush1.msra.mxu0 %v1795
    %2178 = vmatprep.subr.mxu0 0.0
    %2179 = vmatpush1.msra.mxu0 %v1796
    %2180 = vmatprep.subr.mxu0 0.0
    %2181 = vmatpush1.msra.mxu0 %v1797
    %2182 = vmatprep.subr.mxu0 0.0
    %2183 = vmatpush1.msra.mxu0 %v1798
    %2184 = vmatprep.subr.mxu0 0.0
    %2185 = vmatpush1.msra.mxu0 %v1799
    %2186 = vmatprep.mubr.f32.mxu0 %v163
    %2187 = vmatmul.mubr.f32.gmra.mrb[0].mxu0 %v162
    %v2188 = vpop.f32.mrb[0].mxu0
    %v2189 = vadd.f32 %v2044, %v2188
    %v2190 = vpop.f32.mrb[0].mxu0
    %2191 = vmatprep.mubr.f32.mxu0 %v171
    %2192 = vmatmul.mubr.f32.gmra.mrb[0].mxu0 %v170
    %v2193 = vpop.f32.mrb[0].mxu0
    %v2194 = vadd.f32 %v2049, %v2193
    %v2195 = vpop.f32.mrb[0].mxu0
    %2196 = vmatprep.mubr.f32.mxu0 %v179
    %2197 = vmatmul.mubr.f32.gmra.mrb[0].mxu0 %v178
    %v2198 = vpop.f32.mrb[0].mxu0
    %v2199 = vadd.f32 %v2054, %v2198
    %v2200 = vpop.f32.mrb[0].mxu0
    %2201 = vmatprep.mubr.f32.mxu0 %v187
    %2202 = vmatmul.mubr.f32.gmra.mrb[0].mxu0 %v186
    %v2203 = vpop.f32.mrb[0].mxu0
    %v2204 = vadd.f32 %v2059, %v2203
    %v2205 = vpop.f32.mrb[0].mxu0
    %2206 = vmatprep.mubr.f32.mxu0 %v195
    %2207 = vmatmul.mubr.f32.gmra.mrb[0].mxu0 %v194
    %v2208 = vpop.f32.mrb[0].mxu0
    %v2209 = vadd.f32 %v2064, %v2208
    %v2210 = vpop.f32.mrb[0].mxu0
    %2211 = vmatprep.mubr.f32.mxu0 %v203
    %2212 = vmatmul.mubr.f32.gmra.mrb[0].mxu0 %v202
    %v2213 = vpop.f32.mrb[0].mxu0
    %v2214 = vadd.f32 %v2069, %v2213
    %v2215 = vpop.f32.mrb[0].mxu0
    %2216 = vmatprep.mubr.f32.mxu0 %v211
    %2217 = vmatmul.mubr.f32.gmra.mrb[0].mxu0 %v210
    %v2218 = vpop.f32.mrb[0].mxu0
    %v2219 = vadd.f32 %v2074, %v2218
    %v2220 = vpop.f32.mrb[0].mxu0
    %2221 = vmatprep.mubr.f32.mxu0 %v219
    %2222 = vmatmul.mubr.f32.gmra.mrb[0].mxu0 %v218
    %v2223 = vpop.f32.mrb[0].mxu0
    %v2224 = vadd.f32 %v2079, %v2223
    %v2225 = vpop.f32.mrb[0].mxu0
    %2226 = vmatprep.mubr.f32.mxu0 %v227
    %2227 = vmatmul.mubr.f32.gmra.mrb[0].mxu0 %v226
    %v2228 = vpop.f32.mrb[0].mxu0
    %v2229 = vadd.f32 %v2084, %v2228
    %v2230 = vpop.f32.mrb[0].mxu0
    %2231 = vmatprep.mubr.f32.mxu0 %v235
    %2232 = vmatmul.mubr.f32.gmra.mrb[0].mxu0 %v234
    %v2233 = vpop.f32.mrb[0].mxu0
    %v2234 = vadd.f32 %v2089, %v2233
    %v2235 = vpop.f32.mrb[0].mxu0
    %2236 = vmatprep.mubr.f32.mxu0 %v243
    %2237 = vmatmul.mubr.f32.gmra.mrb[0].mxu0 %v242
    %v2238 = vpop.f32.mrb[0].mxu0
    %v2239 = vadd.f32 %v2094, %v2238
    %v2240 = vpop.f32.mrb[0].mxu0
    %2241 = vmatprep.mubr.f32.mxu0 %v251
    %2242 = vmatmul.mubr.f32.gmra.mrb[0].mxu0 %v250
    %v2243 = vpop.f32.mrb[0].mxu0
    %v2244 = vadd.f32 %v2099, %v2243
    %v2245 = vpop.f32.mrb[0].mxu0
    %2246 = vmatprep.mubr.f32.mxu0 %v259
    %2247 = vmatmul.mubr.f32.gmra.mrb[0].mxu0 %v258
    %v2248 = vpop.f32.mrb[0].mxu0
    %v2249 = vadd.f32 %v2104, %v2248
    %v2250 = vpop.f32.mrb[0].mxu0
    %2251 = vmatprep.mubr.f32.mxu0 %v267
    %2252 = vmatmul.mubr.f32.gmra.mrb[0].mxu0 %v266
    %v2253 = vpop.f32.mrb[0].mxu0
    %v2254 = vadd.f32 %v2109, %v2253
    %v2255 = vpop.f32.mrb[0].mxu0
    %2256 = vmatprep.mubr.f32.mxu0 %v275
    %2257 = vmatmul.mubr.f32.gmra.mrb[0].mxu0 %v274
    %v2258 = vpop.f32.mrb[0].mxu0
    %v2259 = vadd.f32 %v2114, %v2258
    %v2260 = vpop.f32.mrb[0].mxu0
    %2261 = vmatprep.mubr.f32.mxu0 %v283
    %2262 = vmatmul.mubr.f32.gmra.mrb[0].mxu0 %v282
    %v2263 = vpop.f32.mrb[0].mxu0
    %v2264 = vadd.f32 %v2119, %v2263
    %v2265 = vpop.f32.mrb[0].mxu0
    %2266 = vdwg.mxu0
    %2267 = vmatprep.subr.mxu0 0.0
    %2268 = vmatpush1.msra.mxu0 %v1800
    %2269 = vmatprep.subr.mxu0 0.0
    %2270 = vmatpush1.msra.mxu0 %v1801
    %2271 = vmatprep.subr.mxu0 0.0
    %2272 = vmatpush1.msra.mxu0 %v1802
    %2273 = vmatprep.subr.mxu0 0.0
    %2274 = vmatpush1.msra.mxu0 %v1803
    %2275 = vmatprep.subr.mxu0 0.0
    %2276 = vmatpush1.msra.mxu0 %v1804
    %2277 = vmatprep.subr.mxu0 0.0
    %2278 = vmatpush1.msra.mxu0 %v1805
    %2279 = vmatprep.subr.mxu0 0.0
    %2280 = vmatpush1.msra.mxu0 %v1806
    %2281 = vmatprep.subr.mxu0 0.0
    %2282 = vmatpush1.msra.mxu0 %v1807
    %2283 = vmatprep.subr.mxu0 0.0
    %2284 = vmatpush1.msra.mxu0 %v1808
    %2285 = vmatprep.subr.mxu0 0.0
    %2286 = vmatpush1.msra.mxu0 %v1809
    %2287 = vmatprep.subr.mxu0 0.0
    %2288 = vmatpush1.msra.mxu0 %v1810
    %2289 = vmatprep.subr.mxu0 0.0
    %2290 = vmatpush1.msra.mxu0 %v1811
    %2291 = vmatprep.subr.mxu0 0.0
    %2292 = vmatpush1.msra.mxu0 %v1812
    %2293 = vmatprep.subr.mxu0 0.0
    %2294 = vmatpush1.msra.mxu0 %v1813
    %2295 = vmatprep.subr.mxu0 0.0
    %2296 = vmatpush1.msra.mxu0 %v1814
    %2297 = vmatprep.subr.mxu0 0.0
    %2298 = vmatpush1.msra.mxu0 %v1815
    %2299 = vmatprep.subr.mxu0 0.0
    %2300 = vmatpush1.msra.mxu0 %v1816
    %2301 = vmatprep.subr.mxu0 0.0
    %2302 = vmatpush1.msra.mxu0 %v1817
    %2303 = vmatprep.subr.mxu0 0.0
    %2304 = vmatpush1.msra.mxu0 %v1818
    %2305 = vmatprep.subr.mxu0 0.0
    %2306 = vmatpush1.msra.mxu0 %v1819
    %2307 = vmatprep.subr.mxu0 0.0
    %2308 = vmatpush1.msra.mxu0 %v1820
    %2309 = vmatprep.subr.mxu0 0.0
    %2310 = vmatpush1.msra.mxu0 %v1821
    %2311 = vmatprep.subr.mxu0 0.0
    %2312 = vmatpush1.msra.mxu0 %v1822
    %2313 = vmatprep.subr.mxu0 0.0
    %2314 = vmatpush1.msra.mxu0 %v1823
    %2315 = vmatprep.subr.mxu0 0.0
    %2316 = vmatpush1.msra.mxu0 %v1824
    %2317 = vmatprep.subr.mxu0 0.0
    %2318 = vmatpush1.msra.mxu0 %v1825
    %2319 = vmatprep.subr.mxu0 0.0
    %2320 = vmatpush1.msra.mxu0 %v1826
    %2321 = vmatprep.subr.mxu0 0.0
    %2322 = vmatpush1.msra.mxu0 %v1827
    %2323 = vmatprep.subr.mxu0 0.0
    %2324 = vmatpush1.msra.mxu0 %v1828
    %2325 = vmatprep.subr.mxu0 0.0
    %2326 = vmatpush1.msra.mxu0 %v1829
    %2327 = vmatprep.subr.mxu0 0.0
    %2328 = vmatpush1.msra.mxu0 %v1830
    %2329 = vmatprep.subr.mxu0 0.0
    %2330 = vmatpush1.msra.mxu0 %v1831
    %2331 = vmatprep.mubr.f32.mxu0 %v165
    %2332 = vmatmul.mubr.f32.gmra.mrb[0].mxu0 %v164
    %v2333 = vpop.f32.mrb[0].mxu0
    %v2334 = vadd.f32 %v2189, %v2333
    %v2335 = vpop.f32.mrb[0].mxu0
    %2336 = vmatprep.mubr.f32.mxu0 %v173
    %2337 = vmatmul.mubr.f32.gmra.mrb[0].mxu0 %v172
    %v2338 = vpop.f32.mrb[0].mxu0
    %v2339 = vadd.f32 %v2194, %v2338
    %v2340 = vpop.f32.mrb[0].mxu0
    %2341 = vmatprep.mubr.f32.mxu0 %v181
    %2342 = vmatmul.mubr.f32.gmra.mrb[0].mxu0 %v180
    %v2343 = vpop.f32.mrb[0].mxu0
    %v2344 = vadd.f32 %v2199, %v2343
    %v2345 = vpop.f32.mrb[0].mxu0
    %2346 = vmatprep.mubr.f32.mxu0 %v189
    %2347 = vmatmul.mubr.f32.gmra.mrb[0].mxu0 %v188
    %v2348 = vpop.f32.mrb[0].mxu0
    %v2349 = vadd.f32 %v2204, %v2348
    %v2350 = vpop.f32.mrb[0].mxu0
    %2351 = vmatprep.mubr.f32.mxu0 %v197
    %2352 = vmatmul.mubr.f32.gmra.mrb[0].mxu0 %v196
    %v2353 = vpop.f32.mrb[0].mxu0
    %v2354 = vadd.f32 %v2209, %v2353
    %v2355 = vpop.f32.mrb[0].mxu0
    %2356 = vmatprep.mubr.f32.mxu0 %v205
    %2357 = vmatmul.mubr.f32.gmra.mrb[0].mxu0 %v204
    %v2358 = vpop.f32.mrb[0].mxu0
    %v2359 = vadd.f32 %v2214, %v2358
    %v2360 = vpop.f32.mrb[0].mxu0
    %2361 = vmatprep.mubr.f32.mxu0 %v213
    %2362 = vmatmul.mubr.f32.gmra.mrb[0].mxu0 %v212
    %v2363 = vpop.f32.mrb[0].mxu0
    %v2364 = vadd.f32 %v2219, %v2363
    %v2365 = vpop.f32.mrb[0].mxu0
    %2366 = vmatprep.mubr.f32.mxu0 %v221
    %2367 = vmatmul.mubr.f32.gmra.mrb[0].mxu0 %v220
    %v2368 = vpop.f32.mrb[0].mxu0
    %v2369 = vadd.f32 %v2224, %v2368
    %v2370 = vpop.f32.mrb[0].mxu0
    %2371 = vmatprep.mubr.f32.mxu0 %v229
    %2372 = vmatmul.mubr.f32.gmra.mrb[0].mxu0 %v228
    %v2373 = vpop.f32.mrb[0].mxu0
    %v2374 = vadd.f32 %v2229, %v2373
    %v2375 = vpop.f32.mrb[0].mxu0
    %2376 = vmatprep.mubr.f32.mxu0 %v237
    %2377 = vmatmul.mubr.f32.gmra.mrb[0].mxu0 %v236
    %v2378 = vpop.f32.mrb[0].mxu0
    %v2379 = vadd.f32 %v2234, %v2378
    %v2380 = vpop.f32.mrb[0].mxu0
    %2381 = vmatprep.mubr.f32.mxu0 %v245
    %2382 = vmatmul.mubr.f32.gmra.mrb[0].mxu0 %v244
    %v2383 = vpop.f32.mrb[0].mxu0
    %v2384 = vadd.f32 %v2239, %v2383
    %v2385 = vpop.f32.mrb[0].mxu0
    %2386 = vmatprep.mubr.f32.mxu0 %v253
    %2387 = vmatmul.mubr.f32.gmra.mrb[0].mxu0 %v252
    %v2388 = vpop.f32.mrb[0].mxu0
    %v2389 = vadd.f32 %v2244, %v2388
    %v2390 = vpop.f32.mrb[0].mxu0
    %2391 = vmatprep.mubr.f32.mxu0 %v261
    %2392 = vmatmul.mubr.f32.gmra.mrb[0].mxu0 %v260
    %v2393 = vpop.f32.mrb[0].mxu0
    %v2394 = vadd.f32 %v2249, %v2393
    %v2395 = vpop.f32.mrb[0].mxu0
    %2396 = vmatprep.mubr.f32.mxu0 %v269
    %2397 = vmatmul.mubr.f32.gmra.mrb[0].mxu0 %v268
    %v2398 = vpop.f32.mrb[0].mxu0
    %v2399 = vadd.f32 %v2254, %v2398
    %v2400 = vpop.f32.mrb[0].mxu0
    %2401 = vmatprep.mubr.f32.mxu0 %v277
    %2402 = vmatmul.mubr.f32.gmra.mrb[0].mxu0 %v276
    %v2403 = vpop.f32.mrb[0].mxu0
    %v2404 = vadd.f32 %v2259, %v2403
    %v2405 = vpop.f32.mrb[0].mxu0
    %2406 = vmatprep.mubr.f32.mxu0 %v285
    %2407 = vmatmul.mubr.f32.gmra.mrb[0].mxu0 %v284
    %v2408 = vpop.f32.mrb[0].mxu0
    %v2409 = vadd.f32 %v2264, %v2408
    %v2410 = vpop.f32.mrb[0].mxu0
    %2411 = vdwg.mxu0
    %s2412 = scalar_lea.vmem [#allocation3], 3072
    %v2413 = vld [vmem:[%s2412] sm:$0xff]
    %v2414 = vld [vmem:[%s2412 + $0x8] sm:$0xff]
    %v2415 = vld [vmem:[%s2412 + $0x10] sm:$0xff]
    %v2416 = vld [vmem:[%s2412 + $0x18] sm:$0xff]
    %v2417 = vld [vmem:[%s2412 + $0x20] sm:$0xff]
    %v2418 = vld [vmem:[%s2412 + $0x28] sm:$0xff]
    %v2419 = vld [vmem:[%s2412 + $0x30] sm:$0xff]
    %v2420 = vld [vmem:[%s2412 + $0x38] sm:$0xff]
    %v2421 = vld [vmem:[%s2412 + $0x40] sm:$0xff]
    %v2422 = vld [vmem:[%s2412 + $0x48] sm:$0xff]
    %v2423 = vld [vmem:[%s2412 + $0x50] sm:$0xff]
    %v2424 = vld [vmem:[%s2412 + $0x58] sm:$0xff]
    %v2425 = vld [vmem:[%s2412 + $0x60] sm:$0xff]
    %v2426 = vld [vmem:[%s2412 + $0x68] sm:$0xff]
    %v2427 = vld [vmem:[%s2412 + $0x70] sm:$0xff]
    %v2428 = vld [vmem:[%s2412 + $0x78] sm:$0xff]
    %v2429 = vld [vmem:[%s2412 + $0x80] sm:$0xff]
    %v2430 = vld [vmem:[%s2412 + $0x88] sm:$0xff]
    %v2431 = vld [vmem:[%s2412 + $0x90] sm:$0xff]
    %v2432 = vld [vmem:[%s2412 + $0x98] sm:$0xff]
    %v2433 = vld [vmem:[%s2412 + $0xa0] sm:$0xff]
    %v2434 = vld [vmem:[%s2412 + $0xa8] sm:$0xff]
    %v2435 = vld [vmem:[%s2412 + $0xb0] sm:$0xff]
    %v2436 = vld [vmem:[%s2412 + $0xb8] sm:$0xff]
    %v2437 = vld [vmem:[%s2412 + $0xc0] sm:$0xff]
    %v2438 = vld [vmem:[%s2412 + $0xc8] sm:$0xff]
    %v2439 = vld [vmem:[%s2412 + $0xd0] sm:$0xff]
    %v2440 = vld [vmem:[%s2412 + $0xd8] sm:$0xff]
    %v2441 = vld [vmem:[%s2412 + $0xe0] sm:$0xff]
    %v2442 = vld [vmem:[%s2412 + $0xe8] sm:$0xff]
    %v2443 = vld [vmem:[%s2412 + $0xf0] sm:$0xff]
    %v2444 = vld [vmem:[%s2412 + $0xf8] sm:$0xff]
    %v2445 = vld [vmem:[%s2412 + $0x100] sm:$0xff]
    %v2446 = vld [vmem:[%s2412 + $0x108] sm:$0xff]
    %v2447 = vld [vmem:[%s2412 + $0x110] sm:$0xff]
    %v2448 = vld [vmem:[%s2412 + $0x118] sm:$0xff]
    %v2449 = vld [vmem:[%s2412 + $0x120] sm:$0xff]
    %v2450 = vld [vmem:[%s2412 + $0x128] sm:$0xff]
    %v2451 = vld [vmem:[%s2412 + $0x130] sm:$0xff]
    %v2452 = vld [vmem:[%s2412 + $0x138] sm:$0xff]
    %v2453 = vld [vmem:[%s2412 + $0x140] sm:$0xff]
    %v2454 = vld [vmem:[%s2412 + $0x148] sm:$0xff]
    %v2455 = vld [vmem:[%s2412 + $0x150] sm:$0xff]
    %v2456 = vld [vmem:[%s2412 + $0x158] sm:$0xff]
    %v2457 = vld [vmem:[%s2412 + $0x160] sm:$0xff]
    %v2458 = vld [vmem:[%s2412 + $0x168] sm:$0xff]
    %v2459 = vld [vmem:[%s2412 + $0x170] sm:$0xff]
    %v2460 = vld [vmem:[%s2412 + $0x178] sm:$0xff]
    %v2461 = vld [vmem:[%s2412 + $0x180] sm:$0xff]
    %v2462 = vld [vmem:[%s2412 + $0x188] sm:$0xff]
    %v2463 = vld [vmem:[%s2412 + $0x190] sm:$0xff]
    %v2464 = vld [vmem:[%s2412 + $0x198] sm:$0xff]
    %v2465 = vld [vmem:[%s2412 + $0x1a0] sm:$0xff]
    %v2466 = vld [vmem:[%s2412 + $0x1a8] sm:$0xff]
    %v2467 = vld [vmem:[%s2412 + $0x1b0] sm:$0xff]
    %v2468 = vld [vmem:[%s2412 + $0x1b8] sm:$0xff]
    %v2469 = vld [vmem:[%s2412 + $0x1c0] sm:$0xff]
    %v2470 = vld [vmem:[%s2412 + $0x1c8] sm:$0xff]
    %v2471 = vld [vmem:[%s2412 + $0x1d0] sm:$0xff]
    %v2472 = vld [vmem:[%s2412 + $0x1d8] sm:$0xff]
    %v2473 = vld [vmem:[%s2412 + $0x1e0] sm:$0xff]
    %v2474 = vld [vmem:[%s2412 + $0x1e8] sm:$0xff]
    %v2475 = vld [vmem:[%s2412 + $0x1f0] sm:$0xff]
    %v2476 = vld [vmem:[%s2412 + $0x1f8] sm:$0xff]
    %v2477 = vld [vmem:[%s2412 + $0x200] sm:$0xff]
    %v2478 = vld [vmem:[%s2412 + $0x208] sm:$0xff]
    %v2479 = vld [vmem:[%s2412 + $0x210] sm:$0xff]
    %v2480 = vld [vmem:[%s2412 + $0x218] sm:$0xff]
    %v2481 = vld [vmem:[%s2412 + $0x220] sm:$0xff]
    %v2482 = vld [vmem:[%s2412 + $0x228] sm:$0xff]
    %v2483 = vld [vmem:[%s2412 + $0x230] sm:$0xff]
    %v2484 = vld [vmem:[%s2412 + $0x238] sm:$0xff]
    %v2485 = vld [vmem:[%s2412 + $0x240] sm:$0xff]
    %v2486 = vld [vmem:[%s2412 + $0x248] sm:$0xff]
    %v2487 = vld [vmem:[%s2412 + $0x250] sm:$0xff]
    %v2488 = vld [vmem:[%s2412 + $0x258] sm:$0xff]
    %v2489 = vld [vmem:[%s2412 + $0x260] sm:$0xff]
    %v2490 = vld [vmem:[%s2412 + $0x268] sm:$0xff]
    %v2491 = vld [vmem:[%s2412 + $0x270] sm:$0xff]
    %v2492 = vld [vmem:[%s2412 + $0x278] sm:$0xff]
    %v2493 = vld [vmem:[%s2412 + $0x280] sm:$0xff]
    %v2494 = vld [vmem:[%s2412 + $0x288] sm:$0xff]
    %v2495 = vld [vmem:[%s2412 + $0x290] sm:$0xff]
    %v2496 = vld [vmem:[%s2412 + $0x298] sm:$0xff]
    %v2497 = vld [vmem:[%s2412 + $0x2a0] sm:$0xff]
    %v2498 = vld [vmem:[%s2412 + $0x2a8] sm:$0xff]
    %v2499 = vld [vmem:[%s2412 + $0x2b0] sm:$0xff]
    %v2500 = vld [vmem:[%s2412 + $0x2b8] sm:$0xff]
    %v2501 = vld [vmem:[%s2412 + $0x2c0] sm:$0xff]
    %v2502 = vld [vmem:[%s2412 + $0x2c8] sm:$0xff]
    %v2503 = vld [vmem:[%s2412 + $0x2d0] sm:$0xff]
    %v2504 = vld [vmem:[%s2412 + $0x2d8] sm:$0xff]
    %v2505 = vld [vmem:[%s2412 + $0x2e0] sm:$0xff]
    %v2506 = vld [vmem:[%s2412 + $0x2e8] sm:$0xff]
    %v2507 = vld [vmem:[%s2412 + $0x2f0] sm:$0xff]
    %v2508 = vld [vmem:[%s2412 + $0x2f8] sm:$0xff]
    %v2509 = vld [vmem:[%s2412 + $0x300] sm:$0xff]
    %v2510 = vld [vmem:[%s2412 + $0x308] sm:$0xff]
    %v2511 = vld [vmem:[%s2412 + $0x310] sm:$0xff]
    %v2512 = vld [vmem:[%s2412 + $0x318] sm:$0xff]
    %v2513 = vld [vmem:[%s2412 + $0x320] sm:$0xff]
    %v2514 = vld [vmem:[%s2412 + $0x328] sm:$0xff]
    %v2515 = vld [vmem:[%s2412 + $0x330] sm:$0xff]
    %v2516 = vld [vmem:[%s2412 + $0x338] sm:$0xff]
    %v2517 = vld [vmem:[%s2412 + $0x340] sm:$0xff]
    %v2518 = vld [vmem:[%s2412 + $0x348] sm:$0xff]
    %v2519 = vld [vmem:[%s2412 + $0x350] sm:$0xff]
    %v2520 = vld [vmem:[%s2412 + $0x358] sm:$0xff]
    %v2521 = vld [vmem:[%s2412 + $0x360] sm:$0xff]
    %v2522 = vld [vmem:[%s2412 + $0x368] sm:$0xff]
    %v2523 = vld [vmem:[%s2412 + $0x370] sm:$0xff]
    %v2524 = vld [vmem:[%s2412 + $0x378] sm:$0xff]
    %v2525 = vld [vmem:[%s2412 + $0x380] sm:$0xff]
    %v2526 = vld [vmem:[%s2412 + $0x388] sm:$0xff]
    %v2527 = vld [vmem:[%s2412 + $0x390] sm:$0xff]
    %v2528 = vld [vmem:[%s2412 + $0x398] sm:$0xff]
    %v2529 = vld [vmem:[%s2412 + $0x3a0] sm:$0xff]
    %v2530 = vld [vmem:[%s2412 + $0x3a8] sm:$0xff]
    %v2531 = vld [vmem:[%s2412 + $0x3b0] sm:$0xff]
    %v2532 = vld [vmem:[%s2412 + $0x3b8] sm:$0xff]
    %v2533 = vld [vmem:[%s2412 + $0x3c0] sm:$0xff]
    %v2534 = vld [vmem:[%s2412 + $0x3c8] sm:$0xff]
    %v2535 = vld [vmem:[%s2412 + $0x3d0] sm:$0xff]
    %v2536 = vld [vmem:[%s2412 + $0x3d8] sm:$0xff]
    %v2537 = vld [vmem:[%s2412 + $0x3e0] sm:$0xff]
    %v2538 = vld [vmem:[%s2412 + $0x3e8] sm:$0xff]
    %v2539 = vld [vmem:[%s2412 + $0x3f0] sm:$0xff]
    %v2540 = vld [vmem:[%s2412 + $0x3f8] sm:$0xff]
    %2541 = vmatprep.subr.mxu0 0.0
    %2542 = vmatpush1.msra.mxu0 %v2413
    %2543 = vmatprep.subr.mxu0 0.0
    %2544 = vmatpush1.msra.mxu0 %v2414
    %2545 = vmatprep.subr.mxu0 0.0
    %2546 = vmatpush1.msra.mxu0 %v2415
    %2547 = vmatprep.subr.mxu0 0.0
    %2548 = vmatpush1.msra.mxu0 %v2416
    %2549 = vmatprep.subr.mxu0 0.0
    %2550 = vmatpush1.msra.mxu0 %v2417
    %2551 = vmatprep.subr.mxu0 0.0
    %2552 = vmatpush1.msra.mxu0 %v2418
    %2553 = vmatprep.subr.mxu0 0.0
    %2554 = vmatpush1.msra.mxu0 %v2419
    %2555 = vmatprep.subr.mxu0 0.0
    %2556 = vmatpush1.msra.mxu0 %v2420
    %2557 = vmatprep.subr.mxu0 0.0
    %2558 = vmatpush1.msra.mxu0 %v2421
    %2559 = vmatprep.subr.mxu0 0.0
    %2560 = vmatpush1.msra.mxu0 %v2422
    %2561 = vmatprep.subr.mxu0 0.0
    %2562 = vmatpush1.msra.mxu0 %v2423
    %2563 = vmatprep.subr.mxu0 0.0
    %2564 = vmatpush1.msra.mxu0 %v2424
    %2565 = vmatprep.subr.mxu0 0.0
    %2566 = vmatpush1.msra.mxu0 %v2425
    %2567 = vmatprep.subr.mxu0 0.0
    %2568 = vmatpush1.msra.mxu0 %v2426
    %2569 = vmatprep.subr.mxu0 0.0
    %2570 = vmatpush1.msra.mxu0 %v2427
    %2571 = vmatprep.subr.mxu0 0.0
    %2572 = vmatpush1.msra.mxu0 %v2428
    %2573 = vmatprep.subr.mxu0 0.0
    %2574 = vmatpush1.msra.mxu0 %v2429
    %2575 = vmatprep.subr.mxu0 0.0
    %2576 = vmatpush1.msra.mxu0 %v2430
    %2577 = vmatprep.subr.mxu0 0.0
    %2578 = vmatpush1.msra.mxu0 %v2431
    %2579 = vmatprep.subr.mxu0 0.0
    %2580 = vmatpush1.msra.mxu0 %v2432
    %2581 = vmatprep.subr.mxu0 0.0
    %2582 = vmatpush1.msra.mxu0 %v2433
    %2583 = vmatprep.subr.mxu0 0.0
    %2584 = vmatpush1.msra.mxu0 %v2434
    %2585 = vmatprep.subr.mxu0 0.0
    %2586 = vmatpush1.msra.mxu0 %v2435
    %2587 = vmatprep.subr.mxu0 0.0
    %2588 = vmatpush1.msra.mxu0 %v2436
    %2589 = vmatprep.subr.mxu0 0.0
    %2590 = vmatpush1.msra.mxu0 %v2437
    %2591 = vmatprep.subr.mxu0 0.0
    %2592 = vmatpush1.msra.mxu0 %v2438
    %2593 = vmatprep.subr.mxu0 0.0
    %2594 = vmatpush1.msra.mxu0 %v2439
    %2595 = vmatprep.subr.mxu0 0.0
    %2596 = vmatpush1.msra.mxu0 %v2440
    %2597 = vmatprep.subr.mxu0 0.0
    %2598 = vmatpush1.msra.mxu0 %v2441
    %2599 = vmatprep.subr.mxu0 0.0
    %2600 = vmatpush1.msra.mxu0 %v2442
    %2601 = vmatprep.subr.mxu0 0.0
    %2602 = vmatpush1.msra.mxu0 %v2443
    %2603 = vmatprep.subr.mxu0 0.0
    %2604 = vmatpush1.msra.mxu0 %v2444
    %2605 = vmatprep.mubr.f32.mxu0 %v159
    %2606 = vmatmul.mubr.f32.gmra.mrb[0].mxu0 %v158
    %v2607 = vpop.f32.mrb[0].mxu0
    %v2608 = vadd.f32 0.0, %v2607
    %v2609 = vpop.f32.mrb[0].mxu0
    %2610 = vmatprep.mubr.f32.mxu0 %v167
    %2611 = vmatmul.mubr.f32.gmra.mrb[0].mxu0 %v166
    %v2612 = vpop.f32.mrb[0].mxu0
    %v2613 = vadd.f32 0.0, %v2612
    %v2614 = vpop.f32.mrb[0].mxu0
    %2615 = vmatprep.mubr.f32.mxu0 %v175
    %2616 = vmatmul.mubr.f32.gmra.mrb[0].mxu0 %v174
    %v2617 = vpop.f32.mrb[0].mxu0
    %v2618 = vadd.f32 0.0, %v2617
    %v2619 = vpop.f32.mrb[0].mxu0
    %2620 = vmatprep.mubr.f32.mxu0 %v183
    %2621 = vmatmul.mubr.f32.gmra.mrb[0].mxu0 %v182
    %v2622 = vpop.f32.mrb[0].mxu0
    %v2623 = vadd.f32 0.0, %v2622
    %v2624 = vpop.f32.mrb[0].mxu0
    %2625 = vmatprep.mubr.f32.mxu0 %v191
    %2626 = vmatmul.mubr.f32.gmra.mrb[0].mxu0 %v190
    %v2627 = vpop.f32.mrb[0].mxu0
    %v2628 = vadd.f32 0.0, %v2627
    %v2629 = vpop.f32.mrb[0].mxu0
    %2630 = vmatprep.mubr.f32.mxu0 %v199
    %2631 = vmatmul.mubr.f32.gmra.mrb[0].mxu0 %v198
    %v2632 = vpop.f32.mrb[0].mxu0
    %v2633 = vadd.f32 0.0, %v2632
    %v2634 = vpop.f32.mrb[0].mxu0
    %2635 = vmatprep.mubr.f32.mxu0 %v207
    %2636 = vmatmul.mubr.f32.gmra.mrb[0].mxu0 %v206
    %v2637 = vpop.f32.mrb[0].mxu0
    %v2638 = vadd.f32 0.0, %v2637
    %v2639 = vpop.f32.mrb[0].mxu0
    %2640 = vmatprep.mubr.f32.mxu0 %v215
    %2641 = vmatmul.mubr.f32.gmra.mrb[0].mxu0 %v214
    %v2642 = vpop.f32.mrb[0].mxu0
    %v2643 = vadd.f32 0.0, %v2642
    %v2644 = vpop.f32.mrb[0].mxu0
    %2645 = vmatprep.mubr.f32.mxu0 %v223
    %2646 = vmatmul.mubr.f32.gmra.mrb[0].mxu0 %v222
    %v2647 = vpop.f32.mrb[0].mxu0
    %v2648 = vadd.f32 0.0, %v2647
    %v2649 = vpop.f32.mrb[0].mxu0
    %2650 = vmatprep.mubr.f32.mxu0 %v231
    %2651 = vmatmul.mubr.f32.gmra.mrb[0].mxu0 %v230
    %v2652 = vpop.f32.mrb[0].mxu0
    %v2653 = vadd.f32 0.0, %v2652
    %v2654 = vpop.f32.mrb[0].mxu0
    %2655 = vmatprep.mubr.f32.mxu0 %v239
    %2656 = vmatmul.mubr.f32.gmra.mrb[0].mxu0 %v238
    %v2657 = vpop.f32.mrb[0].mxu0
    %v2658 = vadd.f32 0.0, %v2657
    %v2659 = vpop.f32.mrb[0].mxu0
    %2660 = vmatprep.mubr.f32.mxu0 %v247
    %2661 = vmatmul.mubr.f32.gmra.mrb[0].mxu0 %v246
    %v2662 = vpop.f32.mrb[0].mxu0
    %v2663 = vadd.f32 0.0, %v2662
    %v2664 = vpop.f32.mrb[0].mxu0
    %2665 = vmatprep.mubr.f32.mxu0 %v255
    %2666 = vmatmul.mubr.f32.gmra.mrb[0].mxu0 %v254
    %v2667 = vpop.f32.mrb[0].mxu0
    %v2668 = vadd.f32 0.0, %v2667
    %v2669 = vpop.f32.mrb[0].mxu0
    %2670 = vmatprep.mubr.f32.mxu0 %v263
    %2671 = vmatmul.mubr.f32.gmra.mrb[0].mxu0 %v262
    %v2672 = vpop.f32.mrb[0].mxu0
    %v2673 = vadd.f32 0.0, %v2672
    %v2674 = vpop.f32.mrb[0].mxu0
    %2675 = vmatprep.mubr.f32.mxu0 %v271
    %2676 = vmatmul.mubr.f32.gmra.mrb[0].mxu0 %v270
    %v2677 = vpop.f32.mrb[0].mxu0
    %v2678 = vadd.f32 0.0, %v2677
    %v2679 = vpop.f32.mrb[0].mxu0
    %2680 = vmatprep.mubr.f32.mxu0 %v279
    %2681 = vmatmul.mubr.f32.gmra.mrb[0].mxu0 %v278
    %v2682 = vpop.f32.mrb[0].mxu0
    %v2683 = vadd.f32 0.0, %v2682
    %v2684 = vpop.f32.mrb[0].mxu0
    %2685 = vdwg.mxu0
    %2686 = vmatprep.subr.mxu0 0.0
    %2687 = vmatpush1.msra.mxu0 %v2445
    %2688 = vmatprep.subr.mxu0 0.0
    %2689 = vmatpush1.msra.mxu0 %v2446
    %2690 = vmatprep.subr.mxu0 0.0
    %2691 = vmatpush1.msra.mxu0 %v2447
    %2692 = vmatprep.subr.mxu0 0.0
    %2693 = vmatpush1.msra.mxu0 %v2448
    %2694 = vmatprep.subr.mxu0 0.0
    %2695 = vmatpush1.msra.mxu0 %v2449
    %2696 = vmatprep.subr.mxu0 0.0
    %2697 = vmatpush1.msra.mxu0 %v2450
    %2698 = vmatprep.subr.mxu0 0.0
    %2699 = vmatpush1.msra.mxu0 %v2451
    %2700 = vmatprep.subr.mxu0 0.0
    %2701 = vmatpush1.msra.mxu0 %v2452
    %2702 = vmatprep.subr.mxu0 0.0
    %2703 = vmatpush1.msra.mxu0 %v2453
    %2704 = vmatprep.subr.mxu0 0.0
    %2705 = vmatpush1.msra.mxu0 %v2454
    %2706 = vmatprep.subr.mxu0 0.0
    %2707 = vmatpush1.msra.mxu0 %v2455
    %2708 = vmatprep.subr.mxu0 0.0
    %2709 = vmatpush1.msra.mxu0 %v2456
    %2710 = vmatprep.subr.mxu0 0.0
    %2711 = vmatpush1.msra.mxu0 %v2457
    %2712 = vmatprep.subr.mxu0 0.0
    %2713 = vmatpush1.msra.mxu0 %v2458
    %2714 = vmatprep.subr.mxu0 0.0
    %2715 = vmatpush1.msra.mxu0 %v2459
    %2716 = vmatprep.subr.mxu0 0.0
    %2717 = vmatpush1.msra.mxu0 %v2460
    %2718 = vmatprep.subr.mxu0 0.0
    %2719 = vmatpush1.msra.mxu0 %v2461
    %2720 = vmatprep.subr.mxu0 0.0
    %2721 = vmatpush1.msra.mxu0 %v2462
    %2722 = vmatprep.subr.mxu0 0.0
    %2723 = vmatpush1.msra.mxu0 %v2463
    %2724 = vmatprep.subr.mxu0 0.0
    %2725 = vmatpush1.msra.mxu0 %v2464
    %2726 = vmatprep.subr.mxu0 0.0
    %2727 = vmatpush1.msra.mxu0 %v2465
    %2728 = vmatprep.subr.mxu0 0.0
    %2729 = vmatpush1.msra.mxu0 %v2466
    %2730 = vmatprep.subr.mxu0 0.0
    %2731 = vmatpush1.msra.mxu0 %v2467
    %2732 = vmatprep.subr.mxu0 0.0
    %2733 = vmatpush1.msra.mxu0 %v2468
    %2734 = vmatprep.subr.mxu0 0.0
    %2735 = vmatpush1.msra.mxu0 %v2469
    %2736 = vmatprep.subr.mxu0 0.0
    %2737 = vmatpush1.msra.mxu0 %v2470
    %2738 = vmatprep.subr.mxu0 0.0
    %2739 = vmatpush1.msra.mxu0 %v2471
    %2740 = vmatprep.subr.mxu0 0.0
    %2741 = vmatpush1.msra.mxu0 %v2472
    %2742 = vmatprep.subr.mxu0 0.0
    %2743 = vmatpush1.msra.mxu0 %v2473
    %2744 = vmatprep.subr.mxu0 0.0
    %2745 = vmatpush1.msra.mxu0 %v2474
    %2746 = vmatprep.subr.mxu0 0.0
    %2747 = vmatpush1.msra.mxu0 %v2475
    %2748 = vmatprep.subr.mxu0 0.0
    %2749 = vmatpush1.msra.mxu0 %v2476
    %2750 = vmatprep.mubr.f32.mxu0 %v161
    %2751 = vmatmul.mubr.f32.gmra.mrb[0].mxu0 %v160
    %v2752 = vpop.f32.mrb[0].mxu0
    %v2753 = vadd.f32 %v2608, %v2752
    %v2754 = vpop.f32.mrb[0].mxu0
    %2755 = vmatprep.mubr.f32.mxu0 %v169
    %2756 = vmatmul.mubr.f32.gmra.mrb[0].mxu0 %v168
    %v2757 = vpop.f32.mrb[0].mxu0
    %v2758 = vadd.f32 %v2613, %v2757
    %v2759 = vpop.f32.mrb[0].mxu0
    %2760 = vmatprep.mubr.f32.mxu0 %v177
    %2761 = vmatmul.mubr.f32.gmra.mrb[0].mxu0 %v176
    %v2762 = vpop.f32.mrb[0].mxu0
    %v2763 = vadd.f32 %v2618, %v2762
    %v2764 = vpop.f32.mrb[0].mxu0
    %2765 = vmatprep.mubr.f32.mxu0 %v185
    %2766 = vmatmul.mubr.f32.gmra.mrb[0].mxu0 %v184
    %v2767 = vpop.f32.mrb[0].mxu0
    %v2768 = vadd.f32 %v2623, %v2767
    %v2769 = vpop.f32.mrb[0].mxu0
    %2770 = vmatprep.mubr.f32.mxu0 %v193
    %2771 = vmatmul.mubr.f32.gmra.mrb[0].mxu0 %v192
    %v2772 = vpop.f32.mrb[0].mxu0
    %v2773 = vadd.f32 %v2628, %v2772
    %v2774 = vpop.f32.mrb[0].mxu0
    %2775 = vmatprep.mubr.f32.mxu0 %v201
    %2776 = vmatmul.mubr.f32.gmra.mrb[0].mxu0 %v200
    %v2777 = vpop.f32.mrb[0].mxu0
    %v2778 = vadd.f32 %v2633, %v2777
    %v2779 = vpop.f32.mrb[0].mxu0
    %2780 = vmatprep.mubr.f32.mxu0 %v209
    %2781 = vmatmul.mubr.f32.gmra.mrb[0].mxu0 %v208
    %v2782 = vpop.f32.mrb[0].mxu0
    %v2783 = vadd.f32 %v2638, %v2782
    %v2784 = vpop.f32.mrb[0].mxu0
    %2785 = vmatprep.mubr.f32.mxu0 %v217
    %2786 = vmatmul.mubr.f32.gmra.mrb[0].mxu0 %v216
    %v2787 = vpop.f32.mrb[0].mxu0
    %v2788 = vadd.f32 %v2643, %v2787
    %v2789 = vpop.f32.mrb[0].mxu0
    %2790 = vmatprep.mubr.f32.mxu0 %v225
    %2791 = vmatmul.mubr.f32.gmra.mrb[0].mxu0 %v224
    %v2792 = vpop.f32.mrb[0].mxu0
    %v2793 = vadd.f32 %v2648, %v2792
    %v2794 = vpop.f32.mrb[0].mxu0
    %2795 = vmatprep.mubr.f32.mxu0 %v233
    %2796 = vmatmul.mubr.f32.gmra.mrb[0].mxu0 %v232
    %v2797 = vpop.f32.mrb[0].mxu0
    %v2798 = vadd.f32 %v2653, %v2797
    %v2799 = vpop.f32.mrb[0].mxu0
    %2800 = vmatprep.mubr.f32.mxu0 %v241
    %2801 = vmatmul.mubr.f32.gmra.mrb[0].mxu0 %v240
    %v2802 = vpop.f32.mrb[0].mxu0
    %v2803 = vadd.f32 %v2658, %v2802
    %v2804 = vpop.f32.mrb[0].mxu0
    %2805 = vmatprep.mubr.f32.mxu0 %v249
    %2806 = vmatmul.mubr.f32.gmra.mrb[0].mxu0 %v248
    %v2807 = vpop.f32.mrb[0].mxu0
    %v2808 = vadd.f32 %v2663, %v2807
    %v2809 = vpop.f32.mrb[0].mxu0
    %2810 = vmatprep.mubr.f32.mxu0 %v257
    %2811 = vmatmul.mubr.f32.gmra.mrb[0].mxu0 %v256
    %v2812 = vpop.f32.mrb[0].mxu0
    %v2813 = vadd.f32 %v2668, %v2812
    %v2814 = vpop.f32.mrb[0].mxu0
    %2815 = vmatprep.mubr.f32.mxu0 %v265
    %2816 = vmatmul.mubr.f32.gmra.mrb[0].mxu0 %v264
    %v2817 = vpop.f32.mrb[0].mxu0
    %v2818 = vadd.f32 %v2673, %v2817
    %v2819 = vpop.f32.mrb[0].mxu0
    %2820 = vmatprep.mubr.f32.mxu0 %v273
    %2821 = vmatmul.mubr.f32.gmra.mrb[0].mxu0 %v272
    %v2822 = vpop.f32.mrb[0].mxu0
    %v2823 = vadd.f32 %v2678, %v2822
    %v2824 = vpop.f32.mrb[0].mxu0
    %2825 = vmatprep.mubr.f32.mxu0 %v281
    %2826 = vmatmul.mubr.f32.gmra.mrb[0].mxu0 %v280
    %v2827 = vpop.f32.mrb[0].mxu0
    %v2828 = vadd.f32 %v2683, %v2827
    %v2829 = vpop.f32.mrb[0].mxu0
    %2830 = vdwg.mxu0
    %2831 = vmatprep.subr.mxu0 0.0
    %2832 = vmatpush1.msra.mxu0 %v2477
    %2833 = vmatprep.subr.mxu0 0.0
    %2834 = vmatpush1.msra.mxu0 %v2478
    %2835 = vmatprep.subr.mxu0 0.0
    %2836 = vmatpush1.msra.mxu0 %v2479
    %2837 = vmatprep.subr.mxu0 0.0
    %2838 = vmatpush1.msra.mxu0 %v2480
    %2839 = vmatprep.subr.mxu0 0.0
    %2840 = vmatpush1.msra.mxu0 %v2481
    %2841 = vmatprep.subr.mxu0 0.0
    %2842 = vmatpush1.msra.mxu0 %v2482
    %2843 = vmatprep.subr.mxu0 0.0
    %2844 = vmatpush1.msra.mxu0 %v2483
    %2845 = vmatprep.subr.mxu0 0.0
    %2846 = vmatpush1.msra.mxu0 %v2484
    %2847 = vmatprep.subr.mxu0 0.0
    %2848 = vmatpush1.msra.mxu0 %v2485
    %2849 = vmatprep.subr.mxu0 0.0
    %2850 = vmatpush1.msra.mxu0 %v2486
    %2851 = vmatprep.subr.mxu0 0.0
    %2852 = vmatpush1.msra.mxu0 %v2487
    %2853 = vmatprep.subr.mxu0 0.0
    %2854 = vmatpush1.msra.mxu0 %v2488
    %2855 = vmatprep.subr.mxu0 0.0
    %2856 = vmatpush1.msra.mxu0 %v2489
    %2857 = vmatprep.subr.mxu0 0.0
    %2858 = vmatpush1.msra.mxu0 %v2490
    %2859 = vmatprep.subr.mxu0 0.0
    %2860 = vmatpush1.msra.mxu0 %v2491
    %2861 = vmatprep.subr.mxu0 0.0
    %2862 = vmatpush1.msra.mxu0 %v2492
    %2863 = vmatprep.subr.mxu0 0.0
    %2864 = vmatpush1.msra.mxu0 %v2493
    %2865 = vmatprep.subr.mxu0 0.0
    %2866 = vmatpush1.msra.mxu0 %v2494
    %2867 = vmatprep.subr.mxu0 0.0
    %2868 = vmatpush1.msra.mxu0 %v2495
    %2869 = vmatprep.subr.mxu0 0.0
    %2870 = vmatpush1.msra.mxu0 %v2496
    %2871 = vmatprep.subr.mxu0 0.0
    %2872 = vmatpush1.msra.mxu0 %v2497
    %2873 = vmatprep.subr.mxu0 0.0
    %2874 = vmatpush1.msra.mxu0 %v2498
    %2875 = vmatprep.subr.mxu0 0.0
    %2876 = vmatpush1.msra.mxu0 %v2499
    %2877 = vmatprep.subr.mxu0 0.0
    %2878 = vmatpush1.msra.mxu0 %v2500
    %2879 = vmatprep.subr.mxu0 0.0
    %2880 = vmatpush1.msra.mxu0 %v2501
    %2881 = vmatprep.subr.mxu0 0.0
    %2882 = vmatpush1.msra.mxu0 %v2502
    %2883 = vmatprep.subr.mxu0 0.0
    %2884 = vmatpush1.msra.mxu0 %v2503
    %2885 = vmatprep.subr.mxu0 0.0
    %2886 = vmatpush1.msra.mxu0 %v2504
    %2887 = vmatprep.subr.mxu0 0.0
    %2888 = vmatpush1.msra.mxu0 %v2505
    %2889 = vmatprep.subr.mxu0 0.0
    %2890 = vmatpush1.msra.mxu0 %v2506
    %2891 = vmatprep.subr.mxu0 0.0
    %2892 = vmatpush1.msra.mxu0 %v2507
    %2893 = vmatprep.subr.mxu0 0.0
    %2894 = vmatpush1.msra.mxu0 %v2508
    %2895 = vmatprep.mubr.f32.mxu0 %v163
    %2896 = vmatmul.mubr.f32.gmra.mrb[0].mxu0 %v162
    %v2897 = vpop.f32.mrb[0].mxu0
    %v2898 = vadd.f32 %v2753, %v2897
    %v2899 = vpop.f32.mrb[0].mxu0
    %2900 = vmatprep.mubr.f32.mxu0 %v171
    %2901 = vmatmul.mubr.f32.gmra.mrb[0].mxu0 %v170
    %v2902 = vpop.f32.mrb[0].mxu0
    %v2903 = vadd.f32 %v2758, %v2902
    %v2904 = vpop.f32.mrb[0].mxu0
    %2905 = vmatprep.mubr.f32.mxu0 %v179
    %2906 = vmatmul.mubr.f32.gmra.mrb[0].mxu0 %v178
    %v2907 = vpop.f32.mrb[0].mxu0
    %v2908 = vadd.f32 %v2763, %v2907
    %v2909 = vpop.f32.mrb[0].mxu0
    %2910 = vmatprep.mubr.f32.mxu0 %v187
    %2911 = vmatmul.mubr.f32.gmra.mrb[0].mxu0 %v186
    %v2912 = vpop.f32.mrb[0].mxu0
    %v2913 = vadd.f32 %v2768, %v2912
    %v2914 = vpop.f32.mrb[0].mxu0
    %2915 = vmatprep.mubr.f32.mxu0 %v195
    %2916 = vmatmul.mubr.f32.gmra.mrb[0].mxu0 %v194
    %v2917 = vpop.f32.mrb[0].mxu0
    %v2918 = vadd.f32 %v2773, %v2917
    %v2919 = vpop.f32.mrb[0].mxu0
    %2920 = vmatprep.mubr.f32.mxu0 %v203
    %2921 = vmatmul.mubr.f32.gmra.mrb[0].mxu0 %v202
    %v2922 = vpop.f32.mrb[0].mxu0
    %v2923 = vadd.f32 %v2778, %v2922
    %v2924 = vpop.f32.mrb[0].mxu0
    %2925 = vmatprep.mubr.f32.mxu0 %v211
    %2926 = vmatmul.mubr.f32.gmra.mrb[0].mxu0 %v210
    %v2927 = vpop.f32.mrb[0].mxu0
    %v2928 = vadd.f32 %v2783, %v2927
    %v2929 = vpop.f32.mrb[0].mxu0
    %2930 = vmatprep.mubr.f32.mxu0 %v219
    %2931 = vmatmul.mubr.f32.gmra.mrb[0].mxu0 %v218
    %v2932 = vpop.f32.mrb[0].mxu0
    %v2933 = vadd.f32 %v2788, %v2932
    %v2934 = vpop.f32.mrb[0].mxu0
    %2935 = vmatprep.mubr.f32.mxu0 %v227
    %2936 = vmatmul.mubr.f32.gmra.mrb[0].mxu0 %v226
    %v2937 = vpop.f32.mrb[0].mxu0
    %v2938 = vadd.f32 %v2793, %v2937
    %v2939 = vpop.f32.mrb[0].mxu0
    %2940 = vmatprep.mubr.f32.mxu0 %v235
    %2941 = vmatmul.mubr.f32.gmra.mrb[0].mxu0 %v234
    %v2942 = vpop.f32.mrb[0].mxu0
    %v2943 = vadd.f32 %v2798, %v2942
    %v2944 = vpop.f32.mrb[0].mxu0
    %2945 = vmatprep.mubr.f32.mxu0 %v243
    %2946 = vmatmul.mubr.f32.gmra.mrb[0].mxu0 %v242
    %v2947 = vpop.f32.mrb[0].mxu0
    %v2948 = vadd.f32 %v2803, %v2947
    %v2949 = vpop.f32.mrb[0].mxu0
    %2950 = vmatprep.mubr.f32.mxu0 %v251
    %2951 = vmatmul.mubr.f32.gmra.mrb[0].mxu0 %v250
    %v2952 = vpop.f32.mrb[0].mxu0
    %v2953 = vadd.f32 %v2808, %v2952
    %v2954 = vpop.f32.mrb[0].mxu0
    %2955 = vmatprep.mubr.f32.mxu0 %v259
    %2956 = vmatmul.mubr.f32.gmra.mrb[0].mxu0 %v258
    %v2957 = vpop.f32.mrb[0].mxu0
    %v2958 = vadd.f32 %v2813, %v2957
    %v2959 = vpop.f32.mrb[0].mxu0
    %2960 = vmatprep.mubr.f32.mxu0 %v267
    %2961 = vmatmul.mubr.f32.gmra.mrb[0].mxu0 %v266
    %v2962 = vpop.f32.mrb[0].mxu0
    %v2963 = vadd.f32 %v2818, %v2962
    %v2964 = vpop.f32.mrb[0].mxu0
    %2965 = vmatprep.mubr.f32.mxu0 %v275
    %2966 = vmatmul.mubr.f32.gmra.mrb[0].mxu0 %v274
    %v2967 = vpop.f32.mrb[0].mxu0
    %v2968 = vadd.f32 %v2823, %v2967
    %v2969 = vpop.f32.mrb[0].mxu0
    %2970 = vmatprep.mubr.f32.mxu0 %v283
    %2971 = vmatmul.mubr.f32.gmra.mrb[0].mxu0 %v282
    %v2972 = vpop.f32.mrb[0].mxu0
    %v2973 = vadd.f32 %v2828, %v2972
    %v2974 = vpop.f32.mrb[0].mxu0
    %2975 = vdwg.mxu0
    %2976 = vmatprep.subr.mxu0 0.0
    %2977 = vmatpush1.msra.mxu0 %v2509
    %2978 = vmatprep.subr.mxu0 0.0
    %2979 = vmatpush1.msra.mxu0 %v2510
    %2980 = vmatprep.subr.mxu0 0.0
    %2981 = vmatpush1.msra.mxu0 %v2511
    %2982 = vmatprep.subr.mxu0 0.0
    %2983 = vmatpush1.msra.mxu0 %v2512
    %2984 = vmatprep.subr.mxu0 0.0
    %2985 = vmatpush1.msra.mxu0 %v2513
    %2986 = vmatprep.subr.mxu0 0.0
    %2987 = vmatpush1.msra.mxu0 %v2514
    %2988 = vmatprep.subr.mxu0 0.0
    %2989 = vmatpush1.msra.mxu0 %v2515
    %2990 = vmatprep.subr.mxu0 0.0
    %2991 = vmatpush1.msra.mxu0 %v2516
    %2992 = vmatprep.subr.mxu0 0.0
    %2993 = vmatpush1.msra.mxu0 %v2517
    %2994 = vmatprep.subr.mxu0 0.0
    %2995 = vmatpush1.msra.mxu0 %v2518
    %2996 = vmatprep.subr.mxu0 0.0
    %2997 = vmatpush1.msra.mxu0 %v2519
    %2998 = vmatprep.subr.mxu0 0.0
    %2999 = vmatpush1.msra.mxu0 %v2520
    %3000 = vmatprep.subr.mxu0 0.0
    %3001 = vmatpush1.msra.mxu0 %v2521
    %3002 = vmatprep.subr.mxu0 0.0
    %3003 = vmatpush1.msra.mxu0 %v2522
    %3004 = vmatprep.subr.mxu0 0.0
    %3005 = vmatpush1.msra.mxu0 %v2523
    %3006 = vmatprep.subr.mxu0 0.0
    %3007 = vmatpush1.msra.mxu0 %v2524
    %3008 = vmatprep.subr.mxu0 0.0
    %3009 = vmatpush1.msra.mxu0 %v2525
    %3010 = vmatprep.subr.mxu0 0.0
    %3011 = vmatpush1.msra.mxu0 %v2526
    %3012 = vmatprep.subr.mxu0 0.0
    %3013 = vmatpush1.msra.mxu0 %v2527
    %3014 = vmatprep.subr.mxu0 0.0
    %3015 = vmatpush1.msra.mxu0 %v2528
    %3016 = vmatprep.subr.mxu0 0.0
    %3017 = vmatpush1.msra.mxu0 %v2529
    %3018 = vmatprep.subr.mxu0 0.0
    %3019 = vmatpush1.msra.mxu0 %v2530
    %3020 = vmatprep.subr.mxu0 0.0
    %3021 = vmatpush1.msra.mxu0 %v2531
    %3022 = vmatprep.subr.mxu0 0.0
    %3023 = vmatpush1.msra.mxu0 %v2532
    %3024 = vmatprep.subr.mxu0 0.0
    %3025 = vmatpush1.msra.mxu0 %v2533
    %3026 = vmatprep.subr.mxu0 0.0
    %3027 = vmatpush1.msra.mxu0 %v2534
    %3028 = vmatprep.subr.mxu0 0.0
    %3029 = vmatpush1.msra.mxu0 %v2535
    %3030 = vmatprep.subr.mxu0 0.0
    %3031 = vmatpush1.msra.mxu0 %v2536
    %3032 = vmatprep.subr.mxu0 0.0
    %3033 = vmatpush1.msra.mxu0 %v2537
    %3034 = vmatprep.subr.mxu0 0.0
    %3035 = vmatpush1.msra.mxu0 %v2538
    %3036 = vmatprep.subr.mxu0 0.0
    %3037 = vmatpush1.msra.mxu0 %v2539
    %3038 = vmatprep.subr.mxu0 0.0
    %3039 = vmatpush1.msra.mxu0 %v2540
    %3040 = vmatprep.mubr.f32.mxu0 %v165
    %3041 = vmatmul.mubr.f32.gmra.mrb[0].mxu0 %v164
    %v3042 = vpop.f32.mrb[0].mxu0
    %v3043 = vadd.f32 %v2898, %v3042
    %v3044 = vpop.f32.mrb[0].mxu0
    %3045 = vmatprep.mubr.f32.mxu0 %v173
    %3046 = vmatmul.mubr.f32.gmra.mrb[0].mxu0 %v172
    %v3047 = vpop.f32.mrb[0].mxu0
    %v3048 = vadd.f32 %v2903, %v3047
    %v3049 = vpop.f32.mrb[0].mxu0
    %3050 = vmatprep.mubr.f32.mxu0 %v181
    %3051 = vmatmul.mubr.f32.gmra.mrb[0].mxu0 %v180
    %v3052 = vpop.f32.mrb[0].mxu0
    %v3053 = vadd.f32 %v2908, %v3052
    %v3054 = vpop.f32.mrb[0].mxu0
    %3055 = vmatprep.mubr.f32.mxu0 %v189
    %3056 = vmatmul.mubr.f32.gmra.mrb[0].mxu0 %v188
    %v3057 = vpop.f32.mrb[0].mxu0
    %v3058 = vadd.f32 %v2913, %v3057
    %v3059 = vpop.f32.mrb[0].mxu0
    %3060 = vmatprep.mubr.f32.mxu0 %v197
    %3061 = vmatmul.mubr.f32.gmra.mrb[0].mxu0 %v196
    %v3062 = vpop.f32.mrb[0].mxu0
    %v3063 = vadd.f32 %v2918, %v3062
    %v3064 = vpop.f32.mrb[0].mxu0
    %3065 = vmatprep.mubr.f32.mxu0 %v205
    %3066 = vmatmul.mubr.f32.gmra.mrb[0].mxu0 %v204
    %v3067 = vpop.f32.mrb[0].mxu0
    %v3068 = vadd.f32 %v2923, %v3067
    %v3069 = vpop.f32.mrb[0].mxu0
    %3070 = vmatprep.mubr.f32.mxu0 %v213
    %3071 = vmatmul.mubr.f32.gmra.mrb[0].mxu0 %v212
    %v3072 = vpop.f32.mrb[0].mxu0
    %v3073 = vadd.f32 %v2928, %v3072
    %v3074 = vpop.f32.mrb[0].mxu0
    %3075 = vmatprep.mubr.f32.mxu0 %v221
    %3076 = vmatmul.mubr.f32.gmra.mrb[0].mxu0 %v220
    %v3077 = vpop.f32.mrb[0].mxu0
    %v3078 = vadd.f32 %v2933, %v3077
    %v3079 = vpop.f32.mrb[0].mxu0
    %3080 = vmatprep.mubr.f32.mxu0 %v229
    %3081 = vmatmul.mubr.f32.gmra.mrb[0].mxu0 %v228
    %v3082 = vpop.f32.mrb[0].mxu0
    %v3083 = vadd.f32 %v2938, %v3082
    %v3084 = vpop.f32.mrb[0].mxu0
    %3085 = vmatprep.mubr.f32.mxu0 %v237
    %3086 = vmatmul.mubr.f32.gmra.mrb[0].mxu0 %v236
    %v3087 = vpop.f32.mrb[0].mxu0
    %v3088 = vadd.f32 %v2943, %v3087
    %v3089 = vpop.f32.mrb[0].mxu0
    %3090 = vmatprep.mubr.f32.mxu0 %v245
    %3091 = vmatmul.mubr.f32.gmra.mrb[0].mxu0 %v244
    %v3092 = vpop.f32.mrb[0].mxu0
    %v3093 = vadd.f32 %v2948, %v3092
    %v3094 = vpop.f32.mrb[0].mxu0
    %3095 = vmatprep.mubr.f32.mxu0 %v253
    %3096 = vmatmul.mubr.f32.gmra.mrb[0].mxu0 %v252
    %v3097 = vpop.f32.mrb[0].mxu0
    %v3098 = vadd.f32 %v2953, %v3097
    %v3099 = vpop.f32.mrb[0].mxu0
    %3100 = vmatprep.mubr.f32.mxu0 %v261
    %3101 = vmatmul.mubr.f32.gmra.mrb[0].mxu0 %v260
    %v3102 = vpop.f32.mrb[0].mxu0
    %v3103 = vadd.f32 %v2958, %v3102
    %v3104 = vpop.f32.mrb[0].mxu0
    %3105 = vmatprep.mubr.f32.mxu0 %v269
    %3106 = vmatmul.mubr.f32.gmra.mrb[0].mxu0 %v268
    %v3107 = vpop.f32.mrb[0].mxu0
    %v3108 = vadd.f32 %v2963, %v3107
    %v3109 = vpop.f32.mrb[0].mxu0
    %3110 = vmatprep.mubr.f32.mxu0 %v277
    %3111 = vmatmul.mubr.f32.gmra.mrb[0].mxu0 %v276
    %v3112 = vpop.f32.mrb[0].mxu0
    %v3113 = vadd.f32 %v2968, %v3112
    %v3114 = vpop.f32.mrb[0].mxu0
    %3115 = vmatprep.mubr.f32.mxu0 %v285
    %3116 = vmatmul.mubr.f32.gmra.mrb[0].mxu0 %v284
    %v3117 = vpop.f32.mrb[0].mxu0
    %v3118 = vadd.f32 %v2973, %v3117
    %v3119 = vpop.f32.mrb[0].mxu0
    %3120 = vdwg.mxu0
    %vm3121 = vcmask 15360
    %v3122 = vsel %vm3121, %v916, 0.0
    %3123 = vadd.xlane.f32.xlu0 %v3122
    %v3124 = vpop.xlane.xlu0 %3123
    %v3125 = vsel %vm3121, %v921, 0.0
    %3126 = vadd.xlane.f32.xlu0 %v3125
    %v3127 = vpop.xlane.xlu0 %3126
    %v3128 = vsel %vm3121, %v926, 0.0
    %3129 = vadd.xlane.f32.xlu0 %v3128
    %v3130 = vpop.xlane.xlu0 %3129
    %v3131 = vsel %vm3121, %v931, 0.0
    %3132 = vadd.xlane.f32.xlu0 %v3131
    %v3133 = vpop.xlane.xlu0 %3132
    %v3134 = vsel %vm3121, %v936, 0.0
    %3135 = vadd.xlane.f32.xlu0 %v3134
    %v3136 = vpop.xlane.xlu0 %3135
    %v3137 = vsel %vm3121, %v941, 0.0
    %3138 = vadd.xlane.f32.xlu0 %v3137
    %v3139 = vpop.xlane.xlu0 %3138
    %v3140 = vsel %vm3121, %v946, 0.0
    %3141 = vadd.xlane.f32.xlu0 %v3140
    %v3142 = vpop.xlane.xlu0 %3141
    %v3143 = vsel %vm3121, %v951, 0.0
    %3144 = vadd.xlane.f32.xlu0 %v3143
    %v3145 = vpop.xlane.xlu0 %3144
    %v3146 = vsel %vm3121, %v956, 0.0
    %3147 = vadd.xlane.f32.xlu0 %v3146
    %v3148 = vpop.xlane.xlu0 %3147
    %v3149 = vsel %vm3121, %v961, 0.0
    %3150 = vadd.xlane.f32.xlu0 %v3149
    %v3151 = vpop.xlane.xlu0 %3150
    %v3152 = vsel %vm3121, %v966, 0.0
    %3153 = vadd.xlane.f32.xlu0 %v3152
    %v3154 = vpop.xlane.xlu0 %3153
    %v3155 = vsel %vm3121, %v971, 0.0
    %3156 = vadd.xlane.f32.xlu0 %v3155
    %v3157 = vpop.xlane.xlu0 %3156
    %v3158 = vsel %vm3121, %v976, 0.0
    %3159 = vadd.xlane.f32.xlu0 %v3158
    %v3160 = vpop.xlane.xlu0 %3159
    %v3161 = vsel %vm3121, %v981, 0.0
    %3162 = vadd.xlane.f32.xlu0 %v3161
    %v3163 = vpop.xlane.xlu0 %3162
    %v3164 = vsel %vm3121, %v986, 0.0
    %3165 = vadd.xlane.f32.xlu0 %v3164
    %v3166 = vpop.xlane.xlu0 %3165
    %v3167 = vsel %vm3121, %v991, 0.0
    %3168 = vadd.xlane.f32.xlu0 %v3167
    %v3169 = vpop.xlane.xlu0 %3168
    %v3170 = vadd.f32 %v3124, 0.0
    %v3171 = vadd.f32 %v3127, 0.0
    %v3172 = vadd.f32 %v3130, 0.0
    %v3173 = vadd.f32 %v3133, 0.0
    %v3174 = vadd.f32 %v3136, 0.0
    %v3175 = vadd.f32 %v3139, 0.0
    %v3176 = vadd.f32 %v3142, 0.0
    %v3177 = vadd.f32 %v3145, 0.0
    %v3178 = vadd.f32 %v3148, 0.0
    %v3179 = vadd.f32 %v3151, 0.0
    %v3180 = vadd.f32 %v3154, 0.0
    %v3181 = vadd.f32 %v3157, 0.0
    %v3182 = vadd.f32 %v3160, 0.0
    %v3183 = vadd.f32 %v3163, 0.0
    %v3184 = vadd.f32 %v3166, 0.0
    %v3185 = vadd.f32 %v3169, 0.0
    %v3186 = vsel %vm3121, %v1625, 0.0
    %3187 = vadd.xlane.f32.xlu0 %v3186
    %v3188 = vpop.xlane.xlu0 %3187
    %v3189 = vsel %vm3121, %v1630, 0.0
    %3190 = vadd.xlane.f32.xlu0 %v3189
    %v3191 = vpop.xlane.xlu0 %3190
    %v3192 = vsel %vm3121, %v1635, 0.0
    %3193 = vadd.xlane.f32.xlu0 %v3192
    %v3194 = vpop.xlane.xlu0 %3193
    %v3195 = vsel %vm3121, %v1640, 0.0
    %3196 = vadd.xlane.f32.xlu0 %v3195
    %v3197 = vpop.xlane.xlu0 %3196
    %v3198 = vsel %vm3121, %v1645, 0.0
    %3199 = vadd.xlane.f32.xlu0 %v3198
    %v3200 = vpop.xlane.xlu0 %3199
    %v3201 = vsel %vm3121, %v1650, 0.0
    %3202 = vadd.xlane.f32.xlu0 %v3201
    %v3203 = vpop.xlane.xlu0 %3202
    %v3204 = vsel %vm3121, %v1655, 0.0
    %3205 = vadd.xlane.f32.xlu0 %v3204
    %v3206 = vpop.xlane.xlu0 %3205
    %v3207 = vsel %vm3121, %v1660, 0.0
    %3208 = vadd.xlane.f32.xlu0 %v3207
    %v3209 = vpop.xlane.xlu0 %3208
    %v3210 = vsel %vm3121, %v1665, 0.0
    %3211 = vadd.xlane.f32.xlu0 %v3210
    %v3212 = vpop.xlane.xlu0 %3211
    %v3213 = vsel %vm3121, %v1670, 0.0
    %3214 = vadd.xlane.f32.xlu0 %v3213
    %v3215 = vpop.xlane.xlu0 %3214
    %v3216 = vsel %vm3121, %v1675, 0.0
    %3217 = vadd.xlane.f32.xlu0 %v3216
    %v3218 = vpop.xlane.xlu0 %3217
    %v3219 = vsel %vm3121, %v1680, 0.0
    %3220 = vadd.xlane.f32.xlu0 %v3219
    %v3221 = vpop.xlane.xlu0 %3220
    %v3222 = vsel %vm3121, %v1685, 0.0
    %3223 = vadd.xlane.f32.xlu0 %v3222
    %v3224 = vpop.xlane.xlu0 %3223
    %v3225 = vsel %vm3121, %v1690, 0.0
    %3226 = vadd.xlane.f32.xlu0 %v3225
    %v3227 = vpop.xlane.xlu0 %3226
    %v3228 = vsel %vm3121, %v1695, 0.0
    %3229 = vadd.xlane.f32.xlu0 %v3228
    %v3230 = vpop.xlane.xlu0 %3229
    %v3231 = vsel %vm3121, %v1700, 0.0
    %3232 = vadd.xlane.f32.xlu0 %v3231
    %v3233 = vpop.xlane.xlu0 %3232
    %v3234 = vadd.f32 %v3170, %v3188
    %v3235 = vadd.f32 %v3171, %v3191
    %v3236 = vadd.f32 %v3172, %v3194
    %v3237 = vadd.f32 %v3173, %v3197
    %v3238 = vadd.f32 %v3174, %v3200
    %v3239 = vadd.f32 %v3175, %v3203
    %v3240 = vadd.f32 %v3176, %v3206
    %v3241 = vadd.f32 %v3177, %v3209
    %v3242 = vadd.f32 %v3178, %v3212
    %v3243 = vadd.f32 %v3179, %v3215
    %v3244 = vadd.f32 %v3180, %v3218
    %v3245 = vadd.f32 %v3181, %v3221
    %v3246 = vadd.f32 %v3182, %v3224
    %v3247 = vadd.f32 %v3183, %v3227
    %v3248 = vadd.f32 %v3184, %v3230
    %v3249 = vadd.f32 %v3185, %v3233
    %v3250 = vsel %vm3121, %v2334, 0.0
    %3251 = vadd.xlane.f32.xlu0 %v3250
    %v3252 = vpop.xlane.xlu0 %3251
    %v3253 = vsel %vm3121, %v2339, 0.0
    %3254 = vadd.xlane.f32.xlu0 %v3253
    %v3255 = vpop.xlane.xlu0 %3254
    %v3256 = vsel %vm3121, %v2344, 0.0
    %3257 = vadd.xlane.f32.xlu0 %v3256
    %v3258 = vpop.xlane.xlu0 %3257
    %v3259 = vsel %vm3121, %v2349, 0.0
    %3260 = vadd.xlane.f32.xlu0 %v3259
    %v3261 = vpop.xlane.xlu0 %3260
    %v3262 = vsel %vm3121, %v2354, 0.0
    %3263 = vadd.xlane.f32.xlu0 %v3262
    %v3264 = vpop.xlane.xlu0 %3263
    %v3265 = vsel %vm3121, %v2359, 0.0
    %3266 = vadd.xlane.f32.xlu0 %v3265
    %v3267 = vpop.xlane.xlu0 %3266
    %v3268 = vsel %vm3121, %v2364, 0.0
    %3269 = vadd.xlane.f32.xlu0 %v3268
    %v3270 = vpop.xlane.xlu0 %3269
    %v3271 = vsel %vm3121, %v2369, 0.0
    %3272 = vadd.xlane.f32.xlu0 %v3271
    %v3273 = vpop.xlane.xlu0 %3272
    %v3274 = vsel %vm3121, %v2374, 0.0
    %3275 = vadd.xlane.f32.xlu0 %v3274
    %v3276 = vpop.xlane.xlu0 %3275
    %v3277 = vsel %vm3121, %v2379, 0.0
    %3278 = vadd.xlane.f32.xlu0 %v3277
    %v3279 = vpop.xlane.xlu0 %3278
    %v3280 = vsel %vm3121, %v2384, 0.0
    %3281 = vadd.xlane.f32.xlu0 %v3280
    %v3282 = vpop.xlane.xlu0 %3281
    %v3283 = vsel %vm3121, %v2389, 0.0
    %3284 = vadd.xlane.f32.xlu0 %v3283
    %v3285 = vpop.xlane.xlu0 %3284
    %v3286 = vsel %vm3121, %v2394, 0.0
    %3287 = vadd.xlane.f32.xlu0 %v3286
    %v3288 = vpop.xlane.xlu0 %3287
    %v3289 = vsel %vm3121, %v2399, 0.0
    %3290 = vadd.xlane.f32.xlu0 %v3289
    %v3291 = vpop.xlane.xlu0 %3290
    %v3292 = vsel %vm3121, %v2404, 0.0
    %3293 = vadd.xlane.f32.xlu0 %v3292
    %v3294 = vpop.xlane.xlu0 %3293
    %v3295 = vsel %vm3121, %v2409, 0.0
    %3296 = vadd.xlane.f32.xlu0 %v3295
    %v3297 = vpop.xlane.xlu0 %3296
    %v3298 = vadd.f32 %v3234, %v3252
    %v3299 = vadd.f32 %v3235, %v3255
    %v3300 = vadd.f32 %v3236, %v3258
    %v3301 = vadd.f32 %v3237, %v3261
    %v3302 = vadd.f32 %v3238, %v3264
    %v3303 = vadd.f32 %v3239, %v3267
    %v3304 = vadd.f32 %v3240, %v3270
    %v3305 = vadd.f32 %v3241, %v3273
    %v3306 = vadd.f32 %v3242, %v3276
    %v3307 = vadd.f32 %v3243, %v3279
    %v3308 = vadd.f32 %v3244, %v3282
    %v3309 = vadd.f32 %v3245, %v3285
    %v3310 = vadd.f32 %v3246, %v3288
    %v3311 = vadd.f32 %v3247, %v3291
    %v3312 = vadd.f32 %v3248, %v3294
    %v3313 = vadd.f32 %v3249, %v3297
    %v3314 = vsel %vm3121, %v3043, 0.0
    %3315 = vadd.xlane.f32.xlu0 %v3314
    %v3316 = vpop.xlane.xlu0 %3315
    %v3317 = vsel %vm3121, %v3048, 0.0
    %3318 = vadd.xlane.f32.xlu0 %v3317
    %v3319 = vpop.xlane.xlu0 %3318
    %v3320 = vsel %vm3121, %v3053, 0.0
    %3321 = vadd.xlane.f32.xlu0 %v3320
    %v3322 = vpop.xlane.xlu0 %3321
    %v3323 = vsel %vm3121, %v3058, 0.0
    %3324 = vadd.xlane.f32.xlu0 %v3323
    %v3325 = vpop.xlane.xlu0 %3324
    %v3326 = vsel %vm3121, %v3063, 0.0
    %3327 = vadd.xlane.f32.xlu0 %v3326
    %v3328 = vpop.xlane.xlu0 %3327
    %v3329 = vsel %vm3121, %v3068, 0.0
    %3330 = vadd.xlane.f32.xlu0 %v3329
    %v3331 = vpop.xlane.xlu0 %3330
    %v3332 = vsel %vm3121, %v3073, 0.0
    %3333 = vadd.xlane.f32.xlu0 %v3332
    %v3334 = vpop.xlane.xlu0 %3333
    %v3335 = vsel %vm3121, %v3078, 0.0
    %3336 = vadd.xlane.f32.xlu0 %v3335
    %v3337 = vpop.xlane.xlu0 %3336
    %v3338 = vsel %vm3121, %v3083, 0.0
    %3339 = vadd.xlane.f32.xlu0 %v3338
    %v3340 = vpop.xlane.xlu0 %3339
    %v3341 = vsel %vm3121, %v3088, 0.0
    %3342 = vadd.xlane.f32.xlu0 %v3341
    %v3343 = vpop.xlane.xlu0 %3342
    %v3344 = vsel %vm3121, %v3093, 0.0
    %3345 = vadd.xlane.f32.xlu0 %v3344
    %v3346 = vpop.xlane.xlu0 %3345
    %v3347 = vsel %vm3121, %v3098, 0.0
    %3348 = vadd.xlane.f32.xlu0 %v3347
    %v3349 = vpop.xlane.xlu0 %3348
    %v3350 = vsel %vm3121, %v3103, 0.0
    %3351 = vadd.xlane.f32.xlu0 %v3350
    %v3352 = vpop.xlane.xlu0 %3351
    %v3353 = vsel %vm3121, %v3108, 0.0
    %3354 = vadd.xlane.f32.xlu0 %v3353
    %v3355 = vpop.xlane.xlu0 %3354
    %v3356 = vsel %vm3121, %v3113, 0.0
    %3357 = vadd.xlane.f32.xlu0 %v3356
    %v3358 = vpop.xlane.xlu0 %3357
    %v3359 = vsel %vm3121, %v3118, 0.0
    %3360 = vadd.xlane.f32.xlu0 %v3359
    %v3361 = vpop.xlane.xlu0 %3360
    %v3362 = vadd.f32 %v3298, %v3316
    %v3363 = vadd.f32 %v3299, %v3319
    %v3364 = vadd.f32 %v3300, %v3322
    %v3365 = vadd.f32 %v3301, %v3325
    %v3366 = vadd.f32 %v3302, %v3328
    %v3367 = vadd.f32 %v3303, %v3331
    %v3368 = vadd.f32 %v3304, %v3334
    %v3369 = vadd.f32 %v3305, %v3337
    %v3370 = vadd.f32 %v3306, %v3340
    %v3371 = vadd.f32 %v3307, %v3343
    %v3372 = vadd.f32 %v3308, %v3346
    %v3373 = vadd.f32 %v3309, %v3349
    %v3374 = vadd.f32 %v3310, %v3352
    %v3375 = vadd.f32 %v3311, %v3355
    %v3376 = vadd.f32 %v3312, %v3358
    %v3377 = vadd.f32 %v3313, %v3361
    %v3378 = vrcp.pop 8.0
    %v3379 = vmul.f32 %v3362, %v3378
    %v3380 = vmul.f32 %v3363, %v3378
    %v3381 = vmul.f32 %v3364, %v3378
    %v3382 = vmul.f32 %v3365, %v3378
    %v3383 = vmul.f32 %v3366, %v3378
    %v3384 = vmul.f32 %v3367, %v3378
    %v3385 = vmul.f32 %v3368, %v3378
    %v3386 = vmul.f32 %v3369, %v3378
    %v3387 = vmul.f32 %v3370, %v3378
    %v3388 = vmul.f32 %v3371, %v3378
    %v3389 = vmul.f32 %v3372, %v3378
    %v3390 = vmul.f32 %v3373, %v3378
    %v3391 = vmul.f32 %v3374, %v3378
    %v3392 = vmul.f32 %v3375, %v3378
    %v3393 = vmul.f32 %v3376, %v3378
    %v3394 = vmul.f32 %v3377, %v3378
    %v3395 = vsub.f32 %v916, %v3379
    %v3396 = vsub.f32 %v921, %v3380
    %v3397 = vsub.f32 %v926, %v3381
    %v3398 = vsub.f32 %v931, %v3382
    %v3399 = vsub.f32 %v936, %v3383
    %v3400 = vsub.f32 %v941, %v3384
    %v3401 = vsub.f32 %v946, %v3385
    %v3402 = vsub.f32 %v951, %v3386
    %v3403 = vsub.f32 %v956, %v3387
    %v3404 = vsub.f32 %v961, %v3388
    %v3405 = vsub.f32 %v966, %v3389
    %v3406 = vsub.f32 %v971, %v3390
    %v3407 = vsub.f32 %v976, %v3391
    %v3408 = vsub.f32 %v981, %v3392
    %v3409 = vsub.f32 %v986, %v3393
    %v3410 = vsub.f32 %v991, %v3394
    %v3411 = vmul.f32 %v3395, %v3395
    %v3412 = vmul.f32 %v3396, %v3396
    %v3413 = vmul.f32 %v3397, %v3397
    %v3414 = vmul.f32 %v3398, %v3398
    %v3415 = vmul.f32 %v3399, %v3399
    %v3416 = vmul.f32 %v3400, %v3400
    %v3417 = vmul.f32 %v3401, %v3401
    %v3418 = vmul.f32 %v3402, %v3402
    %v3419 = vmul.f32 %v3403, %v3403
    %v3420 = vmul.f32 %v3404, %v3404
    %v3421 = vmul.f32 %v3405, %v3405
    %v3422 = vmul.f32 %v3406, %v3406
    %v3423 = vmul.f32 %v3407, %v3407
    %v3424 = vmul.f32 %v3408, %v3408
    %v3425 = vmul.f32 %v3409, %v3409
    %v3426 = vmul.f32 %v3410, %v3410
    %v3427 = vsel %vm3121, %v3411, 0.0
    %3428 = vadd.xlane.f32.xlu0 %v3427
    %v3429 = vpop.xlane.xlu0 %3428
    %v3430 = vsel %vm3121, %v3412, 0.0
    %3431 = vadd.xlane.f32.xlu0 %v3430
    %v3432 = vpop.xlane.xlu0 %3431
    %v3433 = vsel %vm3121, %v3413, 0.0
    %3434 = vadd.xlane.f32.xlu0 %v3433
    %v3435 = vpop.xlane.xlu0 %3434
    %v3436 = vsel %vm3121, %v3414, 0.0
    %3437 = vadd.xlane.f32.xlu0 %v3436
    %v3438 = vpop.xlane.xlu0 %3437
    %v3439 = vsel %vm3121, %v3415, 0.0
    %3440 = vadd.xlane.f32.xlu0 %v3439
    %v3441 = vpop.xlane.xlu0 %3440
    %v3442 = vsel %vm3121, %v3416, 0.0
    %3443 = vadd.xlane.f32.xlu0 %v3442
    %v3444 = vpop.xlane.xlu0 %3443
    %v3445 = vsel %vm3121, %v3417, 0.0
    %3446 = vadd.xlane.f32.xlu0 %v3445
    %v3447 = vpop.xlane.xlu0 %3446
    %v3448 = vsel %vm3121, %v3418, 0.0
    %3449 = vadd.xlane.f32.xlu0 %v3448
    %v3450 = vpop.xlane.xlu0 %3449
    %v3451 = vsel %vm3121, %v3419, 0.0
    %3452 = vadd.xlane.f32.xlu0 %v3451
    %v3453 = vpop.xlane.xlu0 %3452
    %v3454 = vsel %vm3121, %v3420, 0.0
    %3455 = vadd.xlane.f32.xlu0 %v3454
    %v3456 = vpop.xlane.xlu0 %3455
    %v3457 = vsel %vm3121, %v3421, 0.0
    %3458 = vadd.xlane.f32.xlu0 %v3457
    %v3459 = vpop.xlane.xlu0 %3458
    %v3460 = vsel %vm3121, %v3422, 0.0
    %3461 = vadd.xlane.f32.xlu0 %v3460
    %v3462 = vpop.xlane.xlu0 %3461
    %v3463 = vsel %vm3121, %v3423, 0.0
    %3464 = vadd.xlane.f32.xlu0 %v3463
    %v3465 = vpop.xlane.xlu0 %3464
    %v3466 = vsel %vm3121, %v3424, 0.0
    %3467 = vadd.xlane.f32.xlu0 %v3466
    %v3468 = vpop.xlane.xlu0 %3467
    %v3469 = vsel %vm3121, %v3425, 0.0
    %3470 = vadd.xlane.f32.xlu0 %v3469
    %v3471 = vpop.xlane.xlu0 %3470
    %v3472 = vsel %vm3121, %v3426, 0.0
    %3473 = vadd.xlane.f32.xlu0 %v3472
    %v3474 = vpop.xlane.xlu0 %3473
    %v3475 = vadd.f32 %v3429, 0.0
    %v3476 = vadd.f32 %v3432, 0.0
    %v3477 = vadd.f32 %v3435, 0.0
    %v3478 = vadd.f32 %v3438, 0.0
    %v3479 = vadd.f32 %v3441, 0.0
    %v3480 = vadd.f32 %v3444, 0.0
    %v3481 = vadd.f32 %v3447, 0.0
    %v3482 = vadd.f32 %v3450, 0.0
    %v3483 = vadd.f32 %v3453, 0.0
    %v3484 = vadd.f32 %v3456, 0.0
    %v3485 = vadd.f32 %v3459, 0.0
    %v3486 = vadd.f32 %v3462, 0.0
    %v3487 = vadd.f32 %v3465, 0.0
    %v3488 = vadd.f32 %v3468, 0.0
    %v3489 = vadd.f32 %v3471, 0.0
    %v3490 = vadd.f32 %v3474, 0.0
    %v3491 = vsub.f32 %v1625, %v3379
    %v3492 = vsub.f32 %v1630, %v3380
    %v3493 = vsub.f32 %v1635, %v3381
    %v3494 = vsub.f32 %v1640, %v3382
    %v3495 = vsub.f32 %v1645, %v3383
    %v3496 = vsub.f32 %v1650, %v3384
    %v3497 = vsub.f32 %v1655, %v3385
    %v3498 = vsub.f32 %v1660, %v3386
    %v3499 = vsub.f32 %v1665, %v3387
    %v3500 = vsub.f32 %v1670, %v3388
    %v3501 = vsub.f32 %v1675, %v3389
    %v3502 = vsub.f32 %v1680, %v3390
    %v3503 = vsub.f32 %v1685, %v3391
    %v3504 = vsub.f32 %v1690, %v3392
    %v3505 = vsub.f32 %v1695, %v3393
    %v3506 = vsub.f32 %v1700, %v3394
    %v3507 = vmul.f32 %v3491, %v3491
    %v3508 = vmul.f32 %v3492, %v3492
    %v3509 = vmul.f32 %v3493, %v3493
    %v3510 = vmul.f32 %v3494, %v3494
    %v3511 = vmul.f32 %v3495, %v3495
    %v3512 = vmul.f32 %v3496, %v3496
    %v3513 = vmul.f32 %v3497, %v3497
    %v3514 = vmul.f32 %v3498, %v3498
    %v3515 = vmul.f32 %v3499, %v3499
    %v3516 = vmul.f32 %v3500, %v3500
    %v3517 = vmul.f32 %v3501, %v3501
    %v3518 = vmul.f32 %v3502, %v3502
    %v3519 = vmul.f32 %v3503, %v3503
    %v3520 = vmul.f32 %v3504, %v3504
    %v3521 = vmul.f32 %v3505, %v3505
    %v3522 = vmul.f32 %v3506, %v3506
    %v3523 = vsel %vm3121, %v3507, 0.0
    %3524 = vadd.xlane.f32.xlu0 %v3523
    %v3525 = vpop.xlane.xlu0 %3524
    %v3526 = vsel %vm3121, %v3508, 0.0
    %3527 = vadd.xlane.f32.xlu0 %v3526
    %v3528 = vpop.xlane.xlu0 %3527
    %v3529 = vsel %vm3121, %v3509, 0.0
    %3530 = vadd.xlane.f32.xlu0 %v3529
    %v3531 = vpop.xlane.xlu0 %3530
    %v3532 = vsel %vm3121, %v3510, 0.0
    %3533 = vadd.xlane.f32.xlu0 %v3532
    %v3534 = vpop.xlane.xlu0 %3533
    %v3535 = vsel %vm3121, %v3511, 0.0
    %3536 = vadd.xlane.f32.xlu0 %v3535
    %v3537 = vpop.xlane.xlu0 %3536
    %v3538 = vsel %vm3121, %v3512, 0.0
    %3539 = vadd.xlane.f32.xlu0 %v3538
    %v3540 = vpop.xlane.xlu0 %3539
    %v3541 = vsel %vm3121, %v3513, 0.0
    %3542 = vadd.xlane.f32.xlu0 %v3541
    %v3543 = vpop.xlane.xlu0 %3542
    %v3544 = vsel %vm3121, %v3514, 0.0
    %3545 = vadd.xlane.f32.xlu0 %v3544
    %v3546 = vpop.xlane.xlu0 %3545
    %v3547 = vsel %vm3121, %v3515, 0.0
    %3548 = vadd.xlane.f32.xlu0 %v3547
    %v3549 = vpop.xlane.xlu0 %3548
    %v3550 = vsel %vm3121, %v3516, 0.0
    %3551 = vadd.xlane.f32.xlu0 %v3550
    %v3552 = vpop.xlane.xlu0 %3551
    %v3553 = vsel %vm3121, %v3517, 0.0
    %3554 = vadd.xlane.f32.xlu0 %v3553
    %v3555 = vpop.xlane.xlu0 %3554
    %v3556 = vsel %vm3121, %v3518, 0.0
    %3557 = vadd.xlane.f32.xlu0 %v3556
    %v3558 = vpop.xlane.xlu0 %3557
    %v3559 = vsel %vm3121, %v3519, 0.0
    %3560 = vadd.xlane.f32.xlu0 %v3559
    %v3561 = vpop.xlane.xlu0 %3560
    %v3562 = vsel %vm3121, %v3520, 0.0
    %3563 = vadd.xlane.f32.xlu0 %v3562
    %v3564 = vpop.xlane.xlu0 %3563
    %v3565 = vsel %vm3121, %v3521, 0.0
    %3566 = vadd.xlane.f32.xlu0 %v3565
    %v3567 = vpop.xlane.xlu0 %3566
    %v3568 = vsel %vm3121, %v3522, 0.0
    %3569 = vadd.xlane.f32.xlu0 %v3568
    %v3570 = vpop.xlane.xlu0 %3569
    %v3571 = vadd.f32 %v3475, %v3525
    %v3572 = vadd.f32 %v3476, %v3528
    %v3573 = vadd.f32 %v3477, %v3531
    %v3574 = vadd.f32 %v3478, %v3534
    %v3575 = vadd.f32 %v3479, %v3537
    %v3576 = vadd.f32 %v3480, %v3540
    %v3577 = vadd.f32 %v3481, %v3543
    %v3578 = vadd.f32 %v3482, %v3546
    %v3579 = vadd.f32 %v3483, %v3549
    %v3580 = vadd.f32 %v3484, %v3552
    %v3581 = vadd.f32 %v3485, %v3555
    %v3582 = vadd.f32 %v3486, %v3558
    %v3583 = vadd.f32 %v3487, %v3561
    %v3584 = vadd.f32 %v3488, %v3564
    %v3585 = vadd.f32 %v3489, %v3567
    %v3586 = vadd.f32 %v3490, %v3570
    %v3587 = vsub.f32 %v2334, %v3379
    %v3588 = vsub.f32 %v2339, %v3380
    %v3589 = vsub.f32 %v2344, %v3381
    %v3590 = vsub.f32 %v2349, %v3382
    %v3591 = vsub.f32 %v2354, %v3383
    %v3592 = vsub.f32 %v2359, %v3384
    %v3593 = vsub.f32 %v2364, %v3385
    %v3594 = vsub.f32 %v2369, %v3386
    %v3595 = vsub.f32 %v2374, %v3387
    %v3596 = vsub.f32 %v2379, %v3388
    %v3597 = vsub.f32 %v2384, %v3389
    %v3598 = vsub.f32 %v2389, %v3390
    %v3599 = vsub.f32 %v2394, %v3391
    %v3600 = vsub.f32 %v2399, %v3392
    %v3601 = vsub.f32 %v2404, %v3393
    %v3602 = vsub.f32 %v2409, %v3394
    %v3603 = vmul.f32 %v3587, %v3587
    %v3604 = vmul.f32 %v3588, %v3588
    %v3605 = vmul.f32 %v3589, %v3589
    %v3606 = vmul.f32 %v3590, %v3590
    %v3607 = vmul.f32 %v3591, %v3591
    %v3608 = vmul.f32 %v3592, %v3592
    %v3609 = vmul.f32 %v3593, %v3593
    %v3610 = vmul.f32 %v3594, %v3594
    %v3611 = vmul.f32 %v3595, %v3595
    %v3612 = vmul.f32 %v3596, %v3596
    %v3613 = vmul.f32 %v3597, %v3597
    %v3614 = vmul.f32 %v3598, %v3598
    %v3615 = vmul.f32 %v3599, %v3599
    %v3616 = vmul.f32 %v3600, %v3600
    %v3617 = vmul.f32 %v3601, %v3601
    %v3618 = vmul.f32 %v3602, %v3602
    %v3619 = vsel %vm3121, %v3603, 0.0
    %3620 = vadd.xlane.f32.xlu0 %v3619
    %v3621 = vpop.xlane.xlu0 %3620
    %v3622 = vsel %vm3121, %v3604, 0.0
    %3623 = vadd.xlane.f32.xlu0 %v3622
    %v3624 = vpop.xlane.xlu0 %3623
    %v3625 = vsel %vm3121, %v3605, 0.0
    %3626 = vadd.xlane.f32.xlu0 %v3625
    %v3627 = vpop.xlane.xlu0 %3626
    %v3628 = vsel %vm3121, %v3606, 0.0
    %3629 = vadd.xlane.f32.xlu0 %v3628
    %v3630 = vpop.xlane.xlu0 %3629
    %v3631 = vsel %vm3121, %v3607, 0.0
    %3632 = vadd.xlane.f32.xlu0 %v3631
    %v3633 = vpop.xlane.xlu0 %3632
    %v3634 = vsel %vm3121, %v3608, 0.0
    %3635 = vadd.xlane.f32.xlu0 %v3634
    %v3636 = vpop.xlane.xlu0 %3635
    %v3637 = vsel %vm3121, %v3609, 0.0
    %3638 = vadd.xlane.f32.xlu0 %v3637
    %v3639 = vpop.xlane.xlu0 %3638
    %v3640 = vsel %vm3121, %v3610, 0.0
    %3641 = vadd.xlane.f32.xlu0 %v3640
    %v3642 = vpop.xlane.xlu0 %3641
    %v3643 = vsel %vm3121, %v3611, 0.0
    %3644 = vadd.xlane.f32.xlu0 %v3643
    %v3645 = vpop.xlane.xlu0 %3644
    %v3646 = vsel %vm3121, %v3612, 0.0
    %3647 = vadd.xlane.f32.xlu0 %v3646
    %v3648 = vpop.xlane.xlu0 %3647
    %v3649 = vsel %vm3121, %v3613, 0.0
    %3650 = vadd.xlane.f32.xlu0 %v3649
    %v3651 = vpop.xlane.xlu0 %3650
    %v3652 = vsel %vm3121, %v3614, 0.0
    %3653 = vadd.xlane.f32.xlu0 %v3652
    %v3654 = vpop.xlane.xlu0 %3653
    %v3655 = vsel %vm3121, %v3615, 0.0
    %3656 = vadd.xlane.f32.xlu0 %v3655
    %v3657 = vpop.xlane.xlu0 %3656
    %v3658 = vsel %vm3121, %v3616, 0.0
    %3659 = vadd.xlane.f32.xlu0 %v3658
    %v3660 = vpop.xlane.xlu0 %3659
    %v3661 = vsel %vm3121, %v3617, 0.0
    %3662 = vadd.xlane.f32.xlu0 %v3661
    %v3663 = vpop.xlane.xlu0 %3662
    %v3664 = vsel %vm3121, %v3618, 0.0
    %3665 = vadd.xlane.f32.xlu0 %v3664
    %v3666 = vpop.xlane.xlu0 %3665
    %v3667 = vadd.f32 %v3571, %v3621
    %v3668 = vadd.f32 %v3572, %v3624
    %v3669 = vadd.f32 %v3573, %v3627
    %v3670 = vadd.f32 %v3574, %v3630
    %v3671 = vadd.f32 %v3575, %v3633
    %v3672 = vadd.f32 %v3576, %v3636
    %v3673 = vadd.f32 %v3577, %v3639
    %v3674 = vadd.f32 %v3578, %v3642
    %v3675 = vadd.f32 %v3579, %v3645
    %v3676 = vadd.f32 %v3580, %v3648
    %v3677 = vadd.f32 %v3581, %v3651
    %v3678 = vadd.f32 %v3582, %v3654
    %v3679 = vadd.f32 %v3583, %v3657
    %v3680 = vadd.f32 %v3584, %v3660
    %v3681 = vadd.f32 %v3585, %v3663
    %v3682 = vadd.f32 %v3586, %v3666
    %v3683 = vsub.f32 %v3043, %v3379
    %v3684 = vsub.f32 %v3048, %v3380
    %v3685 = vsub.f32 %v3053, %v3381
    %v3686 = vsub.f32 %v3058, %v3382
    %v3687 = vsub.f32 %v3063, %v3383
    %v3688 = vsub.f32 %v3068, %v3384
    %v3689 = vsub.f32 %v3073, %v3385
    %v3690 = vsub.f32 %v3078, %v3386
    %v3691 = vsub.f32 %v3083, %v3387
    %v3692 = vsub.f32 %v3088, %v3388
    %v3693 = vsub.f32 %v3093, %v3389
    %v3694 = vsub.f32 %v3098, %v3390
    %v3695 = vsub.f32 %v3103, %v3391
    %v3696 = vsub.f32 %v3108, %v3392
    %v3697 = vsub.f32 %v3113, %v3393
    %v3698 = vsub.f32 %v3118, %v3394
    %v3699 = vmul.f32 %v3683, %v3683
    %v3700 = vmul.f32 %v3684, %v3684
    %v3701 = vmul.f32 %v3685, %v3685
    %v3702 = vmul.f32 %v3686, %v3686
    %v3703 = vmul.f32 %v3687, %v3687
    %v3704 = vmul.f32 %v3688, %v3688
    %v3705 = vmul.f32 %v3689, %v3689
    %v3706 = vmul.f32 %v3690, %v3690
    %v3707 = vmul.f32 %v3691, %v3691
    %v3708 = vmul.f32 %v3692, %v3692
    %v3709 = vmul.f32 %v3693, %v3693
    %v3710 = vmul.f32 %v3694, %v3694
    %v3711 = vmul.f32 %v3695, %v3695
    %v3712 = vmul.f32 %v3696, %v3696
    %v3713 = vmul.f32 %v3697, %v3697
    %v3714 = vmul.f32 %v3698, %v3698
    %v3715 = vsel %vm3121, %v3699, 0.0
    %3716 = vadd.xlane.f32.xlu0 %v3715
    %v3717 = vpop.xlane.xlu0 %3716
    %v3718 = vsel %vm3121, %v3700, 0.0
    %3719 = vadd.xlane.f32.xlu0 %v3718
    %v3720 = vpop.xlane.xlu0 %3719
    %v3721 = vsel %vm3121, %v3701, 0.0
    %3722 = vadd.xlane.f32.xlu0 %v3721
    %v3723 = vpop.xlane.xlu0 %3722
    %v3724 = vsel %vm3121, %v3702, 0.0
    %3725 = vadd.xlane.f32.xlu0 %v3724
    %v3726 = vpop.xlane.xlu0 %3725
    %v3727 = vsel %vm3121, %v3703, 0.0
    %3728 = vadd.xlane.f32.xlu0 %v3727
    %v3729 = vpop.xlane.xlu0 %3728
    %v3730 = vsel %vm3121, %v3704, 0.0
    %3731 = vadd.xlane.f32.xlu0 %v3730
    %v3732 = vpop.xlane.xlu0 %3731
    %v3733 = vsel %vm3121, %v3705, 0.0
    %3734 = vadd.xlane.f32.xlu0 %v3733
    %v3735 = vpop.xlane.xlu0 %3734
    %v3736 = vsel %vm3121, %v3706, 0.0
    %3737 = vadd.xlane.f32.xlu0 %v3736
    %v3738 = vpop.xlane.xlu0 %3737
    %v3739 = vsel %vm3121, %v3707, 0.0
    %3740 = vadd.xlane.f32.xlu0 %v3739
    %v3741 = vpop.xlane.xlu0 %3740
    %v3742 = vsel %vm3121, %v3708, 0.0
    %3743 = vadd.xlane.f32.xlu0 %v3742
    %v3744 = vpop.xlane.xlu0 %3743
    %v3745 = vsel %vm3121, %v3709, 0.0
    %3746 = vadd.xlane.f32.xlu0 %v3745
    %v3747 = vpop.xlane.xlu0 %3746
    %v3748 = vsel %vm3121, %v3710, 0.0
    %3749 = vadd.xlane.f32.xlu0 %v3748
    %v3750 = vpop.xlane.xlu0 %3749
    %v3751 = vsel %vm3121, %v3711, 0.0
    %3752 = vadd.xlane.f32.xlu0 %v3751
    %v3753 = vpop.xlane.xlu0 %3752
    %v3754 = vsel %vm3121, %v3712, 0.0
    %3755 = vadd.xlane.f32.xlu0 %v3754
    %v3756 = vpop.xlane.xlu0 %3755
    %v3757 = vsel %vm3121, %v3713, 0.0
    %3758 = vadd.xlane.f32.xlu0 %v3757
    %v3759 = vpop.xlane.xlu0 %3758
    %v3760 = vsel %vm3121, %v3714, 0.0
    %3761 = vadd.xlane.f32.xlu0 %v3760
    %v3762 = vpop.xlane.xlu0 %3761
    %v3763 = vadd.f32 %v3667, %v3717
    %v3764 = vadd.f32 %v3668, %v3720
    %v3765 = vadd.f32 %v3669, %v3723
    %v3766 = vadd.f32 %v3670, %v3726
    %v3767 = vadd.f32 %v3671, %v3729
    %v3768 = vadd.f32 %v3672, %v3732
    %v3769 = vadd.f32 %v3673, %v3735
    %v3770 = vadd.f32 %v3674, %v3738
    %v3771 = vadd.f32 %v3675, %v3741
    %v3772 = vadd.f32 %v3676, %v3744
    %v3773 = vadd.f32 %v3677, %v3747
    %v3774 = vadd.f32 %v3678, %v3750
    %v3775 = vadd.f32 %v3679, %v3753
    %v3776 = vadd.f32 %v3680, %v3756
    %v3777 = vadd.f32 %v3681, %v3759
    %v3778 = vadd.f32 %v3682, %v3762
    %v3779 = vmul.f32 %v3763, %v3378
    %v3780 = vmul.f32 %v3764, %v3378
    %v3781 = vmul.f32 %v3765, %v3378
    %v3782 = vmul.f32 %v3766, %v3378
    %v3783 = vmul.f32 %v3767, %v3378
    %v3784 = vmul.f32 %v3768, %v3378
    %v3785 = vmul.f32 %v3769, %v3378
    %v3786 = vmul.f32 %v3770, %v3378
    %v3787 = vmul.f32 %v3771, %v3378
    %v3788 = vmul.f32 %v3772, %v3378
    %v3789 = vmul.f32 %v3773, %v3378
    %v3790 = vmul.f32 %v3774, %v3378
    %v3791 = vmul.f32 %v3775, %v3378
    %v3792 = vmul.f32 %v3776, %v3378
    %v3793 = vmul.f32 %v3777, %v3378
    %v3794 = vmul.f32 %v3778, %v3378
    %v3795 = vadd.f32 %v3779, 1e-05
    %v3796 = vadd.f32 %v3780, 1e-05
    %v3797 = vadd.f32 %v3781, 1e-05
    %v3798 = vadd.f32 %v3782, 1e-05
    %v3799 = vadd.f32 %v3783, 1e-05
    %v3800 = vadd.f32 %v3784, 1e-05
    %v3801 = vadd.f32 %v3785, 1e-05
    %v3802 = vadd.f32 %v3786, 1e-05
    %v3803 = vadd.f32 %v3787, 1e-05
    %v3804 = vadd.f32 %v3788, 1e-05
    %v3805 = vadd.f32 %v3789, 1e-05
    %v3806 = vadd.f32 %v3790, 1e-05
    %v3807 = vadd.f32 %v3791, 1e-05
    %v3808 = vadd.f32 %v3792, 1e-05
    %v3809 = vadd.f32 %v3793, 1e-05
    %v3810 = vadd.f32 %v3794, 1e-05
    %v3811 = vrsqrt.pop %v3795
    %v3812 = vrsqrt.pop %v3796
    %v3813 = vrsqrt.pop %v3797
    %v3814 = vrsqrt.pop %v3798
    %v3815 = vrsqrt.pop %v3799
    %v3816 = vrsqrt.pop %v3800
    %v3817 = vrsqrt.pop %v3801
    %v3818 = vrsqrt.pop %v3802
    %v3819 = vrsqrt.pop %v3803
    %v3820 = vrsqrt.pop %v3804
    %v3821 = vrsqrt.pop %v3805
    %v3822 = vrsqrt.pop %v3806
    %v3823 = vrsqrt.pop %v3807
    %v3824 = vrsqrt.pop %v3808
    %v3825 = vrsqrt.pop %v3809
    %v3826 = vrsqrt.pop %v3810
    %v3827 = vld [vmem:[#allocation8] sm:$0xff]
    %v3828 = vld [vmem:[#allocation8 + $0x8] sm:$0xff]
    %v3829 = vld [vmem:[#allocation8 + $0x10] sm:$0xff]
    %v3830 = vld [vmem:[#allocation8 + $0x18] sm:$0xff]
    %v3831 = vld [vmem:[#allocation8 + $0x20] sm:$0xff]
    %v3832 = vld [vmem:[#allocation8 + $0x28] sm:$0xff]
    %v3833 = vld [vmem:[#allocation8 + $0x30] sm:$0xff]
    %v3834 = vld [vmem:[#allocation8 + $0x38] sm:$0xff]
    %v3835 = vld [vmem:[#allocation8 + $0x40] sm:$0xff]
    %v3836 = vld [vmem:[#allocation8 + $0x48] sm:$0xff]
    %v3837 = vld [vmem:[#allocation8 + $0x50] sm:$0xff]
    %v3838 = vld [vmem:[#allocation8 + $0x58] sm:$0xff]
    %v3839 = vld [vmem:[#allocation8 + $0x60] sm:$0xff]
    %v3840 = vld [vmem:[#allocation8 + $0x68] sm:$0xff]
    %v3841 = vld [vmem:[#allocation8 + $0x70] sm:$0xff]
    %v3842 = vld [vmem:[#allocation8 + $0x78] sm:$0xff]
    %v3843 = vmul.f32 %v3811, %v3827
    %v3844 = vmul.f32 %v3812, %v3828
    %v3845 = vmul.f32 %v3813, %v3829
    %v3846 = vmul.f32 %v3814, %v3830
    %v3847 = vmul.f32 %v3815, %v3831
    %v3848 = vmul.f32 %v3816, %v3832
    %v3849 = vmul.f32 %v3817, %v3833
    %v3850 = vmul.f32 %v3818, %v3834
    %v3851 = vmul.f32 %v3819, %v3835
    %v3852 = vmul.f32 %v3820, %v3836
    %v3853 = vmul.f32 %v3821, %v3837
    %v3854 = vmul.f32 %v3822, %v3838
    %v3855 = vmul.f32 %v3823, %v3839
    %v3856 = vmul.f32 %v3824, %v3840
    %v3857 = vmul.f32 %v3825, %v3841
    %v3858 = vmul.f32 %v3826, %v3842
    %v3859 = vld [vmem:[#allocation9] sm:$0xff]
    %v3860 = vld [vmem:[#allocation9 + $0x8] sm:$0xff]
    %v3861 = vld [vmem:[#allocation9 + $0x10] sm:$0xff]
    %v3862 = vld [vmem:[#allocation9 + $0x18] sm:$0xff]
    %v3863 = vld [vmem:[#allocation9 + $0x20] sm:$0xff]
    %v3864 = vld [vmem:[#allocation9 + $0x28] sm:$0xff]
    %v3865 = vld [vmem:[#allocation9 + $0x30] sm:$0xff]
    %v3866 = vld [vmem:[#allocation9 + $0x38] sm:$0xff]
    %v3867 = vld [vmem:[#allocation9 + $0x40] sm:$0xff]
    %v3868 = vld [vmem:[#allocation9 + $0x48] sm:$0xff]
    %v3869 = vld [vmem:[#allocation9 + $0x50] sm:$0xff]
    %v3870 = vld [vmem:[#allocation9 + $0x58] sm:$0xff]
    %v3871 = vld [vmem:[#allocation9 + $0x60] sm:$0xff]
    %v3872 = vld [vmem:[#allocation9 + $0x68] sm:$0xff]
    %v3873 = vld [vmem:[#allocation9 + $0x70] sm:$0xff]
    %v3874 = vld [vmem:[#allocation9 + $0x78] sm:$0xff]
    %v3875 = vld [vmem:[#allocation12] sm:$0xff]
    %v3876 = vld [vmem:[#allocation12 + $0x8] sm:$0xff]
    %v3877 = vld [vmem:[#allocation12 + $0x10] sm:$0xff]
    %v3878 = vld [vmem:[#allocation12 + $0x18] sm:$0xff]
    %v3879 = vld [vmem:[#allocation12 + $0x20] sm:$0xff]
    %v3880 = vld [vmem:[#allocation12 + $0x28] sm:$0xff]
    %v3881 = vld [vmem:[#allocation12 + $0x30] sm:$0xff]
    %v3882 = vld [vmem:[#allocation12 + $0x38] sm:$0xff]
    %v3883 = vld [vmem:[#allocation12 + $0x40] sm:$0xff]
    %v3884 = vld [vmem:[#allocation12 + $0x48] sm:$0xff]
    %v3885 = vld [vmem:[#allocation12 + $0x50] sm:$0xff]
    %v3886 = vld [vmem:[#allocation12 + $0x58] sm:$0xff]
    %v3887 = vld [vmem:[#allocation12 + $0x60] sm:$0xff]
    %v3888 = vld [vmem:[#allocation12 + $0x68] sm:$0xff]
    %v3889 = vld [vmem:[#allocation12 + $0x70] sm:$0xff]
    %v3890 = vld [vmem:[#allocation12 + $0x78] sm:$0xff]
    %v3891 = vld [vmem:[#allocation12 + $0x80] sm:$0xff]
    %v3892 = vld [vmem:[#allocation12 + $0x88] sm:$0xff]
    %v3893 = vld [vmem:[#allocation12 + $0x90] sm:$0xff]
    %v3894 = vld [vmem:[#allocation12 + $0x98] sm:$0xff]
    %v3895 = vld [vmem:[#allocation12 + $0xa0] sm:$0xff]
    %v3896 = vld [vmem:[#allocation12 + $0xa8] sm:$0xff]
    %v3897 = vld [vmem:[#allocation12 + $0xb0] sm:$0xff]
    %v3898 = vld [vmem:[#allocation12 + $0xb8] sm:$0xff]
    %v3899 = vld [vmem:[#allocation12 + $0xc0] sm:$0xff]
    %v3900 = vld [vmem:[#allocation12 + $0xc8] sm:$0xff]
    %v3901 = vld [vmem:[#allocation12 + $0xd0] sm:$0xff]
    %v3902 = vld [vmem:[#allocation12 + $0xd8] sm:$0xff]
    %v3903 = vld [vmem:[#allocation12 + $0xe0] sm:$0xff]
    %v3904 = vld [vmem:[#allocation12 + $0xe8] sm:$0xff]
    %v3905 = vld [vmem:[#allocation12 + $0xf0] sm:$0xff]
    %v3906 = vld [vmem:[#allocation12 + $0xf8] sm:$0xff]
    %v3907 = vld [vmem:[#allocation12 + $0x100] sm:$0xff]
    %v3908 = vld [vmem:[#allocation12 + $0x108] sm:$0xff]
    %v3909 = vld [vmem:[#allocation12 + $0x110] sm:$0xff]
    %v3910 = vld [vmem:[#allocation12 + $0x118] sm:$0xff]
    %v3911 = vld [vmem:[#allocation12 + $0x120] sm:$0xff]
    %v3912 = vld [vmem:[#allocation12 + $0x128] sm:$0xff]
    %v3913 = vld [vmem:[#allocation12 + $0x130] sm:$0xff]
    %v3914 = vld [vmem:[#allocation12 + $0x138] sm:$0xff]
    %v3915 = vld [vmem:[#allocation12 + $0x140] sm:$0xff]
    %v3916 = vld [vmem:[#allocation12 + $0x148] sm:$0xff]
    %v3917 = vld [vmem:[#allocation12 + $0x150] sm:$0xff]
    %v3918 = vld [vmem:[#allocation12 + $0x158] sm:$0xff]
    %v3919 = vld [vmem:[#allocation12 + $0x160] sm:$0xff]
    %v3920 = vld [vmem:[#allocation12 + $0x168] sm:$0xff]
    %v3921 = vld [vmem:[#allocation12 + $0x170] sm:$0xff]
    %v3922 = vld [vmem:[#allocation12 + $0x178] sm:$0xff]
    %v3923 = vld [vmem:[#allocation12 + $0x180] sm:$0xff]
    %v3924 = vld [vmem:[#allocation12 + $0x188] sm:$0xff]
    %v3925 = vld [vmem:[#allocation12 + $0x190] sm:$0xff]
    %v3926 = vld [vmem:[#allocation12 + $0x198] sm:$0xff]
    %v3927 = vld [vmem:[#allocation12 + $0x1a0] sm:$0xff]
    %v3928 = vld [vmem:[#allocation12 + $0x1a8] sm:$0xff]
    %v3929 = vld [vmem:[#allocation12 + $0x1b0] sm:$0xff]
    %v3930 = vld [vmem:[#allocation12 + $0x1b8] sm:$0xff]
    %v3931 = vld [vmem:[#allocation12 + $0x1c0] sm:$0xff]
    %v3932 = vld [vmem:[#allocation12 + $0x1c8] sm:$0xff]
    %v3933 = vld [vmem:[#allocation12 + $0x1d0] sm:$0xff]
    %v3934 = vld [vmem:[#allocation12 + $0x1d8] sm:$0xff]
    %v3935 = vld [vmem:[#allocation12 + $0x1e0] sm:$0xff]
    %v3936 = vld [vmem:[#allocation12 + $0x1e8] sm:$0xff]
    %v3937 = vld [vmem:[#allocation12 + $0x1f0] sm:$0xff]
    %v3938 = vld [vmem:[#allocation12 + $0x1f8] sm:$0xff]
    %v3939 = vld [vmem:[#allocation11] sm:$0xff]
    %v3940 = vld [vmem:[#allocation11 + $0x8] sm:$0xff]
    %v3941 = vld [vmem:[#allocation11 + $0x10] sm:$0xff]
    %v3942 = vld [vmem:[#allocation11 + $0x18] sm:$0xff]
    %v3943 = vld [vmem:[#allocation11 + $0x20] sm:$0xff]
    %v3944 = vld [vmem:[#allocation11 + $0x28] sm:$0xff]
    %v3945 = vld [vmem:[#allocation11 + $0x30] sm:$0xff]
    %v3946 = vld [vmem:[#allocation11 + $0x38] sm:$0xff]
    %v3947 = vld [vmem:[#allocation11 + $0x40] sm:$0xff]
    %v3948 = vld [vmem:[#allocation11 + $0x48] sm:$0xff]
    %v3949 = vld [vmem:[#allocation11 + $0x50] sm:$0xff]
    %v3950 = vld [vmem:[#allocation11 + $0x58] sm:$0xff]
    %v3951 = vld [vmem:[#allocation11 + $0x60] sm:$0xff]
    %v3952 = vld [vmem:[#allocation11 + $0x68] sm:$0xff]
    %v3953 = vld [vmem:[#allocation11 + $0x70] sm:$0xff]
    %v3954 = vld [vmem:[#allocation11 + $0x78] sm:$0xff]
    %v3955 = vld [vmem:[#allocation11 + $0x80] sm:$0xff]
    %v3956 = vld [vmem:[#allocation11 + $0x88] sm:$0xff]
    %v3957 = vld [vmem:[#allocation11 + $0x90] sm:$0xff]
    %v3958 = vld [vmem:[#allocation11 + $0x98] sm:$0xff]
    %v3959 = vld [vmem:[#allocation11 + $0xa0] sm:$0xff]
    %v3960 = vld [vmem:[#allocation11 + $0xa8] sm:$0xff]
    %v3961 = vld [vmem:[#allocation11 + $0xb0] sm:$0xff]
    %v3962 = vld [vmem:[#allocation11 + $0xb8] sm:$0xff]
    %v3963 = vld [vmem:[#allocation11 + $0xc0] sm:$0xff]
    %v3964 = vld [vmem:[#allocation11 + $0xc8] sm:$0xff]
    %v3965 = vld [vmem:[#allocation11 + $0xd0] sm:$0xff]
    %v3966 = vld [vmem:[#allocation11 + $0xd8] sm:$0xff]
    %v3967 = vld [vmem:[#allocation11 + $0xe0] sm:$0xff]
    %v3968 = vld [vmem:[#allocation11 + $0xe8] sm:$0xff]
    %v3969 = vld [vmem:[#allocation11 + $0xf0] sm:$0xff]
    %v3970 = vld [vmem:[#allocation11 + $0xf8] sm:$0xff]
    %v3971 = vld [vmem:[#allocation11 + $0x100] sm:$0xff]
    %v3972 = vld [vmem:[#allocation11 + $0x108] sm:$0xff]
    %v3973 = vld [vmem:[#allocation11 + $0x110] sm:$0xff]
    %v3974 = vld [vmem:[#allocation11 + $0x118] sm:$0xff]
    %v3975 = vld [vmem:[#allocation11 + $0x120] sm:$0xff]
    %v3976 = vld [vmem:[#allocation11 + $0x128] sm:$0xff]
    %v3977 = vld [vmem:[#allocation11 + $0x130] sm:$0xff]
    %v3978 = vld [vmem:[#allocation11 + $0x138] sm:$0xff]
    %v3979 = vld [vmem:[#allocation11 + $0x140] sm:$0xff]
    %v3980 = vld [vmem:[#allocation11 + $0x148] sm:$0xff]
    %v3981 = vld [vmem:[#allocation11 + $0x150] sm:$0xff]
    %v3982 = vld [vmem:[#allocation11 + $0x158] sm:$0xff]
    %v3983 = vld [vmem:[#allocation11 + $0x160] sm:$0xff]
    %v3984 = vld [vmem:[#allocation11 + $0x168] sm:$0xff]
    %v3985 = vld [vmem:[#allocation11 + $0x170] sm:$0xff]
    %v3986 = vld [vmem:[#allocation11 + $0x178] sm:$0xff]
    %v3987 = vld [vmem:[#allocation11 + $0x180] sm:$0xff]
    %v3988 = vld [vmem:[#allocation11 + $0x188] sm:$0xff]
    %v3989 = vld [vmem:[#allocation11 + $0x190] sm:$0xff]
    %v3990 = vld [vmem:[#allocation11 + $0x198] sm:$0xff]
    %v3991 = vld [vmem:[#allocation11 + $0x1a0] sm:$0xff]
    %v3992 = vld [vmem:[#allocation11 + $0x1a8] sm:$0xff]
    %v3993 = vld [vmem:[#allocation11 + $0x1b0] sm:$0xff]
    %v3994 = vld [vmem:[#allocation11 + $0x1b8] sm:$0xff]
    %v3995 = vld [vmem:[#allocation11 + $0x1c0] sm:$0xff]
    %v3996 = vld [vmem:[#allocation11 + $0x1c8] sm:$0xff]
    %v3997 = vld [vmem:[#allocation11 + $0x1d0] sm:$0xff]
    %v3998 = vld [vmem:[#allocation11 + $0x1d8] sm:$0xff]
    %v3999 = vld [vmem:[#allocation11 + $0x1e0] sm:$0xff]
    %v4000 = vld [vmem:[#allocation11 + $0x1e8] sm:$0xff]
    %v4001 = vld [vmem:[#allocation11 + $0x1f0] sm:$0xff]
    %v4002 = vld [vmem:[#allocation11 + $0x1f8] sm:$0xff]
    %4004 = vset.pattern.permute.xlu0 0
    %4005 = vperm.xlu0 %4004, %v3843
    %v4006 = vpop.permute.xlu0 %4005
    %4009 = vset.pattern.permute.xlu0 0
    %4010 = vperm.xlu0 %4009, %v3844
    %v4011 = vpop.permute.xlu0 %4010
    %4014 = vset.pattern.permute.xlu0 0
    %4015 = vperm.xlu0 %4014, %v3845
    %v4016 = vpop.permute.xlu0 %4015
    %4019 = vset.pattern.permute.xlu0 0
    %4020 = vperm.xlu0 %4019, %v3846
    %v4021 = vpop.permute.xlu0 %4020
    %4024 = vset.pattern.permute.xlu0 0
    %4025 = vperm.xlu0 %4024, %v3847
    %v4026 = vpop.permute.xlu0 %4025
    %4029 = vset.pattern.permute.xlu0 0
    %4030 = vperm.xlu0 %4029, %v3848
    %v4031 = vpop.permute.xlu0 %4030
    %4034 = vset.pattern.permute.xlu0 0
    %4035 = vperm.xlu0 %4034, %v3849
    %v4036 = vpop.permute.xlu0 %4035
    %4039 = vset.pattern.permute.xlu0 0
    %4040 = vperm.xlu0 %4039, %v3850
    %v4041 = vpop.permute.xlu0 %4040
    %4044 = vset.pattern.permute.xlu0 0
    %4045 = vperm.xlu0 %4044, %v3851
    %v4046 = vpop.permute.xlu0 %4045
    %4049 = vset.pattern.permute.xlu0 0
    %4050 = vperm.xlu0 %4049, %v3852
    %v4051 = vpop.permute.xlu0 %4050
    %4054 = vset.pattern.permute.xlu0 0
    %4055 = vperm.xlu0 %4054, %v3853
    %v4056 = vpop.permute.xlu0 %4055
    %4059 = vset.pattern.permute.xlu0 0
    %4060 = vperm.xlu0 %4059, %v3854
    %v4061 = vpop.permute.xlu0 %4060
    %4064 = vset.pattern.permute.xlu0 0
    %4065 = vperm.xlu0 %4064, %v3855
    %v4066 = vpop.permute.xlu0 %4065
    %4069 = vset.pattern.permute.xlu0 0
    %4070 = vperm.xlu0 %4069, %v3856
    %v4071 = vpop.permute.xlu0 %4070
    %4074 = vset.pattern.permute.xlu0 0
    %4075 = vperm.xlu0 %4074, %v3857
    %v4076 = vpop.permute.xlu0 %4075
    %4079 = vset.pattern.permute.xlu0 0
    %4080 = vperm.xlu0 %4079, %v3858
    %v4081 = vpop.permute.xlu0 %4080
    %v4083 = vmul.f32 %v3395, %v4006
    %v4084 = vmul.f32 %v3396, %v4011
    %v4085 = vmul.f32 %v3397, %v4016
    %v4086 = vmul.f32 %v3398, %v4021
    %v4087 = vmul.f32 %v3399, %v4026
    %v4088 = vmul.f32 %v3400, %v4031
    %v4089 = vmul.f32 %v3401, %v4036
    %v4090 = vmul.f32 %v3402, %v4041
    %v4091 = vmul.f32 %v3403, %v4046
    %v4092 = vmul.f32 %v3404, %v4051
    %v4093 = vmul.f32 %v3405, %v4056
    %v4094 = vmul.f32 %v3406, %v4061
    %v4095 = vmul.f32 %v3407, %v4066
    %v4096 = vmul.f32 %v3408, %v4071
    %v4097 = vmul.f32 %v3409, %v4076
    %v4098 = vmul.f32 %v3410, %v4081
    %4100 = vset.pattern.permute.xlu0 0
    %4101 = vperm.xlu0 %4100, %v3859
    %v4102 = vpop.permute.xlu0 %4101
    %4105 = vset.pattern.permute.xlu0 0
    %4106 = vperm.xlu0 %4105, %v3860
    %v4107 = vpop.permute.xlu0 %4106
    %4110 = vset.pattern.permute.xlu0 0
    %4111 = vperm.xlu0 %4110, %v3861
    %v4112 = vpop.permute.xlu0 %4111
    %4115 = vset.pattern.permute.xlu0 0
    %4116 = vperm.xlu0 %4115, %v3862
    %v4117 = vpop.permute.xlu0 %4116
    %4120 = vset.pattern.permute.xlu0 0
    %4121 = vperm.xlu0 %4120, %v3863
    %v4122 = vpop.permute.xlu0 %4121
    %4125 = vset.pattern.permute.xlu0 0
    %4126 = vperm.xlu0 %4125, %v3864
    %v4127 = vpop.permute.xlu0 %4126
    %4130 = vset.pattern.permute.xlu0 0
    %4131 = vperm.xlu0 %4130, %v3865
    %v4132 = vpop.permute.xlu0 %4131
    %4135 = vset.pattern.permute.xlu0 0
    %4136 = vperm.xlu0 %4135, %v3866
    %v4137 = vpop.permute.xlu0 %4136
    %4140 = vset.pattern.permute.xlu0 0
    %4141 = vperm.xlu0 %4140, %v3867
    %v4142 = vpop.permute.xlu0 %4141
    %4145 = vset.pattern.permute.xlu0 0
    %4146 = vperm.xlu0 %4145, %v3868
    %v4147 = vpop.permute.xlu0 %4146
    %4150 = vset.pattern.permute.xlu0 0
    %4151 = vperm.xlu0 %4150, %v3869
    %v4152 = vpop.permute.xlu0 %4151
    %4155 = vset.pattern.permute.xlu0 0
    %4156 = vperm.xlu0 %4155, %v3870
    %v4157 = vpop.permute.xlu0 %4156
    %4160 = vset.pattern.permute.xlu0 0
    %4161 = vperm.xlu0 %4160, %v3871
    %v4162 = vpop.permute.xlu0 %4161
    %4165 = vset.pattern.permute.xlu0 0
    %4166 = vperm.xlu0 %4165, %v3872
    %v4167 = vpop.permute.xlu0 %4166
    %4170 = vset.pattern.permute.xlu0 0
    %4171 = vperm.xlu0 %4170, %v3873
    %v4172 = vpop.permute.xlu0 %4171
    %4175 = vset.pattern.permute.xlu0 0
    %4176 = vperm.xlu0 %4175, %v3874
    %v4177 = vpop.permute.xlu0 %4176
    %v4179 = vadd.f32 %v4083, %v4102
    %v4180 = vadd.f32 %v4084, %v4107
    %v4181 = vadd.f32 %v4085, %v4112
    %v4182 = vadd.f32 %v4086, %v4117
    %v4183 = vadd.f32 %v4087, %v4122
    %v4184 = vadd.f32 %v4088, %v4127
    %v4185 = vadd.f32 %v4089, %v4132
    %v4186 = vadd.f32 %v4090, %v4137
    %v4187 = vadd.f32 %v4091, %v4142
    %v4188 = vadd.f32 %v4092, %v4147
    %v4189 = vadd.f32 %v4093, %v4152
    %v4190 = vadd.f32 %v4094, %v4157
    %v4191 = vadd.f32 %v4095, %v4162
    %v4192 = vadd.f32 %v4096, %v4167
    %v4193 = vadd.f32 %v4097, %v4172
    %v4194 = vadd.f32 %v4098, %v4177
    %vm4195 = vcmp.ge.f32.partialorder %v4179, 0.0
    %vm4196 = vcmp.ge.f32.partialorder %v4180, 0.0
    %vm4197 = vcmp.ge.f32.partialorder %v4181, 0.0
    %vm4198 = vcmp.ge.f32.partialorder %v4182, 0.0
    %vm4199 = vcmp.ge.f32.partialorder %v4183, 0.0
    %vm4200 = vcmp.ge.f32.partialorder %v4184, 0.0
    %vm4201 = vcmp.ge.f32.partialorder %v4185, 0.0
    %vm4202 = vcmp.ge.f32.partialorder %v4186, 0.0
    %vm4203 = vcmp.ge.f32.partialorder %v4187, 0.0
    %vm4204 = vcmp.ge.f32.partialorder %v4188, 0.0
    %vm4205 = vcmp.ge.f32.partialorder %v4189, 0.0
    %vm4206 = vcmp.ge.f32.partialorder %v4190, 0.0
    %vm4207 = vcmp.ge.f32.partialorder %v4191, 0.0
    %vm4208 = vcmp.ge.f32.partialorder %v4192, 0.0
    %vm4209 = vcmp.ge.f32.partialorder %v4193, 0.0
    %vm4210 = vcmp.ge.f32.partialorder %v4194, 0.0
    %v4211 = vmul.f32 %v4179, 0.2
    %v4212 = vmul.f32 %v4180, 0.2
    %v4213 = vmul.f32 %v4181, 0.2
    %v4214 = vmul.f32 %v4182, 0.2
    %v4215 = vmul.f32 %v4183, 0.2
    %v4216 = vmul.f32 %v4184, 0.2
    %v4217 = vmul.f32 %v4185, 0.2
    %v4218 = vmul.f32 %v4186, 0.2
    %v4219 = vmul.f32 %v4187, 0.2
    %v4220 = vmul.f32 %v4188, 0.2
    %v4221 = vmul.f32 %v4189, 0.2
    %v4222 = vmul.f32 %v4190, 0.2
    %v4223 = vmul.f32 %v4191, 0.2
    %v4224 = vmul.f32 %v4192, 0.2
    %v4225 = vmul.f32 %v4193, 0.2
    %v4226 = vmul.f32 %v4194, 0.2
    %v4227 = vsel %vm4195, %v4179, %v4211
    %v4228 = vsel %vm4196, %v4180, %v4212
    %v4229 = vsel %vm4197, %v4181, %v4213
    %v4230 = vsel %vm4198, %v4182, %v4214
    %v4231 = vsel %vm4199, %v4183, %v4215
    %v4232 = vsel %vm4200, %v4184, %v4216
    %v4233 = vsel %vm4201, %v4185, %v4217
    %v4234 = vsel %vm4202, %v4186, %v4218
    %v4235 = vsel %vm4203, %v4187, %v4219
    %v4236 = vsel %vm4204, %v4188, %v4220
    %v4237 = vsel %vm4205, %v4189, %v4221
    %v4238 = vsel %vm4206, %v4190, %v4222
    %v4239 = vsel %vm4207, %v4191, %v4223
    %v4240 = vsel %vm4208, %v4192, %v4224
    %v4241 = vsel %vm4209, %v4193, %v4225
    %v4242 = vsel %vm4210, %v4194, %v4226
    %v4243 = vld [vmem:[#allocation14] sm:$0xff]
    %v4244 = vld [vmem:[#allocation14 + $0x8] sm:$0xff]
    %v4245 = vld [vmem:[#allocation14 + $0x10] sm:$0xff]
    %v4246 = vld [vmem:[#allocation14 + $0x18] sm:$0xff]
    %v4247 = vld [vmem:[#allocation14 + $0x20] sm:$0xff]
    %v4248 = vld [vmem:[#allocation14 + $0x28] sm:$0xff]
    %v4249 = vld [vmem:[#allocation14 + $0x30] sm:$0xff]
    %v4250 = vld [vmem:[#allocation14 + $0x38] sm:$0xff]
    %v4251 = vld [vmem:[#allocation14 + $0x40] sm:$0xff]
    %v4252 = vld [vmem:[#allocation14 + $0x48] sm:$0xff]
    %v4253 = vld [vmem:[#allocation14 + $0x50] sm:$0xff]
    %v4254 = vld [vmem:[#allocation14 + $0x58] sm:$0xff]
    %v4255 = vld [vmem:[#allocation14 + $0x60] sm:$0xff]
    %v4256 = vld [vmem:[#allocation14 + $0x68] sm:$0xff]
    %v4257 = vld [vmem:[#allocation14 + $0x70] sm:$0xff]
    %v4258 = vld [vmem:[#allocation14 + $0x78] sm:$0xff]
    %4259 = vmatprep.subr.mxu0 0.0
    %4260 = vmatpush1.msra.mxu0 %v4227
    %4261 = vmatprep.subr.mxu0 0.0
    %4262 = vmatpush1.msra.mxu0 %v4228
    %4263 = vmatprep.subr.mxu0 0.0
    %4264 = vmatpush1.msra.mxu0 %v4229
    %4265 = vmatprep.subr.mxu0 0.0
    %4266 = vmatpush1.msra.mxu0 %v4230
    %4267 = vmatprep.subr.mxu0 0.0
    %4268 = vmatpush1.msra.mxu0 %v4231
    %4269 = vmatprep.subr.mxu0 0.0
    %4270 = vmatpush1.msra.mxu0 %v4232
    %4271 = vmatprep.subr.mxu0 0.0
    %4272 = vmatpush1.msra.mxu0 %v4233
    %4273 = vmatprep.subr.mxu0 0.0
    %4274 = vmatpush1.msra.mxu0 %v4234
    %4275 = vmatprep.subr.mxu0 0.0
    %4276 = vmatpush1.msra.mxu0 %v4235
    %4277 = vmatprep.subr.mxu0 0.0
    %4278 = vmatpush1.msra.mxu0 %v4236
    %4279 = vmatprep.subr.mxu0 0.0
    %4280 = vmatpush1.msra.mxu0 %v4237
    %4281 = vmatprep.subr.mxu0 0.0
    %4282 = vmatpush1.msra.mxu0 %v4238
    %4283 = vmatprep.subr.mxu0 0.0
    %4284 = vmatpush1.msra.mxu0 %v4239
    %4285 = vmatprep.subr.mxu0 0.0
    %4286 = vmatpush1.msra.mxu0 %v4240
    %4287 = vmatprep.subr.mxu0 0.0
    %4288 = vmatpush1.msra.mxu0 %v4241
    %4289 = vmatprep.subr.mxu0 0.0
    %4290 = vmatpush1.msra.mxu0 %v4242
    %4291 = vmatprep.subr.mxu0 0.0
    %4292 = vmatpush1.msra.mxu0 0.0
    %4293 = vmatprep.subr.mxu0 0.0
    %4294 = vmatpush1.msra.mxu0 0.0
    %4295 = vmatprep.subr.mxu0 0.0
    %4296 = vmatpush1.msra.mxu0 0.0
    %4297 = vmatprep.subr.mxu0 0.0
    %4298 = vmatpush1.msra.mxu0 0.0
    %4299 = vmatprep.subr.mxu0 0.0
    %4300 = vmatpush1.msra.mxu0 0.0
    %4301 = vmatprep.subr.mxu0 0.0
    %4302 = vmatpush1.msra.mxu0 0.0
    %4303 = vmatprep.subr.mxu0 0.0
    %4304 = vmatpush1.msra.mxu0 0.0
    %4305 = vmatprep.subr.mxu0 0.0
    %4306 = vmatpush1.msra.mxu0 0.0
    %4307 = vmatprep.subr.mxu0 0.0
    %4308 = vmatpush1.msra.mxu0 0.0
    %4309 = vmatprep.subr.mxu0 0.0
    %4310 = vmatpush1.msra.mxu0 0.0
    %4311 = vmatprep.subr.mxu0 0.0
    %4312 = vmatpush1.msra.mxu0 0.0
    %4313 = vmatprep.subr.mxu0 0.0
    %4314 = vmatpush1.msra.mxu0 0.0
    %4315 = vmatprep.subr.mxu0 0.0
    %4316 = vmatpush1.msra.mxu0 0.0
    %4317 = vmatprep.subr.mxu0 0.0
    %4318 = vmatpush1.msra.mxu0 0.0
    %4319 = vmatprep.subr.mxu0 0.0
    %4320 = vmatpush1.msra.mxu0 0.0
    %4321 = vmatprep.subr.mxu0 0.0
    %4322 = vmatpush1.msra.mxu0 0.0
    %4323 = vmatprep.mubr.f32.mxu0 0.0
    %4324 = vmatmul.mubr.f32.gmra.mrb[0].mxu0 %v4243
    %v4325 = vpop.f32.mrb[0].mxu0
    %v4326 = vadd.f32 0.0, %v4325
    %v4327 = vpop.f32.mrb[0].mxu0
    %4328 = vmatprep.mubr.f32.mxu0 0.0
    %4329 = vmatmul.mubr.f32.gmra.mrb[0].mxu0 %v4244
    %v4330 = vpop.f32.mrb[0].mxu0
    %v4331 = vadd.f32 0.0, %v4330
    %v4332 = vpop.f32.mrb[0].mxu0
    %4333 = vmatprep.mubr.f32.mxu0 0.0
    %4334 = vmatmul.mubr.f32.gmra.mrb[0].mxu0 %v4245
    %v4335 = vpop.f32.mrb[0].mxu0
    %v4336 = vadd.f32 0.0, %v4335
    %v4337 = vpop.f32.mrb[0].mxu0
    %4338 = vmatprep.mubr.f32.mxu0 0.0
    %4339 = vmatmul.mubr.f32.gmra.mrb[0].mxu0 %v4246
    %v4340 = vpop.f32.mrb[0].mxu0
    %v4341 = vadd.f32 0.0, %v4340
    %v4342 = vpop.f32.mrb[0].mxu0
    %4343 = vmatprep.mubr.f32.mxu0 0.0
    %4344 = vmatmul.mubr.f32.gmra.mrb[0].mxu0 %v4247
    %v4345 = vpop.f32.mrb[0].mxu0
    %v4346 = vadd.f32 0.0, %v4345
    %v4347 = vpop.f32.mrb[0].mxu0
    %4348 = vmatprep.mubr.f32.mxu0 0.0
    %4349 = vmatmul.mubr.f32.gmra.mrb[0].mxu0 %v4248
    %v4350 = vpop.f32.mrb[0].mxu0
    %v4351 = vadd.f32 0.0, %v4350
    %v4352 = vpop.f32.mrb[0].mxu0
    %4353 = vmatprep.mubr.f32.mxu0 0.0
    %4354 = vmatmul.mubr.f32.gmra.mrb[0].mxu0 %v4249
    %v4355 = vpop.f32.mrb[0].mxu0
    %v4356 = vadd.f32 0.0, %v4355
    %v4357 = vpop.f32.mrb[0].mxu0
    %4358 = vmatprep.mubr.f32.mxu0 0.0
    %4359 = vmatmul.mubr.f32.gmra.mrb[0].mxu0 %v4250
    %v4360 = vpop.f32.mrb[0].mxu0
    %v4361 = vadd.f32 0.0, %v4360
    %v4362 = vpop.f32.mrb[0].mxu0
    %4363 = vmatprep.mubr.f32.mxu0 0.0
    %4364 = vmatmul.mubr.f32.gmra.mrb[0].mxu0 %v4251
    %v4365 = vpop.f32.mrb[0].mxu0
    %v4366 = vadd.f32 0.0, %v4365
    %v4367 = vpop.f32.mrb[0].mxu0
    %4368 = vmatprep.mubr.f32.mxu0 0.0
    %4369 = vmatmul.mubr.f32.gmra.mrb[0].mxu0 %v4252
    %v4370 = vpop.f32.mrb[0].mxu0
    %v4371 = vadd.f32 0.0, %v4370
    %v4372 = vpop.f32.mrb[0].mxu0
    %4373 = vmatprep.mubr.f32.mxu0 0.0
    %4374 = vmatmul.mubr.f32.gmra.mrb[0].mxu0 %v4253
    %v4375 = vpop.f32.mrb[0].mxu0
    %v4376 = vadd.f32 0.0, %v4375
    %v4377 = vpop.f32.mrb[0].mxu0
    %4378 = vmatprep.mubr.f32.mxu0 0.0
    %4379 = vmatmul.mubr.f32.gmra.mrb[0].mxu0 %v4254
    %v4380 = vpop.f32.mrb[0].mxu0
    %v4381 = vadd.f32 0.0, %v4380
    %v4382 = vpop.f32.mrb[0].mxu0
    %4383 = vmatprep.mubr.f32.mxu0 0.0
    %4384 = vmatmul.mubr.f32.gmra.mrb[0].mxu0 %v4255
    %v4385 = vpop.f32.mrb[0].mxu0
    %v4386 = vadd.f32 0.0, %v4385
    %v4387 = vpop.f32.mrb[0].mxu0
    %4388 = vmatprep.mubr.f32.mxu0 0.0
    %4389 = vmatmul.mubr.f32.gmra.mrb[0].mxu0 %v4256
    %v4390 = vpop.f32.mrb[0].mxu0
    %v4391 = vadd.f32 0.0, %v4390
    %v4392 = vpop.f32.mrb[0].mxu0
    %4393 = vmatprep.mubr.f32.mxu0 0.0
    %4394 = vmatmul.mubr.f32.gmra.mrb[0].mxu0 %v4257
    %v4395 = vpop.f32.mrb[0].mxu0
    %v4396 = vadd.f32 0.0, %v4395
    %v4397 = vpop.f32.mrb[0].mxu0
    %4398 = vmatprep.mubr.f32.mxu0 0.0
    %4399 = vmatmul.mubr.f32.gmra.mrb[0].mxu0 %v4258
    %v4400 = vpop.f32.mrb[0].mxu0
    %v4401 = vadd.f32 0.0, %v4400
    %v4402 = vpop.f32.mrb[0].mxu0
    %4403 = vdwg.mxu0
    %4404 = vmatprep.subr.mxu0 0.0
    %4405 = vmatpush1.msra.mxu0 %v3939
    %4406 = vmatprep.subr.mxu0 0.0
    %4407 = vmatpush1.msra.mxu0 %v3940
    %4408 = vmatprep.subr.mxu0 0.0
    %4409 = vmatpush1.msra.mxu0 %v3941
    %4410 = vmatprep.subr.mxu0 0.0
    %4411 = vmatpush1.msra.mxu0 %v3942
    %4412 = vmatprep.subr.mxu0 0.0
    %4413 = vmatpush1.msra.mxu0 %v3943
    %4414 = vmatprep.subr.mxu0 0.0
    %4415 = vmatpush1.msra.mxu0 %v3944
    %4416 = vmatprep.subr.mxu0 0.0
    %4417 = vmatpush1.msra.mxu0 %v3945
    %4418 = vmatprep.subr.mxu0 0.0
    %4419 = vmatpush1.msra.mxu0 %v3946
    %4420 = vmatprep.subr.mxu0 0.0
    %4421 = vmatpush1.msra.mxu0 %v3947
    %4422 = vmatprep.subr.mxu0 0.0
    %4423 = vmatpush1.msra.mxu0 %v3948
    %4424 = vmatprep.subr.mxu0 0.0
    %4425 = vmatpush1.msra.mxu0 %v3949
    %4426 = vmatprep.subr.mxu0 0.0
    %4427 = vmatpush1.msra.mxu0 %v3950
    %4428 = vmatprep.subr.mxu0 0.0
    %4429 = vmatpush1.msra.mxu0 %v3951
    %4430 = vmatprep.subr.mxu0 0.0
    %4431 = vmatpush1.msra.mxu0 %v3952
    %4432 = vmatprep.subr.mxu0 0.0
    %4433 = vmatpush1.msra.mxu0 %v3953
    %4434 = vmatprep.subr.mxu0 0.0
    %4435 = vmatpush1.msra.mxu0 %v3954
    %4436 = vmatprep.subr.mxu0 0.0
    %4437 = vmatpush1.msra.mxu0 %v3955
    %4438 = vmatprep.subr.mxu0 0.0
    %4439 = vmatpush1.msra.mxu0 %v3956
    %4440 = vmatprep.subr.mxu0 0.0
    %4441 = vmatpush1.msra.mxu0 %v3957
    %4442 = vmatprep.subr.mxu0 0.0
    %4443 = vmatpush1.msra.mxu0 %v3958
    %4444 = vmatprep.subr.mxu0 0.0
    %4445 = vmatpush1.msra.mxu0 %v3959
    %4446 = vmatprep.subr.mxu0 0.0
    %4447 = vmatpush1.msra.mxu0 %v3960
    %4448 = vmatprep.subr.mxu0 0.0
    %4449 = vmatpush1.msra.mxu0 %v3961
    %4450 = vmatprep.subr.mxu0 0.0
    %4451 = vmatpush1.msra.mxu0 %v3962
    %4452 = vmatprep.subr.mxu0 0.0
    %4453 = vmatpush1.msra.mxu0 %v3963
    %4454 = vmatprep.subr.mxu0 0.0
    %4455 = vmatpush1.msra.mxu0 %v3964
    %4456 = vmatprep.subr.mxu0 0.0
    %4457 = vmatpush1.msra.mxu0 %v3965
    %4458 = vmatprep.subr.mxu0 0.0
    %4459 = vmatpush1.msra.mxu0 %v3966
    %4460 = vmatprep.subr.mxu0 0.0
    %4461 = vmatpush1.msra.mxu0 %v3967
    %4462 = vmatprep.subr.mxu0 0.0
    %4463 = vmatpush1.msra.mxu0 %v3968
    %4464 = vmatprep.subr.mxu0 0.0
    %4465 = vmatpush1.msra.mxu0 %v3969
    %4466 = vmatprep.subr.mxu0 0.0
    %4467 = vmatpush1.msra.mxu0 %v3970
    %4468 = vmatprep.mubr.f32.mxu0 %v3876
    %4469 = vmatmul.mubr.f32.gmra.mrb[0].mxu0 %v3875
    %v4470 = vpop.f32.mrb[0].mxu0
    %v4471 = vadd.f32 %v4326, %v4470
    %v4472 = vpop.f32.mrb[0].mxu0
    %4473 = vmatprep.mubr.f32.mxu0 %v3880
    %4474 = vmatmul.mubr.f32.gmra.mrb[0].mxu0 %v3879
    %v4475 = vpop.f32.mrb[0].mxu0
    %v4476 = vadd.f32 %v4331, %v4475
    %v4477 = vpop.f32.mrb[0].mxu0
    %4478 = vmatprep.mubr.f32.mxu0 %v3884
    %4479 = vmatmul.mubr.f32.gmra.mrb[0].mxu0 %v3883
    %v4480 = vpop.f32.mrb[0].mxu0
    %v4481 = vadd.f32 %v4336, %v4480
    %v4482 = vpop.f32.mrb[0].mxu0
    %4483 = vmatprep.mubr.f32.mxu0 %v3888
    %4484 = vmatmul.mubr.f32.gmra.mrb[0].mxu0 %v3887
    %v4485 = vpop.f32.mrb[0].mxu0
    %v4486 = vadd.f32 %v4341, %v4485
    %v4487 = vpop.f32.mrb[0].mxu0
    %4488 = vmatprep.mubr.f32.mxu0 %v3892
    %4489 = vmatmul.mubr.f32.gmra.mrb[0].mxu0 %v3891
    %v4490 = vpop.f32.mrb[0].mxu0
    %v4491 = vadd.f32 %v4346, %v4490
    %v4492 = vpop.f32.mrb[0].mxu0
    %4493 = vmatprep.mubr.f32.mxu0 %v3896
    %4494 = vmatmul.mubr.f32.gmra.mrb[0].mxu0 %v3895
    %v4495 = vpop.f32.mrb[0].mxu0
    %v4496 = vadd.f32 %v4351, %v4495
    %v4497 = vpop.f32.mrb[0].mxu0
    %4498 = vmatprep.mubr.f32.mxu0 %v3900
    %4499 = vmatmul.mubr.f32.gmra.mrb[0].mxu0 %v3899
    %v4500 = vpop.f32.mrb[0].mxu0
    %v4501 = vadd.f32 %v4356, %v4500
    %v4502 = vpop.f32.mrb[0].mxu0
    %4503 = vmatprep.mubr.f32.mxu0 %v3904
    %4504 = vmatmul.mubr.f32.gmra.mrb[0].mxu0 %v3903
    %v4505 = vpop.f32.mrb[0].mxu0
    %v4506 = vadd.f32 %v4361, %v4505
    %v4507 = vpop.f32.mrb[0].mxu0
    %4508 = vmatprep.mubr.f32.mxu0 %v3908
    %4509 = vmatmul.mubr.f32.gmra.mrb[0].mxu0 %v3907
    %v4510 = vpop.f32.mrb[0].mxu0
    %v4511 = vadd.f32 %v4366, %v4510
    %v4512 = vpop.f32.mrb[0].mxu0
    %4513 = vmatprep.mubr.f32.mxu0 %v3912
    %4514 = vmatmul.mubr.f32.gmra.mrb[0].mxu0 %v3911
    %v4515 = vpop.f32.mrb[0].mxu0
    %v4516 = vadd.f32 %v4371, %v4515
    %v4517 = vpop.f32.mrb[0].mxu0
    %4518 = vmatprep.mubr.f32.mxu0 %v3916
    %4519 = vmatmul.mubr.f32.gmra.mrb[0].mxu0 %v3915
    %v4520 = vpop.f32.mrb[0].mxu0
    %v4521 = vadd.f32 %v4376, %v4520
    %v4522 = vpop.f32.mrb[0].mxu0
    %4523 = vmatprep.mubr.f32.mxu0 %v3920
    %4524 = vmatmul.mubr.f32.gmra.mrb[0].mxu0 %v3919
    %v4525 = vpop.f32.mrb[0].mxu0
    %v4526 = vadd.f32 %v4381, %v4525
    %v4527 = vpop.f32.mrb[0].mxu0
    %4528 = vmatprep.mubr.f32.mxu0 %v3924
    %4529 = vmatmul.mubr.f32.gmra.mrb[0].mxu0 %v3923
    %v4530 = vpop.f32.mrb[0].mxu0
    %v4531 = vadd.f32 %v4386, %v4530
    %v4532 = vpop.f32.mrb[0].mxu0
    %4533 = vmatprep.mubr.f32.mxu0 %v3928
    %4534 = vmatmul.mubr.f32.gmra.mrb[0].mxu0 %v3927
    %v4535 = vpop.f32.mrb[0].mxu0
    %v4536 = vadd.f32 %v4391, %v4535
    %v4537 = vpop.f32.mrb[0].mxu0
    %4538 = vmatprep.mubr.f32.mxu0 %v3932
    %4539 = vmatmul.mubr.f32.gmra.mrb[0].mxu0 %v3931
    %v4540 = vpop.f32.mrb[0].mxu0
    %v4541 = vadd.f32 %v4396, %v4540
    %v4542 = vpop.f32.mrb[0].mxu0
    %4543 = vmatprep.mubr.f32.mxu0 %v3936
    %4544 = vmatmul.mubr.f32.gmra.mrb[0].mxu0 %v3935
    %v4545 = vpop.f32.mrb[0].mxu0
    %v4546 = vadd.f32 %v4401, %v4545
    %v4547 = vpop.f32.mrb[0].mxu0
    %4548 = vdwg.mxu0
    %4549 = vmatprep.subr.mxu0 0.0
    %4550 = vmatpush1.msra.mxu0 %v3971
    %4551 = vmatprep.subr.mxu0 0.0
    %4552 = vmatpush1.msra.mxu0 %v3972
    %4553 = vmatprep.subr.mxu0 0.0
    %4554 = vmatpush1.msra.mxu0 %v3973
    %4555 = vmatprep.subr.mxu0 0.0
    %4556 = vmatpush1.msra.mxu0 %v3974
    %4557 = vmatprep.subr.mxu0 0.0
    %4558 = vmatpush1.msra.mxu0 %v3975
    %4559 = vmatprep.subr.mxu0 0.0
    %4560 = vmatpush1.msra.mxu0 %v3976
    %4561 = vmatprep.subr.mxu0 0.0
    %4562 = vmatpush1.msra.mxu0 %v3977
    %4563 = vmatprep.subr.mxu0 0.0
    %4564 = vmatpush1.msra.mxu0 %v3978
    %4565 = vmatprep.subr.mxu0 0.0
    %4566 = vmatpush1.msra.mxu0 %v3979
    %4567 = vmatprep.subr.mxu0 0.0
    %4568 = vmatpush1.msra.mxu0 %v3980
    %4569 = vmatprep.subr.mxu0 0.0
    %4570 = vmatpush1.msra.mxu0 %v3981
    %4571 = vmatprep.subr.mxu0 0.0
    %4572 = vmatpush1.msra.mxu0 %v3982
    %4573 = vmatprep.subr.mxu0 0.0
    %4574 = vmatpush1.msra.mxu0 %v3983
    %4575 = vmatprep.subr.mxu0 0.0
    %4576 = vmatpush1.msra.mxu0 %v3984
    %4577 = vmatprep.subr.mxu0 0.0
    %4578 = vmatpush1.msra.mxu0 %v3985
    %4579 = vmatprep.subr.mxu0 0.0
    %4580 = vmatpush1.msra.mxu0 %v3986
    %4581 = vmatprep.subr.mxu0 0.0
    %4582 = vmatpush1.msra.mxu0 %v3987
    %4583 = vmatprep.subr.mxu0 0.0
    %4584 = vmatpush1.msra.mxu0 %v3988
    %4585 = vmatprep.subr.mxu0 0.0
    %4586 = vmatpush1.msra.mxu0 %v3989
    %4587 = vmatprep.subr.mxu0 0.0
    %4588 = vmatpush1.msra.mxu0 %v3990
    %4589 = vmatprep.subr.mxu0 0.0
    %4590 = vmatpush1.msra.mxu0 %v3991
    %4591 = vmatprep.subr.mxu0 0.0
    %4592 = vmatpush1.msra.mxu0 %v3992
    %4593 = vmatprep.subr.mxu0 0.0
    %4594 = vmatpush1.msra.mxu0 %v3993
    %4595 = vmatprep.subr.mxu0 0.0
    %4596 = vmatpush1.msra.mxu0 %v3994
    %4597 = vmatprep.subr.mxu0 0.0
    %4598 = vmatpush1.msra.mxu0 %v3995
    %4599 = vmatprep.subr.mxu0 0.0
    %4600 = vmatpush1.msra.mxu0 %v3996
    %4601 = vmatprep.subr.mxu0 0.0
    %4602 = vmatpush1.msra.mxu0 %v3997
    %4603 = vmatprep.subr.mxu0 0.0
    %4604 = vmatpush1.msra.mxu0 %v3998
    %4605 = vmatprep.subr.mxu0 0.0
    %4606 = vmatpush1.msra.mxu0 %v3999
    %4607 = vmatprep.subr.mxu0 0.0
    %4608 = vmatpush1.msra.mxu0 %v4000
    %4609 = vmatprep.subr.mxu0 0.0
    %4610 = vmatpush1.msra.mxu0 %v4001
    %4611 = vmatprep.subr.mxu0 0.0
    %4612 = vmatpush1.msra.mxu0 %v4002
    %4613 = vmatprep.mubr.f32.mxu0 %v3878
    %4614 = vmatmul.mubr.f32.gmra.mrb[0].mxu0 %v3877
    %v4615 = vpop.f32.mrb[0].mxu0
    %v4616 = vadd.f32 %v4471, %v4615
    %v4617 = vpop.f32.mrb[0].mxu0
    %4618 = vmatprep.mubr.f32.mxu0 %v3882
    %4619 = vmatmul.mubr.f32.gmra.mrb[0].mxu0 %v3881
    %v4620 = vpop.f32.mrb[0].mxu0
    %v4621 = vadd.f32 %v4476, %v4620
    %v4622 = vpop.f32.mrb[0].mxu0
    %4623 = vmatprep.mubr.f32.mxu0 %v3886
    %4624 = vmatmul.mubr.f32.gmra.mrb[0].mxu0 %v3885
    %v4625 = vpop.f32.mrb[0].mxu0
    %v4626 = vadd.f32 %v4481, %v4625
    %v4627 = vpop.f32.mrb[0].mxu0
    %4628 = vmatprep.mubr.f32.mxu0 %v3890
    %4629 = vmatmul.mubr.f32.gmra.mrb[0].mxu0 %v3889
    %v4630 = vpop.f32.mrb[0].mxu0
    %v4631 = vadd.f32 %v4486, %v4630
    %v4632 = vpop.f32.mrb[0].mxu0
    %4633 = vmatprep.mubr.f32.mxu0 %v3894
    %4634 = vmatmul.mubr.f32.gmra.mrb[0].mxu0 %v3893
    %v4635 = vpop.f32.mrb[0].mxu0
    %v4636 = vadd.f32 %v4491, %v4635
    %v4637 = vpop.f32.mrb[0].mxu0
    %4638 = vmatprep.mubr.f32.mxu0 %v3898
    %4639 = vmatmul.mubr.f32.gmra.mrb[0].mxu0 %v3897
    %v4640 = vpop.f32.mrb[0].mxu0
    %v4641 = vadd.f32 %v4496, %v4640
    %v4642 = vpop.f32.mrb[0].mxu0
    %4643 = vmatprep.mubr.f32.mxu0 %v3902
    %4644 = vmatmul.mubr.f32.gmra.mrb[0].mxu0 %v3901
    %v4645 = vpop.f32.mrb[0].mxu0
    %v4646 = vadd.f32 %v4501, %v4645
    %v4647 = vpop.f32.mrb[0].mxu0
    %4648 = vmatprep.mubr.f32.mxu0 %v3906
    %4649 = vmatmul.mubr.f32.gmra.mrb[0].mxu0 %v3905
    %v4650 = vpop.f32.mrb[0].mxu0
    %v4651 = vadd.f32 %v4506, %v4650
    %v4652 = vpop.f32.mrb[0].mxu0
    %4653 = vmatprep.mubr.f32.mxu0 %v3910
    %4654 = vmatmul.mubr.f32.gmra.mrb[0].mxu0 %v3909
    %v4655 = vpop.f32.mrb[0].mxu0
    %v4656 = vadd.f32 %v4511, %v4655
    %v4657 = vpop.f32.mrb[0].mxu0
    %4658 = vmatprep.mubr.f32.mxu0 %v3914
    %4659 = vmatmul.mubr.f32.gmra.mrb[0].mxu0 %v3913
    %v4660 = vpop.f32.mrb[0].mxu0
    %v4661 = vadd.f32 %v4516, %v4660
    %v4662 = vpop.f32.mrb[0].mxu0
    %4663 = vmatprep.mubr.f32.mxu0 %v3918
    %4664 = vmatmul.mubr.f32.gmra.mrb[0].mxu0 %v3917
    %v4665 = vpop.f32.mrb[0].mxu0
    %v4666 = vadd.f32 %v4521, %v4665
    %v4667 = vpop.f32.mrb[0].mxu0
    %4668 = vmatprep.mubr.f32.mxu0 %v3922
    %4669 = vmatmul.mubr.f32.gmra.mrb[0].mxu0 %v3921
    %v4670 = vpop.f32.mrb[0].mxu0
    %v4671 = vadd.f32 %v4526, %v4670
    %v4672 = vpop.f32.mrb[0].mxu0
    %4673 = vmatprep.mubr.f32.mxu0 %v3926
    %4674 = vmatmul.mubr.f32.gmra.mrb[0].mxu0 %v3925
    %v4675 = vpop.f32.mrb[0].mxu0
    %v4676 = vadd.f32 %v4531, %v4675
    %v4677 = vpop.f32.mrb[0].mxu0
    %4678 = vmatprep.mubr.f32.mxu0 %v3930
    %4679 = vmatmul.mubr.f32.gmra.mrb[0].mxu0 %v3929
    %v4680 = vpop.f32.mrb[0].mxu0
    %v4681 = vadd.f32 %v4536, %v4680
    %v4682 = vpop.f32.mrb[0].mxu0
    %4683 = vmatprep.mubr.f32.mxu0 %v3934
    %4684 = vmatmul.mubr.f32.gmra.mrb[0].mxu0 %v3933
    %v4685 = vpop.f32.mrb[0].mxu0
    %v4686 = vadd.f32 %v4541, %v4685
    %v4687 = vpop.f32.mrb[0].mxu0
    %4688 = vmatprep.mubr.f32.mxu0 %v3938
    %4689 = vmatmul.mubr.f32.gmra.mrb[0].mxu0 %v3937
    %v4690 = vpop.f32.mrb[0].mxu0
    %v4691 = vadd.f32 %v4546, %v4690
    %v4692 = vpop.f32.mrb[0].mxu0
    %4693 = vdwg.mxu0
    %v4694 = vmul.f32 %v3491, %v4006
    %v4695 = vmul.f32 %v3492, %v4011
    %v4696 = vmul.f32 %v3493, %v4016
    %v4697 = vmul.f32 %v3494, %v4021
    %v4698 = vmul.f32 %v3495, %v4026
    %v4699 = vmul.f32 %v3496, %v4031
    %v4700 = vmul.f32 %v3497, %v4036
    %v4701 = vmul.f32 %v3498, %v4041
    %v4702 = vmul.f32 %v3499, %v4046
    %v4703 = vmul.f32 %v3500, %v4051
    %v4704 = vmul.f32 %v3501, %v4056
    %v4705 = vmul.f32 %v3502, %v4061
    %v4706 = vmul.f32 %v3503, %v4066
    %v4707 = vmul.f32 %v3504, %v4071
    %v4708 = vmul.f32 %v3505, %v4076
    %v4709 = vmul.f32 %v3506, %v4081
    %v4710 = vadd.f32 %v4694, %v4102
    %v4711 = vadd.f32 %v4695, %v4107
    %v4712 = vadd.f32 %v4696, %v4112
    %v4713 = vadd.f32 %v4697, %v4117
    %v4714 = vadd.f32 %v4698, %v4122
    %v4715 = vadd.f32 %v4699, %v4127
    %v4716 = vadd.f32 %v4700, %v4132
    %v4717 = vadd.f32 %v4701, %v4137
    %v4718 = vadd.f32 %v4702, %v4142
    %v4719 = vadd.f32 %v4703, %v4147
    %v4720 = vadd.f32 %v4704, %v4152
    %v4721 = vadd.f32 %v4705, %v4157
    %v4722 = vadd.f32 %v4706, %v4162
    %v4723 = vadd.f32 %v4707, %v4167
    %v4724 = vadd.f32 %v4708, %v4172
    %v4725 = vadd.f32 %v4709, %v4177
    %vm4726 = vcmp.ge.f32.partialorder %v4710, 0.0
    %vm4727 = vcmp.ge.f32.partialorder %v4711, 0.0
    %vm4728 = vcmp.ge.f32.partialorder %v4712, 0.0
    %vm4729 = vcmp.ge.f32.partialorder %v4713, 0.0
    %vm4730 = vcmp.ge.f32.partialorder %v4714, 0.0
    %vm4731 = vcmp.ge.f32.partialorder %v4715, 0.0
    %vm4732 = vcmp.ge.f32.partialorder %v4716, 0.0
    %vm4733 = vcmp.ge.f32.partialorder %v4717, 0.0
    %vm4734 = vcmp.ge.f32.partialorder %v4718, 0.0
    %vm4735 = vcmp.ge.f32.partialorder %v4719, 0.0
    %vm4736 = vcmp.ge.f32.partialorder %v4720, 0.0
    %vm4737 = vcmp.ge.f32.partialorder %v4721, 0.0
    %vm4738 = vcmp.ge.f32.partialorder %v4722, 0.0
    %vm4739 = vcmp.ge.f32.partialorder %v4723, 0.0
    %vm4740 = vcmp.ge.f32.partialorder %v4724, 0.0
    %vm4741 = vcmp.ge.f32.partialorder %v4725, 0.0
    %v4742 = vmul.f32 %v4710, 0.2
    %v4743 = vmul.f32 %v4711, 0.2
    %v4744 = vmul.f32 %v4712, 0.2
    %v4745 = vmul.f32 %v4713, 0.2
    %v4746 = vmul.f32 %v4714, 0.2
    %v4747 = vmul.f32 %v4715, 0.2
    %v4748 = vmul.f32 %v4716, 0.2
    %v4749 = vmul.f32 %v4717, 0.2
    %v4750 = vmul.f32 %v4718, 0.2
    %v4751 = vmul.f32 %v4719, 0.2
    %v4752 = vmul.f32 %v4720, 0.2
    %v4753 = vmul.f32 %v4721, 0.2
    %v4754 = vmul.f32 %v4722, 0.2
    %v4755 = vmul.f32 %v4723, 0.2
    %v4756 = vmul.f32 %v4724, 0.2
    %v4757 = vmul.f32 %v4725, 0.2
    %v4758 = vsel %vm4726, %v4710, %v4742
    %v4759 = vsel %vm4727, %v4711, %v4743
    %v4760 = vsel %vm4728, %v4712, %v4744
    %v4761 = vsel %vm4729, %v4713, %v4745
    %v4762 = vsel %vm4730, %v4714, %v4746
    %v4763 = vsel %vm4731, %v4715, %v4747
    %v4764 = vsel %vm4732, %v4716, %v4748
    %v4765 = vsel %vm4733, %v4717, %v4749
    %v4766 = vsel %vm4734, %v4718, %v4750
    %v4767 = vsel %vm4735, %v4719, %v4751
    %v4768 = vsel %vm4736, %v4720, %v4752
    %v4769 = vsel %vm4737, %v4721, %v4753
    %v4770 = vsel %vm4738, %v4722, %v4754
    %v4771 = vsel %vm4739, %v4723, %v4755
    %v4772 = vsel %vm4740, %v4724, %v4756
    %v4773 = vsel %vm4741, %v4725, %v4757
    %s4774 = scalar_lea.vmem [#allocation14], 128
    %v4775 = vld [vmem:[%s4774] sm:$0xff]
    %v4776 = vld [vmem:[%s4774 + $0x8] sm:$0xff]
    %v4777 = vld [vmem:[%s4774 + $0x10] sm:$0xff]
    %v4778 = vld [vmem:[%s4774 + $0x18] sm:$0xff]
    %v4779 = vld [vmem:[%s4774 + $0x20] sm:$0xff]
    %v4780 = vld [vmem:[%s4774 + $0x28] sm:$0xff]
    %v4781 = vld [vmem:[%s4774 + $0x30] sm:$0xff]
    %v4782 = vld [vmem:[%s4774 + $0x38] sm:$0xff]
    %v4783 = vld [vmem:[%s4774 + $0x40] sm:$0xff]
    %v4784 = vld [vmem:[%s4774 + $0x48] sm:$0xff]
    %v4785 = vld [vmem:[%s4774 + $0x50] sm:$0xff]
    %v4786 = vld [vmem:[%s4774 + $0x58] sm:$0xff]
    %v4787 = vld [vmem:[%s4774 + $0x60] sm:$0xff]
    %v4788 = vld [vmem:[%s4774 + $0x68] sm:$0xff]
    %v4789 = vld [vmem:[%s4774 + $0x70] sm:$0xff]
    %v4790 = vld [vmem:[%s4774 + $0x78] sm:$0xff]
    %4791 = vmatprep.subr.mxu0 0.0
    %4792 = vmatpush1.msra.mxu0 %v4758
    %4793 = vmatprep.subr.mxu0 0.0
    %4794 = vmatpush1.msra.mxu0 %v4759
    %4795 = vmatprep.subr.mxu0 0.0
    %4796 = vmatpush1.msra.mxu0 %v4760
    %4797 = vmatprep.subr.mxu0 0.0
    %4798 = vmatpush1.msra.mxu0 %v4761
    %4799 = vmatprep.subr.mxu0 0.0
    %4800 = vmatpush1.msra.mxu0 %v4762
    %4801 = vmatprep.subr.mxu0 0.0
    %4802 = vmatpush1.msra.mxu0 %v4763
    %4803 = vmatprep.subr.mxu0 0.0
    %4804 = vmatpush1.msra.mxu0 %v4764
    %4805 = vmatprep.subr.mxu0 0.0
    %4806 = vmatpush1.msra.mxu0 %v4765
    %4807 = vmatprep.subr.mxu0 0.0
    %4808 = vmatpush1.msra.mxu0 %v4766
    %4809 = vmatprep.subr.mxu0 0.0
    %4810 = vmatpush1.msra.mxu0 %v4767
    %4811 = vmatprep.subr.mxu0 0.0
    %4812 = vmatpush1.msra.mxu0 %v4768
    %4813 = vmatprep.subr.mxu0 0.0
    %4814 = vmatpush1.msra.mxu0 %v4769
    %4815 = vmatprep.subr.mxu0 0.0
    %4816 = vmatpush1.msra.mxu0 %v4770
    %4817 = vmatprep.subr.mxu0 0.0
    %4818 = vmatpush1.msra.mxu0 %v4771
    %4819 = vmatprep.subr.mxu0 0.0
    %4820 = vmatpush1.msra.mxu0 %v4772
    %4821 = vmatprep.subr.mxu0 0.0
    %4822 = vmatpush1.msra.mxu0 %v4773
    %4823 = vmatprep.subr.mxu0 0.0
    %4824 = vmatpush1.msra.mxu0 0.0
    %4825 = vmatprep.subr.mxu0 0.0
    %4826 = vmatpush1.msra.mxu0 0.0
    %4827 = vmatprep.subr.mxu0 0.0
    %4828 = vmatpush1.msra.mxu0 0.0
    %4829 = vmatprep.subr.mxu0 0.0
    %4830 = vmatpush1.msra.mxu0 0.0
    %4831 = vmatprep.subr.mxu0 0.0
    %4832 = vmatpush1.msra.mxu0 0.0
    %4833 = vmatprep.subr.mxu0 0.0
    %4834 = vmatpush1.msra.mxu0 0.0
    %4835 = vmatprep.subr.mxu0 0.0
    %4836 = vmatpush1.msra.mxu0 0.0
    %4837 = vmatprep.subr.mxu0 0.0
    %4838 = vmatpush1.msra.mxu0 0.0
    %4839 = vmatprep.subr.mxu0 0.0
    %4840 = vmatpush1.msra.mxu0 0.0
    %4841 = vmatprep.subr.mxu0 0.0
    %4842 = vmatpush1.msra.mxu0 0.0
    %4843 = vmatprep.subr.mxu0 0.0
    %4844 = vmatpush1.msra.mxu0 0.0
    %4845 = vmatprep.subr.mxu0 0.0
    %4846 = vmatpush1.msra.mxu0 0.0
    %4847 = vmatprep.subr.mxu0 0.0
    %4848 = vmatpush1.msra.mxu0 0.0
    %4849 = vmatprep.subr.mxu0 0.0
    %4850 = vmatpush1.msra.mxu0 0.0
    %4851 = vmatprep.subr.mxu0 0.0
    %4852 = vmatpush1.msra.mxu0 0.0
    %4853 = vmatprep.subr.mxu0 0.0
    %4854 = vmatpush1.msra.mxu0 0.0
    %4855 = vmatprep.mubr.f32.mxu0 0.0
    %4856 = vmatmul.mubr.f32.gmra.mrb[0].mxu0 %v4775
    %v4857 = vpop.f32.mrb[0].mxu0
    %v4858 = vadd.f32 0.0, %v4857
    %v4859 = vpop.f32.mrb[0].mxu0
    %4860 = vmatprep.mubr.f32.mxu0 0.0
    %4861 = vmatmul.mubr.f32.gmra.mrb[0].mxu0 %v4776
    %v4862 = vpop.f32.mrb[0].mxu0
    %v4863 = vadd.f32 0.0, %v4862
    %v4864 = vpop.f32.mrb[0].mxu0
    %4865 = vmatprep.mubr.f32.mxu0 0.0
    %4866 = vmatmul.mubr.f32.gmra.mrb[0].mxu0 %v4777
    %v4867 = vpop.f32.mrb[0].mxu0
    %v4868 = vadd.f32 0.0, %v4867
    %v4869 = vpop.f32.mrb[0].mxu0
    %4870 = vmatprep.mubr.f32.mxu0 0.0
    %4871 = vmatmul.mubr.f32.gmra.mrb[0].mxu0 %v4778
    %v4872 = vpop.f32.mrb[0].mxu0
    %v4873 = vadd.f32 0.0, %v4872
    %v4874 = vpop.f32.mrb[0].mxu0
    %4875 = vmatprep.mubr.f32.mxu0 0.0
    %4876 = vmatmul.mubr.f32.gmra.mrb[0].mxu0 %v4779
    %v4877 = vpop.f32.mrb[0].mxu0
    %v4878 = vadd.f32 0.0, %v4877
    %v4879 = vpop.f32.mrb[0].mxu0
    %4880 = vmatprep.mubr.f32.mxu0 0.0
    %4881 = vmatmul.mubr.f32.gmra.mrb[0].mxu0 %v4780
    %v4882 = vpop.f32.mrb[0].mxu0
    %v4883 = vadd.f32 0.0, %v4882
    %v4884 = vpop.f32.mrb[0].mxu0
    %4885 = vmatprep.mubr.f32.mxu0 0.0
    %4886 = vmatmul.mubr.f32.gmra.mrb[0].mxu0 %v4781
    %v4887 = vpop.f32.mrb[0].mxu0
    %v4888 = vadd.f32 0.0, %v4887
    %v4889 = vpop.f32.mrb[0].mxu0
    %4890 = vmatprep.mubr.f32.mxu0 0.0
    %4891 = vmatmul.mubr.f32.gmra.mrb[0].mxu0 %v4782
    %v4892 = vpop.f32.mrb[0].mxu0
    %v4893 = vadd.f32 0.0, %v4892
    %v4894 = vpop.f32.mrb[0].mxu0
    %4895 = vmatprep.mubr.f32.mxu0 0.0
    %4896 = vmatmul.mubr.f32.gmra.mrb[0].mxu0 %v4783
    %v4897 = vpop.f32.mrb[0].mxu0
    %v4898 = vadd.f32 0.0, %v4897
    %v4899 = vpop.f32.mrb[0].mxu0
    %4900 = vmatprep.mubr.f32.mxu0 0.0
    %4901 = vmatmul.mubr.f32.gmra.mrb[0].mxu0 %v4784
    %v4902 = vpop.f32.mrb[0].mxu0
    %v4903 = vadd.f32 0.0, %v4902
    %v4904 = vpop.f32.mrb[0].mxu0
    %4905 = vmatprep.mubr.f32.mxu0 0.0
    %4906 = vmatmul.mubr.f32.gmra.mrb[0].mxu0 %v4785
    %v4907 = vpop.f32.mrb[0].mxu0
    %v4908 = vadd.f32 0.0, %v4907
    %v4909 = vpop.f32.mrb[0].mxu0
    %4910 = vmatprep.mubr.f32.mxu0 0.0
    %4911 = vmatmul.mubr.f32.gmra.mrb[0].mxu0 %v4786
    %v4912 = vpop.f32.mrb[0].mxu0
    %v4913 = vadd.f32 0.0, %v4912
    %v4914 = vpop.f32.mrb[0].mxu0
    %4915 = vmatprep.mubr.f32.mxu0 0.0
    %4916 = vmatmul.mubr.f32.gmra.mrb[0].mxu0 %v4787
    %v4917 = vpop.f32.mrb[0].mxu0
    %v4918 = vadd.f32 0.0, %v4917
    %v4919 = vpop.f32.mrb[0].mxu0
    %4920 = vmatprep.mubr.f32.mxu0 0.0
    %4921 = vmatmul.mubr.f32.gmra.mrb[0].mxu0 %v4788
    %v4922 = vpop.f32.mrb[0].mxu0
    %v4923 = vadd.f32 0.0, %v4922
    %v4924 = vpop.f32.mrb[0].mxu0
    %4925 = vmatprep.mubr.f32.mxu0 0.0
    %4926 = vmatmul.mubr.f32.gmra.mrb[0].mxu0 %v4789
    %v4927 = vpop.f32.mrb[0].mxu0
    %v4928 = vadd.f32 0.0, %v4927
    %v4929 = vpop.f32.mrb[0].mxu0
    %4930 = vmatprep.mubr.f32.mxu0 0.0
    %4931 = vmatmul.mubr.f32.gmra.mrb[0].mxu0 %v4790
    %v4932 = vpop.f32.mrb[0].mxu0
    %v4933 = vadd.f32 0.0, %v4932
    %v4934 = vpop.f32.mrb[0].mxu0
    %4935 = vdwg.mxu0
    %v4936 = vadd.f32 %v4616, %v4858
    %v4937 = vadd.f32 %v4621, %v4863
    %v4938 = vadd.f32 %v4626, %v4868
    %v4939 = vadd.f32 %v4631, %v4873
    %v4940 = vadd.f32 %v4636, %v4878
    %v4941 = vadd.f32 %v4641, %v4883
    %v4942 = vadd.f32 %v4646, %v4888
    %v4943 = vadd.f32 %v4651, %v4893
    %v4944 = vadd.f32 %v4656, %v4898
    %v4945 = vadd.f32 %v4661, %v4903
    %v4946 = vadd.f32 %v4666, %v4908
    %v4947 = vadd.f32 %v4671, %v4913
    %v4948 = vadd.f32 %v4676, %v4918
    %v4949 = vadd.f32 %v4681, %v4923
    %v4950 = vadd.f32 %v4686, %v4928
    %v4951 = vadd.f32 %v4691, %v4933
    %v4952 = vmul.f32 %v3587, %v4006
    %v4953 = vmul.f32 %v3588, %v4011
    %v4954 = vmul.f32 %v3589, %v4016
    %v4955 = vmul.f32 %v3590, %v4021
    %v4956 = vmul.f32 %v3591, %v4026
    %v4957 = vmul.f32 %v3592, %v4031
    %v4958 = vmul.f32 %v3593, %v4036
    %v4959 = vmul.f32 %v3594, %v4041
    %v4960 = vmul.f32 %v3595, %v4046
    %v4961 = vmul.f32 %v3596, %v4051
    %v4962 = vmul.f32 %v3597, %v4056
    %v4963 = vmul.f32 %v3598, %v4061
    %v4964 = vmul.f32 %v3599, %v4066
    %v4965 = vmul.f32 %v3600, %v4071
    %v4966 = vmul.f32 %v3601, %v4076
    %v4967 = vmul.f32 %v3602, %v4081
    %v4968 = vadd.f32 %v4952, %v4102
    %v4969 = vadd.f32 %v4953, %v4107
    %v4970 = vadd.f32 %v4954, %v4112
    %v4971 = vadd.f32 %v4955, %v4117
    %v4972 = vadd.f32 %v4956, %v4122
    %v4973 = vadd.f32 %v4957, %v4127
    %v4974 = vadd.f32 %v4958, %v4132
    %v4975 = vadd.f32 %v4959, %v4137
    %v4976 = vadd.f32 %v4960, %v4142
    %v4977 = vadd.f32 %v4961, %v4147
    %v4978 = vadd.f32 %v4962, %v4152
    %v4979 = vadd.f32 %v4963, %v4157
    %v4980 = vadd.f32 %v4964, %v4162
    %v4981 = vadd.f32 %v4965, %v4167
    %v4982 = vadd.f32 %v4966, %v4172
    %v4983 = vadd.f32 %v4967, %v4177
    %vm4984 = vcmp.ge.f32.partialorder %v4968, 0.0
    %vm4985 = vcmp.ge.f32.partialorder %v4969, 0.0
    %vm4986 = vcmp.ge.f32.partialorder %v4970, 0.0
    %vm4987 = vcmp.ge.f32.partialorder %v4971, 0.0
    %vm4988 = vcmp.ge.f32.partialorder %v4972, 0.0
    %vm4989 = vcmp.ge.f32.partialorder %v4973, 0.0
    %vm4990 = vcmp.ge.f32.partialorder %v4974, 0.0
    %vm4991 = vcmp.ge.f32.partialorder %v4975, 0.0
    %vm4992 = vcmp.ge.f32.partialorder %v4976, 0.0
    %vm4993 = vcmp.ge.f32.partialorder %v4977, 0.0
    %vm4994 = vcmp.ge.f32.partialorder %v4978, 0.0
    %vm4995 = vcmp.ge.f32.partialorder %v4979, 0.0
    %vm4996 = vcmp.ge.f32.partialorder %v4980, 0.0
    %vm4997 = vcmp.ge.f32.partialorder %v4981, 0.0
    %vm4998 = vcmp.ge.f32.partialorder %v4982, 0.0
    %vm4999 = vcmp.ge.f32.partialorder %v4983, 0.0
    %v5000 = vmul.f32 %v4968, 0.2
    %v5001 = vmul.f32 %v4969, 0.2
    %v5002 = vmul.f32 %v4970, 0.2
    %v5003 = vmul.f32 %v4971, 0.2
    %v5004 = vmul.f32 %v4972, 0.2
    %v5005 = vmul.f32 %v4973, 0.2
    %v5006 = vmul.f32 %v4974, 0.2
    %v5007 = vmul.f32 %v4975, 0.2
    %v5008 = vmul.f32 %v4976, 0.2
    %v5009 = vmul.f32 %v4977, 0.2
    %v5010 = vmul.f32 %v4978, 0.2
    %v5011 = vmul.f32 %v4979, 0.2
    %v5012 = vmul.f32 %v4980, 0.2
    %v5013 = vmul.f32 %v4981, 0.2
    %v5014 = vmul.f32 %v4982, 0.2
    %v5015 = vmul.f32 %v4983, 0.2
    %v5016 = vsel %vm4984, %v4968, %v5000
    %v5017 = vsel %vm4985, %v4969, %v5001
    %v5018 = vsel %vm4986, %v4970, %v5002
    %v5019 = vsel %vm4987, %v4971, %v5003
    %v5020 = vsel %vm4988, %v4972, %v5004
    %v5021 = vsel %vm4989, %v4973, %v5005
    %v5022 = vsel %vm4990, %v4974, %v5006
    %v5023 = vsel %vm4991, %v4975, %v5007
    %v5024 = vsel %vm4992, %v4976, %v5008
    %v5025 = vsel %vm4993, %v4977, %v5009
    %v5026 = vsel %vm4994, %v4978, %v5010
    %v5027 = vsel %vm4995, %v4979, %v5011
    %v5028 = vsel %vm4996, %v4980, %v5012
    %v5029 = vsel %vm4997, %v4981, %v5013
    %v5030 = vsel %vm4998, %v4982, %v5014
    %v5031 = vsel %vm4999, %v4983, %v5015
    %s5032 = scalar_lea.vmem [#allocation14], 256
    %v5033 = vld [vmem:[%s5032] sm:$0xff]
    %v5034 = vld [vmem:[%s5032 + $0x8] sm:$0xff]
    %v5035 = vld [vmem:[%s5032 + $0x10] sm:$0xff]
    %v5036 = vld [vmem:[%s5032 + $0x18] sm:$0xff]
    %v5037 = vld [vmem:[%s5032 + $0x20] sm:$0xff]
    %v5038 = vld [vmem:[%s5032 + $0x28] sm:$0xff]
    %v5039 = vld [vmem:[%s5032 + $0x30] sm:$0xff]
    %v5040 = vld [vmem:[%s5032 + $0x38] sm:$0xff]
    %v5041 = vld [vmem:[%s5032 + $0x40] sm:$0xff]
    %v5042 = vld [vmem:[%s5032 + $0x48] sm:$0xff]
    %v5043 = vld [vmem:[%s5032 + $0x50] sm:$0xff]
    %v5044 = vld [vmem:[%s5032 + $0x58] sm:$0xff]
    %v5045 = vld [vmem:[%s5032 + $0x60] sm:$0xff]
    %v5046 = vld [vmem:[%s5032 + $0x68] sm:$0xff]
    %v5047 = vld [vmem:[%s5032 + $0x70] sm:$0xff]
    %v5048 = vld [vmem:[%s5032 + $0x78] sm:$0xff]
    %5049 = vmatprep.subr.mxu0 0.0
    %5050 = vmatpush1.msra.mxu0 %v5016
    %5051 = vmatprep.subr.mxu0 0.0
    %5052 = vmatpush1.msra.mxu0 %v5017
    %5053 = vmatprep.subr.mxu0 0.0
    %5054 = vmatpush1.msra.mxu0 %v5018
    %5055 = vmatprep.subr.mxu0 0.0
    %5056 = vmatpush1.msra.mxu0 %v5019
    %5057 = vmatprep.subr.mxu0 0.0
    %5058 = vmatpush1.msra.mxu0 %v5020
    %5059 = vmatprep.subr.mxu0 0.0
    %5060 = vmatpush1.msra.mxu0 %v5021
    %5061 = vmatprep.subr.mxu0 0.0
    %5062 = vmatpush1.msra.mxu0 %v5022
    %5063 = vmatprep.subr.mxu0 0.0
    %5064 = vmatpush1.msra.mxu0 %v5023
    %5065 = vmatprep.subr.mxu0 0.0
    %5066 = vmatpush1.msra.mxu0 %v5024
    %5067 = vmatprep.subr.mxu0 0.0
    %5068 = vmatpush1.msra.mxu0 %v5025
    %5069 = vmatprep.subr.mxu0 0.0
    %5070 = vmatpush1.msra.mxu0 %v5026
    %5071 = vmatprep.subr.mxu0 0.0
    %5072 = vmatpush1.msra.mxu0 %v5027
    %5073 = vmatprep.subr.mxu0 0.0
    %5074 = vmatpush1.msra.mxu0 %v5028
    %5075 = vmatprep.subr.mxu0 0.0
    %5076 = vmatpush1.msra.mxu0 %v5029
    %5077 = vmatprep.subr.mxu0 0.0
    %5078 = vmatpush1.msra.mxu0 %v5030
    %5079 = vmatprep.subr.mxu0 0.0
    %5080 = vmatpush1.msra.mxu0 %v5031
    %5081 = vmatprep.subr.mxu0 0.0
    %5082 = vmatpush1.msra.mxu0 0.0
    %5083 = vmatprep.subr.mxu0 0.0
    %5084 = vmatpush1.msra.mxu0 0.0
    %5085 = vmatprep.subr.mxu0 0.0
    %5086 = vmatpush1.msra.mxu0 0.0
    %5087 = vmatprep.subr.mxu0 0.0
    %5088 = vmatpush1.msra.mxu0 0.0
    %5089 = vmatprep.subr.mxu0 0.0
    %5090 = vmatpush1.msra.mxu0 0.0
    %5091 = vmatprep.subr.mxu0 0.0
    %5092 = vmatpush1.msra.mxu0 0.0
    %5093 = vmatprep.subr.mxu0 0.0
    %5094 = vmatpush1.msra.mxu0 0.0
    %5095 = vmatprep.subr.mxu0 0.0
    %5096 = vmatpush1.msra.mxu0 0.0
    %5097 = vmatprep.subr.mxu0 0.0
    %5098 = vmatpush1.msra.mxu0 0.0
    %5099 = vmatprep.subr.mxu0 0.0
    %5100 = vmatpush1.msra.mxu0 0.0
    %5101 = vmatprep.subr.mxu0 0.0
    %5102 = vmatpush1.msra.mxu0 0.0
    %5103 = vmatprep.subr.mxu0 0.0
    %5104 = vmatpush1.msra.mxu0 0.0
    %5105 = vmatprep.subr.mxu0 0.0
    %5106 = vmatpush1.msra.mxu0 0.0
    %5107 = vmatprep.subr.mxu0 0.0
    %5108 = vmatpush1.msra.mxu0 0.0
    %5109 = vmatprep.subr.mxu0 0.0
    %5110 = vmatpush1.msra.mxu0 0.0
    %5111 = vmatprep.subr.mxu0 0.0
    %5112 = vmatpush1.msra.mxu0 0.0
    %5113 = vmatprep.mubr.f32.mxu0 0.0
    %5114 = vmatmul.mubr.f32.gmra.mrb[0].mxu0 %v5033
    %v5115 = vpop.f32.mrb[0].mxu0
    %v5116 = vadd.f32 0.0, %v5115
    %v5117 = vpop.f32.mrb[0].mxu0
    %5118 = vmatprep.mubr.f32.mxu0 0.0
    %5119 = vmatmul.mubr.f32.gmra.mrb[0].mxu0 %v5034
    %v5120 = vpop.f32.mrb[0].mxu0
    %v5121 = vadd.f32 0.0, %v5120
    %v5122 = vpop.f32.mrb[0].mxu0
    %5123 = vmatprep.mubr.f32.mxu0 0.0
    %5124 = vmatmul.mubr.f32.gmra.mrb[0].mxu0 %v5035
    %v5125 = vpop.f32.mrb[0].mxu0
    %v5126 = vadd.f32 0.0, %v5125
    %v5127 = vpop.f32.mrb[0].mxu0
    %5128 = vmatprep.mubr.f32.mxu0 0.0
    %5129 = vmatmul.mubr.f32.gmra.mrb[0].mxu0 %v5036
    %v5130 = vpop.f32.mrb[0].mxu0
    %v5131 = vadd.f32 0.0, %v5130
    %v5132 = vpop.f32.mrb[0].mxu0
    %5133 = vmatprep.mubr.f32.mxu0 0.0
    %5134 = vmatmul.mubr.f32.gmra.mrb[0].mxu0 %v5037
    %v5135 = vpop.f32.mrb[0].mxu0
    %v5136 = vadd.f32 0.0, %v5135
    %v5137 = vpop.f32.mrb[0].mxu0
    %5138 = vmatprep.mubr.f32.mxu0 0.0
    %5139 = vmatmul.mubr.f32.gmra.mrb[0].mxu0 %v5038
    %v5140 = vpop.f32.mrb[0].mxu0
    %v5141 = vadd.f32 0.0, %v5140
    %v5142 = vpop.f32.mrb[0].mxu0
    %5143 = vmatprep.mubr.f32.mxu0 0.0
    %5144 = vmatmul.mubr.f32.gmra.mrb[0].mxu0 %v5039
    %v5145 = vpop.f32.mrb[0].mxu0
    %v5146 = vadd.f32 0.0, %v5145
    %v5147 = vpop.f32.mrb[0].mxu0
    %5148 = vmatprep.mubr.f32.mxu0 0.0
    %5149 = vmatmul.mubr.f32.gmra.mrb[0].mxu0 %v5040
    %v5150 = vpop.f32.mrb[0].mxu0
    %v5151 = vadd.f32 0.0, %v5150
    %v5152 = vpop.f32.mrb[0].mxu0
    %5153 = vmatprep.mubr.f32.mxu0 0.0
    %5154 = vmatmul.mubr.f32.gmra.mrb[0].mxu0 %v5041
    %v5155 = vpop.f32.mrb[0].mxu0
    %v5156 = vadd.f32 0.0, %v5155
    %v5157 = vpop.f32.mrb[0].mxu0
    %5158 = vmatprep.mubr.f32.mxu0 0.0
    %5159 = vmatmul.mubr.f32.gmra.mrb[0].mxu0 %v5042
    %v5160 = vpop.f32.mrb[0].mxu0
    %v5161 = vadd.f32 0.0, %v5160
    %v5162 = vpop.f32.mrb[0].mxu0
    %5163 = vmatprep.mubr.f32.mxu0 0.0
    %5164 = vmatmul.mubr.f32.gmra.mrb[0].mxu0 %v5043
    %v5165 = vpop.f32.mrb[0].mxu0
    %v5166 = vadd.f32 0.0, %v5165
    %v5167 = vpop.f32.mrb[0].mxu0
    %5168 = vmatprep.mubr.f32.mxu0 0.0
    %5169 = vmatmul.mubr.f32.gmra.mrb[0].mxu0 %v5044
    %v5170 = vpop.f32.mrb[0].mxu0
    %v5171 = vadd.f32 0.0, %v5170
    %v5172 = vpop.f32.mrb[0].mxu0
    %5173 = vmatprep.mubr.f32.mxu0 0.0
    %5174 = vmatmul.mubr.f32.gmra.mrb[0].mxu0 %v5045
    %v5175 = vpop.f32.mrb[0].mxu0
    %v5176 = vadd.f32 0.0, %v5175
    %v5177 = vpop.f32.mrb[0].mxu0
    %5178 = vmatprep.mubr.f32.mxu0 0.0
    %5179 = vmatmul.mubr.f32.gmra.mrb[0].mxu0 %v5046
    %v5180 = vpop.f32.mrb[0].mxu0
    %v5181 = vadd.f32 0.0, %v5180
    %v5182 = vpop.f32.mrb[0].mxu0
    %5183 = vmatprep.mubr.f32.mxu0 0.0
    %5184 = vmatmul.mubr.f32.gmra.mrb[0].mxu0 %v5047
    %v5185 = vpop.f32.mrb[0].mxu0
    %v5186 = vadd.f32 0.0, %v5185
    %v5187 = vpop.f32.mrb[0].mxu0
    %5188 = vmatprep.mubr.f32.mxu0 0.0
    %5189 = vmatmul.mubr.f32.gmra.mrb[0].mxu0 %v5048
    %v5190 = vpop.f32.mrb[0].mxu0
    %v5191 = vadd.f32 0.0, %v5190
    %v5192 = vpop.f32.mrb[0].mxu0
    %5193 = vdwg.mxu0
    %v5194 = vadd.f32 %v4936, %v5116
    %v5195 = vadd.f32 %v4937, %v5121
    %v5196 = vadd.f32 %v4938, %v5126
    %v5197 = vadd.f32 %v4939, %v5131
    %v5198 = vadd.f32 %v4940, %v5136
    %v5199 = vadd.f32 %v4941, %v5141
    %v5200 = vadd.f32 %v4942, %v5146
    %v5201 = vadd.f32 %v4943, %v5151
    %v5202 = vadd.f32 %v4944, %v5156
    %v5203 = vadd.f32 %v4945, %v5161
    %v5204 = vadd.f32 %v4946, %v5166
    %v5205 = vadd.f32 %v4947, %v5171
    %v5206 = vadd.f32 %v4948, %v5176
    %v5207 = vadd.f32 %v4949, %v5181
    %v5208 = vadd.f32 %v4950, %v5186
    %v5209 = vadd.f32 %v4951, %v5191
    %v5210 = vmul.f32 %v3683, %v4006
    %v5211 = vmul.f32 %v3684, %v4011
    %v5212 = vmul.f32 %v3685, %v4016
    %v5213 = vmul.f32 %v3686, %v4021
    %v5214 = vmul.f32 %v3687, %v4026
    %v5215 = vmul.f32 %v3688, %v4031
    %v5216 = vmul.f32 %v3689, %v4036
    %v5217 = vmul.f32 %v3690, %v4041
    %v5218 = vmul.f32 %v3691, %v4046
    %v5219 = vmul.f32 %v3692, %v4051
    %v5220 = vmul.f32 %v3693, %v4056
    %v5221 = vmul.f32 %v3694, %v4061
    %v5222 = vmul.f32 %v3695, %v4066
    %v5223 = vmul.f32 %v3696, %v4071
    %v5224 = vmul.f32 %v3697, %v4076
    %v5225 = vmul.f32 %v3698, %v4081
    %v5226 = vadd.f32 %v5210, %v4102
    %v5227 = vadd.f32 %v5211, %v4107
    %v5228 = vadd.f32 %v5212, %v4112
    %v5229 = vadd.f32 %v5213, %v4117
    %v5230 = vadd.f32 %v5214, %v4122
    %v5231 = vadd.f32 %v5215, %v4127
    %v5232 = vadd.f32 %v5216, %v4132
    %v5233 = vadd.f32 %v5217, %v4137
    %v5234 = vadd.f32 %v5218, %v4142
    %v5235 = vadd.f32 %v5219, %v4147
    %v5236 = vadd.f32 %v5220, %v4152
    %v5237 = vadd.f32 %v5221, %v4157
    %v5238 = vadd.f32 %v5222, %v4162
    %v5239 = vadd.f32 %v5223, %v4167
    %v5240 = vadd.f32 %v5224, %v4172
    %v5241 = vadd.f32 %v5225, %v4177
    %vm5242 = vcmp.ge.f32.partialorder %v5226, 0.0
    %vm5243 = vcmp.ge.f32.partialorder %v5227, 0.0
    %vm5244 = vcmp.ge.f32.partialorder %v5228, 0.0
    %vm5245 = vcmp.ge.f32.partialorder %v5229, 0.0
    %vm5246 = vcmp.ge.f32.partialorder %v5230, 0.0
    %vm5247 = vcmp.ge.f32.partialorder %v5231, 0.0
    %vm5248 = vcmp.ge.f32.partialorder %v5232, 0.0
    %vm5249 = vcmp.ge.f32.partialorder %v5233, 0.0
    %vm5250 = vcmp.ge.f32.partialorder %v5234, 0.0
    %vm5251 = vcmp.ge.f32.partialorder %v5235, 0.0
    %vm5252 = vcmp.ge.f32.partialorder %v5236, 0.0
    %vm5253 = vcmp.ge.f32.partialorder %v5237, 0.0
    %vm5254 = vcmp.ge.f32.partialorder %v5238, 0.0
    %vm5255 = vcmp.ge.f32.partialorder %v5239, 0.0
    %vm5256 = vcmp.ge.f32.partialorder %v5240, 0.0
    %vm5257 = vcmp.ge.f32.partialorder %v5241, 0.0
    %v5258 = vmul.f32 %v5226, 0.2
    %v5259 = vmul.f32 %v5227, 0.2
    %v5260 = vmul.f32 %v5228, 0.2
    %v5261 = vmul.f32 %v5229, 0.2
    %v5262 = vmul.f32 %v5230, 0.2
    %v5263 = vmul.f32 %v5231, 0.2
    %v5264 = vmul.f32 %v5232, 0.2
    %v5265 = vmul.f32 %v5233, 0.2
    %v5266 = vmul.f32 %v5234, 0.2
    %v5267 = vmul.f32 %v5235, 0.2
    %v5268 = vmul.f32 %v5236, 0.2
    %v5269 = vmul.f32 %v5237, 0.2
    %v5270 = vmul.f32 %v5238, 0.2
    %v5271 = vmul.f32 %v5239, 0.2
    %v5272 = vmul.f32 %v5240, 0.2
    %v5273 = vmul.f32 %v5241, 0.2
    %v5274 = vsel %vm5242, %v5226, %v5258
    %v5275 = vsel %vm5243, %v5227, %v5259
    %v5276 = vsel %vm5244, %v5228, %v5260
    %v5277 = vsel %vm5245, %v5229, %v5261
    %v5278 = vsel %vm5246, %v5230, %v5262
    %v5279 = vsel %vm5247, %v5231, %v5263
    %v5280 = vsel %vm5248, %v5232, %v5264
    %v5281 = vsel %vm5249, %v5233, %v5265
    %v5282 = vsel %vm5250, %v5234, %v5266
    %v5283 = vsel %vm5251, %v5235, %v5267
    %v5284 = vsel %vm5252, %v5236, %v5268
    %v5285 = vsel %vm5253, %v5237, %v5269
    %v5286 = vsel %vm5254, %v5238, %v5270
    %v5287 = vsel %vm5255, %v5239, %v5271
    %v5288 = vsel %vm5256, %v5240, %v5272
    %v5289 = vsel %vm5257, %v5241, %v5273
    %s5290 = scalar_lea.vmem [#allocation14], 384
    %v5291 = vld [vmem:[%s5290] sm:$0xff]
    %v5292 = vld [vmem:[%s5290 + $0x8] sm:$0xff]
    %v5293 = vld [vmem:[%s5290 + $0x10] sm:$0xff]
    %v5294 = vld [vmem:[%s5290 + $0x18] sm:$0xff]
    %v5295 = vld [vmem:[%s5290 + $0x20] sm:$0xff]
    %v5296 = vld [vmem:[%s5290 + $0x28] sm:$0xff]
    %v5297 = vld [vmem:[%s5290 + $0x30] sm:$0xff]
    %v5298 = vld [vmem:[%s5290 + $0x38] sm:$0xff]
    %v5299 = vld [vmem:[%s5290 + $0x40] sm:$0xff]
    %v5300 = vld [vmem:[%s5290 + $0x48] sm:$0xff]
    %v5301 = vld [vmem:[%s5290 + $0x50] sm:$0xff]
    %v5302 = vld [vmem:[%s5290 + $0x58] sm:$0xff]
    %v5303 = vld [vmem:[%s5290 + $0x60] sm:$0xff]
    %v5304 = vld [vmem:[%s5290 + $0x68] sm:$0xff]
    %v5305 = vld [vmem:[%s5290 + $0x70] sm:$0xff]
    %v5306 = vld [vmem:[%s5290 + $0x78] sm:$0xff]
    %5307 = vmatprep.subr.mxu0 0.0
    %5308 = vmatpush1.msra.mxu0 %v5274
    %5309 = vmatprep.subr.mxu0 0.0
    %5310 = vmatpush1.msra.mxu0 %v5275
    %5311 = vmatprep.subr.mxu0 0.0
    %5312 = vmatpush1.msra.mxu0 %v5276
    %5313 = vmatprep.subr.mxu0 0.0
    %5314 = vmatpush1.msra.mxu0 %v5277
    %5315 = vmatprep.subr.mxu0 0.0
    %5316 = vmatpush1.msra.mxu0 %v5278
    %5317 = vmatprep.subr.mxu0 0.0
    %5318 = vmatpush1.msra.mxu0 %v5279
    %5319 = vmatprep.subr.mxu0 0.0
    %5320 = vmatpush1.msra.mxu0 %v5280
    %5321 = vmatprep.subr.mxu0 0.0
    %5322 = vmatpush1.msra.mxu0 %v5281
    %5323 = vmatprep.subr.mxu0 0.0
    %5324 = vmatpush1.msra.mxu0 %v5282
    %5325 = vmatprep.subr.mxu0 0.0
    %5326 = vmatpush1.msra.mxu0 %v5283
    %5327 = vmatprep.subr.mxu0 0.0
    %5328 = vmatpush1.msra.mxu0 %v5284
    %5329 = vmatprep.subr.mxu0 0.0
    %5330 = vmatpush1.msra.mxu0 %v5285
    %5331 = vmatprep.subr.mxu0 0.0
    %5332 = vmatpush1.msra.mxu0 %v5286
    %5333 = vmatprep.subr.mxu0 0.0
    %5334 = vmatpush1.msra.mxu0 %v5287
    %5335 = vmatprep.subr.mxu0 0.0
    %5336 = vmatpush1.msra.mxu0 %v5288
    %5337 = vmatprep.subr.mxu0 0.0
    %5338 = vmatpush1.msra.mxu0 %v5289
    %5339 = vmatprep.subr.mxu0 0.0
    %5340 = vmatpush1.msra.mxu0 0.0
    %5341 = vmatprep.subr.mxu0 0.0
    %5342 = vmatpush1.msra.mxu0 0.0
    %5343 = vmatprep.subr.mxu0 0.0
    %5344 = vmatpush1.msra.mxu0 0.0
    %5345 = vmatprep.subr.mxu0 0.0
    %5346 = vmatpush1.msra.mxu0 0.0
    %5347 = vmatprep.subr.mxu0 0.0
    %5348 = vmatpush1.msra.mxu0 0.0
    %5349 = vmatprep.subr.mxu0 0.0
    %5350 = vmatpush1.msra.mxu0 0.0
    %5351 = vmatprep.subr.mxu0 0.0
    %5352 = vmatpush1.msra.mxu0 0.0
    %5353 = vmatprep.subr.mxu0 0.0
    %5354 = vmatpush1.msra.mxu0 0.0
    %5355 = vmatprep.subr.mxu0 0.0
    %5356 = vmatpush1.msra.mxu0 0.0
    %5357 = vmatprep.subr.mxu0 0.0
    %5358 = vmatpush1.msra.mxu0 0.0
    %5359 = vmatprep.subr.mxu0 0.0
    %5360 = vmatpush1.msra.mxu0 0.0
    %5361 = vmatprep.subr.mxu0 0.0
    %5362 = vmatpush1.msra.mxu0 0.0
    %5363 = vmatprep.subr.mxu0 0.0
    %5364 = vmatpush1.msra.mxu0 0.0
    %5365 = vmatprep.subr.mxu0 0.0
    %5366 = vmatpush1.msra.mxu0 0.0
    %5367 = vmatprep.subr.mxu0 0.0
    %5368 = vmatpush1.msra.mxu0 0.0
    %5369 = vmatprep.subr.mxu0 0.0
    %5370 = vmatpush1.msra.mxu0 0.0
    %5371 = vmatprep.mubr.f32.mxu0 0.0
    %5372 = vmatmul.mubr.f32.gmra.mrb[0].mxu0 %v5291
    %v5373 = vpop.f32.mrb[0].mxu0
    %v5374 = vadd.f32 0.0, %v5373
    %v5375 = vpop.f32.mrb[0].mxu0
    %5376 = vmatprep.mubr.f32.mxu0 0.0
    %5377 = vmatmul.mubr.f32.gmra.mrb[0].mxu0 %v5292
    %v5378 = vpop.f32.mrb[0].mxu0
    %v5379 = vadd.f32 0.0, %v5378
    %v5380 = vpop.f32.mrb[0].mxu0
    %5381 = vmatprep.mubr.f32.mxu0 0.0
    %5382 = vmatmul.mubr.f32.gmra.mrb[0].mxu0 %v5293
    %v5383 = vpop.f32.mrb[0].mxu0
    %v5384 = vadd.f32 0.0, %v5383
    %v5385 = vpop.f32.mrb[0].mxu0
    %5386 = vmatprep.mubr.f32.mxu0 0.0
    %5387 = vmatmul.mubr.f32.gmra.mrb[0].mxu0 %v5294
    %v5388 = vpop.f32.mrb[0].mxu0
    %v5389 = vadd.f32 0.0, %v5388
    %v5390 = vpop.f32.mrb[0].mxu0
    %5391 = vmatprep.mubr.f32.mxu0 0.0
    %5392 = vmatmul.mubr.f32.gmra.mrb[0].mxu0 %v5295
    %v5393 = vpop.f32.mrb[0].mxu0
    %v5394 = vadd.f32 0.0, %v5393
    %v5395 = vpop.f32.mrb[0].mxu0
    %5396 = vmatprep.mubr.f32.mxu0 0.0
    %5397 = vmatmul.mubr.f32.gmra.mrb[0].mxu0 %v5296
    %v5398 = vpop.f32.mrb[0].mxu0
    %v5399 = vadd.f32 0.0, %v5398
    %v5400 = vpop.f32.mrb[0].mxu0
    %5401 = vmatprep.mubr.f32.mxu0 0.0
    %5402 = vmatmul.mubr.f32.gmra.mrb[0].mxu0 %v5297
    %v5403 = vpop.f32.mrb[0].mxu0
    %v5404 = vadd.f32 0.0, %v5403
    %v5405 = vpop.f32.mrb[0].mxu0
    %5406 = vmatprep.mubr.f32.mxu0 0.0
    %5407 = vmatmul.mubr.f32.gmra.mrb[0].mxu0 %v5298
    %v5408 = vpop.f32.mrb[0].mxu0
    %v5409 = vadd.f32 0.0, %v5408
    %v5410 = vpop.f32.mrb[0].mxu0
    %5411 = vmatprep.mubr.f32.mxu0 0.0
    %5412 = vmatmul.mubr.f32.gmra.mrb[0].mxu0 %v5299
    %v5413 = vpop.f32.mrb[0].mxu0
    %v5414 = vadd.f32 0.0, %v5413
    %v5415 = vpop.f32.mrb[0].mxu0
    %5416 = vmatprep.mubr.f32.mxu0 0.0
    %5417 = vmatmul.mubr.f32.gmra.mrb[0].mxu0 %v5300
    %v5418 = vpop.f32.mrb[0].mxu0
    %v5419 = vadd.f32 0.0, %v5418
    %v5420 = vpop.f32.mrb[0].mxu0
    %5421 = vmatprep.mubr.f32.mxu0 0.0
    %5422 = vmatmul.mubr.f32.gmra.mrb[0].mxu0 %v5301
    %v5423 = vpop.f32.mrb[0].mxu0
    %v5424 = vadd.f32 0.0, %v5423
    %v5425 = vpop.f32.mrb[0].mxu0
    %5426 = vmatprep.mubr.f32.mxu0 0.0
    %5427 = vmatmul.mubr.f32.gmra.mrb[0].mxu0 %v5302
    %v5428 = vpop.f32.mrb[0].mxu0
    %v5429 = vadd.f32 0.0, %v5428
    %v5430 = vpop.f32.mrb[0].mxu0
    %5431 = vmatprep.mubr.f32.mxu0 0.0
    %5432 = vmatmul.mubr.f32.gmra.mrb[0].mxu0 %v5303
    %v5433 = vpop.f32.mrb[0].mxu0
    %v5434 = vadd.f32 0.0, %v5433
    %v5435 = vpop.f32.mrb[0].mxu0
    %5436 = vmatprep.mubr.f32.mxu0 0.0
    %5437 = vmatmul.mubr.f32.gmra.mrb[0].mxu0 %v5304
    %v5438 = vpop.f32.mrb[0].mxu0
    %v5439 = vadd.f32 0.0, %v5438
    %v5440 = vpop.f32.mrb[0].mxu0
    %5441 = vmatprep.mubr.f32.mxu0 0.0
    %5442 = vmatmul.mubr.f32.gmra.mrb[0].mxu0 %v5305
    %v5443 = vpop.f32.mrb[0].mxu0
    %v5444 = vadd.f32 0.0, %v5443
    %v5445 = vpop.f32.mrb[0].mxu0
    %5446 = vmatprep.mubr.f32.mxu0 0.0
    %5447 = vmatmul.mubr.f32.gmra.mrb[0].mxu0 %v5306
    %v5448 = vpop.f32.mrb[0].mxu0
    %v5449 = vadd.f32 0.0, %v5448
    %v5450 = vpop.f32.mrb[0].mxu0
    %5451 = vdwg.mxu0
    %v5452 = vadd.f32 %v5194, %v5374
    %v5453 = vadd.f32 %v5195, %v5379
    %v5454 = vadd.f32 %v5196, %v5384
    %v5455 = vadd.f32 %v5197, %v5389
    %v5456 = vadd.f32 %v5198, %v5394
    %v5457 = vadd.f32 %v5199, %v5399
    %v5458 = vadd.f32 %v5200, %v5404
    %v5459 = vadd.f32 %v5201, %v5409
    %v5460 = vadd.f32 %v5202, %v5414
    %v5461 = vadd.f32 %v5203, %v5419
    %v5462 = vadd.f32 %v5204, %v5424
    %v5463 = vadd.f32 %v5205, %v5429
    %v5464 = vadd.f32 %v5206, %v5434
    %v5465 = vadd.f32 %v5207, %v5439
    %v5466 = vadd.f32 %v5208, %v5444
    %v5467 = vadd.f32 %v5209, %v5449
    %v5468 = vld [vmem:[#allocation15] sm:$0xff]
    %v5469 = vld [vmem:[#allocation15 + $0x8] sm:$0xff]
    %v5470 = vld [vmem:[#allocation15 + $0x10] sm:$0xff]
    %v5471 = vld [vmem:[#allocation15 + $0x18] sm:$0xff]
    %v5472 = vld [vmem:[#allocation15 + $0x20] sm:$0xff]
    %v5473 = vld [vmem:[#allocation15 + $0x28] sm:$0xff]
    %v5474 = vld [vmem:[#allocation15 + $0x30] sm:$0xff]
    %v5475 = vld [vmem:[#allocation15 + $0x38] sm:$0xff]
    %v5476 = vld [vmem:[#allocation15 + $0x40] sm:$0xff]
    %v5477 = vld [vmem:[#allocation15 + $0x48] sm:$0xff]
    %v5478 = vld [vmem:[#allocation15 + $0x50] sm:$0xff]
    %v5479 = vld [vmem:[#allocation15 + $0x58] sm:$0xff]
    %v5480 = vld [vmem:[#allocation15 + $0x60] sm:$0xff]
    %v5481 = vld [vmem:[#allocation15 + $0x68] sm:$0xff]
    %v5482 = vld [vmem:[#allocation15 + $0x70] sm:$0xff]
    %v5483 = vld [vmem:[#allocation15 + $0x78] sm:$0xff]
    %5485 = vset.pattern.permute.xlu0 0
    %5486 = vperm.xlu0 %5485, %v5468
    %v5487 = vpop.permute.xlu0 %5486
    %5490 = vset.pattern.permute.xlu0 0
    %5491 = vperm.xlu0 %5490, %v5469
    %v5492 = vpop.permute.xlu0 %5491
    %5495 = vset.pattern.permute.xlu0 0
    %5496 = vperm.xlu0 %5495, %v5470
    %v5497 = vpop.permute.xlu0 %5496
    %5500 = vset.pattern.permute.xlu0 0
    %5501 = vperm.xlu0 %5500, %v5471
    %v5502 = vpop.permute.xlu0 %5501
    %5505 = vset.pattern.permute.xlu0 0
    %5506 = vperm.xlu0 %5505, %v5472
    %v5507 = vpop.permute.xlu0 %5506
    %5510 = vset.pattern.permute.xlu0 0
    %5511 = vperm.xlu0 %5510, %v5473
    %v5512 = vpop.permute.xlu0 %5511
    %5515 = vset.pattern.permute.xlu0 0
    %5516 = vperm.xlu0 %5515, %v5474
    %v5517 = vpop.permute.xlu0 %5516
    %5520 = vset.pattern.permute.xlu0 0
    %5521 = vperm.xlu0 %5520, %v5475
    %v5522 = vpop.permute.xlu0 %5521
    %5525 = vset.pattern.permute.xlu0 0
    %5526 = vperm.xlu0 %5525, %v5476
    %v5527 = vpop.permute.xlu0 %5526
    %5530 = vset.pattern.permute.xlu0 0
    %5531 = vperm.xlu0 %5530, %v5477
    %v5532 = vpop.permute.xlu0 %5531
    %5535 = vset.pattern.permute.xlu0 0
    %5536 = vperm.xlu0 %5535, %v5478
    %v5537 = vpop.permute.xlu0 %5536
    %5540 = vset.pattern.permute.xlu0 0
    %5541 = vperm.xlu0 %5540, %v5479
    %v5542 = vpop.permute.xlu0 %5541
    %5545 = vset.pattern.permute.xlu0 0
    %5546 = vperm.xlu0 %5545, %v5480
    %v5547 = vpop.permute.xlu0 %5546
    %5550 = vset.pattern.permute.xlu0 0
    %5551 = vperm.xlu0 %5550, %v5481
    %v5552 = vpop.permute.xlu0 %5551
    %5555 = vset.pattern.permute.xlu0 0
    %5556 = vperm.xlu0 %5555, %v5482
    %v5557 = vpop.permute.xlu0 %5556
    %5560 = vset.pattern.permute.xlu0 0
    %5561 = vperm.xlu0 %5560, %v5483
    %v5562 = vpop.permute.xlu0 %5561
    %v5564 = vadd.f32 %v5452, %v5487
    %v5565 = vadd.f32 %v5453, %v5492
    %v5566 = vadd.f32 %v5454, %v5497
    %v5567 = vadd.f32 %v5455, %v5502
    %v5568 = vadd.f32 %v5456, %v5507
    %v5569 = vadd.f32 %v5457, %v5512
    %v5570 = vadd.f32 %v5458, %v5517
    %v5571 = vadd.f32 %v5459, %v5522
    %v5572 = vadd.f32 %v5460, %v5527
    %v5573 = vadd.f32 %v5461, %v5532
    %v5574 = vadd.f32 %v5462, %v5537
    %v5575 = vadd.f32 %v5463, %v5542
    %v5576 = vadd.f32 %v5464, %v5547
    %v5577 = vadd.f32 %v5465, %v5552
    %v5578 = vadd.f32 %v5466, %v5557
    %v5579 = vadd.f32 %v5467, %v5562
    %vm5580 = vcmp.ge.f32.partialorder %v5564, 0.0
    %vm5581 = vcmp.ge.f32.partialorder %v5565, 0.0
    %vm5582 = vcmp.ge.f32.partialorder %v5566, 0.0
    %vm5583 = vcmp.ge.f32.partialorder %v5567, 0.0
    %vm5584 = vcmp.ge.f32.partialorder %v5568, 0.0
    %vm5585 = vcmp.ge.f32.partialorder %v5569, 0.0
    %vm5586 = vcmp.ge.f32.partialorder %v5570, 0.0
    %vm5587 = vcmp.ge.f32.partialorder %v5571, 0.0
    %vm5588 = vcmp.ge.f32.partialorder %v5572, 0.0
    %vm5589 = vcmp.ge.f32.partialorder %v5573, 0.0
    %vm5590 = vcmp.ge.f32.partialorder %v5574, 0.0
    %vm5591 = vcmp.ge.f32.partialorder %v5575, 0.0
    %vm5592 = vcmp.ge.f32.partialorder %v5576, 0.0
    %vm5593 = vcmp.ge.f32.partialorder %v5577, 0.0
    %vm5594 = vcmp.ge.f32.partialorder %v5578, 0.0
    %vm5595 = vcmp.ge.f32.partialorder %v5579, 0.0
    %v5596 = vmul.f32 %v5564, 0.2
    %v5597 = vmul.f32 %v5565, 0.2
    %v5598 = vmul.f32 %v5566, 0.2
    %v5599 = vmul.f32 %v5567, 0.2
    %v5600 = vmul.f32 %v5568, 0.2
    %v5601 = vmul.f32 %v5569, 0.2
    %v5602 = vmul.f32 %v5570, 0.2
    %v5603 = vmul.f32 %v5571, 0.2
    %v5604 = vmul.f32 %v5572, 0.2
    %v5605 = vmul.f32 %v5573, 0.2
    %v5606 = vmul.f32 %v5574, 0.2
    %v5607 = vmul.f32 %v5575, 0.2
    %v5608 = vmul.f32 %v5576, 0.2
    %v5609 = vmul.f32 %v5577, 0.2
    %v5610 = vmul.f32 %v5578, 0.2
    %v5611 = vmul.f32 %v5579, 0.2
    %v5612 = vsel %vm5580, %v5564, %v5596
    %v5613 = vsel %vm5581, %v5565, %v5597
    %v5614 = vsel %vm5582, %v5566, %v5598
    %v5615 = vsel %vm5583, %v5567, %v5599
    %v5616 = vsel %vm5584, %v5568, %v5600
    %v5617 = vsel %vm5585, %v5569, %v5601
    %v5618 = vsel %vm5586, %v5570, %v5602
    %v5619 = vsel %vm5587, %v5571, %v5603
    %v5620 = vsel %vm5588, %v5572, %v5604
    %v5621 = vsel %vm5589, %v5573, %v5605
    %v5622 = vsel %vm5590, %v5574, %v5606
    %v5623 = vsel %vm5591, %v5575, %v5607
    %v5624 = vsel %vm5592, %v5576, %v5608
    %v5625 = vsel %vm5593, %v5577, %v5609
    %v5626 = vsel %vm5594, %v5578, %v5610
    %v5627 = vsel %vm5595, %v5579, %v5611
    %v5628 = vld [vmem:[#allocation17] sm:$0x1]
    %v5629 = vld [vmem:[#allocation2] sm:$0x1]
    %5631 = vset.pattern.permute.xlu0 0
    %5632 = vperm.xlu0 %5631, %v5629
    %v5633 = vpop.permute.xlu0 %5632
    %v5635 = vlaneseq
    %v5636 = vshrl.u32 %v5635, 7
    %v5637 = vsub.s32 0, %v5636
    %v5638 = vrot.slane %v5633, %v5637
    %5639 = vmatprep.subr.mxu0 0.0
    %5640 = vmatpush1.msra.mxu0 %v5612
    %5641 = vmatprep.subr.mxu0 0.0
    %5642 = vmatpush1.msra.mxu0 %v5613
    %5643 = vmatprep.subr.mxu0 0.0
    %5644 = vmatpush1.msra.mxu0 %v5614
    %5645 = vmatprep.subr.mxu0 0.0
    %5646 = vmatpush1.msra.mxu0 %v5615
    %5647 = vmatprep.subr.mxu0 0.0
    %5648 = vmatpush1.msra.mxu0 %v5616
    %5649 = vmatprep.subr.mxu0 0.0
    %5650 = vmatpush1.msra.mxu0 %v5617
    %5651 = vmatprep.subr.mxu0 0.0
    %5652 = vmatpush1.msra.mxu0 %v5618
    %5653 = vmatprep.subr.mxu0 0.0
    %5654 = vmatpush1.msra.mxu0 %v5619
    %5655 = vmatprep.subr.mxu0 0.0
    %5656 = vmatpush1.msra.mxu0 %v5620
    %5657 = vmatprep.subr.mxu0 0.0
    %5658 = vmatpush1.msra.mxu0 %v5621
    %5659 = vmatprep.subr.mxu0 0.0
    %5660 = vmatpush1.msra.mxu0 %v5622
    %5661 = vmatprep.subr.mxu0 0.0
    %5662 = vmatpush1.msra.mxu0 %v5623
    %5663 = vmatprep.subr.mxu0 0.0
    %5664 = vmatpush1.msra.mxu0 %v5624
    %5665 = vmatprep.subr.mxu0 0.0
    %5666 = vmatpush1.msra.mxu0 %v5625
    %5667 = vmatprep.subr.mxu0 0.0
    %5668 = vmatpush1.msra.mxu0 %v5626
    %5669 = vmatprep.subr.mxu0 0.0
    %5670 = vmatpush1.msra.mxu0 %v5627
    %5671 = vmatprep.subr.mxu0 0.0
    %5672 = vmatpush1.msra.mxu0 0.0
    %5673 = vmatprep.subr.mxu0 0.0
    %5674 = vmatpush1.msra.mxu0 0.0
    %5675 = vmatprep.subr.mxu0 0.0
    %5676 = vmatpush1.msra.mxu0 0.0
    %5677 = vmatprep.subr.mxu0 0.0
    %5678 = vmatpush1.msra.mxu0 0.0
    %5679 = vmatprep.subr.mxu0 0.0
    %5680 = vmatpush1.msra.mxu0 0.0
    %5681 = vmatprep.subr.mxu0 0.0
    %5682 = vmatpush1.msra.mxu0 0.0
    %5683 = vmatprep.subr.mxu0 0.0
    %5684 = vmatpush1.msra.mxu0 0.0
    %5685 = vmatprep.subr.mxu0 0.0
    %5686 = vmatpush1.msra.mxu0 0.0
    %5687 = vmatprep.subr.mxu0 0.0
    %5688 = vmatpush1.msra.mxu0 0.0
    %5689 = vmatprep.subr.mxu0 0.0
    %5690 = vmatpush1.msra.mxu0 0.0
    %5691 = vmatprep.subr.mxu0 0.0
    %5692 = vmatpush1.msra.mxu0 0.0
    %5693 = vmatprep.subr.mxu0 0.0
    %5694 = vmatpush1.msra.mxu0 0.0
    %5695 = vmatprep.subr.mxu0 0.0
    %5696 = vmatpush1.msra.mxu0 0.0
    %5697 = vmatprep.subr.mxu0 0.0
    %5698 = vmatpush1.msra.mxu0 0.0
    %5699 = vmatprep.subr.mxu0 0.0
    %5700 = vmatpush1.msra.mxu0 0.0
    %5701 = vmatprep.subr.mxu0 0.0
    %5702 = vmatpush1.msra.mxu0 0.0
    %5703 = vmatprep.mubr.f32.mxu0 0.0
    %5704 = vmatmul.mubr.f32.gmra.mrb[0].mxu0 %v5628
    %v5705 = vpop.f32.mrb[0].mxu0
    %v5706 = vadd.f32 %v5638, %v5705
    %v5707 = vpop.f32.mrb[0].mxu0
    %5708 = vdwg.mxu0
    %v5709 = vxor.u32 %v5706, 2147483648
    %v5710 = vmul.f32 %v5709, 1.442695
    %v5711 = vpow.pop %v5710
    %v5712 = vadd.f32 %v5711, 1.0
    %v5713 = vrcp.pop %v5712
    %v5714 = vmul.f32 1.0, %v5713
    %vm5715 = vcmask 8192
    %5716 = vst.msk [vmem:[#allocation18] sm:$0x1] %vm5715, %v5714
    // Predicated region
    $region78: #{discriminator_forward.9} parent=1 // pred_check
      _
    $region79: #{discriminator_forward.9} parent=1 // pred_check_branch
      %5718 = sbr.rel (0) target = $region81
    $region80: #{discriminator_forward.9} parent=1 // pred_region
      %s5720 = ssub.s32 16, 16
      %5721 = vsyncadd [#allocation5], %s5720
      %s5723 = sshll.u32 [#allocation18], 4
      %s5724 = int_to_ptr.vmem [resolvable:$true] %s5723
      %5726 = dma.vmem_to_hbm [thread:$0]  %s5724, 16, %s10, [#allocation5]
    $region81: #{discriminator_forward.9} parent=1 // pred_fallthru
      _
    // Predicated region
    $region82: #{discriminator_forward.9} parent=1 // pred_check
      _
    $region83: #{discriminator_forward.9} parent=1 // pred_check_branch
      %5728 = sbr.rel (0) target = $region85
    $region84: #{discriminator_forward.9} parent=1 // pred_region
      %5729 = dma.done [#allocation5], 16
    $region85: #{discriminator_forward.9} parent=1 // pred_fallthru
      _
    %5730 = vsyncpa [#allocation4], 1
    %5731 = vsyncpa [#allocation7], 1
    %5732 = vsyncpa [#allocation10], 1
    %5733 = vsyncpa [#allocation13], 1
    %5734 = vsyncpa [#allocation16], 1
    %5735 = vsyncpa [#allocation5], 1

</llo_original>
